<compile_context>
chip_gen: v6e
topology: v6e:2x2x1
jax: 0.10.0
libtpu: 0.0.40
codegen_flags: <defaults>
</compile_context>

<pallas_src>
import math

import jax
import jax.numpy as jnp
from jax.experimental import pallas as pl
from jax.experimental.pallas import tpu as pltpu


def _pick_row_tile(H, target=16):
    """Largest divisor of H that is <= target (falls back to H)."""
    for d in range(min(target, H), 0, -1):
        if H % d == 0:
            return d
    return H


# ---------------------------------------------------------------------------
# Pure nearest-neighbor x2 upsample (with_conv=False path).
# ---------------------------------------------------------------------------
def _nearest_up_kernel(x_ref, o_ref):
    t = x_ref[...]                               # (TH, W, C)
    slab = jnp.concatenate([t, t], axis=-1)      # (TH, W, 2C): lanes [dw=0 | dw=1]
    o_ref[:, 0, :, :] = slab                     # output rows 2h
    o_ref[:, 1, :, :] = slab                     # output rows 2h+1


def nearest_upsample_x2(x_nhwc, row_tile=32):
    N, H, W, C = x_nhwc.shape
    TH = _pick_row_tile(H, row_tile)
    n_tiles = (N * H) // TH
    x_flat = x_nhwc.reshape(N * H, W, C)
    out = pl.pallas_call(
        _nearest_up_kernel,
        out_shape=jax.ShapeDtypeStruct((N * H, 2, W, 2 * C), x_nhwc.dtype),
        grid=(n_tiles,),
        in_specs=[pl.BlockSpec((TH, W, C), lambda i: (i, 0, 0))],
        out_specs=pl.BlockSpec((TH, 2, W, 2 * C), lambda i: (i, 0, 0, 0)),
        compiler_params=pltpu.CompilerParams(dimension_semantics=("parallel",)),
    )(x_flat)
    # (N*H, 2, W, 2, C) row-major == (N, 2H, 2W, C): pure metadata reshape.
    return out.reshape(N, 2 * H, 2 * W, C)


# ---------------------------------------------------------------------------
# Weight fold: 3x3 kernel on the nearest-x2 upsampled image  ->  12 tap
# matrices of shape (Cin, 2*Cout) acting directly on x.
#   tap index = (dh*2 + r)*3 + c
#     dh in {0,1} : output row parity
#     r  in {0,1} : row tap      -> x row  h + dh + r - 1
#     c  in {0,1,2}: column tap  -> x col  w + c - 1
#   lane halves of each tap: [dw=0 | dw=1]  (output column parity)
# ---------------------------------------------------------------------------
def _fold_upsample_conv_weights(w_hwio, compute_dtype):
    Cin, Cout = w_hwio.shape[2], w_hwio.shape[3]
    S = jnp.array([[[1., 0., 0.], [0., 1., 1.]],
                   [[1., 1., 0.], [0., 0., 1.]]], dtype=jnp.float32)
    # w_eff[dh, dw, r, s, i, o] = sum_{k,l} S[dh,r,k] S[dw,s,l] w3[k,l,i,o]
    w_eff = jnp.einsum("ark,bsl,klio->abrsio", S, S, w_hwio.astype(jnp.float32))
    w_stack = jnp.zeros((2, 2, 3, Cin, 2 * Cout), jnp.float32)
    for dh in (0, 1):
        for r in (0, 1):
            for c in (0, 1, 2):
                if c <= 1:   # dw=0 uses column shifts {-1, 0}  (s = c)
                    w_stack = w_stack.at[dh, r, c, :, :Cout].set(w_eff[dh, 0, r, c])
                if c >= 1:   # dw=1 uses column shifts {0, +1}  (s = c - 1)
                    w_stack = w_stack.at[dh, r, c, :, Cout:].set(w_eff[dh, 1, r, c - 1])
    return w_stack.reshape(12, Cin, 2 * Cout).astype(compute_dtype)


# ---------------------------------------------------------------------------
# Fused nearest-x2 + 3x3 "same" conv kernel (sub-pixel formulation).
# ---------------------------------------------------------------------------
def _make_upconv_kernel(TH, W, Cin, Cout, compute_dtype):
    cdt = compute_dtype

    def kernel(body_ref, top_ref, bot_ref, w_ref, b_ref, o_ref, xpad_ref):
        i = pl.program_id(1)
        n_h = pl.num_programs(1)

        # ---- build the H/W zero-padded tile in VMEM (cast to compute dtype).
        #      Border columns are re-zeroed every step (cheap, and safe under
        #      megacore grid splitting where each core has its own scratch). ----
        zcol = jnp.zeros((TH + 2, 1, Cin), dtype=cdt)
        xpad_ref[:, pl.ds(0, 1), :] = zcol
        xpad_ref[:, pl.ds(W + 1, 1), :] = zcol
        xpad_ref[pl.ds(1, TH), pl.ds(1, W), :] = body_ref[...].astype(cdt)

        top = top_ref[...].astype(cdt)                      # (1, W, Cin)
        top = jnp.where(i == 0, jnp.zeros_like(top), top)   # SAME pad @ image top
        xpad_ref[pl.ds(0, 1), pl.ds(1, W), :] = top

        bot = bot_ref[...].astype(cdt)                      # (1, W, Cin)
        bot = jnp.where(i == n_h - 1, jnp.zeros_like(bot), bot)  # @ image bottom
        xpad_ref[pl.ds(TH + 1, 1), pl.ds(1, W), :] = bot

        bias = b_ref[0, :].astype(jnp.float32)              # (2*Cout,) = [b | b]

        # ---- sub-pixel conv: per output row-parity dh, 6 fat MXU matmuls
        #      (Cin x 2*Cout) with f32 accumulation, accumulated directly in the
        #      store layout; ONE live accumulator at a time. ----
        for dh in (0, 1):
            acc = None
            for r in (0, 1):                 # row tap: xpad rows dh+r .. dh+r+TH-1
                a = dh + r
                for c in (0, 1, 2):          # column tap: xpad cols c .. c+W-1
                    patch = xpad_ref[pl.ds(a, TH), pl.ds(c, W), :]   # (TH, W, Cin)
                    wt = w_ref[(dh * 2 + r) * 3 + c]                 # (Cin, 2*Cout)
                    contrib = jnp.einsum("hwc,cd->hwd", patch, wt,
                                         preferred_element_type=jnp.float32)
                    acc = contrib if acc is None else acc + contrib
            # lanes of the slab = [dw=0 Cout | dw=1 Cout] -> free-reshape interleave
            o_ref[:, dh, :, :] = (acc + bias).astype(o_ref.dtype)

    return kernel


def _conv_vmem_budget(TH, W, Cin, Cout, x_bytes, c_bytes, o_bytes):
    body = TH * W * Cin * x_bytes
    halo = W * Cin * x_bytes
    wts = 12 * Cin * 2 * Cout * c_bytes
    bias = 2 * Cout * 4
    outb = TH * 2 * W * 2 * Cout * o_bytes
    xpad = (TH + 2) * (W + 2) * Cin * c_bytes
    acc = TH * W * 2 * Cout * 4
    need = 2 * (body + 2 * halo + wts + bias + outb) + xpad + acc
    # headroom for operand retiling / spills; clamp to a chip-portable range
    return int(min(max(2 * need + (4 << 20), 32 << 20), 100 << 20))


def upsample_conv3x3_subpixel(x_nhwc, w_hwio, bias, *, out_dtype=None,
                              compute_dtype=jnp.bfloat16, row_tile=16):
    N, H, W, Cin = x_nhwc.shape
    Cout = w_hwio.shape[-1]
    out_dtype = out_dtype or x_nhwc.dtype
    TH = _pick_row_tile(H, row_tile)
    n_h = H // TH
    total_rows = N * H

    w_stack = _fold_upsample_conv_weights(w_hwio, compute_dtype)
    bias2 = jnp.concatenate([bias, bias]).reshape(1, 2 * Cout).astype(jnp.float32)

    # x stays in its stored dtype (cast in-kernel; no wrapper-side HBM cast pass)
    # and is never materialized at 2H x 2W.
    x_flat = x_nhwc.reshape(total_rows, W, Cin)

    # Body tile + 1-row halos are all auto-pipelined BlockSpecs (clamped index
    # maps); clamped/garbage border halos are zero-overridden in-kernel.
    body_spec = pl.BlockSpec((TH, W, Cin), lambda n, i: (n * n_h + i, 0, 0))
    top_spec = pl.BlockSpec(
        (1, W, Cin), lambda n, i: (jnp.maximum(n * H + i * TH - 1, 0), 0, 0))
    bot_spec = pl.BlockSpec(
        (1, W, Cin),
        lambda n, i: (jnp.minimum(n * H + i * TH + TH, total_rows - 1), 0, 0))

    kernel = _make_upconv_kernel(TH, W, Cin, Cout, compute_dtype)
    vmem_bytes = _conv_vmem_budget(
        TH, W, Cin, Cout,
        jnp.dtype(x_nhwc.dtype).itemsize,
        jnp.dtype(compute_dtype).itemsize,
        jnp.dtype(out_dtype).itemsize)

    out = pl.pallas_call(
        kernel,
        out_shape=jax.ShapeDtypeStruct((total_rows, 2, W, 2 * Cout), out_dtype),
        grid_spec=pltpu.PrefetchScalarGridSpec(
            num_scalar_prefetch=0,
            grid=(N, n_h),
            in_specs=[body_spec, top_spec, bot_spec,
                      pl.BlockSpec((12, Cin, 2 * Cout), lambda n, i: (0, 0, 0)),
                      pl.BlockSpec((1, 2 * Cout), lambda n, i: (0, 0))],
            out_specs=pl.BlockSpec((TH, 2, W, 2 * Cout),
                                   lambda n, i: (n * n_h + i, 0, 0, 0)),
            scratch_shapes=[pltpu.VMEM((TH + 2, W + 2, Cin), compute_dtype)],
        ),
        compiler_params=pltpu.CompilerParams(
            dimension_semantics=("parallel", "parallel"),
            vmem_limit_bytes=vmem_bytes),
    )(x_flat, x_flat, x_flat, w_stack, bias2)
    # (N*H, 2, W, 2, Cout) row-major == (N, 2H, 2W, Cout): free reshape.
    return out.reshape(N, 2 * H, 2 * W, Cout)


# ---------------------------------------------------------------------------
# Module-level forward: matches Upsample.forward(x) with x in NCHW.
# TODO(synk): if the surrounding model is NHWC, skip these transposes (they
#             read/write the 4x-sized output and can dominate on v5e/v6e).
# ---------------------------------------------------------------------------
def upsample_forward(x_nchw, params, with_conv=True,
                     compute_dtype=jnp.bfloat16, row_tile=16):
    x = jnp.transpose(x_nchw, (0, 2, 3, 1))          # NCHW -> NHWC (C on lanes)
    if with_conv:
        y = upsample_conv3x3_subpixel(
            x, params["w"], params["b"],
            out_dtype=x_nchw.dtype, compute_dtype=compute_dtype,
            row_tile=row_tile)
    else:
        y = nearest_upsample_x2(x, row_tile=max(row_tile, 32))
    return jnp.transpose(y, (0, 3, 1, 2))            # NHWC -> NCHW


def init_upsample_params(key, in_channels):
    # Mirrors torch.nn.Conv2d default init bounds, stored in HWIO: (3,3,Cin,Cout).
    kw, kb = jax.random.split(key)
    fan_in = in_channels * 3 * 3
    bound = 1.0 / math.sqrt(fan_in)
    w = jax.random.uniform(
        kw, (3, 3, in_channels, in_channels), jnp.float32, -bound, bound)
    b = jax.random.uniform(kb, (in_channels,), jnp.float32, -bound, bound)
    return {"w": w, "b": b}


# ---------------------------------------------------------------------------
# Pure-JAX f32 reference for verification.
# ---------------------------------------------------------------------------
def upsample_reference(x_nchw, params, with_conv=True):
    x = jnp.repeat(jnp.repeat(x_nchw, 2, axis=2), 2, axis=3)
    if with_conv:
        x = jax.lax.conv_general_dilated(
            x, params["w"], window_strides=(1, 1), padding="SAME",
            dimension_numbers=("NCHW", "HWIO", "NCHW"),
            precision=jax.lax.Precision.HIGHEST,
        ) + params["b"][None, :, None, None]
    return x


if __name__ == "__main__":
    key = jax.random.PRNGKey(0)
    kx, kp = jax.random.split(key)

    N, C, H, W = 2, 4, 16, 16
    x = jax.random.normal(kx, (N, C, H, W), jnp.float32)
    params = init_upsample_params(kp, C)

    # with_conv=True path (fused upsample + 3x3 conv, bf16 MXU / f32 accum).
    y = jax.block_until_ready(upsample_forward(x, params, with_conv=True))
    y_ref = upsample_reference(x, params, with_conv=True)
    assert y.shape == (N, C, 2 * H, 2 * W)
    # bf16 operands -> compare against f32 reference with bf16-level tolerance.
    assert jnp.allclose(y, y_ref, rtol=5e-2, atol=5e-2), float(
        jnp.max(jnp.abs(y - y_ref)))

    # with_conv=False path (pure nearest upsample, exact).
    y2 = jax.block_until_ready(upsample_forward(x, params, with_conv=False))
    y2_ref = upsample_reference(x, params, with_conv=False)
    assert jnp.array_equal(y2, y2_ref), "nearest-upsample path mismatch"

    print("KERNEL_OK")
</pallas_src>

<mosaic_0001>
module attributes {stable_mosaic.version = 11 : i64} {
  func.func @kernel(%arg0: i32, %arg1: i32, %arg2: memref<16x16x4xf32, #tpu.memory_space<vmem>>, %arg3: memref<1x16x4xf32, #tpu.memory_space<vmem>>, %arg4: memref<1x16x4xf32, #tpu.memory_space<vmem>>, %arg5: memref<12x4x8xbf16, #tpu.memory_space<vmem>>, %arg6: memref<1x8xf32, #tpu.memory_space<vmem>>, %arg7: memref<16x2x16x8xf32, #tpu.memory_space<vmem>>, %arg8: memref<18x18x4xbf16, #tpu.memory_space<vmem>>) attributes {dimension_semantics = [#tpu.dimension_semantics<parallel>, #tpu.dimension_semantics<parallel>], iteration_bounds = array<i64: 2, 1>, scalar_prefetch = 0 : i64, scratch_operands = 1 : i64, tpu.core_type = #tpu.core_type<tc>, window_params = [{transform_indices = @transform_0, window_bounds = array<i64: 16, 16, 4>}, {transform_indices = @transform_1, window_bounds = array<i64: 1, 16, 4>}, {transform_indices = @transform_2, window_bounds = array<i64: 1, 16, 4>}, {pipeline_mode = #tpu.pipeline_mode<synchronous>, transform_indices = @transform_3, window_bounds = array<i64: 12, 4, 8>}, {pipeline_mode = #tpu.pipeline_mode<synchronous>, transform_indices = @transform_4, window_bounds = array<i64: 1, 8>}, {transform_indices = @transform_5, window_bounds = array<i64: 16, 2, 16, 8>}]} {
    %cst = arith.constant 0.000000e+00 : bf16
    %0 = vector.broadcast %cst : bf16 to vector<18x1x4xbf16>
    %c0 = arith.constant 0 : index
    %c0_0 = arith.constant 0 : index
    %c0_1 = arith.constant 0 : index
    %1 = vector.load %arg8[%c0, %c0_0, %c0_1] : memref<18x18x4xbf16, #tpu.memory_space<vmem>>, vector<18x1x4xbf16>
    tpu.vector_store %arg8[%c0, %c0_0, %c0_1], %0 {strides = array<i32>} : memref<18x18x4xbf16, #tpu.memory_space<vmem>>, vector<18x1x4xbf16>,
    %c0_2 = arith.constant 0 : index
    %c17 = arith.constant 17 : index
    %c0_3 = arith.constant 0 : index
    %2 = vector.load %arg8[%c0_2, %c17, %c0_3] : memref<18x18x4xbf16, #tpu.memory_space<vmem>>, vector<18x1x4xbf16>
    tpu.vector_store %arg8[%c0_2, %c17, %c0_3], %0 {strides = array<i32>} : memref<18x18x4xbf16, #tpu.memory_space<vmem>>, vector<18x1x4xbf16>,
    %c0_4 = arith.constant 0 : index
    %c0_5 = arith.constant 0 : index
    %c0_6 = arith.constant 0 : index
    %3 = vector.load %arg2[%c0_4, %c0_5, %c0_6] : memref<16x16x4xf32, #tpu.memory_space<vmem>>, vector<16x16x4xf32>
    %4 = arith.truncf %3 : vector<16x16x4xf32> to vector<16x16x4xbf16>
    %c1 = arith.constant 1 : index
    %c1_7 = arith.constant 1 : index
    %c0_8 = arith.constant 0 : index
    %5 = vector.load %arg8[%c1, %c1_7, %c0_8] : memref<18x18x4xbf16, #tpu.memory_space<vmem>>, vector<16x16x4xbf16>
    tpu.vector_store %arg8[%c1, %c1_7, %c0_8], %4 {strides = array<i32>} : memref<18x18x4xbf16, #tpu.memory_space<vmem>>, vector<16x16x4xbf16>,
    %c0_9 = arith.constant 0 : index
    %c0_10 = arith.constant 0 : index
    %c0_11 = arith.constant 0 : index
    %6 = vector.load %arg3[%c0_9, %c0_10, %c0_11] : memref<1x16x4xf32, #tpu.memory_space<vmem>>, vector<1x16x4xf32>
    %7 = arith.truncf %6 : vector<1x16x4xf32> to vector<1x16x4xbf16>
    %c0_i32 = arith.constant 0 : i32
    %8 = arith.cmpi eq, %arg1, %c0_i32 : i32
    %cst_12 = arith.constant 0.000000e+00 : bf16
    %9 = vector.broadcast %cst_12 : bf16 to vector<1x16x4xbf16>
    %10 = arith.select %8, %9, %7 : vector<1x16x4xbf16>
    %c0_13 = arith.constant 0 : index
    %c1_14 = arith.constant 1 : index
    %c0_15 = arith.constant 0 : index
    %11 = vector.load %arg8[%c0_13, %c1_14, %c0_15] : memref<18x18x4xbf16, #tpu.memory_space<vmem>>, vector<1x16x4xbf16>
    tpu.vector_store %arg8[%c0_13, %c1_14, %c0_15], %10 {strides = array<i32>} : memref<18x18x4xbf16, #tpu.memory_space<vmem>>, vector<1x16x4xbf16>,
    %c0_16 = arith.constant 0 : index
    %c0_17 = arith.constant 0 : index
    %c0_18 = arith.constant 0 : index
    %12 = vector.load %arg4[%c0_16, %c0_17, %c0_18] : memref<1x16x4xf32, #tpu.memory_space<vmem>>, vector<1x16x4xf32>
    %13 = arith.truncf %12 : vector<1x16x4xf32> to vector<1x16x4xbf16>
    %c0_i32_19 = arith.constant 0 : i32
    %14 = arith.cmpi eq, %arg1, %c0_i32_19 : i32
    %cst_20 = arith.constant 0.000000e+00 : bf16
    %15 = vector.broadcast %cst_20 : bf16 to vector<1x16x4xbf16>
    %16 = arith.select %14, %15, %13 : vector<1x16x4xbf16>
    %c17_21 = arith.constant 17 : index
    %c1_22 = arith.constant 1 : index
    %c0_23 = arith.constant 0 : index
    %17 = vector.load %arg8[%c17_21, %c1_22, %c0_23] : memref<18x18x4xbf16, #tpu.memory_space<vmem>>, vector<1x16x4xbf16>
    tpu.vector_store %arg8[%c17_21, %c1_22, %c0_23], %16 {strides = array<i32>} : memref<18x18x4xbf16, #tpu.memory_space<vmem>>, vector<1x16x4xbf16>,
    %c0_24 = arith.constant 0 : index
    %c0_25 = arith.constant 0 : index
    %18 = vector.load %arg6[%c0_24, %c0_25] : memref<1x8xf32, #tpu.memory_space<vmem>>, vector<1x8xf32>
    %19 = vector.shape_cast %18 : vector<1x8xf32> to vector<8xf32>
    %c0_26 = arith.constant 0 : index
    %c0_27 = arith.constant 0 : index
    %c0_28 = arith.constant 0 : index
    %20 = vector.load %arg8[%c0_26, %c0_27, %c0_28] : memref<18x18x4xbf16, #tpu.memory_space<vmem>>, vector<16x16x4xbf16>
    %c0_29 = arith.constant 0 : index
    %c0_30 = arith.constant 0 : index
    %c0_31 = arith.constant 0 : index
    %21 = vector.load %arg5[%c0_29, %c0_30, %c0_31] : memref<12x4x8xbf16, #tpu.memory_space<vmem>>, vector<1x4x8xbf16>
    %22 = vector.shape_cast %21 : vector<1x4x8xbf16> to vector<4x8xbf16>
    "tpu.trace_start"() <{level = 10 : i32, message = "hwc,cd->hwd"}> : () -> ()
    %cst_32 = arith.constant dense<0.000000e+00> : vector<16x16x8xf32>
    %23 = tpu.matmul %20, %22, %cst_32 {dimension_numbers = #tpu.dot_dimension_numbers<[2], [0], [0, 1], [1], [0, 0, 0, 1, 1, 1], [], []>} : vector<16x16x4xbf16>, vector<4x8xbf16>, vector<16x16x8xf32> -> vector<16x16x8xf32>
    "tpu.trace_stop"() : () -> ()
    %c0_33 = arith.constant 0 : index
    %c1_34 = arith.constant 1 : index
    %c0_35 = arith.constant 0 : index
    %24 = vector.load %arg8[%c0_33, %c1_34, %c0_35] : memref<18x18x4xbf16, #tpu.memory_space<vmem>>, vector<16x16x4xbf16>
    %c1_36 = arith.constant 1 : index
    %c0_37 = arith.constant 0 : index
    %c0_38 = arith.constant 0 : index
    %25 = vector.load %arg5[%c1_36, %c0_37, %c0_38] : memref<12x4x8xbf16, #tpu.memory_space<vmem>>, vector<1x4x8xbf16>
    %26 = vector.shape_cast %25 : vector<1x4x8xbf16> to vector<4x8xbf16>
    "tpu.trace_start"() <{level = 10 : i32, message = "hwc,cd->hwd"}> : () -> ()
    %cst_39 = arith.constant dense<0.000000e+00> : vector<16x16x8xf32>
    %27 = tpu.matmul %24, %26, %cst_39 {dimension_numbers = #tpu.dot_dimension_numbers<[2], [0], [0, 1], [1], [0, 0, 0, 1, 1, 1], [], []>} : vector<16x16x4xbf16>, vector<4x8xbf16>, vector<16x16x8xf32> -> vector<16x16x8xf32>
    "tpu.trace_stop"() : () -> ()
    %28 = arith.addf %23, %27 : vector<16x16x8xf32>
    %c0_40 = arith.constant 0 : index
    %c2 = arith.constant 2 : index
    %c0_41 = arith.constant 0 : index
    %29 = vector.load %arg8[%c0_40, %c2, %c0_41] : memref<18x18x4xbf16, #tpu.memory_space<vmem>>, vector<16x16x4xbf16>
    %c2_42 = arith.constant 2 : index
    %c0_43 = arith.constant 0 : index
    %c0_44 = arith.constant 0 : index
    %30 = vector.load %arg5[%c2_42, %c0_43, %c0_44] : memref<12x4x8xbf16, #tpu.memory_space<vmem>>, vector<1x4x8xbf16>
    %31 = vector.shape_cast %30 : vector<1x4x8xbf16> to vector<4x8xbf16>
    "tpu.trace_start"() <{level = 10 : i32, message = "hwc,cd->hwd"}> : () -> ()
    %cst_45 = arith.constant dense<0.000000e+00> : vector<16x16x8xf32>
    %32 = tpu.matmul %29, %31, %cst_45 {dimension_numbers = #tpu.dot_dimension_numbers<[2], [0], [0, 1], [1], [0, 0, 0, 1, 1, 1], [], []>} : vector<16x16x4xbf16>, vector<4x8xbf16>, vector<16x16x8xf32> -> vector<16x16x8xf32>
    "tpu.trace_stop"() : () -> ()
    %33 = arith.addf %28, %32 : vector<16x16x8xf32>
    %c1_46 = arith.constant 1 : index
    %c0_47 = arith.constant 0 : index
    %c0_48 = arith.constant 0 : index
    %34 = vector.load %arg8[%c1_46, %c0_47, %c0_48] : memref<18x18x4xbf16, #tpu.memory_space<vmem>>, vector<16x16x4xbf16>
    %c3 = arith.constant 3 : index
    %c0_49 = arith.constant 0 : index
    %c0_50 = arith.constant 0 : index
    %35 = vector.load %arg5[%c3, %c0_49, %c0_50] : memref<12x4x8xbf16, #tpu.memory_space<vmem>>, vector<1x4x8xbf16>
    %36 = vector.shape_cast %35 : vector<1x4x8xbf16> to vector<4x8xbf16>
    "tpu.trace_start"() <{level = 10 : i32, message = "hwc,cd->hwd"}> : () -> ()
    %cst_51 = arith.constant dense<0.000000e+00> : vector<16x16x8xf32>
    %37 = tpu.matmul %34, %36, %cst_51 {dimension_numbers = #tpu.dot_dimension_numbers<[2], [0], [0, 1], [1], [0, 0, 0, 1, 1, 1], [], []>} : vector<16x16x4xbf16>, vector<4x8xbf16>, vector<16x16x8xf32> -> vector<16x16x8xf32>
    "tpu.trace_stop"() : () -> ()
    %38 = arith.addf %33, %37 : vector<16x16x8xf32>
    %c1_52 = arith.constant 1 : index
    %c1_53 = arith.constant 1 : index
    %c0_54 = arith.constant 0 : index
    %39 = vector.load %arg8[%c1_52, %c1_53, %c0_54] : memref<18x18x4xbf16, #tpu.memory_space<vmem>>, vector<16x16x4xbf16>
    %c4 = arith.constant 4 : index
    %c0_55 = arith.constant 0 : index
    %c0_56 = arith.constant 0 : index
    %40 = vector.load %arg5[%c4, %c0_55, %c0_56] : memref<12x4x8xbf16, #tpu.memory_space<vmem>>, vector<1x4x8xbf16>
    %41 = vector.shape_cast %40 : vector<1x4x8xbf16> to vector<4x8xbf16>
    "tpu.trace_start"() <{level = 10 : i32, message = "hwc,cd->hwd"}> : () -> ()
    %cst_57 = arith.constant dense<0.000000e+00> : vector<16x16x8xf32>
    %42 = tpu.matmul %39, %41, %cst_57 {dimension_numbers = #tpu.dot_dimension_numbers<[2], [0], [0, 1], [1], [0, 0, 0, 1, 1, 1], [], []>} : vector<16x16x4xbf16>, vector<4x8xbf16>, vector<16x16x8xf32> -> vector<16x16x8xf32>
    "tpu.trace_stop"() : () -> ()
    %43 = arith.addf %38, %42 : vector<16x16x8xf32>
    %c1_58 = arith.constant 1 : index
    %c2_59 = arith.constant 2 : index
    %c0_60 = arith.constant 0 : index
    %44 = vector.load %arg8[%c1_58, %c2_59, %c0_60] : memref<18x18x4xbf16, #tpu.memory_space<vmem>>, vector<16x16x4xbf16>
    %c5 = arith.constant 5 : index
    %c0_61 = arith.constant 0 : index
    %c0_62 = arith.constant 0 : index
    %45 = vector.load %arg5[%c5, %c0_61, %c0_62] : memref<12x4x8xbf16, #tpu.memory_space<vmem>>, vector<1x4x8xbf16>
    %46 = vector.shape_cast %45 : vector<1x4x8xbf16> to vector<4x8xbf16>
    "tpu.trace_start"() <{level = 10 : i32, message = "hwc,cd->hwd"}> : () -> ()
    %cst_63 = arith.constant dense<0.000000e+00> : vector<16x16x8xf32>
    %47 = tpu.matmul %44, %46, %cst_63 {dimension_numbers = #tpu.dot_dimension_numbers<[2], [0], [0, 1], [1], [0, 0, 0, 1, 1, 1], [], []>} : vector<16x16x4xbf16>, vector<4x8xbf16>, vector<16x16x8xf32> -> vector<16x16x8xf32>
    "tpu.trace_stop"() : () -> ()
    %48 = arith.addf %43, %47 : vector<16x16x8xf32>
    %49 = vector.shape_cast %19 : vector<8xf32> to vector<1x1x8xf32>
    %50 = vector.broadcast %49 : vector<1x1x8xf32> to vector<16x16x8xf32>
    %51 = arith.addf %48, %50 : vector<16x16x8xf32>
    %c0_64 = arith.constant 0 : index
    %c0_65 = arith.constant 0 : index
    %c0_66 = arith.constant 0 : index
    %c0_67 = arith.constant 0 : index
    %52 = vector.load %arg7[%c0_64, %c0_65, %c0_66, %c0_67] : memref<16x2x16x8xf32, #tpu.memory_space<vmem>>, vector<16x1x16x8xf32>
    %53 = vector.shape_cast %52 : vector<16x1x16x8xf32> to vector<16x16x8xf32>
    %54 = vector.shape_cast %51 : vector<16x16x8xf32> to vector<16x1x16x8xf32>
    tpu.vector_store %arg7[%c0_64, %c0_65, %c0_66, %c0_67], %54 {strides = array<i32>} : memref<16x2x16x8xf32, #tpu.memory_space<vmem>>, vector<16x1x16x8xf32>,
    %c1_68 = arith.constant 1 : index
    %c0_69 = arith.constant 0 : index
    %c0_70 = arith.constant 0 : index
    %55 = vector.load %arg8[%c1_68, %c0_69, %c0_70] : memref<18x18x4xbf16, #tpu.memory_space<vmem>>, vector<16x16x4xbf16>
    %c6 = arith.constant 6 : index
    %c0_71 = arith.constant 0 : index
    %c0_72 = arith.constant 0 : index
    %56 = vector.load %arg5[%c6, %c0_71, %c0_72] : memref<12x4x8xbf16, #tpu.memory_space<vmem>>, vector<1x4x8xbf16>
    %57 = vector.shape_cast %56 : vector<1x4x8xbf16> to vector<4x8xbf16>
    "tpu.trace_start"() <{level = 10 : i32, message = "hwc,cd->hwd"}> : () -> ()
    %cst_73 = arith.constant dense<0.000000e+00> : vector<16x16x8xf32>
    %58 = tpu.matmul %55, %57, %cst_73 {dimension_numbers = #tpu.dot_dimension_numbers<[2], [0], [0, 1], [1], [0, 0, 0, 1, 1, 1], [], []>} : vector<16x16x4xbf16>, vector<4x8xbf16>, vector<16x16x8xf32> -> vector<16x16x8xf32>
    "tpu.trace_stop"() : () -> ()
    %c1_74 = arith.constant 1 : index
    %c1_75 = arith.constant 1 : index
    %c0_76 = arith.constant 0 : index
    %59 = vector.load %arg8[%c1_74, %c1_75, %c0_76] : memref<18x18x4xbf16, #tpu.memory_space<vmem>>, vector<16x16x4xbf16>
    %c7 = arith.constant 7 : index
    %c0_77 = arith.constant 0 : index
    %c0_78 = arith.constant 0 : index
    %60 = vector.load %arg5[%c7, %c0_77, %c0_78] : memref<12x4x8xbf16, #tpu.memory_space<vmem>>, vector<1x4x8xbf16>
    %61 = vector.shape_cast %60 : vector<1x4x8xbf16> to vector<4x8xbf16>
    "tpu.trace_start"() <{level = 10 : i32, message = "hwc,cd->hwd"}> : () -> ()
    %cst_79 = arith.constant dense<0.000000e+00> : vector<16x16x8xf32>
    %62 = tpu.matmul %59, %61, %cst_79 {dimension_numbers = #tpu.dot_dimension_numbers<[2], [0], [0, 1], [1], [0, 0, 0, 1, 1, 1], [], []>} : vector<16x16x4xbf16>, vector<4x8xbf16>, vector<16x16x8xf32> -> vector<16x16x8xf32>
    "tpu.trace_stop"() : () -> ()
    %63 = arith.addf %58, %62 : vector<16x16x8xf32>
    %c1_80 = arith.constant 1 : index
    %c2_81 = arith.constant 2 : index
    %c0_82 = arith.constant 0 : index
    %64 = vector.load %arg8[%c1_80, %c2_81, %c0_82] : memref<18x18x4xbf16, #tpu.memory_space<vmem>>, vector<16x16x4xbf16>
    %c8 = arith.constant 8 : index
    %c0_83 = arith.constant 0 : index
    %c0_84 = arith.constant 0 : index
    %65 = vector.load %arg5[%c8, %c0_83, %c0_84] : memref<12x4x8xbf16, #tpu.memory_space<vmem>>, vector<1x4x8xbf16>
    %66 = vector.shape_cast %65 : vector<1x4x8xbf16> to vector<4x8xbf16>
    "tpu.trace_start"() <{level = 10 : i32, message = "hwc,cd->hwd"}> : () -> ()
    %cst_85 = arith.constant dense<0.000000e+00> : vector<16x16x8xf32>
    %67 = tpu.matmul %64, %66, %cst_85 {dimension_numbers = #tpu.dot_dimension_numbers<[2], [0], [0, 1], [1], [0, 0, 0, 1, 1, 1], [], []>} : vector<16x16x4xbf16>, vector<4x8xbf16>, vector<16x16x8xf32> -> vector<16x16x8xf32>
    "tpu.trace_stop"() : () -> ()
    %68 = arith.addf %63, %67 : vector<16x16x8xf32>
    %c2_86 = arith.constant 2 : index
    %c0_87 = arith.constant 0 : index
    %c0_88 = arith.constant 0 : index
    %69 = vector.load %arg8[%c2_86, %c0_87, %c0_88] : memref<18x18x4xbf16, #tpu.memory_space<vmem>>, vector<16x16x4xbf16>
    %c9 = arith.constant 9 : index
    %c0_89 = arith.constant 0 : index
    %c0_90 = arith.constant 0 : index
    %70 = vector.load %arg5[%c9, %c0_89, %c0_90] : memref<12x4x8xbf16, #tpu.memory_space<vmem>>, vector<1x4x8xbf16>
    %71 = vector.shape_cast %70 : vector<1x4x8xbf16> to vector<4x8xbf16>
    "tpu.trace_start"() <{level = 10 : i32, message = "hwc,cd->hwd"}> : () -> ()
    %cst_91 = arith.constant dense<0.000000e+00> : vector<16x16x8xf32>
    %72 = tpu.matmul %69, %71, %cst_91 {dimension_numbers = #tpu.dot_dimension_numbers<[2], [0], [0, 1], [1], [0, 0, 0, 1, 1, 1], [], []>} : vector<16x16x4xbf16>, vector<4x8xbf16>, vector<16x16x8xf32> -> vector<16x16x8xf32>
    "tpu.trace_stop"() : () -> ()
    %73 = arith.addf %68, %72 : vector<16x16x8xf32>
    %c2_92 = arith.constant 2 : index
    %c1_93 = arith.constant 1 : index
    %c0_94 = arith.constant 0 : index
    %74 = vector.load %arg8[%c2_92, %c1_93, %c0_94] : memref<18x18x4xbf16, #tpu.memory_space<vmem>>, vector<16x16x4xbf16>
    %c10 = arith.constant 10 : index
    %c0_95 = arith.constant 0 : index
    %c0_96 = arith.constant 0 : index
    %75 = vector.load %arg5[%c10, %c0_95, %c0_96] : memref<12x4x8xbf16, #tpu.memory_space<vmem>>, vector<1x4x8xbf16>
    %76 = vector.shape_cast %75 : vector<1x4x8xbf16> to vector<4x8xbf16>
    "tpu.trace_start"() <{level = 10 : i32, message = "hwc,cd->hwd"}> : () -> ()
    %cst_97 = arith.constant dense<0.000000e+00> : vector<16x16x8xf32>
    %77 = tpu.matmul %74, %76, %cst_97 {dimension_numbers = #tpu.dot_dimension_numbers<[2], [0], [0, 1], [1], [0, 0, 0, 1, 1, 1], [], []>} : vector<16x16x4xbf16>, vector<4x8xbf16>, vector<16x16x8xf32> -> vector<16x16x8xf32>
    "tpu.trace_stop"() : () -> ()
    %78 = arith.addf %73, %77 : vector<16x16x8xf32>
    %c2_98 = arith.constant 2 : index
    %c2_99 = arith.constant 2 : index
    %c0_100 = arith.constant 0 : index
    %79 = vector.load %arg8[%c2_98, %c2_99, %c0_100] : memref<18x18x4xbf16, #tpu.memory_space<vmem>>, vector<16x16x4xbf16>
    %c11 = arith.constant 11 : index
    %c0_101 = arith.constant 0 : index
    %c0_102 = arith.constant 0 : index
    %80 = vector.load %arg5[%c11, %c0_101, %c0_102] : memref<12x4x8xbf16, #tpu.memory_space<vmem>>, vector<1x4x8xbf16>
    %81 = vector.shape_cast %80 : vector<1x4x8xbf16> to vector<4x8xbf16>
    "tpu.trace_start"() <{level = 10 : i32, message = "hwc,cd->hwd"}> : () -> ()
    %cst_103 = arith.constant dense<0.000000e+00> : vector<16x16x8xf32>
    %82 = tpu.matmul %79, %81, %cst_103 {dimension_numbers = #tpu.dot_dimension_numbers<[2], [0], [0, 1], [1], [0, 0, 0, 1, 1, 1], [], []>} : vector<16x16x4xbf16>, vector<4x8xbf16>, vector<16x16x8xf32> -> vector<16x16x8xf32>
    "tpu.trace_stop"() : () -> ()
    %83 = arith.addf %78, %82 : vector<16x16x8xf32>
    %84 = vector.shape_cast %19 : vector<8xf32> to vector<1x1x8xf32>
    %85 = vector.broadcast %84 : vector<1x1x8xf32> to vector<16x16x8xf32>
    %86 = arith.addf %83, %85 : vector<16x16x8xf32>
    %c0_104 = arith.constant 0 : index
    %c1_105 = arith.constant 1 : index
    %c0_106 = arith.constant 0 : index
    %c0_107 = arith.constant 0 : index
    %87 = vector.load %arg7[%c0_104, %c1_105, %c0_106, %c0_107] : memref<16x2x16x8xf32, #tpu.memory_space<vmem>>, vector<16x1x16x8xf32>
    %88 = vector.shape_cast %87 : vector<16x1x16x8xf32> to vector<16x16x8xf32>
    %89 = vector.shape_cast %86 : vector<16x16x8xf32> to vector<16x1x16x8xf32>
    tpu.vector_store %arg7[%c0_104, %c1_105, %c0_106, %c0_107], %89 {strides = array<i32>} : memref<16x2x16x8xf32, #tpu.memory_space<vmem>>, vector<16x1x16x8xf32>,
    return
  }
  func.func @transform_0(%arg0: i32, %arg1: i32) -> (i32, i32, i32) {
    %c1_i32 = arith.constant 1 : i32
    %0 = arith.muli %arg0, %c1_i32 : i32
    %1 = arith.addi %0, %arg1 : i32
    %c0_i32 = arith.constant 0 : i32
    %c0_i32_0 = arith.constant 0 : i32
    %c0_i32_1 = arith.constant 0 : i32
    return %1, %c0_i32, %c0_i32_0 : i32, i32, i32
  }
  func.func @transform_1(%arg0: i32, %arg1: i32) -> (i32, i32, i32) {
    %c16_i32 = arith.constant 16 : i32
    %0 = arith.muli %arg0, %c16_i32 : i32
    %c16_i32_0 = arith.constant 16 : i32
    %1 = arith.muli %arg1, %c16_i32_0 : i32
    %2 = arith.addi %0, %1 : i32
    %c1_i32 = arith.constant 1 : i32
    %3 = arith.subi %2, %c1_i32 : i32
    %c0_i32 = arith.constant 0 : i32
    %4 = arith.maxsi %3, %c0_i32 : i32
    %c0_i32_1 = arith.constant 0 : i32
    %c0_i32_2 = arith.constant 0 : i32
    %c0_i32_3 = arith.constant 0 : i32
    return %4, %c0_i32_1, %c0_i32_2 : i32, i32, i32
  }
  func.func @transform_2(%arg0: i32, %arg1: i32) -> (i32, i32, i32) {
    %c16_i32 = arith.constant 16 : i32
    %0 = arith.muli %arg0, %c16_i32 : i32
    %c16_i32_0 = arith.constant 16 : i32
    %1 = arith.muli %arg1, %c16_i32_0 : i32
    %2 = arith.addi %0, %1 : i32
    %c16_i32_1 = arith.constant 16 : i32
    %3 = arith.addi %2, %c16_i32_1 : i32
    %c31_i32 = arith.constant 31 : i32
    %4 = arith.minsi %3, %c31_i32 : i32
    %c0_i32 = arith.constant 0 : i32
    %c0_i32_2 = arith.constant 0 : i32
    %c0_i32_3 = arith.constant 0 : i32
    return %4, %c0_i32, %c0_i32_2 : i32, i32, i32
  }
  func.func @transform_3(%arg0: i32, %arg1: i32) -> (i32, i32, i32) {
    %c0_i32 = arith.constant 0 : i32
    %c0_i32_0 = arith.constant 0 : i32
    %c0_i32_1 = arith.constant 0 : i32
    %c0_i32_2 = arith.constant 0 : i32
    return %c0_i32, %c0_i32_0, %c0_i32_1 : i32, i32, i32
  }
  func.func @transform_4(%arg0: i32, %arg1: i32) -> (i32, i32) {
    %c0_i32 = arith.constant 0 : i32
    %c0_i32_0 = arith.constant 0 : i32
    %c0_i32_1 = arith.constant 0 : i32
    return %c0_i32, %c0_i32_0 : i32, i32
  }
  func.func @transform_5(%arg0: i32, %arg1: i32) -> (i32, i32, i32, i32) {
    %c1_i32 = arith.constant 1 : i32
    %0 = arith.muli %arg0, %c1_i32 : i32
    %1 = arith.addi %0, %arg1 : i32
    %c0_i32 = arith.constant 0 : i32
    %c0_i32_0 = arith.constant 0 : i32
    %c0_i32_1 = arith.constant 0 : i32
    %c0_i32_2 = arith.constant 0 : i32
    return %1, %c0_i32, %c0_i32_0, %c0_i32_1 : i32, i32, i32, i32
  }
}

</mosaic_0001>

<llo_original>
// kernel: tpu_custom_call.1
$region0: #{tpu_custom_call.1}
  #allocation0 [shape = 'u32[]', space=smem, size = 0x4, offset = 0x4, fixed_abs, tag = 'smem constant byte address 0x4 - core index']
  #allocation1 [shape = 'u32[144,128]{1,0:T(1,128)}', space=vmem, size = 0x12000, scoped, tag = 'internal scratch']
  #allocation2 [shape = 'bf16[18,18,4]{2,1,0:T(8,128)(2,1)}', space=vmem, size = 0x1b000, scoped, tag = 'scratch operand']
  %s0 = inlined_call_operand.vmem [shape: f32[32,16,4], index: 0, kind: input, shape index: {}]
  %s1 = inlined_call_operand.vmem [shape: f32[32,16,4], index: 1, kind: input, shape index: {}]
  %s2 = inlined_call_operand.vmem [shape: f32[32,16,4], index: 2, kind: input, shape index: {}]
  %s3 = inlined_call_operand.vmem [shape: bf16[12,4,8], index: 3, kind: input, shape index: {}]
  %s4 = inlined_call_operand.vmem [shape: f32[1,8], index: 4, kind: input, shape index: {}]
  %s5 = inlined_call_operand.vmem [shape: f32[32,2,16,8], index: 5, kind: output, shape index: {}]
  %s6 = sld [smem:[#allocation0]]
  $region53: #{tpu_custom_call.1} parent=0
    _
  %s8 = ssub.s32 1, %s6
  %s9 = scalar_select 0, %s8, %s6
  loop: start=0, step=1, limit=4
  $region2: #{tpu_custom_call.1} parent=0 // loop_pre_header
    _
  $region3: #{tpu_custom_call.1} parent=0 // loop_header
    %s11 = sphi 0, %s15
    %p12 = scmp.ge.s32.totalorder %s11, 4
    %s18 = sphi 0, %s30
    %s19 = sphi 0, %s26
    %s20 = sphi 0, %s18
    %s21 = sphi 0, %s19
    %s22 = sphi 0, %s20
    %s23 = sphi 0, %s21
    %s35 = sphi 0, %s37
    %s38 = sphi 0, %s35
    %s39 = sphi 0, %s38
    %s55 = sphi 0, %s39
    %s73 = sphi 0, %s75
    %s76 = sphi 0, %s73
    %s77 = sphi 0, %s76
    %s93 = sphi 0, %s77
    %s111 = sphi 0, %s113
    %s114 = sphi 0, %s111
    %s115 = sphi 0, %s114
    %s131 = sphi 0, %s115
    %s135 = sphi 0, %s135
    %s137 = sphi 0, %s135
    %s138 = sphi 0, %s137
    %s152 = sphi 0, %s138
    %s156 = sphi 0, %s156
    %s158 = sphi 0, %s156
    %s159 = sphi 0, %s158
    %s173 = sphi 0, %s159
    %s181 = sphi 0, %s183
    %s184 = sphi 0, %s181
    %s185 = sphi 0, %s184
    %s201 = sphi 0, %s185
  $region4: #{tpu_custom_call.1} parent=0 // loop_header_branch
    %14 = sbr.rel (%p12) target = $region8
  $region5: #{tpu_custom_call.1} parent=0 // loop_body
    %s16 = ssub.s32 %s11, 1
    %s17 = ssub.s32 %s11, 2
    %s24 = sadd.s32 1, %s19
    %p25 = scmp.ge.s32.totalorder %s24, 1
    %s26 = scalar_select %p25, 0, %s24
    %s27 = sadd.s32 1, %s18
    %s28 = scalar_select %p25, %s27, %s18
    %p29 = scmp.ge.s32.totalorder %s28, 2
    %s30 = scalar_select %p29, 0, %s28
    %s31 = sadd.s32 %s18, %s19
    %s32 = sadd.s32 %s30, %s26
    %s33 = ssub.s32 %s31, %s32
    %p34 = scmp.eq.s32.totalorder %s33, 0
    %s36 = sadd.s32 %s35, 1
    %s37 = scalar_select %p34, %s35, %s36
    %p40 = pneg %p34
    %p41 = scmp.eq.s32.totalorder %s11, 1
    %p42 = por %p40, %p41
    %p43 = scmp.ne.s32.totalorder %s35, %s38
    %p44 = scmp.eq.s32.totalorder %s11, 0
    %p45 = por %p43, %p44
    %p46 = scmp.ne.s32.totalorder %s35, %s38
    %p47 = scmp.eq.s32.totalorder %s16, 1
    %p48 = por %p46, %p47
    %p49 = scmp.ne.s32.totalorder %s38, %s39
    %p50 = scmp.eq.s32.totalorder %s16, 0
    %p51 = por %p49, %p50
    %p52 = scmp.ne.s32.totalorder %s38, %s39
    %p53 = scmp.eq.s32.totalorder %s17, 1
    %p54 = por %p52, %p53
    %p56 = scmp.ne.s32.totalorder %s39, %s55
    %p57 = scmp.eq.s32.totalorder %s17, 0
    %p58 = por %p56, %p57
    %s59 = smul.u32 %s18, 16
    %s60 = smul.u32 %s19, 16
    %s61 = sadd.s32 %s59, %s60
    %s62 = ssub.s32 %s61, 1
    %p63 = scmp.gt.s32.totalorder %s62, 0
    %s64 = scalar_select %p63, %s62, 0
    %s65 = smul.u32 %s30, 16
    %s66 = smul.u32 %s26, 16
    %s67 = sadd.s32 %s65, %s66
    %s68 = ssub.s32 %s67, 1
    %p69 = scmp.gt.s32.totalorder %s68, 0
    %s70 = scalar_select %p69, %s68, 0
    %s71 = ssub.s32 %s64, %s70
    %p72 = scmp.eq.s32.totalorder %s71, 0
    %s74 = sadd.s32 %s73, 1
    %s75 = scalar_select %p72, %s73, %s74
    %p78 = pneg %p72
    %p79 = scmp.eq.s32.totalorder %s11, 1
    %p80 = por %p78, %p79
    %p81 = scmp.ne.s32.totalorder %s73, %s76
    %p82 = scmp.eq.s32.totalorder %s11, 0
    %p83 = por %p81, %p82
    %p84 = scmp.ne.s32.totalorder %s73, %s76
    %p85 = scmp.eq.s32.totalorder %s16, 1
    %p86 = por %p84, %p85
    %p87 = scmp.ne.s32.totalorder %s76, %s77
    %p88 = scmp.eq.s32.totalorder %s16, 0
    %p89 = por %p87, %p88
    %p90 = scmp.ne.s32.totalorder %s76, %s77
    %p91 = scmp.eq.s32.totalorder %s17, 1
    %p92 = por %p90, %p91
    %p94 = scmp.ne.s32.totalorder %s77, %s93
    %p95 = scmp.eq.s32.totalorder %s17, 0
    %p96 = por %p94, %p95
    %s97 = smul.u32 %s18, 16
    %s98 = smul.u32 %s19, 16
    %s99 = sadd.s32 %s97, %s98
    %s100 = sadd.s32 %s99, 16
    %p101 = scmp.lt.s32.totalorder %s100, 31
    %s102 = scalar_select %p101, %s100, 31
    %s103 = smul.u32 %s30, 16
    %s104 = smul.u32 %s26, 16
    %s105 = sadd.s32 %s103, %s104
    %s106 = sadd.s32 %s105, 16
    %p107 = scmp.lt.s32.totalorder %s106, 31
    %s108 = scalar_select %p107, %s106, 31
    %s109 = ssub.s32 %s102, %s108
    %p110 = scmp.eq.s32.totalorder %s109, 0
    %s112 = sadd.s32 %s111, 1
    %s113 = scalar_select %p110, %s111, %s112
    %p116 = pneg %p110
    %p117 = scmp.eq.s32.totalorder %s11, 1
    %p118 = por %p116, %p117
    %p119 = scmp.ne.s32.totalorder %s111, %s114
    %p120 = scmp.eq.s32.totalorder %s11, 0
    %p121 = por %p119, %p120
    %p122 = scmp.ne.s32.totalorder %s111, %s114
    %p123 = scmp.eq.s32.totalorder %s16, 1
    %p124 = por %p122, %p123
    %p125 = scmp.ne.s32.totalorder %s114, %s115
    %p126 = scmp.eq.s32.totalorder %s16, 0
    %p127 = por %p125, %p126
    %p128 = scmp.ne.s32.totalorder %s114, %s115
    %p129 = scmp.eq.s32.totalorder %s17, 1
    %p130 = por %p128, %p129
    %p132 = scmp.ne.s32.totalorder %s115, %s131
    %p133 = scmp.eq.s32.totalorder %s17, 0
    %p134 = por %p132, %p133
    %s136 = sadd.s32 %s135, 1
    %p139 = scmp.eq.s32.totalorder %s11, 1
    %p140 = scmp.ne.s32.totalorder %s135, %s137
    %p141 = scmp.eq.s32.totalorder %s11, 0
    %p142 = por %p140, %p141
    %p143 = scmp.ne.s32.totalorder %s135, %s137
    %p144 = scmp.eq.s32.totalorder %s16, 1
    %p145 = por %p143, %p144
    %p146 = scmp.ne.s32.totalorder %s137, %s138
    %p147 = scmp.eq.s32.totalorder %s16, 0
    %p148 = por %p146, %p147
    %p149 = scmp.ne.s32.totalorder %s137, %s138
    %p150 = scmp.eq.s32.totalorder %s17, 1
    %p151 = por %p149, %p150
    %p153 = scmp.ne.s32.totalorder %s138, %s152
    %p154 = scmp.eq.s32.totalorder %s17, 0
    %p155 = por %p153, %p154
    %s157 = sadd.s32 %s156, 1
    %p160 = scmp.eq.s32.totalorder %s11, 1
    %p161 = scmp.ne.s32.totalorder %s156, %s158
    %p162 = scmp.eq.s32.totalorder %s11, 0
    %p163 = por %p161, %p162
    %p164 = scmp.ne.s32.totalorder %s156, %s158
    %p165 = scmp.eq.s32.totalorder %s16, 1
    %p166 = por %p164, %p165
    %p167 = scmp.ne.s32.totalorder %s158, %s159
    %p168 = scmp.eq.s32.totalorder %s16, 0
    %p169 = por %p167, %p168
    %p170 = scmp.ne.s32.totalorder %s158, %s159
    %p171 = scmp.eq.s32.totalorder %s17, 1
    %p172 = por %p170, %p171
    %p174 = scmp.ne.s32.totalorder %s159, %s173
    %p175 = scmp.eq.s32.totalorder %s17, 0
    %p176 = por %p174, %p175
    %s177 = sadd.s32 %s18, %s19
    %s178 = sadd.s32 %s30, %s26
    %s179 = ssub.s32 %s177, %s178
    %p180 = scmp.eq.s32.totalorder %s179, 0
    %s182 = sadd.s32 %s181, 1
    %s183 = scalar_select %p180, %s181, %s182
    %p186 = pneg %p180
    %p187 = scmp.eq.s32.totalorder %s11, 1
    %p188 = por %p186, %p187
    %p189 = scmp.ne.s32.totalorder %s181, %s184
    %p190 = scmp.eq.s32.totalorder %s11, 0
    %p191 = por %p189, %p190
    %p192 = scmp.ne.s32.totalorder %s181, %s184
    %p193 = scmp.eq.s32.totalorder %s16, 1
    %p194 = por %p192, %p193
    %p195 = scmp.ne.s32.totalorder %s184, %s185
    %p196 = scmp.eq.s32.totalorder %s16, 0
    %p197 = por %p195, %p196
    %p198 = scmp.ne.s32.totalorder %s184, %s185
    %p199 = scmp.eq.s32.totalorder %s17, 1
    %p200 = por %p198, %p199
    %p202 = scmp.ne.s32.totalorder %s185, %s201
    %p203 = scmp.eq.s32.totalorder %s17, 0
    %p204 = por %p202, %p203
    %p205 = scmp.le.s32.totalorder 1, %s11
    %p206 = scmp.lt.s32.totalorder %s11, 3
    %p207 = pnand %p205, %p206
    %p208 = pneg %p207
    // Predicated region
    $region9: #{tpu_custom_call.1} parent=5 // pred_check
      _
    $region10: #{tpu_custom_call.1} parent=5 // pred_check_branch
      %210 = sbr.rel (%p207) target = $region12
    $region11: #{tpu_custom_call.1} parent=5 // pred_region
      %s211 = ssub.s32 %s11, 1
      // Predicated region
      $region13: #{tpu_custom_call.1} parent=11 // pred_check
        %p212 = pneg %p148
      $region14: #{tpu_custom_call.1} parent=11 // pred_check_branch
        %214 = sbr.rel (%p212) target = $region16
      $region15: #{tpu_custom_call.1} parent=11 // pred_region
        _
      $region16: #{tpu_custom_call.1} parent=11 // pred_fallthru
        _
      // Predicated region
      $region17: #{tpu_custom_call.1} parent=11 // pred_check
        %p215 = pneg %p169
      $region18: #{tpu_custom_call.1} parent=11 // pred_check_branch
        %217 = sbr.rel (%p215) target = $region20
      $region19: #{tpu_custom_call.1} parent=11 // pred_region
        _
      $region20: #{tpu_custom_call.1} parent=11 // pred_fallthru
        _
    $region12: #{tpu_custom_call.1} parent=5 // pred_fallthru
      _
    %p218 = scmp.lt.s32.totalorder %s11, 2
    // Predicated region
    $region21: #{tpu_custom_call.1} parent=5 // pred_check
      %p219 = pneg %p218
    $region22: #{tpu_custom_call.1} parent=5 // pred_check_branch
      %221 = sbr.rel (%p219) target = $region24
    $region23: #{tpu_custom_call.1} parent=5 // pred_region
      // Predicated region
      $region25: #{tpu_custom_call.1} parent=23 // pred_check
        %p222 = pneg %p45
      $region26: #{tpu_custom_call.1} parent=23 // pred_check_branch
        %224 = sbr.rel (%p222) target = $region28
      $region27: #{tpu_custom_call.1} parent=23 // pred_region
        %s225 = sadd.s32 %s18, %s19
        %s226 = smul.u32 16, %s225
        %p227 = scmp.lt.s32.totalorder %s226, 31
        %s228 = scalar_select %p227, %s226, 31
        %s229 = smul.addr %s228, 2
        %s230 = smul.addr %s229, 8
        %s231 = scalar_lea.vmem %s0, %s230
        %s232 = sadd.s32 %s18, %s19
        %s233 = smul.u32 16, %s232
      $region28: #{tpu_custom_call.1} parent=23 // pred_fallthru
        _
      // Predicated region
      $region29: #{tpu_custom_call.1} parent=23 // pred_check
        %p234 = pneg %p83
      $region30: #{tpu_custom_call.1} parent=23 // pred_check_branch
        %236 = sbr.rel (%p234) target = $region32
      $region31: #{tpu_custom_call.1} parent=23 // pred_region
        %s237 = smul.u32 %s18, 16
        %s238 = smul.u32 %s19, 16
        %s239 = sadd.s32 %s237, %s238
        %s240 = ssub.s32 %s239, 1
        %p241 = scmp.gt.s32.totalorder %s240, 0
        %s242 = scalar_select %p241, %s240, 0
        %p243 = scmp.lt.s32.totalorder %s242, 31
        %s244 = scalar_select %p243, %s242, 31
        %s245 = smul.addr %s244, 2
        %s246 = smul.addr %s245, 8
        %s247 = scalar_lea.vmem %s1, %s246
        %s248 = smul.u32 %s18, 16
        %s249 = smul.u32 %s19, 16
        %s250 = sadd.s32 %s248, %s249
        %s251 = ssub.s32 %s250, 1
        %p252 = scmp.gt.s32.totalorder %s251, 0
        %s253 = scalar_select %p252, %s251, 0
      $region32: #{tpu_custom_call.1} parent=23 // pred_fallthru
        _
      // Predicated region
      $region33: #{tpu_custom_call.1} parent=23 // pred_check
        %p254 = pneg %p121
      $region34: #{tpu_custom_call.1} parent=23 // pred_check_branch
        %256 = sbr.rel (%p254) target = $region36
      $region35: #{tpu_custom_call.1} parent=23 // pred_region
        %s257 = smul.u32 %s18, 16
        %s258 = smul.u32 %s19, 16
        %s259 = sadd.s32 %s257, %s258
        %s260 = sadd.s32 %s259, 16
        %p261 = scmp.lt.s32.totalorder %s260, 31
        %s262 = scalar_select %p261, %s260, 31
        %p263 = scmp.lt.s32.totalorder %s262, 31
        %s264 = scalar_select %p263, %s262, 31
        %s265 = smul.addr %s264, 2
        %s266 = smul.addr %s265, 8
        %s267 = scalar_lea.vmem %s2, %s266
        %s268 = smul.u32 %s18, 16
        %s269 = smul.u32 %s19, 16
        %s270 = sadd.s32 %s268, %s269
        %s271 = sadd.s32 %s270, 16
        %p272 = scmp.lt.s32.totalorder %s271, 31
        %s273 = scalar_select %p272, %s271, 31
      $region36: #{tpu_custom_call.1} parent=23 // pred_fallthru
        _
    $region24: #{tpu_custom_call.1} parent=5 // pred_fallthru
      _
    %p274 = scmp.le.s32.totalorder 1, %s11
    %p275 = scmp.lt.s32.totalorder %s11, 3
    %p276 = pnand %p274, %p275
    %p277 = pneg %p276
    // Predicated region
    $region37: #{tpu_custom_call.1} parent=5 // pred_check
      _
    $region38: #{tpu_custom_call.1} parent=5 // pred_check_branch
      %279 = sbr.rel (%p276) target = $region40
    $region39: #{tpu_custom_call.1} parent=5 // pred_region
      %s280 = ssub.s32 %s11, 1
      %s281 = sadd.s32 %s20, %s21
      %s282 = smul.u32 16, %s281
      %p283 = scmp.lt.s32.totalorder %s282, 31
      %s284 = scalar_select %p283, %s282, 31
      %s285 = smul.addr %s284, 2
      %s286 = smul.addr %s285, 8
      %s287 = scalar_lea.vmem %s0, %s286
      %p288 = pneg %p51
      %p289 = pneg %p48
      %s290 = smul.u32 %s20, 16
      %s291 = smul.u32 %s21, 16
      %s292 = sadd.s32 %s290, %s291
      %s293 = ssub.s32 %s292, 1
      %p294 = scmp.gt.s32.totalorder %s293, 0
      %s295 = scalar_select %p294, %s293, 0
      %p296 = scmp.lt.s32.totalorder %s295, 31
      %s297 = scalar_select %p296, %s295, 31
      %s298 = smul.addr %s297, 2
      %s299 = smul.addr %s298, 8
      %s300 = scalar_lea.vmem %s1, %s299
      %p301 = pneg %p89
      %p302 = pneg %p86
      %s303 = smul.u32 %s20, 16
      %s304 = smul.u32 %s21, 16
      %s305 = sadd.s32 %s303, %s304
      %s306 = sadd.s32 %s305, 16
      %p307 = scmp.lt.s32.totalorder %s306, 31
      %s308 = scalar_select %p307, %s306, 31
      %p309 = scmp.lt.s32.totalorder %s308, 31
      %s310 = scalar_select %p309, %s308, 31
      %s311 = smul.addr %s310, 2
      %s312 = smul.addr %s311, 8
      %s313 = scalar_lea.vmem %s2, %s312
      %p314 = pneg %p127
      %p315 = pneg %p124
      %p316 = pneg %p148
      %p317 = pneg %p145
      %p318 = pneg %p169
      %p319 = pneg %p166
      %p320 = pneg %p197
      %p321 = pneg %p194
      %s322 = sadd.s32 %s20, %s21
      %s323 = smul.u32 16, %s322
      %p324 = scmp.lt.s32.totalorder %s323, 31
      %s325 = scalar_select %p324, %s323, 31
      %s326 = smul.addr %s325, 4
      %s327 = smul.addr %s326, 8
      %s328 = scalar_lea.vmem %s5, %s327
      %s329 = sadd.s32 %s20, %s21
      %s330 = smul.u32 16, %s329
      %p331 = scmp.lt.s32.totalorder %s330, 31
      %s332 = scalar_select %p331, %s330, 31
      %s333 = smul.addr %s332, 2
      %s334 = smul.addr %s333, 8
      %s335 = scalar_lea.vmem %s0, %s334
      %s336 = sadd.s32 %s20, %s21
      %s337 = smul.u32 16, %s336
      %s338 = smul.u32 %s20, 16
      %s339 = smul.u32 %s21, 16
      %s340 = sadd.s32 %s338, %s339
      %s341 = ssub.s32 %s340, 1
      %p342 = scmp.gt.s32.totalorder %s341, 0
      %s343 = scalar_select %p342, %s341, 0
      %p344 = scmp.lt.s32.totalorder %s343, 31
      %s345 = scalar_select %p344, %s343, 31
      %s346 = smul.addr %s345, 2
      %s347 = smul.addr %s346, 8
      %s348 = scalar_lea.vmem %s1, %s347
      %s349 = smul.u32 %s20, 16
      %s350 = smul.u32 %s21, 16
      %s351 = sadd.s32 %s349, %s350
      %s352 = ssub.s32 %s351, 1
      %p353 = scmp.gt.s32.totalorder %s352, 0
      %s354 = scalar_select %p353, %s352, 0
      %s355 = smul.u32 %s20, 16
      %s356 = smul.u32 %s21, 16
      %s357 = sadd.s32 %s355, %s356
      %s358 = sadd.s32 %s357, 16
      %p359 = scmp.lt.s32.totalorder %s358, 31
      %s360 = scalar_select %p359, %s358, 31
      %p361 = scmp.lt.s32.totalorder %s360, 31
      %s362 = scalar_select %p361, %s360, 31
      %s363 = smul.addr %s362, 2
      %s364 = smul.addr %s363, 8
      %s365 = scalar_lea.vmem %s2, %s364
      %s366 = smul.u32 %s20, 16
      %s367 = smul.u32 %s21, 16
      %s368 = sadd.s32 %s366, %s367
      %s369 = sadd.s32 %s368, 16
      %p370 = scmp.lt.s32.totalorder %s369, 31
      %s371 = scalar_select %p370, %s369, 31
      %s372 = sadd.s32 %s20, %s21
      %s373 = smul.u32 16, %s372
      %p374 = scmp.lt.s32.totalorder %s373, 31
      %s375 = scalar_select %p374, %s373, 31
      %s376 = smul.addr %s375, 4
      %s377 = smul.addr %s376, 8
      %s378 = scalar_lea.vmem %s5, %s377
      %s379 = sadd.s32 %s20, %s21
      %s380 = smul.u32 16, %s379
      %vm382 = vcmask 24576
      %vm383 = vsmask.f32 256
      %vm384 = vmand %vm382, %vm383
      %v385 = vld [vmem:[#allocation2] sm:$0x1]
      %v386 = vsel %vm384, 0, %v385
      %387 = vst [vmem:[#allocation2] sm:$0x1] %v386
      %v388 = vld [vmem:[#allocation2 + $0xc] sm:$0x1]
      %v389 = vsel %vm384, 0, %v388
      %390 = vst [vmem:[#allocation2 + $0xc] sm:$0x1] %v389
      %v391 = vld [vmem:[#allocation2 + $0x18] sm:$0x1]
      %v392 = vsel %vm384, 0, %v391
      %393 = vst [vmem:[#allocation2 + $0x18] sm:$0x1] %v392
      %v394 = vld [vmem:[#allocation2 + $0x24] sm:$0x1]
      %v395 = vsel %vm384, 0, %v394
      %396 = vst [vmem:[#allocation2 + $0x24] sm:$0x1] %v395
      %v397 = vld [vmem:[#allocation2 + $0x30] sm:$0x1]
      %v398 = vsel %vm384, 0, %v397
      %399 = vst [vmem:[#allocation2 + $0x30] sm:$0x1] %v398
      %v400 = vld [vmem:[#allocation2 + $0x3c] sm:$0x1]
      %v401 = vsel %vm384, 0, %v400
      %402 = vst [vmem:[#allocation2 + $0x3c] sm:$0x1] %v401
      %v403 = vld [vmem:[#allocation2 + $0x48] sm:$0x1]
      %v404 = vsel %vm384, 0, %v403
      %405 = vst [vmem:[#allocation2 + $0x48] sm:$0x1] %v404
      %v406 = vld [vmem:[#allocation2 + $0x54] sm:$0x1]
      %v407 = vsel %vm384, 0, %v406
      %408 = vst [vmem:[#allocation2 + $0x54] sm:$0x1] %v407
      %v409 = vld [vmem:[#allocation2 + $0x60] sm:$0x1]
      %v410 = vsel %vm384, 0, %v409
      %411 = vst [vmem:[#allocation2 + $0x60] sm:$0x1] %v410
      %v412 = vld [vmem:[#allocation2 + $0x6c] sm:$0x1]
      %v413 = vsel %vm384, 0, %v412
      %414 = vst [vmem:[#allocation2 + $0x6c] sm:$0x1] %v413
      %v415 = vld [vmem:[#allocation2 + $0x78] sm:$0x1]
      %v416 = vsel %vm384, 0, %v415
      %417 = vst [vmem:[#allocation2 + $0x78] sm:$0x1] %v416
      %v418 = vld [vmem:[#allocation2 + $0x84] sm:$0x1]
      %v419 = vsel %vm384, 0, %v418
      %420 = vst [vmem:[#allocation2 + $0x84] sm:$0x1] %v419
      %v421 = vld [vmem:[#allocation2 + $0x90] sm:$0x1]
      %v422 = vsel %vm384, 0, %v421
      %423 = vst [vmem:[#allocation2 + $0x90] sm:$0x1] %v422
      %v424 = vld [vmem:[#allocation2 + $0x9c] sm:$0x1]
      %v425 = vsel %vm384, 0, %v424
      %426 = vst [vmem:[#allocation2 + $0x9c] sm:$0x1] %v425
      %v427 = vld [vmem:[#allocation2 + $0xa8] sm:$0x1]
      %v428 = vsel %vm384, 0, %v427
      %429 = vst [vmem:[#allocation2 + $0xa8] sm:$0x1] %v428
      %v430 = vld [vmem:[#allocation2 + $0xb4] sm:$0x1]
      %v431 = vsel %vm384, 0, %v430
      %432 = vst [vmem:[#allocation2 + $0xb4] sm:$0x1] %v431
      %v433 = vld [vmem:[#allocation2 + $0xc0] sm:$0x1]
      %v434 = vsel %vm384, 0, %v433
      %435 = vst [vmem:[#allocation2 + $0xc0] sm:$0x1] %v434
      %v436 = vld [vmem:[#allocation2 + $0xcc] sm:$0x1]
      %v437 = vsel %vm384, 0, %v436
      %438 = vst [vmem:[#allocation2 + $0xcc] sm:$0x1] %v437
      %vm439 = vsmask.f32 7938
      %vm440 = vmand %vm382, %vm439
      %v441 = vld [vmem:[#allocation2 + $0x8] sm:$0x1]
      %v442 = vsel %vm440, 0, %v441
      %443 = vst [vmem:[#allocation2 + $0x8] sm:$0x1] %v442
      %v444 = vld [vmem:[#allocation2 + $0x14] sm:$0x1]
      %v445 = vsel %vm440, 0, %v444
      %446 = vst [vmem:[#allocation2 + $0x14] sm:$0x1] %v445
      %v447 = vld [vmem:[#allocation2 + $0x20] sm:$0x1]
      %v448 = vsel %vm440, 0, %v447
      %449 = vst [vmem:[#allocation2 + $0x20] sm:$0x1] %v448
      %v450 = vld [vmem:[#allocation2 + $0x2c] sm:$0x1]
      %v451 = vsel %vm440, 0, %v450
      %452 = vst [vmem:[#allocation2 + $0x2c] sm:$0x1] %v451
      %v453 = vld [vmem:[#allocation2 + $0x38] sm:$0x1]
      %v454 = vsel %vm440, 0, %v453
      %455 = vst [vmem:[#allocation2 + $0x38] sm:$0x1] %v454
      %v456 = vld [vmem:[#allocation2 + $0x44] sm:$0x1]
      %v457 = vsel %vm440, 0, %v456
      %458 = vst [vmem:[#allocation2 + $0x44] sm:$0x1] %v457
      %v459 = vld [vmem:[#allocation2 + $0x50] sm:$0x1]
      %v460 = vsel %vm440, 0, %v459
      %461 = vst [vmem:[#allocation2 + $0x50] sm:$0x1] %v460
      %v462 = vld [vmem:[#allocation2 + $0x5c] sm:$0x1]
      %v463 = vsel %vm440, 0, %v462
      %464 = vst [vmem:[#allocation2 + $0x5c] sm:$0x1] %v463
      %v465 = vld [vmem:[#allocation2 + $0x68] sm:$0x1]
      %v466 = vsel %vm440, 0, %v465
      %467 = vst [vmem:[#allocation2 + $0x68] sm:$0x1] %v466
      %v468 = vld [vmem:[#allocation2 + $0x74] sm:$0x1]
      %v469 = vsel %vm440, 0, %v468
      %470 = vst [vmem:[#allocation2 + $0x74] sm:$0x1] %v469
      %v471 = vld [vmem:[#allocation2 + $0x80] sm:$0x1]
      %v472 = vsel %vm440, 0, %v471
      %473 = vst [vmem:[#allocation2 + $0x80] sm:$0x1] %v472
      %v474 = vld [vmem:[#allocation2 + $0x8c] sm:$0x1]
      %v475 = vsel %vm440, 0, %v474
      %476 = vst [vmem:[#allocation2 + $0x8c] sm:$0x1] %v475
      %v477 = vld [vmem:[#allocation2 + $0x98] sm:$0x1]
      %v478 = vsel %vm440, 0, %v477
      %479 = vst [vmem:[#allocation2 + $0x98] sm:$0x1] %v478
      %v480 = vld [vmem:[#allocation2 + $0xa4] sm:$0x1]
      %v481 = vsel %vm440, 0, %v480
      %482 = vst [vmem:[#allocation2 + $0xa4] sm:$0x1] %v481
      %v483 = vld [vmem:[#allocation2 + $0xb0] sm:$0x1]
      %v484 = vsel %vm440, 0, %v483
      %485 = vst [vmem:[#allocation2 + $0xb0] sm:$0x1] %v484
      %v486 = vld [vmem:[#allocation2 + $0xbc] sm:$0x1]
      %v487 = vsel %vm440, 0, %v486
      %488 = vst [vmem:[#allocation2 + $0xbc] sm:$0x1] %v487
      %v489 = vld [vmem:[#allocation2 + $0xc8] sm:$0x1]
      %v490 = vsel %vm440, 0, %v489
      %491 = vst [vmem:[#allocation2 + $0xc8] sm:$0x1] %v490
      %v492 = vld [vmem:[#allocation2 + $0xd4] sm:$0x1]
      %v493 = vsel %vm440, 0, %v492
      %494 = vst [vmem:[#allocation2 + $0xd4] sm:$0x1] %v493
      %v495 = vld [vmem:[%s335] sm:$0xff]
      %v496 = vld [vmem:[%s335 + $0x8] sm:$0xff]
      %v497 = vld [vmem:[%s335 + $0x10] sm:$0xff]
      %v498 = vld [vmem:[%s335 + $0x18] sm:$0xff]
      %v499 = vld [vmem:[%s335 + $0x20] sm:$0xff]
      %v500 = vld [vmem:[%s335 + $0x28] sm:$0xff]
      %v501 = vld [vmem:[%s335 + $0x30] sm:$0xff]
      %v502 = vld [vmem:[%s335 + $0x38] sm:$0xff]
      %v503 = vld [vmem:[%s335 + $0x40] sm:$0xff]
      %v504 = vld [vmem:[%s335 + $0x48] sm:$0xff]
      %v505 = vld [vmem:[%s335 + $0x50] sm:$0xff]
      %v506 = vld [vmem:[%s335 + $0x58] sm:$0xff]
      %v507 = vld [vmem:[%s335 + $0x60] sm:$0xff]
      %v508 = vld [vmem:[%s335 + $0x68] sm:$0xff]
      %v509 = vld [vmem:[%s335 + $0x70] sm:$0xff]
      %v510 = vld [vmem:[%s335 + $0x78] sm:$0xff]
      %v511 = vld [vmem:[%s335 + $0x80] sm:$0xff]
      %v512 = vld [vmem:[%s335 + $0x88] sm:$0xff]
      %v513 = vld [vmem:[%s335 + $0x90] sm:$0xff]
      %v514 = vld [vmem:[%s335 + $0x98] sm:$0xff]
      %v515 = vld [vmem:[%s335 + $0xa0] sm:$0xff]
      %v516 = vld [vmem:[%s335 + $0xa8] sm:$0xff]
      %v517 = vld [vmem:[%s335 + $0xb0] sm:$0xff]
      %v518 = vld [vmem:[%s335 + $0xb8] sm:$0xff]
      %v519 = vld [vmem:[%s335 + $0xc0] sm:$0xff]
      %v520 = vld [vmem:[%s335 + $0xc8] sm:$0xff]
      %v521 = vld [vmem:[%s335 + $0xd0] sm:$0xff]
      %v522 = vld [vmem:[%s335 + $0xd8] sm:$0xff]
      %v523 = vld [vmem:[%s335 + $0xe0] sm:$0xff]
      %v524 = vld [vmem:[%s335 + $0xe8] sm:$0xff]
      %v525 = vld [vmem:[%s335 + $0xf0] sm:$0xff]
      %v526 = vld [vmem:[%s335 + $0xf8] sm:$0xff]
      %v527 = vpack.c.bf16 %v496, %v495
      %v528 = vpack.c.bf16 %v498, %v497
      %v529 = vpack.c.bf16 %v500, %v499
      %v530 = vpack.c.bf16 %v502, %v501
      %v531 = vpack.c.bf16 %v504, %v503
      %v532 = vpack.c.bf16 %v506, %v505
      %v533 = vpack.c.bf16 %v508, %v507
      %v534 = vpack.c.bf16 %v510, %v509
      %v535 = vpack.c.bf16 %v512, %v511
      %v536 = vpack.c.bf16 %v514, %v513
      %v537 = vpack.c.bf16 %v516, %v515
      %v538 = vpack.c.bf16 %v518, %v517
      %v539 = vpack.c.bf16 %v520, %v519
      %v540 = vpack.c.bf16 %v522, %v521
      %v541 = vpack.c.bf16 %v524, %v523
      %v542 = vpack.c.bf16 %v526, %v525
      %v559 = vunpack.c.l.b16 %v527
      %v560 = vunpack.c.h.b16 %v527
      %v561 = vunpack.c.l.b16 %v528
      %v562 = vunpack.c.h.b16 %v528
      %v563 = vunpack.c.l.b16 %v529
      %v564 = vunpack.c.h.b16 %v529
      %v565 = vunpack.c.l.b16 %v530
      %v566 = vunpack.c.h.b16 %v530
      %v567 = vunpack.c.l.b16 %v531
      %v568 = vunpack.c.h.b16 %v531
      %v569 = vunpack.c.l.b16 %v532
      %v570 = vunpack.c.h.b16 %v532
      %v571 = vunpack.c.l.b16 %v533
      %v572 = vunpack.c.h.b16 %v533
      %v573 = vunpack.c.l.b16 %v534
      %v574 = vunpack.c.h.b16 %v534
      %v575 = vunpack.c.l.b16 %v535
      %v576 = vunpack.c.h.b16 %v535
      %v577 = vunpack.c.l.b16 %v536
      %v578 = vunpack.c.h.b16 %v536
      %v579 = vunpack.c.l.b16 %v537
      %v580 = vunpack.c.h.b16 %v537
      %v581 = vunpack.c.l.b16 %v538
      %v582 = vunpack.c.h.b16 %v538
      %v583 = vunpack.c.l.b16 %v539
      %v584 = vunpack.c.h.b16 %v539
      %v585 = vunpack.c.l.b16 %v540
      %v586 = vunpack.c.h.b16 %v540
      %v587 = vunpack.c.l.b16 %v541
      %v588 = vunpack.c.h.b16 %v541
      %v589 = vunpack.c.l.b16 %v542
      %v590 = vunpack.c.h.b16 %v542
      %v591 = vpack.c.b16 %v559, %v559
      %v592 = vpack.c.b16 %v560, %v560
      %v593 = vpack.c.b16 %v561, %v561
      %v594 = vpack.c.b16 %v562, %v562
      %v595 = vpack.c.b16 %v563, %v563
      %v596 = vpack.c.b16 %v564, %v564
      %v597 = vpack.c.b16 %v565, %v565
      %v598 = vpack.c.b16 %v566, %v566
      %v599 = vpack.c.b16 %v567, %v567
      %v600 = vpack.c.b16 %v568, %v568
      %v601 = vpack.c.b16 %v569, %v569
      %v602 = vpack.c.b16 %v570, %v570
      %v603 = vpack.c.b16 %v571, %v571
      %v604 = vpack.c.b16 %v572, %v572
      %v605 = vpack.c.b16 %v573, %v573
      %v606 = vpack.c.b16 %v574, %v574
      %v607 = vpack.c.b16 %v575, %v575
      %v608 = vpack.c.b16 %v576, %v576
      %v609 = vpack.c.b16 %v577, %v577
      %v610 = vpack.c.b16 %v578, %v578
      %v611 = vpack.c.b16 %v579, %v579
      %v612 = vpack.c.b16 %v580, %v580
      %v613 = vpack.c.b16 %v581, %v581
      %v614 = vpack.c.b16 %v582, %v582
      %v615 = vpack.c.b16 %v583, %v583
      %v616 = vpack.c.b16 %v584, %v584
      %v617 = vpack.c.b16 %v585, %v585
      %v618 = vpack.c.b16 %v586, %v586
      %v619 = vpack.c.b16 %v587, %v587
      %v620 = vpack.c.b16 %v588, %v588
      %v621 = vpack.c.b16 %v589, %v589
      %v622 = vpack.c.b16 %v590, %v590
      %vm623 = vsmask.f32 4368
      %vm624 = vmor %vm383, %vm623
      %v626 = vshrl.u32 %v591, 16
      %v628 = vrot.slane %v626, 7
      %v629 = vshll.u32 %v591, 16
      %v631 = vor.u32 %v628, %v629
      %v632 = vrot.slane %v628, 4
      %v634 = vshrl.u32 %v592, 16
      %v636 = vrot.slane %v634, 7
      %v637 = vshll.u32 %v592, 16
      %v639 = vor.u32 %v636, %v637
      %v640 = vsel %vm624, %v632, %v639
      %v641 = vrot.slane %v636, 4
      %v643 = vshrl.u32 %v593, 16
      %v645 = vrot.slane %v643, 7
      %v646 = vshll.u32 %v593, 16
      %v648 = vor.u32 %v645, %v646
      %v649 = vrot.slane %v645, 4
      %v651 = vshrl.u32 %v594, 16
      %v653 = vrot.slane %v651, 7
      %v654 = vshll.u32 %v594, 16
      %v656 = vor.u32 %v653, %v654
      %v657 = vsel %vm624, %v649, %v656
      %v658 = vrot.slane %v653, 4
      %v660 = vshrl.u32 %v595, 16
      %v662 = vrot.slane %v660, 7
      %v663 = vshll.u32 %v595, 16
      %v665 = vor.u32 %v662, %v663
      %v666 = vrot.slane %v662, 4
      %v668 = vshrl.u32 %v596, 16
      %v670 = vrot.slane %v668, 7
      %v671 = vshll.u32 %v596, 16
      %v673 = vor.u32 %v670, %v671
      %v674 = vsel %vm624, %v666, %v673
      %v675 = vrot.slane %v670, 4
      %v677 = vshrl.u32 %v597, 16
      %v679 = vrot.slane %v677, 7
      %v680 = vshll.u32 %v597, 16
      %v682 = vor.u32 %v679, %v680
      %v683 = vrot.slane %v679, 4
      %v685 = vshrl.u32 %v598, 16
      %v687 = vrot.slane %v685, 7
      %v688 = vshll.u32 %v598, 16
      %v690 = vor.u32 %v687, %v688
      %v691 = vsel %vm624, %v683, %v690
      %v692 = vrot.slane %v687, 4
      %v694 = vshrl.u32 %v599, 16
      %v696 = vrot.slane %v694, 7
      %v697 = vshll.u32 %v599, 16
      %v699 = vor.u32 %v696, %v697
      %v700 = vrot.slane %v696, 4
      %v702 = vshrl.u32 %v600, 16
      %v704 = vrot.slane %v702, 7
      %v705 = vshll.u32 %v600, 16
      %v707 = vor.u32 %v704, %v705
      %v708 = vsel %vm624, %v700, %v707
      %v709 = vrot.slane %v704, 4
      %v711 = vshrl.u32 %v601, 16
      %v713 = vrot.slane %v711, 7
      %v714 = vshll.u32 %v601, 16
      %v716 = vor.u32 %v713, %v714
      %v717 = vrot.slane %v713, 4
      %v719 = vshrl.u32 %v602, 16
      %v721 = vrot.slane %v719, 7
      %v722 = vshll.u32 %v602, 16
      %v724 = vor.u32 %v721, %v722
      %v725 = vsel %vm624, %v717, %v724
      %v726 = vrot.slane %v721, 4
      %v728 = vshrl.u32 %v603, 16
      %v730 = vrot.slane %v728, 7
      %v731 = vshll.u32 %v603, 16
      %v733 = vor.u32 %v730, %v731
      %v734 = vrot.slane %v730, 4
      %v736 = vshrl.u32 %v604, 16
      %v738 = vrot.slane %v736, 7
      %v739 = vshll.u32 %v604, 16
      %v741 = vor.u32 %v738, %v739
      %v742 = vsel %vm624, %v734, %v741
      %v743 = vrot.slane %v738, 4
      %v745 = vshrl.u32 %v605, 16
      %v747 = vrot.slane %v745, 7
      %v748 = vshll.u32 %v605, 16
      %v750 = vor.u32 %v747, %v748
      %v751 = vrot.slane %v747, 4
      %v753 = vshrl.u32 %v606, 16
      %v755 = vrot.slane %v753, 7
      %v756 = vshll.u32 %v606, 16
      %v758 = vor.u32 %v755, %v756
      %v759 = vsel %vm624, %v751, %v758
      %v760 = vrot.slane %v755, 4
      %v762 = vshrl.u32 %v607, 16
      %v764 = vrot.slane %v762, 7
      %v765 = vshll.u32 %v607, 16
      %v767 = vor.u32 %v764, %v765
      %v768 = vrot.slane %v764, 4
      %v770 = vshrl.u32 %v608, 16
      %v772 = vrot.slane %v770, 7
      %v773 = vshll.u32 %v608, 16
      %v775 = vor.u32 %v772, %v773
      %v776 = vsel %vm624, %v768, %v775
      %v777 = vrot.slane %v772, 4
      %v779 = vshrl.u32 %v609, 16
      %v781 = vrot.slane %v779, 7
      %v782 = vshll.u32 %v609, 16
      %v784 = vor.u32 %v781, %v782
      %v785 = vrot.slane %v781, 4
      %v787 = vshrl.u32 %v610, 16
      %v789 = vrot.slane %v787, 7
      %v790 = vshll.u32 %v610, 16
      %v792 = vor.u32 %v789, %v790
      %v793 = vsel %vm624, %v785, %v792
      %v794 = vrot.slane %v789, 4
      %v796 = vshrl.u32 %v611, 16
      %v798 = vrot.slane %v796, 7
      %v799 = vshll.u32 %v611, 16
      %v801 = vor.u32 %v798, %v799
      %v802 = vrot.slane %v798, 4
      %v804 = vshrl.u32 %v612, 16
      %v806 = vrot.slane %v804, 7
      %v807 = vshll.u32 %v612, 16
      %v809 = vor.u32 %v806, %v807
      %v810 = vsel %vm624, %v802, %v809
      %v811 = vrot.slane %v806, 4
      %v813 = vshrl.u32 %v613, 16
      %v815 = vrot.slane %v813, 7
      %v816 = vshll.u32 %v613, 16
      %v818 = vor.u32 %v815, %v816
      %v819 = vrot.slane %v815, 4
      %v821 = vshrl.u32 %v614, 16
      %v823 = vrot.slane %v821, 7
      %v824 = vshll.u32 %v614, 16
      %v826 = vor.u32 %v823, %v824
      %v827 = vsel %vm624, %v819, %v826
      %v828 = vrot.slane %v823, 4
      %v830 = vshrl.u32 %v615, 16
      %v832 = vrot.slane %v830, 7
      %v833 = vshll.u32 %v615, 16
      %v835 = vor.u32 %v832, %v833
      %v836 = vrot.slane %v832, 4
      %v838 = vshrl.u32 %v616, 16
      %v840 = vrot.slane %v838, 7
      %v841 = vshll.u32 %v616, 16
      %v843 = vor.u32 %v840, %v841
      %v844 = vsel %vm624, %v836, %v843
      %v845 = vrot.slane %v840, 4
      %v847 = vshrl.u32 %v617, 16
      %v849 = vrot.slane %v847, 7
      %v850 = vshll.u32 %v617, 16
      %v852 = vor.u32 %v849, %v850
      %v853 = vrot.slane %v849, 4
      %v855 = vshrl.u32 %v618, 16
      %v857 = vrot.slane %v855, 7
      %v858 = vshll.u32 %v618, 16
      %v860 = vor.u32 %v857, %v858
      %v861 = vsel %vm624, %v853, %v860
      %v862 = vrot.slane %v857, 4
      %v864 = vshrl.u32 %v619, 16
      %v866 = vrot.slane %v864, 7
      %v867 = vshll.u32 %v619, 16
      %v869 = vor.u32 %v866, %v867
      %v870 = vrot.slane %v866, 4
      %v872 = vshrl.u32 %v620, 16
      %v874 = vrot.slane %v872, 7
      %v875 = vshll.u32 %v620, 16
      %v877 = vor.u32 %v874, %v875
      %v878 = vsel %vm624, %v870, %v877
      %v879 = vrot.slane %v874, 4
      %v881 = vshrl.u32 %v621, 16
      %v883 = vrot.slane %v881, 7
      %v884 = vshll.u32 %v621, 16
      %v886 = vor.u32 %v883, %v884
      %v887 = vrot.slane %v883, 4
      %v889 = vshrl.u32 %v622, 16
      %v891 = vrot.slane %v889, 7
      %v892 = vshll.u32 %v622, 16
      %v894 = vor.u32 %v891, %v892
      %v895 = vsel %vm624, %v887, %v894
      %v896 = vrot.slane %v891, 4
      %s945 = scalar_lea.vmem [#allocation2], 12
      %vm946 = vcmask 27648
      %vm947 = vmand %vm946, %vm439
      %v948 = vld [vmem:[%s945] sm:$0xf]
      %v949 = vsel %vm947, %v631, %v948
      %950 = vst [vmem:[%s945] sm:$0xf] %v949
      %vm951 = vcmask 27648
      %952 = vst.msk [vmem:[%s945 + $0x4] sm:$0xf] %vm951, %v640
      %v953 = vld [vmem:[%s945 + $0x8] sm:$0x1]
      %v954 = vsel %vm384, %v641, %v953
      %955 = vst [vmem:[%s945 + $0x8] sm:$0x1] %v954
      %v956 = vld [vmem:[%s945 + $0xc] sm:$0xf]
      %v957 = vsel %vm947, %v648, %v956
      %958 = vst [vmem:[%s945 + $0xc] sm:$0xf] %v957
      %959 = vst.msk [vmem:[%s945 + $0x10] sm:$0xf] %vm951, %v657
      %v960 = vld [vmem:[%s945 + $0x14] sm:$0x1]
      %v961 = vsel %vm384, %v658, %v960
      %962 = vst [vmem:[%s945 + $0x14] sm:$0x1] %v961
      %v963 = vld [vmem:[%s945 + $0x18] sm:$0xf]
      %v964 = vsel %vm947, %v665, %v963
      %965 = vst [vmem:[%s945 + $0x18] sm:$0xf] %v964
      %966 = vst.msk [vmem:[%s945 + $0x1c] sm:$0xf] %vm951, %v674
      %v967 = vld [vmem:[%s945 + $0x20] sm:$0x1]
      %v968 = vsel %vm384, %v675, %v967
      %969 = vst [vmem:[%s945 + $0x20] sm:$0x1] %v968
      %v970 = vld [vmem:[%s945 + $0x24] sm:$0xf]
      %v971 = vsel %vm947, %v682, %v970
      %972 = vst [vmem:[%s945 + $0x24] sm:$0xf] %v971
      %973 = vst.msk [vmem:[%s945 + $0x28] sm:$0xf] %vm951, %v691
      %v974 = vld [vmem:[%s945 + $0x2c] sm:$0x1]
      %v975 = vsel %vm384, %v692, %v974
      %976 = vst [vmem:[%s945 + $0x2c] sm:$0x1] %v975
      %v977 = vld [vmem:[%s945 + $0x30] sm:$0xf]
      %v978 = vsel %vm947, %v699, %v977
      %979 = vst [vmem:[%s945 + $0x30] sm:$0xf] %v978
      %980 = vst.msk [vmem:[%s945 + $0x34] sm:$0xf] %vm951, %v708
      %v981 = vld [vmem:[%s945 + $0x38] sm:$0x1]
      %v982 = vsel %vm384, %v709, %v981
      %983 = vst [vmem:[%s945 + $0x38] sm:$0x1] %v982
      %v984 = vld [vmem:[%s945 + $0x3c] sm:$0xf]
      %v985 = vsel %vm947, %v716, %v984
      %986 = vst [vmem:[%s945 + $0x3c] sm:$0xf] %v985
      %987 = vst.msk [vmem:[%s945 + $0x40] sm:$0xf] %vm951, %v725
      %v988 = vld [vmem:[%s945 + $0x44] sm:$0x1]
      %v989 = vsel %vm384, %v726, %v988
      %990 = vst [vmem:[%s945 + $0x44] sm:$0x1] %v989
      %v991 = vld [vmem:[%s945 + $0x48] sm:$0xf]
      %v992 = vsel %vm947, %v733, %v991
      %993 = vst [vmem:[%s945 + $0x48] sm:$0xf] %v992
      %994 = vst.msk [vmem:[%s945 + $0x4c] sm:$0xf] %vm951, %v742
      %v995 = vld [vmem:[%s945 + $0x50] sm:$0x1]
      %v996 = vsel %vm384, %v743, %v995
      %997 = vst [vmem:[%s945 + $0x50] sm:$0x1] %v996
      %v998 = vld [vmem:[%s945 + $0x54] sm:$0xf]
      %v999 = vsel %vm947, %v750, %v998
      %1000 = vst [vmem:[%s945 + $0x54] sm:$0xf] %v999
      %1001 = vst.msk [vmem:[%s945 + $0x58] sm:$0xf] %vm951, %v759
      %v1002 = vld [vmem:[%s945 + $0x5c] sm:$0x1]
      %v1003 = vsel %vm384, %v760, %v1002
      %1004 = vst [vmem:[%s945 + $0x5c] sm:$0x1] %v1003
      %v1005 = vld [vmem:[%s945 + $0x60] sm:$0xf]
      %v1006 = vsel %vm947, %v767, %v1005
      %1007 = vst [vmem:[%s945 + $0x60] sm:$0xf] %v1006
      %1008 = vst.msk [vmem:[%s945 + $0x64] sm:$0xf] %vm951, %v776
      %v1009 = vld [vmem:[%s945 + $0x68] sm:$0x1]
      %v1010 = vsel %vm384, %v777, %v1009
      %1011 = vst [vmem:[%s945 + $0x68] sm:$0x1] %v1010
      %v1012 = vld [vmem:[%s945 + $0x6c] sm:$0xf]
      %v1013 = vsel %vm947, %v784, %v1012
      %1014 = vst [vmem:[%s945 + $0x6c] sm:$0xf] %v1013
      %1015 = vst.msk [vmem:[%s945 + $0x70] sm:$0xf] %vm951, %v793
      %v1016 = vld [vmem:[%s945 + $0x74] sm:$0x1]
      %v1017 = vsel %vm384, %v794, %v1016
      %1018 = vst [vmem:[%s945 + $0x74] sm:$0x1] %v1017
      %v1019 = vld [vmem:[%s945 + $0x78] sm:$0xf]
      %v1020 = vsel %vm947, %v801, %v1019
      %1021 = vst [vmem:[%s945 + $0x78] sm:$0xf] %v1020
      %1022 = vst.msk [vmem:[%s945 + $0x7c] sm:$0xf] %vm951, %v810
      %v1023 = vld [vmem:[%s945 + $0x80] sm:$0x1]
      %v1024 = vsel %vm384, %v811, %v1023
      %1025 = vst [vmem:[%s945 + $0x80] sm:$0x1] %v1024
      %v1026 = vld [vmem:[%s945 + $0x84] sm:$0xf]
      %v1027 = vsel %vm947, %v818, %v1026
      %1028 = vst [vmem:[%s945 + $0x84] sm:$0xf] %v1027
      %1029 = vst.msk [vmem:[%s945 + $0x88] sm:$0xf] %vm951, %v827
      %v1030 = vld [vmem:[%s945 + $0x8c] sm:$0x1]
      %v1031 = vsel %vm384, %v828, %v1030
      %1032 = vst [vmem:[%s945 + $0x8c] sm:$0x1] %v1031
      %v1033 = vld [vmem:[%s945 + $0x90] sm:$0xf]
      %v1034 = vsel %vm947, %v835, %v1033
      %1035 = vst [vmem:[%s945 + $0x90] sm:$0xf] %v1034
      %1036 = vst.msk [vmem:[%s945 + $0x94] sm:$0xf] %vm951, %v844
      %v1037 = vld [vmem:[%s945 + $0x98] sm:$0x1]
      %v1038 = vsel %vm384, %v845, %v1037
      %1039 = vst [vmem:[%s945 + $0x98] sm:$0x1] %v1038
      %v1040 = vld [vmem:[%s945 + $0x9c] sm:$0xf]
      %v1041 = vsel %vm947, %v852, %v1040
      %1042 = vst [vmem:[%s945 + $0x9c] sm:$0xf] %v1041
      %1043 = vst.msk [vmem:[%s945 + $0xa0] sm:$0xf] %vm951, %v861
      %v1044 = vld [vmem:[%s945 + $0xa4] sm:$0x1]
      %v1045 = vsel %vm384, %v862, %v1044
      %1046 = vst [vmem:[%s945 + $0xa4] sm:$0x1] %v1045
      %v1047 = vld [vmem:[%s945 + $0xa8] sm:$0xf]
      %v1048 = vsel %vm947, %v869, %v1047
      %1049 = vst [vmem:[%s945 + $0xa8] sm:$0xf] %v1048
      %1050 = vst.msk [vmem:[%s945 + $0xac] sm:$0xf] %vm951, %v878
      %v1051 = vld [vmem:[%s945 + $0xb0] sm:$0x1]
      %v1052 = vsel %vm384, %v879, %v1051
      %1053 = vst [vmem:[%s945 + $0xb0] sm:$0x1] %v1052
      %v1054 = vld [vmem:[%s945 + $0xb4] sm:$0xf]
      %v1055 = vsel %vm947, %v886, %v1054
      %1056 = vst [vmem:[%s945 + $0xb4] sm:$0xf] %v1055
      %1057 = vst.msk [vmem:[%s945 + $0xb8] sm:$0xf] %vm951, %v895
      %v1058 = vld [vmem:[%s945 + $0xbc] sm:$0x1]
      %v1059 = vsel %vm384, %v896, %v1058
      %1060 = vst [vmem:[%s945 + $0xbc] sm:$0x1] %v1059
      %v1061 = vld [vmem:[%s348] sm:$0xff]
      %v1062 = vld [vmem:[%s348 + $0x8] sm:$0xff]
      %v1063 = vpack.c.bf16 %v1062, %v1061
      %p1064 = scmp.eq.s32.totalorder %s21, 0
      %s1065 = scalar_select %p1064, 1, 0
      %v1066 = vstv %s1065
      %vm1067 = vcmp.eq.s32.totalorder %v1066, 1
      %v1068 = vsel %vm1067, 0, %v1063
      %v1070 = vunpack.c.l.b16 %v1068
      %v1071 = vunpack.c.h.b16 %v1068
      %v1072 = vpack.c.b16 %v1070, %v1070
      %v1073 = vpack.c.b16 %v1071, %v1071
      %v1075 = vshrl.u32 %v1072, 16
      %v1077 = vrot.slane %v1075, 7
      %v1078 = vshll.u32 %v1072, 16
      %v1080 = vor.u32 %v1077, %v1078
      %v1081 = vrot.slane %v1077, 4
      %v1083 = vshrl.u32 %v1073, 16
      %v1085 = vrot.slane %v1083, 7
      %v1086 = vshll.u32 %v1073, 16
      %v1088 = vor.u32 %v1085, %v1086
      %v1089 = vsel %vm624, %v1081, %v1088
      %v1090 = vrot.slane %v1085, 4
      %v1094 = vld [vmem:[#allocation2] sm:$0xf]
      %v1095 = vsel %vm947, %v1080, %v1094
      %1096 = vst [vmem:[#allocation2] sm:$0xf] %v1095
      %1097 = vst.msk [vmem:[#allocation2 + $0x4] sm:$0xf] %vm951, %v1089
      %v1098 = vld [vmem:[#allocation2 + $0x8] sm:$0x1]
      %v1099 = vsel %vm384, %v1090, %v1098
      %1100 = vst [vmem:[#allocation2 + $0x8] sm:$0x1] %v1099
      %v1101 = vld [vmem:[%s365] sm:$0xff]
      %v1102 = vld [vmem:[%s365 + $0x8] sm:$0xff]
      %v1103 = vpack.c.bf16 %v1102, %v1101
      %v1104 = vsel %vm1067, 0, %v1103
      %v1106 = vunpack.c.l.b16 %v1104
      %v1107 = vunpack.c.h.b16 %v1104
      %v1108 = vpack.c.b16 %v1106, %v1106
      %v1109 = vpack.c.b16 %v1107, %v1107
      %v1111 = vshrl.u32 %v1108, 16
      %v1113 = vrot.slane %v1111, 7
      %v1114 = vshll.u32 %v1108, 16
      %v1116 = vor.u32 %v1113, %v1114
      %v1117 = vrot.slane %v1113, 4
      %v1119 = vshrl.u32 %v1109, 16
      %v1121 = vrot.slane %v1119, 7
      %v1122 = vshll.u32 %v1109, 16
      %v1124 = vor.u32 %v1121, %v1122
      %v1125 = vsel %vm624, %v1117, %v1124
      %v1126 = vrot.slane %v1121, 4
      %s1130 = scalar_lea.vmem [#allocation2], 204
      %v1131 = vld [vmem:[%s1130] sm:$0xf]
      %v1132 = vsel %vm947, %v1116, %v1131
      %1133 = vst [vmem:[%s1130] sm:$0xf] %v1132
      %1134 = vst.msk [vmem:[%s1130 + $0x4] sm:$0xf] %vm951, %v1125
      %v1135 = vld [vmem:[%s1130 + $0x8] sm:$0x1]
      %v1136 = vsel %vm384, %v1126, %v1135
      %1137 = vst [vmem:[%s1130 + $0x8] sm:$0x1] %v1136
      %v1138 = vld [vmem:[%s4] sm:$0x1]
      %v1139 = vld [vmem:[#allocation2] sm:$0xf]
      %v1140 = vld [vmem:[#allocation2 + $0x4] sm:$0xf]
      %v1141 = vld [vmem:[#allocation2 + $0xc] sm:$0xf]
      %v1142 = vld [vmem:[#allocation2 + $0x10] sm:$0xf]
      %v1143 = vld [vmem:[#allocation2 + $0x18] sm:$0xf]
      %v1144 = vld [vmem:[#allocation2 + $0x1c] sm:$0xf]
      %v1145 = vld [vmem:[#allocation2 + $0x24] sm:$0xf]
      %v1146 = vld [vmem:[#allocation2 + $0x28] sm:$0xf]
      %v1147 = vld [vmem:[#allocation2 + $0x30] sm:$0xf]
      %v1148 = vld [vmem:[#allocation2 + $0x34] sm:$0xf]
      %v1149 = vld [vmem:[#allocation2 + $0x3c] sm:$0xf]
      %v1150 = vld [vmem:[#allocation2 + $0x40] sm:$0xf]
      %v1151 = vld [vmem:[#allocation2 + $0x48] sm:$0xf]
      %v1152 = vld [vmem:[#allocation2 + $0x4c] sm:$0xf]
      %v1153 = vld [vmem:[#allocation2 + $0x54] sm:$0xf]
      %v1154 = vld [vmem:[#allocation2 + $0x58] sm:$0xf]
      %v1155 = vld [vmem:[#allocation2 + $0x60] sm:$0xf]
      %v1156 = vld [vmem:[#allocation2 + $0x64] sm:$0xf]
      %v1157 = vld [vmem:[#allocation2 + $0x6c] sm:$0xf]
      %v1158 = vld [vmem:[#allocation2 + $0x70] sm:$0xf]
      %v1159 = vld [vmem:[#allocation2 + $0x78] sm:$0xf]
      %v1160 = vld [vmem:[#allocation2 + $0x7c] sm:$0xf]
      %v1161 = vld [vmem:[#allocation2 + $0x84] sm:$0xf]
      %v1162 = vld [vmem:[#allocation2 + $0x88] sm:$0xf]
      %v1163 = vld [vmem:[#allocation2 + $0x90] sm:$0xf]
      %v1164 = vld [vmem:[#allocation2 + $0x94] sm:$0xf]
      %v1165 = vld [vmem:[#allocation2 + $0x9c] sm:$0xf]
      %v1166 = vld [vmem:[#allocation2 + $0xa0] sm:$0xf]
      %v1167 = vld [vmem:[#allocation2 + $0xa8] sm:$0xf]
      %v1168 = vld [vmem:[#allocation2 + $0xac] sm:$0xf]
      %v1169 = vld [vmem:[#allocation2 + $0xb4] sm:$0xf]
      %v1170 = vld [vmem:[#allocation2 + $0xb8] sm:$0xf]
      %v1171 = vld [vmem:[%s3] sm:$0x3]
      %v1172 = vld [vmem:[#allocation2] sm:$0xf]
      %v1173 = vld [vmem:[#allocation2 + $0x4] sm:$0xf]
      %v1174 = vld [vmem:[#allocation2 + $0x8] sm:$0x1]
      %v1175 = vld [vmem:[#allocation2 + $0xc] sm:$0xf]
      %v1176 = vld [vmem:[#allocation2 + $0x10] sm:$0xf]
      %v1177 = vld [vmem:[#allocation2 + $0x14] sm:$0x1]
      %v1178 = vld [vmem:[#allocation2 + $0x18] sm:$0xf]
      %v1179 = vld [vmem:[#allocation2 + $0x1c] sm:$0xf]
      %v1180 = vld [vmem:[#allocation2 + $0x20] sm:$0x1]
      %v1181 = vld [vmem:[#allocation2 + $0x24] sm:$0xf]
      %v1182 = vld [vmem:[#allocation2 + $0x28] sm:$0xf]
      %v1183 = vld [vmem:[#allocation2 + $0x2c] sm:$0x1]
      %v1184 = vld [vmem:[#allocation2 + $0x30] sm:$0xf]
      %v1185 = vld [vmem:[#allocation2 + $0x34] sm:$0xf]
      %v1186 = vld [vmem:[#allocation2 + $0x38] sm:$0x1]
      %v1187 = vld [vmem:[#allocation2 + $0x3c] sm:$0xf]
      %v1188 = vld [vmem:[#allocation2 + $0x40] sm:$0xf]
      %v1189 = vld [vmem:[#allocation2 + $0x44] sm:$0x1]
      %v1190 = vld [vmem:[#allocation2 + $0x48] sm:$0xf]
      %v1191 = vld [vmem:[#allocation2 + $0x4c] sm:$0xf]
      %v1192 = vld [vmem:[#allocation2 + $0x50] sm:$0x1]
      %v1193 = vld [vmem:[#allocation2 + $0x54] sm:$0xf]
      %v1194 = vld [vmem:[#allocation2 + $0x58] sm:$0xf]
      %v1195 = vld [vmem:[#allocation2 + $0x5c] sm:$0x1]
      %v1196 = vld [vmem:[#allocation2 + $0x60] sm:$0xf]
      %v1197 = vld [vmem:[#allocation2 + $0x64] sm:$0xf]
      %v1198 = vld [vmem:[#allocation2 + $0x68] sm:$0x1]
      %v1199 = vld [vmem:[#allocation2 + $0x6c] sm:$0xf]
      %v1200 = vld [vmem:[#allocation2 + $0x70] sm:$0xf]
      %v1201 = vld [vmem:[#allocation2 + $0x74] sm:$0x1]
      %v1202 = vld [vmem:[#allocation2 + $0x78] sm:$0xf]
      %v1203 = vld [vmem:[#allocation2 + $0x7c] sm:$0xf]
      %v1204 = vld [vmem:[#allocation2 + $0x80] sm:$0x1]
      %v1205 = vld [vmem:[#allocation2 + $0x84] sm:$0xf]
      %v1206 = vld [vmem:[#allocation2 + $0x88] sm:$0xf]
      %v1207 = vld [vmem:[#allocation2 + $0x8c] sm:$0x1]
      %v1208 = vld [vmem:[#allocation2 + $0x90] sm:$0xf]
      %v1209 = vld [vmem:[#allocation2 + $0x94] sm:$0xf]
      %v1210 = vld [vmem:[#allocation2 + $0x98] sm:$0x1]
      %v1211 = vld [vmem:[#allocation2 + $0x9c] sm:$0xf]
      %v1212 = vld [vmem:[#allocation2 + $0xa0] sm:$0xf]
      %v1213 = vld [vmem:[#allocation2 + $0xa4] sm:$0x1]
      %v1214 = vld [vmem:[#allocation2 + $0xa8] sm:$0xf]
      %v1215 = vld [vmem:[#allocation2 + $0xac] sm:$0xf]
      %v1216 = vld [vmem:[#allocation2 + $0xb0] sm:$0x1]
      %v1217 = vld [vmem:[#allocation2 + $0xb4] sm:$0xf]
      %v1218 = vld [vmem:[#allocation2 + $0xb8] sm:$0xf]
      %v1219 = vld [vmem:[#allocation2 + $0xbc] sm:$0x1]
      %s1220 = scalar_lea.vmem %s3, 2
      %v1221 = vld [vmem:[%s1220] sm:$0x3]
      %vm1222 = vsmask.f32 3328
      %vm1223 = vsmask.f32 7440
      %vm1224 = vmor %vm1222, %vm1223
      %v1226 = vshrl.u32 %v1172, 16
      %v1228 = vrot.slane %v1226, 4
      %v1229 = vshll.u32 %v1172, 16
      %v1231 = vrot.slane %v1229, 5
      %v1232 = vor.u32 %v1228, %v1231
      %v1233 = vrot.slane %v1232, 4
      %v1235 = vshll.u32 %v1173, 16
      %v1237 = vrot.slane %v1235, 5
      %v1238 = vsel %vm1224, %v1233, %v1237
      %v1239 = vshrl.u32 %v1173, 16
      %v1241 = vrot.slane %v1239, 4
      %v1242 = vor.u32 %v1241, %v1237
      %v1243 = vrot.slane %v1242, 4
      %v1245 = vshll.u32 %v1174, 16
      %v1247 = vrot.slane %v1245, 5
      %v1248 = vsel %vm1224, %v1243, %v1247
      %v1250 = vshrl.u32 %v1175, 16
      %v1252 = vrot.slane %v1250, 4
      %v1253 = vshll.u32 %v1175, 16
      %v1255 = vrot.slane %v1253, 5
      %v1256 = vor.u32 %v1252, %v1255
      %v1257 = vrot.slane %v1256, 4
      %v1259 = vshll.u32 %v1176, 16
      %v1261 = vrot.slane %v1259, 5
      %v1262 = vsel %vm1224, %v1257, %v1261
      %v1263 = vshrl.u32 %v1176, 16
      %v1265 = vrot.slane %v1263, 4
      %v1266 = vor.u32 %v1265, %v1261
      %v1267 = vrot.slane %v1266, 4
      %v1269 = vshll.u32 %v1177, 16
      %v1271 = vrot.slane %v1269, 5
      %v1272 = vsel %vm1224, %v1267, %v1271
      %v1274 = vshrl.u32 %v1178, 16
      %v1276 = vrot.slane %v1274, 4
      %v1277 = vshll.u32 %v1178, 16
      %v1279 = vrot.slane %v1277, 5
      %v1280 = vor.u32 %v1276, %v1279
      %v1281 = vrot.slane %v1280, 4
      %v1283 = vshll.u32 %v1179, 16
      %v1285 = vrot.slane %v1283, 5
      %v1286 = vsel %vm1224, %v1281, %v1285
      %v1287 = vshrl.u32 %v1179, 16
      %v1289 = vrot.slane %v1287, 4
      %v1290 = vor.u32 %v1289, %v1285
      %v1291 = vrot.slane %v1290, 4
      %v1293 = vshll.u32 %v1180, 16
      %v1295 = vrot.slane %v1293, 5
      %v1296 = vsel %vm1224, %v1291, %v1295
      %v1298 = vshrl.u32 %v1181, 16
      %v1300 = vrot.slane %v1298, 4
      %v1301 = vshll.u32 %v1181, 16
      %v1303 = vrot.slane %v1301, 5
      %v1304 = vor.u32 %v1300, %v1303
      %v1305 = vrot.slane %v1304, 4
      %v1307 = vshll.u32 %v1182, 16
      %v1309 = vrot.slane %v1307, 5
      %v1310 = vsel %vm1224, %v1305, %v1309
      %v1311 = vshrl.u32 %v1182, 16
      %v1313 = vrot.slane %v1311, 4
      %v1314 = vor.u32 %v1313, %v1309
      %v1315 = vrot.slane %v1314, 4
      %v1317 = vshll.u32 %v1183, 16
      %v1319 = vrot.slane %v1317, 5
      %v1320 = vsel %vm1224, %v1315, %v1319
      %v1322 = vshrl.u32 %v1184, 16
      %v1324 = vrot.slane %v1322, 4
      %v1325 = vshll.u32 %v1184, 16
      %v1327 = vrot.slane %v1325, 5
      %v1328 = vor.u32 %v1324, %v1327
      %v1329 = vrot.slane %v1328, 4
      %v1331 = vshll.u32 %v1185, 16
      %v1333 = vrot.slane %v1331, 5
      %v1334 = vsel %vm1224, %v1329, %v1333
      %v1335 = vshrl.u32 %v1185, 16
      %v1337 = vrot.slane %v1335, 4
      %v1338 = vor.u32 %v1337, %v1333
      %v1339 = vrot.slane %v1338, 4
      %v1341 = vshll.u32 %v1186, 16
      %v1343 = vrot.slane %v1341, 5
      %v1344 = vsel %vm1224, %v1339, %v1343
      %v1346 = vshrl.u32 %v1187, 16
      %v1348 = vrot.slane %v1346, 4
      %v1349 = vshll.u32 %v1187, 16
      %v1351 = vrot.slane %v1349, 5
      %v1352 = vor.u32 %v1348, %v1351
      %v1353 = vrot.slane %v1352, 4
      %v1355 = vshll.u32 %v1188, 16
      %v1357 = vrot.slane %v1355, 5
      %v1358 = vsel %vm1224, %v1353, %v1357
      %v1359 = vshrl.u32 %v1188, 16
      %v1361 = vrot.slane %v1359, 4
      %v1362 = vor.u32 %v1361, %v1357
      %v1363 = vrot.slane %v1362, 4
      %v1365 = vshll.u32 %v1189, 16
      %v1367 = vrot.slane %v1365, 5
      %v1368 = vsel %vm1224, %v1363, %v1367
      %v1370 = vshrl.u32 %v1190, 16
      %v1372 = vrot.slane %v1370, 4
      %v1373 = vshll.u32 %v1190, 16
      %v1375 = vrot.slane %v1373, 5
      %v1376 = vor.u32 %v1372, %v1375
      %v1377 = vrot.slane %v1376, 4
      %v1379 = vshll.u32 %v1191, 16
      %v1381 = vrot.slane %v1379, 5
      %v1382 = vsel %vm1224, %v1377, %v1381
      %v1383 = vshrl.u32 %v1191, 16
      %v1385 = vrot.slane %v1383, 4
      %v1386 = vor.u32 %v1385, %v1381
      %v1387 = vrot.slane %v1386, 4
      %v1389 = vshll.u32 %v1192, 16
      %v1391 = vrot.slane %v1389, 5
      %v1392 = vsel %vm1224, %v1387, %v1391
      %v1394 = vshrl.u32 %v1193, 16
      %v1396 = vrot.slane %v1394, 4
      %v1397 = vshll.u32 %v1193, 16
      %v1399 = vrot.slane %v1397, 5
      %v1400 = vor.u32 %v1396, %v1399
      %v1401 = vrot.slane %v1400, 4
      %v1403 = vshll.u32 %v1194, 16
      %v1405 = vrot.slane %v1403, 5
      %v1406 = vsel %vm1224, %v1401, %v1405
      %v1407 = vshrl.u32 %v1194, 16
      %v1409 = vrot.slane %v1407, 4
      %v1410 = vor.u32 %v1409, %v1405
      %v1411 = vrot.slane %v1410, 4
      %v1413 = vshll.u32 %v1195, 16
      %v1415 = vrot.slane %v1413, 5
      %v1416 = vsel %vm1224, %v1411, %v1415
      %v1418 = vshrl.u32 %v1196, 16
      %v1420 = vrot.slane %v1418, 4
      %v1421 = vshll.u32 %v1196, 16
      %v1423 = vrot.slane %v1421, 5
      %v1424 = vor.u32 %v1420, %v1423
      %v1425 = vrot.slane %v1424, 4
      %v1427 = vshll.u32 %v1197, 16
      %v1429 = vrot.slane %v1427, 5
      %v1430 = vsel %vm1224, %v1425, %v1429
      %v1431 = vshrl.u32 %v1197, 16
      %v1433 = vrot.slane %v1431, 4
      %v1434 = vor.u32 %v1433, %v1429
      %v1435 = vrot.slane %v1434, 4
      %v1437 = vshll.u32 %v1198, 16
      %v1439 = vrot.slane %v1437, 5
      %v1440 = vsel %vm1224, %v1435, %v1439
      %v1442 = vshrl.u32 %v1199, 16
      %v1444 = vrot.slane %v1442, 4
      %v1445 = vshll.u32 %v1199, 16
      %v1447 = vrot.slane %v1445, 5
      %v1448 = vor.u32 %v1444, %v1447
      %v1449 = vrot.slane %v1448, 4
      %v1451 = vshll.u32 %v1200, 16
      %v1453 = vrot.slane %v1451, 5
      %v1454 = vsel %vm1224, %v1449, %v1453
      %v1455 = vshrl.u32 %v1200, 16
      %v1457 = vrot.slane %v1455, 4
      %v1458 = vor.u32 %v1457, %v1453
      %v1459 = vrot.slane %v1458, 4
      %v1461 = vshll.u32 %v1201, 16
      %v1463 = vrot.slane %v1461, 5
      %v1464 = vsel %vm1224, %v1459, %v1463
      %v1466 = vshrl.u32 %v1202, 16
      %v1468 = vrot.slane %v1466, 4
      %v1469 = vshll.u32 %v1202, 16
      %v1471 = vrot.slane %v1469, 5
      %v1472 = vor.u32 %v1468, %v1471
      %v1473 = vrot.slane %v1472, 4
      %v1475 = vshll.u32 %v1203, 16
      %v1477 = vrot.slane %v1475, 5
      %v1478 = vsel %vm1224, %v1473, %v1477
      %v1479 = vshrl.u32 %v1203, 16
      %v1481 = vrot.slane %v1479, 4
      %v1482 = vor.u32 %v1481, %v1477
      %v1483 = vrot.slane %v1482, 4
      %v1485 = vshll.u32 %v1204, 16
      %v1487 = vrot.slane %v1485, 5
      %v1488 = vsel %vm1224, %v1483, %v1487
      %v1490 = vshrl.u32 %v1205, 16
      %v1492 = vrot.slane %v1490, 4
      %v1493 = vshll.u32 %v1205, 16
      %v1495 = vrot.slane %v1493, 5
      %v1496 = vor.u32 %v1492, %v1495
      %v1497 = vrot.slane %v1496, 4
      %v1499 = vshll.u32 %v1206, 16
      %v1501 = vrot.slane %v1499, 5
      %v1502 = vsel %vm1224, %v1497, %v1501
      %v1503 = vshrl.u32 %v1206, 16
      %v1505 = vrot.slane %v1503, 4
      %v1506 = vor.u32 %v1505, %v1501
      %v1507 = vrot.slane %v1506, 4
      %v1509 = vshll.u32 %v1207, 16
      %v1511 = vrot.slane %v1509, 5
      %v1512 = vsel %vm1224, %v1507, %v1511
      %v1514 = vshrl.u32 %v1208, 16
      %v1516 = vrot.slane %v1514, 4
      %v1517 = vshll.u32 %v1208, 16
      %v1519 = vrot.slane %v1517, 5
      %v1520 = vor.u32 %v1516, %v1519
      %v1521 = vrot.slane %v1520, 4
      %v1523 = vshll.u32 %v1209, 16
      %v1525 = vrot.slane %v1523, 5
      %v1526 = vsel %vm1224, %v1521, %v1525
      %v1527 = vshrl.u32 %v1209, 16
      %v1529 = vrot.slane %v1527, 4
      %v1530 = vor.u32 %v1529, %v1525
      %v1531 = vrot.slane %v1530, 4
      %v1533 = vshll.u32 %v1210, 16
      %v1535 = vrot.slane %v1533, 5
      %v1536 = vsel %vm1224, %v1531, %v1535
      %v1538 = vshrl.u32 %v1211, 16
      %v1540 = vrot.slane %v1538, 4
      %v1541 = vshll.u32 %v1211, 16
      %v1543 = vrot.slane %v1541, 5
      %v1544 = vor.u32 %v1540, %v1543
      %v1545 = vrot.slane %v1544, 4
      %v1547 = vshll.u32 %v1212, 16
      %v1549 = vrot.slane %v1547, 5
      %v1550 = vsel %vm1224, %v1545, %v1549
      %v1551 = vshrl.u32 %v1212, 16
      %v1553 = vrot.slane %v1551, 4
      %v1554 = vor.u32 %v1553, %v1549
      %v1555 = vrot.slane %v1554, 4
      %v1557 = vshll.u32 %v1213, 16
      %v1559 = vrot.slane %v1557, 5
      %v1560 = vsel %vm1224, %v1555, %v1559
      %v1562 = vshrl.u32 %v1214, 16
      %v1564 = vrot.slane %v1562, 4
      %v1565 = vshll.u32 %v1214, 16
      %v1567 = vrot.slane %v1565, 5
      %v1568 = vor.u32 %v1564, %v1567
      %v1569 = vrot.slane %v1568, 4
      %v1571 = vshll.u32 %v1215, 16
      %v1573 = vrot.slane %v1571, 5
      %v1574 = vsel %vm1224, %v1569, %v1573
      %v1575 = vshrl.u32 %v1215, 16
      %v1577 = vrot.slane %v1575, 4
      %v1578 = vor.u32 %v1577, %v1573
      %v1579 = vrot.slane %v1578, 4
      %v1581 = vshll.u32 %v1216, 16
      %v1583 = vrot.slane %v1581, 5
      %v1584 = vsel %vm1224, %v1579, %v1583
      %v1586 = vshrl.u32 %v1217, 16
      %v1588 = vrot.slane %v1586, 4
      %v1589 = vshll.u32 %v1217, 16
      %v1591 = vrot.slane %v1589, 5
      %v1592 = vor.u32 %v1588, %v1591
      %v1593 = vrot.slane %v1592, 4
      %v1595 = vshll.u32 %v1218, 16
      %v1597 = vrot.slane %v1595, 5
      %v1598 = vsel %vm1224, %v1593, %v1597
      %v1599 = vshrl.u32 %v1218, 16
      %v1601 = vrot.slane %v1599, 4
      %v1602 = vor.u32 %v1601, %v1597
      %v1603 = vrot.slane %v1602, 4
      %v1605 = vshll.u32 %v1219, 16
      %v1607 = vrot.slane %v1605, 5
      %v1608 = vsel %vm1224, %v1603, %v1607
      %v1609 = vunpack.c.l.b16 %v1238
      %v1610 = vunpack.c.l.b16 %v1248
      %v1611 = vunpack.c.l.b16 %v1262
      %v1612 = vunpack.c.l.b16 %v1272
      %v1613 = vunpack.c.l.b16 %v1286
      %v1614 = vunpack.c.l.b16 %v1296
      %v1615 = vunpack.c.l.b16 %v1310
      %v1616 = vunpack.c.l.b16 %v1320
      %v1617 = vunpack.c.l.b16 %v1334
      %v1618 = vunpack.c.l.b16 %v1344
      %v1619 = vunpack.c.l.b16 %v1358
      %v1620 = vunpack.c.l.b16 %v1368
      %v1621 = vunpack.c.l.b16 %v1382
      %v1622 = vunpack.c.l.b16 %v1392
      %v1623 = vunpack.c.l.b16 %v1406
      %v1624 = vunpack.c.l.b16 %v1416
      %v1625 = vunpack.c.l.b16 %v1430
      %v1626 = vunpack.c.l.b16 %v1440
      %v1627 = vunpack.c.l.b16 %v1454
      %v1628 = vunpack.c.l.b16 %v1464
      %v1629 = vunpack.c.l.b16 %v1478
      %v1630 = vunpack.c.l.b16 %v1488
      %v1631 = vunpack.c.l.b16 %v1502
      %v1632 = vunpack.c.l.b16 %v1512
      %v1633 = vunpack.c.l.b16 %v1526
      %v1634 = vunpack.c.l.b16 %v1536
      %v1635 = vunpack.c.l.b16 %v1550
      %v1636 = vunpack.c.l.b16 %v1560
      %v1637 = vunpack.c.l.b16 %v1574
      %v1638 = vunpack.c.l.b16 %v1584
      %v1639 = vunpack.c.l.b16 %v1598
      %v1640 = vunpack.c.l.b16 %v1608
      %v1641 = vpack.c.b16 %v1610, %v1609
      %v1642 = vpack.c.b16 %v1612, %v1611
      %v1643 = vpack.c.b16 %v1614, %v1613
      %v1644 = vpack.c.b16 %v1616, %v1615
      %v1645 = vpack.c.b16 %v1618, %v1617
      %v1646 = vpack.c.b16 %v1620, %v1619
      %v1647 = vpack.c.b16 %v1622, %v1621
      %v1648 = vpack.c.b16 %v1624, %v1623
      %v1649 = vpack.c.b16 %v1626, %v1625
      %v1650 = vpack.c.b16 %v1628, %v1627
      %v1651 = vpack.c.b16 %v1630, %v1629
      %v1652 = vpack.c.b16 %v1632, %v1631
      %v1653 = vpack.c.b16 %v1634, %v1633
      %v1654 = vpack.c.b16 %v1636, %v1635
      %v1655 = vpack.c.b16 %v1638, %v1637
      %v1656 = vpack.c.b16 %v1640, %v1639
      %vm1657 = vcmask 31744
      %v1659 = vsel %vm1657, %v1641, 0
      %v1662 = vsel %vm1657, %v1642, 0
      %v1665 = vsel %vm1657, %v1643, 0
      %v1668 = vsel %vm1657, %v1644, 0
      %v1671 = vsel %vm1657, %v1645, 0
      %v1674 = vsel %vm1657, %v1646, 0
      %v1677 = vsel %vm1657, %v1647, 0
      %v1680 = vsel %vm1657, %v1648, 0
      %v1683 = vsel %vm1657, %v1649, 0
      %v1686 = vsel %vm1657, %v1650, 0
      %v1689 = vsel %vm1657, %v1651, 0
      %v1692 = vsel %vm1657, %v1652, 0
      %v1695 = vsel %vm1657, %v1653, 0
      %v1698 = vsel %vm1657, %v1654, 0
      %v1701 = vsel %vm1657, %v1655, 0
      %v1704 = vsel %vm1657, %v1656, 0
      %vm1706 = vcmask 1041408
      %v1708 = vsel %vm1706, %v1221, 0
      %1710 = vmatprep.subr.bf16.mxu0 0
      %1711 = vmatpush1.bf16.msra.mxu0 0
      %1712 = vmatprep.subr.bf16.mxu0 0
      %1713 = vmatpush1.bf16.msra.mxu0 0
      %1714 = vmatprep.subr.bf16.mxu0 0
      %1715 = vmatpush1.bf16.msra.mxu0 0
      %1716 = vmatprep.subr.bf16.mxu0 0
      %1717 = vmatpush1.bf16.msra.mxu0 0
      %1718 = vmatprep.subr.bf16.mxu0 0
      %1719 = vmatpush1.bf16.msra.mxu0 0
      %1720 = vmatprep.subr.bf16.mxu0 0
      %1721 = vmatpush1.bf16.msra.mxu0 0
      %1722 = vmatprep.subr.bf16.mxu0 0
      %1723 = vmatpush1.bf16.msra.mxu0 0
      %1724 = vmatprep.subr.bf16.mxu0 0
      %1725 = vmatpush1.bf16.msra.mxu0 %v1708
      %1726 = vmatprep.subr.bf16.mxu0 0
      %1727 = vmatpush2.bf16.msra.mxu0 0
      %1728 = vmatprep.subr.bf16.mxu0 0
      %1729 = vmatpush2.bf16.msra.mxu0 0
      %1730 = vmatprep.subr.bf16.mxu0 0
      %1731 = vmatpush2.bf16.msra.mxu0 0
      %1732 = vmatprep.subr.bf16.mxu0 0
      %1733 = vmatpush2.bf16.msra.mxu0 0
      %1734 = vmatprep.subr.bf16.mxu0 0
      %1735 = vmatpush2.bf16.msra.mxu0 0
      %1736 = vmatprep.subr.bf16.mxu0 0
      %1737 = vmatpush2.bf16.msra.mxu0 0
      %1738 = vmatprep.subr.bf16.mxu0 0
      %1739 = vmatpush2.bf16.msra.mxu0 0
      %1740 = vmatprep.subr.bf16.mxu0 0
      %1741 = vmatpush2.bf16.msra.mxu0 0
      %1742 = vmatprep.mubr.bf16.mxu0 0
      %1743 = vmatmul.mubr.bf16.gmra.mxu0 %v1659
      %v1744 = vpop.f32.mrf.mxu0
      %v1745 = vadd.f32 0.0, %v1744
      %v1746 = vpop.f32.mrf.mxu0
      %v1747 = vpop.f32.mrf.mxu0
      %v1748 = vadd.f32 0.0, %v1747
      %v1749 = vpop.f32.mrf.mxu0
      %1750 = vmatprep.mubr.bf16.mxu0 0
      %1751 = vmatmul.mubr.bf16.gmra.mxu0 %v1662
      %v1752 = vpop.f32.mrf.mxu0
      %v1753 = vadd.f32 0.0, %v1752
      %v1754 = vpop.f32.mrf.mxu0
      %v1755 = vpop.f32.mrf.mxu0
      %v1756 = vadd.f32 0.0, %v1755
      %v1757 = vpop.f32.mrf.mxu0
      %1758 = vmatprep.mubr.bf16.mxu0 0
      %1759 = vmatmul.mubr.bf16.gmra.mxu0 %v1665
      %v1760 = vpop.f32.mrf.mxu0
      %v1761 = vadd.f32 0.0, %v1760
      %v1762 = vpop.f32.mrf.mxu0
      %v1763 = vpop.f32.mrf.mxu0
      %v1764 = vadd.f32 0.0, %v1763
      %v1765 = vpop.f32.mrf.mxu0
      %1766 = vmatprep.mubr.bf16.mxu0 0
      %1767 = vmatmul.mubr.bf16.gmra.mxu0 %v1668
      %v1768 = vpop.f32.mrf.mxu0
      %v1769 = vadd.f32 0.0, %v1768
      %v1770 = vpop.f32.mrf.mxu0
      %v1771 = vpop.f32.mrf.mxu0
      %v1772 = vadd.f32 0.0, %v1771
      %v1773 = vpop.f32.mrf.mxu0
      %1774 = vmatprep.mubr.bf16.mxu0 0
      %1775 = vmatmul.mubr.bf16.gmra.mxu0 %v1671
      %v1776 = vpop.f32.mrf.mxu0
      %v1777 = vadd.f32 0.0, %v1776
      %v1778 = vpop.f32.mrf.mxu0
      %v1779 = vpop.f32.mrf.mxu0
      %v1780 = vadd.f32 0.0, %v1779
      %v1781 = vpop.f32.mrf.mxu0
      %1782 = vmatprep.mubr.bf16.mxu0 0
      %1783 = vmatmul.mubr.bf16.gmra.mxu0 %v1674
      %v1784 = vpop.f32.mrf.mxu0
      %v1785 = vadd.f32 0.0, %v1784
      %v1786 = vpop.f32.mrf.mxu0
      %v1787 = vpop.f32.mrf.mxu0
      %v1788 = vadd.f32 0.0, %v1787
      %v1789 = vpop.f32.mrf.mxu0
      %1790 = vmatprep.mubr.bf16.mxu0 0
      %1791 = vmatmul.mubr.bf16.gmra.mxu0 %v1677
      %v1792 = vpop.f32.mrf.mxu0
      %v1793 = vadd.f32 0.0, %v1792
      %v1794 = vpop.f32.mrf.mxu0
      %v1795 = vpop.f32.mrf.mxu0
      %v1796 = vadd.f32 0.0, %v1795
      %v1797 = vpop.f32.mrf.mxu0
      %1798 = vmatprep.mubr.bf16.mxu0 0
      %1799 = vmatmul.mubr.bf16.gmra.mxu0 %v1680
      %v1800 = vpop.f32.mrf.mxu0
      %v1801 = vadd.f32 0.0, %v1800
      %v1802 = vpop.f32.mrf.mxu0
      %v1803 = vpop.f32.mrf.mxu0
      %v1804 = vadd.f32 0.0, %v1803
      %v1805 = vpop.f32.mrf.mxu0
      %1806 = vmatprep.mubr.bf16.mxu0 0
      %1807 = vmatmul.mubr.bf16.gmra.mxu0 %v1683
      %v1808 = vpop.f32.mrf.mxu0
      %v1809 = vadd.f32 0.0, %v1808
      %v1810 = vpop.f32.mrf.mxu0
      %v1811 = vpop.f32.mrf.mxu0
      %v1812 = vadd.f32 0.0, %v1811
      %v1813 = vpop.f32.mrf.mxu0
      %1814 = vmatprep.mubr.bf16.mxu0 0
      %1815 = vmatmul.mubr.bf16.gmra.mxu0 %v1686
      %v1816 = vpop.f32.mrf.mxu0
      %v1817 = vadd.f32 0.0, %v1816
      %v1818 = vpop.f32.mrf.mxu0
      %v1819 = vpop.f32.mrf.mxu0
      %v1820 = vadd.f32 0.0, %v1819
      %v1821 = vpop.f32.mrf.mxu0
      %1822 = vmatprep.mubr.bf16.mxu0 0
      %1823 = vmatmul.mubr.bf16.gmra.mxu0 %v1689
      %v1824 = vpop.f32.mrf.mxu0
      %v1825 = vadd.f32 0.0, %v1824
      %v1826 = vpop.f32.mrf.mxu0
      %v1827 = vpop.f32.mrf.mxu0
      %v1828 = vadd.f32 0.0, %v1827
      %v1829 = vpop.f32.mrf.mxu0
      %1830 = vmatprep.mubr.bf16.mxu0 0
      %1831 = vmatmul.mubr.bf16.gmra.mxu0 %v1692
      %v1832 = vpop.f32.mrf.mxu0
      %v1833 = vadd.f32 0.0, %v1832
      %v1834 = vpop.f32.mrf.mxu0
      %v1835 = vpop.f32.mrf.mxu0
      %v1836 = vadd.f32 0.0, %v1835
      %v1837 = vpop.f32.mrf.mxu0
      %1838 = vmatprep.mubr.bf16.mxu0 0
      %1839 = vmatmul.mubr.bf16.gmra.mxu0 %v1695
      %v1840 = vpop.f32.mrf.mxu0
      %v1841 = vadd.f32 0.0, %v1840
      %v1842 = vpop.f32.mrf.mxu0
      %v1843 = vpop.f32.mrf.mxu0
      %v1844 = vadd.f32 0.0, %v1843
      %v1845 = vpop.f32.mrf.mxu0
      %1846 = vmatprep.mubr.bf16.mxu0 0
      %1847 = vmatmul.mubr.bf16.gmra.mxu0 %v1698
      %v1848 = vpop.f32.mrf.mxu0
      %v1849 = vadd.f32 0.0, %v1848
      %v1850 = vpop.f32.mrf.mxu0
      %v1851 = vpop.f32.mrf.mxu0
      %v1852 = vadd.f32 0.0, %v1851
      %v1853 = vpop.f32.mrf.mxu0
      %1854 = vmatprep.mubr.bf16.mxu0 0
      %1855 = vmatmul.mubr.bf16.gmra.mxu0 %v1701
      %v1856 = vpop.f32.mrf.mxu0
      %v1857 = vadd.f32 0.0, %v1856
      %v1858 = vpop.f32.mrf.mxu0
      %v1859 = vpop.f32.mrf.mxu0
      %v1860 = vadd.f32 0.0, %v1859
      %v1861 = vpop.f32.mrf.mxu0
      %1862 = vmatprep.mubr.bf16.mxu0 0
      %1863 = vmatmul.mubr.bf16.gmra.mxu0 %v1704
      %v1864 = vpop.f32.mrf.mxu0
      %v1865 = vadd.f32 0.0, %v1864
      %v1866 = vpop.f32.mrf.mxu0
      %v1867 = vpop.f32.mrf.mxu0
      %v1868 = vadd.f32 0.0, %v1867
      %v1869 = vpop.f32.mrf.mxu0
      %1870 = vdwg.mxu0
      %v1903 = vunpack.c.l.b16 %v1139
      %v1904 = vunpack.c.l.b16 %v1140
      %v1905 = vunpack.c.l.b16 %v1141
      %v1906 = vunpack.c.l.b16 %v1142
      %v1907 = vunpack.c.l.b16 %v1143
      %v1908 = vunpack.c.l.b16 %v1144
      %v1909 = vunpack.c.l.b16 %v1145
      %v1910 = vunpack.c.l.b16 %v1146
      %v1911 = vunpack.c.l.b16 %v1147
      %v1912 = vunpack.c.l.b16 %v1148
      %v1913 = vunpack.c.l.b16 %v1149
      %v1914 = vunpack.c.l.b16 %v1150
      %v1915 = vunpack.c.l.b16 %v1151
      %v1916 = vunpack.c.l.b16 %v1152
      %v1917 = vunpack.c.l.b16 %v1153
      %v1918 = vunpack.c.l.b16 %v1154
      %v1919 = vunpack.c.l.b16 %v1155
      %v1920 = vunpack.c.l.b16 %v1156
      %v1921 = vunpack.c.l.b16 %v1157
      %v1922 = vunpack.c.l.b16 %v1158
      %v1923 = vunpack.c.l.b16 %v1159
      %v1924 = vunpack.c.l.b16 %v1160
      %v1925 = vunpack.c.l.b16 %v1161
      %v1926 = vunpack.c.l.b16 %v1162
      %v1927 = vunpack.c.l.b16 %v1163
      %v1928 = vunpack.c.l.b16 %v1164
      %v1929 = vunpack.c.l.b16 %v1165
      %v1930 = vunpack.c.l.b16 %v1166
      %v1931 = vunpack.c.l.b16 %v1167
      %v1932 = vunpack.c.l.b16 %v1168
      %v1933 = vunpack.c.l.b16 %v1169
      %v1934 = vunpack.c.l.b16 %v1170
      %v1935 = vpack.c.b16 %v1904, %v1903
      %v1936 = vpack.c.b16 %v1906, %v1905
      %v1937 = vpack.c.b16 %v1908, %v1907
      %v1938 = vpack.c.b16 %v1910, %v1909
      %v1939 = vpack.c.b16 %v1912, %v1911
      %v1940 = vpack.c.b16 %v1914, %v1913
      %v1941 = vpack.c.b16 %v1916, %v1915
      %v1942 = vpack.c.b16 %v1918, %v1917
      %v1943 = vpack.c.b16 %v1920, %v1919
      %v1944 = vpack.c.b16 %v1922, %v1921
      %v1945 = vpack.c.b16 %v1924, %v1923
      %v1946 = vpack.c.b16 %v1926, %v1925
      %v1947 = vpack.c.b16 %v1928, %v1927
      %v1948 = vpack.c.b16 %v1930, %v1929
      %v1949 = vpack.c.b16 %v1932, %v1931
      %v1950 = vpack.c.b16 %v1934, %v1933
      %v1952 = vsel %vm1657, %v1935, 0
      %v1955 = vsel %vm1657, %v1936, 0
      %v1958 = vsel %vm1657, %v1937, 0
      %v1961 = vsel %vm1657, %v1938, 0
      %v1964 = vsel %vm1657, %v1939, 0
      %v1967 = vsel %vm1657, %v1940, 0
      %v1970 = vsel %vm1657, %v1941, 0
      %v1973 = vsel %vm1657, %v1942, 0
      %v1976 = vsel %vm1657, %v1943, 0
      %v1979 = vsel %vm1657, %v1944, 0
      %v1982 = vsel %vm1657, %v1945, 0
      %v1985 = vsel %vm1657, %v1946, 0
      %v1988 = vsel %vm1657, %v1947, 0
      %v1991 = vsel %vm1657, %v1948, 0
      %v1994 = vsel %vm1657, %v1949, 0
      %v1997 = vsel %vm1657, %v1950, 0
      %v2000 = vsel %vm1706, %v1171, 0
      %2002 = vmatprep.subr.bf16.mxu0 0
      %2003 = vmatpush1.bf16.msra.mxu0 0
      %2004 = vmatprep.subr.bf16.mxu0 0
      %2005 = vmatpush1.bf16.msra.mxu0 0
      %2006 = vmatprep.subr.bf16.mxu0 0
      %2007 = vmatpush1.bf16.msra.mxu0 0
      %2008 = vmatprep.subr.bf16.mxu0 0
      %2009 = vmatpush1.bf16.msra.mxu0 0
      %2010 = vmatprep.subr.bf16.mxu0 0
      %2011 = vmatpush1.bf16.msra.mxu0 0
      %2012 = vmatprep.subr.bf16.mxu0 0
      %2013 = vmatpush1.bf16.msra.mxu0 0
      %2014 = vmatprep.subr.bf16.mxu0 0
      %2015 = vmatpush1.bf16.msra.mxu0 0
      %2016 = vmatprep.subr.bf16.mxu0 0
      %2017 = vmatpush1.bf16.msra.mxu0 %v2000
      %2018 = vmatprep.subr.bf16.mxu0 0
      %2019 = vmatpush2.bf16.msra.mxu0 0
      %2020 = vmatprep.subr.bf16.mxu0 0
      %2021 = vmatpush2.bf16.msra.mxu0 0
      %2022 = vmatprep.subr.bf16.mxu0 0
      %2023 = vmatpush2.bf16.msra.mxu0 0
      %2024 = vmatprep.subr.bf16.mxu0 0
      %2025 = vmatpush2.bf16.msra.mxu0 0
      %2026 = vmatprep.subr.bf16.mxu0 0
      %2027 = vmatpush2.bf16.msra.mxu0 0
      %2028 = vmatprep.subr.bf16.mxu0 0
      %2029 = vmatpush2.bf16.msra.mxu0 0
      %2030 = vmatprep.subr.bf16.mxu0 0
      %2031 = vmatpush2.bf16.msra.mxu0 0
      %2032 = vmatprep.subr.bf16.mxu0 0
      %2033 = vmatpush2.bf16.msra.mxu0 0
      %2034 = vmatprep.mubr.bf16.mxu0 0
      %2035 = vmatmul.mubr.bf16.gmra.mxu0 %v1952
      %v2036 = vpop.f32.mrf.mxu0
      %v2037 = vadd.f32 %v1745, %v2036
      %v2038 = vpop.f32.mrf.mxu0
      %v2039 = vpop.f32.mrf.mxu0
      %v2040 = vadd.f32 %v1748, %v2039
      %v2041 = vpop.f32.mrf.mxu0
      %2042 = vmatprep.mubr.bf16.mxu0 0
      %2043 = vmatmul.mubr.bf16.gmra.mxu0 %v1955
      %v2044 = vpop.f32.mrf.mxu0
      %v2045 = vadd.f32 %v1753, %v2044
      %v2046 = vpop.f32.mrf.mxu0
      %v2047 = vpop.f32.mrf.mxu0
      %v2048 = vadd.f32 %v1756, %v2047
      %v2049 = vpop.f32.mrf.mxu0
      %2050 = vmatprep.mubr.bf16.mxu0 0
      %2051 = vmatmul.mubr.bf16.gmra.mxu0 %v1958
      %v2052 = vpop.f32.mrf.mxu0
      %v2053 = vadd.f32 %v1761, %v2052
      %v2054 = vpop.f32.mrf.mxu0
      %v2055 = vpop.f32.mrf.mxu0
      %v2056 = vadd.f32 %v1764, %v2055
      %v2057 = vpop.f32.mrf.mxu0
      %2058 = vmatprep.mubr.bf16.mxu0 0
      %2059 = vmatmul.mubr.bf16.gmra.mxu0 %v1961
      %v2060 = vpop.f32.mrf.mxu0
      %v2061 = vadd.f32 %v1769, %v2060
      %v2062 = vpop.f32.mrf.mxu0
      %v2063 = vpop.f32.mrf.mxu0
      %v2064 = vadd.f32 %v1772, %v2063
      %v2065 = vpop.f32.mrf.mxu0
      %2066 = vmatprep.mubr.bf16.mxu0 0
      %2067 = vmatmul.mubr.bf16.gmra.mxu0 %v1964
      %v2068 = vpop.f32.mrf.mxu0
      %v2069 = vadd.f32 %v1777, %v2068
      %v2070 = vpop.f32.mrf.mxu0
      %v2071 = vpop.f32.mrf.mxu0
      %v2072 = vadd.f32 %v1780, %v2071
      %v2073 = vpop.f32.mrf.mxu0
      %2074 = vmatprep.mubr.bf16.mxu0 0
      %2075 = vmatmul.mubr.bf16.gmra.mxu0 %v1967
      %v2076 = vpop.f32.mrf.mxu0
      %v2077 = vadd.f32 %v1785, %v2076
      %v2078 = vpop.f32.mrf.mxu0
      %v2079 = vpop.f32.mrf.mxu0
      %v2080 = vadd.f32 %v1788, %v2079
      %v2081 = vpop.f32.mrf.mxu0
      %2082 = vmatprep.mubr.bf16.mxu0 0
      %2083 = vmatmul.mubr.bf16.gmra.mxu0 %v1970
      %v2084 = vpop.f32.mrf.mxu0
      %v2085 = vadd.f32 %v1793, %v2084
      %v2086 = vpop.f32.mrf.mxu0
      %v2087 = vpop.f32.mrf.mxu0
      %v2088 = vadd.f32 %v1796, %v2087
      %v2089 = vpop.f32.mrf.mxu0
      %2090 = vmatprep.mubr.bf16.mxu0 0
      %2091 = vmatmul.mubr.bf16.gmra.mxu0 %v1973
      %v2092 = vpop.f32.mrf.mxu0
      %v2093 = vadd.f32 %v1801, %v2092
      %v2094 = vpop.f32.mrf.mxu0
      %v2095 = vpop.f32.mrf.mxu0
      %v2096 = vadd.f32 %v1804, %v2095
      %v2097 = vpop.f32.mrf.mxu0
      %2098 = vmatprep.mubr.bf16.mxu0 0
      %2099 = vmatmul.mubr.bf16.gmra.mxu0 %v1976
      %v2100 = vpop.f32.mrf.mxu0
      %v2101 = vadd.f32 %v1809, %v2100
      %v2102 = vpop.f32.mrf.mxu0
      %v2103 = vpop.f32.mrf.mxu0
      %v2104 = vadd.f32 %v1812, %v2103
      %v2105 = vpop.f32.mrf.mxu0
      %2106 = vmatprep.mubr.bf16.mxu0 0
      %2107 = vmatmul.mubr.bf16.gmra.mxu0 %v1979
      %v2108 = vpop.f32.mrf.mxu0
      %v2109 = vadd.f32 %v1817, %v2108
      %v2110 = vpop.f32.mrf.mxu0
      %v2111 = vpop.f32.mrf.mxu0
      %v2112 = vadd.f32 %v1820, %v2111
      %v2113 = vpop.f32.mrf.mxu0
      %2114 = vmatprep.mubr.bf16.mxu0 0
      %2115 = vmatmul.mubr.bf16.gmra.mxu0 %v1982
      %v2116 = vpop.f32.mrf.mxu0
      %v2117 = vadd.f32 %v1825, %v2116
      %v2118 = vpop.f32.mrf.mxu0
      %v2119 = vpop.f32.mrf.mxu0
      %v2120 = vadd.f32 %v1828, %v2119
      %v2121 = vpop.f32.mrf.mxu0
      %2122 = vmatprep.mubr.bf16.mxu0 0
      %2123 = vmatmul.mubr.bf16.gmra.mxu0 %v1985
      %v2124 = vpop.f32.mrf.mxu0
      %v2125 = vadd.f32 %v1833, %v2124
      %v2126 = vpop.f32.mrf.mxu0
      %v2127 = vpop.f32.mrf.mxu0
      %v2128 = vadd.f32 %v1836, %v2127
      %v2129 = vpop.f32.mrf.mxu0
      %2130 = vmatprep.mubr.bf16.mxu0 0
      %2131 = vmatmul.mubr.bf16.gmra.mxu0 %v1988
      %v2132 = vpop.f32.mrf.mxu0
      %v2133 = vadd.f32 %v1841, %v2132
      %v2134 = vpop.f32.mrf.mxu0
      %v2135 = vpop.f32.mrf.mxu0
      %v2136 = vadd.f32 %v1844, %v2135
      %v2137 = vpop.f32.mrf.mxu0
      %2138 = vmatprep.mubr.bf16.mxu0 0
      %2139 = vmatmul.mubr.bf16.gmra.mxu0 %v1991
      %v2140 = vpop.f32.mrf.mxu0
      %v2141 = vadd.f32 %v1849, %v2140
      %v2142 = vpop.f32.mrf.mxu0
      %v2143 = vpop.f32.mrf.mxu0
      %v2144 = vadd.f32 %v1852, %v2143
      %v2145 = vpop.f32.mrf.mxu0
      %2146 = vmatprep.mubr.bf16.mxu0 0
      %2147 = vmatmul.mubr.bf16.gmra.mxu0 %v1994
      %v2148 = vpop.f32.mrf.mxu0
      %v2149 = vadd.f32 %v1857, %v2148
      %v2150 = vpop.f32.mrf.mxu0
      %v2151 = vpop.f32.mrf.mxu0
      %v2152 = vadd.f32 %v1860, %v2151
      %v2153 = vpop.f32.mrf.mxu0
      %2154 = vmatprep.mubr.bf16.mxu0 0
      %2155 = vmatmul.mubr.bf16.gmra.mxu0 %v1997
      %v2156 = vpop.f32.mrf.mxu0
      %v2157 = vadd.f32 %v1865, %v2156
      %v2158 = vpop.f32.mrf.mxu0
      %v2159 = vpop.f32.mrf.mxu0
      %v2160 = vadd.f32 %v1868, %v2159
      %v2161 = vpop.f32.mrf.mxu0
      %2162 = vdwg.mxu0
      %v2163 = vld [vmem:[#allocation2] sm:$0xe]
      %v2164 = vld [vmem:[#allocation2 + $0x4] sm:$0xf]
      %v2165 = vld [vmem:[#allocation2 + $0x8] sm:$0x1]
      %v2166 = vld [vmem:[#allocation2 + $0xc] sm:$0xe]
      %v2167 = vld [vmem:[#allocation2 + $0x10] sm:$0xf]
      %v2168 = vld [vmem:[#allocation2 + $0x14] sm:$0x1]
      %v2169 = vld [vmem:[#allocation2 + $0x18] sm:$0xe]
      %v2170 = vld [vmem:[#allocation2 + $0x1c] sm:$0xf]
      %v2171 = vld [vmem:[#allocation2 + $0x20] sm:$0x1]
      %v2172 = vld [vmem:[#allocation2 + $0x24] sm:$0xe]
      %v2173 = vld [vmem:[#allocation2 + $0x28] sm:$0xf]
      %v2174 = vld [vmem:[#allocation2 + $0x2c] sm:$0x1]
      %v2175 = vld [vmem:[#allocation2 + $0x30] sm:$0xe]
      %v2176 = vld [vmem:[#allocation2 + $0x34] sm:$0xf]
      %v2177 = vld [vmem:[#allocation2 + $0x38] sm:$0x1]
      %v2178 = vld [vmem:[#allocation2 + $0x3c] sm:$0xe]
      %v2179 = vld [vmem:[#allocation2 + $0x40] sm:$0xf]
      %v2180 = vld [vmem:[#allocation2 + $0x44] sm:$0x1]
      %v2181 = vld [vmem:[#allocation2 + $0x48] sm:$0xe]
      %v2182 = vld [vmem:[#allocation2 + $0x4c] sm:$0xf]
      %v2183 = vld [vmem:[#allocation2 + $0x50] sm:$0x1]
      %v2184 = vld [vmem:[#allocation2 + $0x54] sm:$0xe]
      %v2185 = vld [vmem:[#allocation2 + $0x58] sm:$0xf]
      %v2186 = vld [vmem:[#allocation2 + $0x5c] sm:$0x1]
      %v2187 = vld [vmem:[#allocation2 + $0x60] sm:$0xe]
      %v2188 = vld [vmem:[#allocation2 + $0x64] sm:$0xf]
      %v2189 = vld [vmem:[#allocation2 + $0x68] sm:$0x1]
      %v2190 = vld [vmem:[#allocation2 + $0x6c] sm:$0xe]
      %v2191 = vld [vmem:[#allocation2 + $0x70] sm:$0xf]
      %v2192 = vld [vmem:[#allocation2 + $0x74] sm:$0x1]
      %v2193 = vld [vmem:[#allocation2 + $0x78] sm:$0xe]
      %v2194 = vld [vmem:[#allocation2 + $0x7c] sm:$0xf]
      %v2195 = vld [vmem:[#allocation2 + $0x80] sm:$0x1]
      %v2196 = vld [vmem:[#allocation2 + $0x84] sm:$0xe]
      %v2197 = vld [vmem:[#allocation2 + $0x88] sm:$0xf]
      %v2198 = vld [vmem:[#allocation2 + $0x8c] sm:$0x1]
      %v2199 = vld [vmem:[#allocation2 + $0x90] sm:$0xe]
      %v2200 = vld [vmem:[#allocation2 + $0x94] sm:$0xf]
      %v2201 = vld [vmem:[#allocation2 + $0x98] sm:$0x1]
      %v2202 = vld [vmem:[#allocation2 + $0x9c] sm:$0xe]
      %v2203 = vld [vmem:[#allocation2 + $0xa0] sm:$0xf]
      %v2204 = vld [vmem:[#allocation2 + $0xa4] sm:$0x1]
      %v2205 = vld [vmem:[#allocation2 + $0xa8] sm:$0xe]
      %v2206 = vld [vmem:[#allocation2 + $0xac] sm:$0xf]
      %v2207 = vld [vmem:[#allocation2 + $0xb0] sm:$0x1]
      %v2208 = vld [vmem:[#allocation2 + $0xb4] sm:$0xe]
      %v2209 = vld [vmem:[#allocation2 + $0xb8] sm:$0xf]
      %v2210 = vld [vmem:[#allocation2 + $0xbc] sm:$0x1]
      %s2211 = scalar_lea.vmem %s3, 4
      %v2212 = vld [vmem:[%s2211] sm:$0x3]
      %vm2261 = vcmask 1042432
      %vm2262 = vcmask 1046532
      %vm2263 = vmor %vm2261, %vm2262
      %v2264 = vrot.slane %v2163, 5
      %v2265 = vrot.slane %v2264, 4
      %v2266 = vrot.slane %v2164, 5
      %v2267 = vsel %vm2263, %v2265, %v2266
      %v2268 = vrot.slane %v2266, 4
      %v2269 = vrot.slane %v2165, 5
      %v2270 = vsel %vm2263, %v2268, %v2269
      %v2271 = vrot.slane %v2166, 5
      %v2272 = vrot.slane %v2271, 4
      %v2273 = vrot.slane %v2167, 5
      %v2274 = vsel %vm2263, %v2272, %v2273
      %v2275 = vrot.slane %v2273, 4
      %v2276 = vrot.slane %v2168, 5
      %v2277 = vsel %vm2263, %v2275, %v2276
      %v2278 = vrot.slane %v2169, 5
      %v2279 = vrot.slane %v2278, 4
      %v2280 = vrot.slane %v2170, 5
      %v2281 = vsel %vm2263, %v2279, %v2280
      %v2282 = vrot.slane %v2280, 4
      %v2283 = vrot.slane %v2171, 5
      %v2284 = vsel %vm2263, %v2282, %v2283
      %v2285 = vrot.slane %v2172, 5
      %v2286 = vrot.slane %v2285, 4
      %v2287 = vrot.slane %v2173, 5
      %v2288 = vsel %vm2263, %v2286, %v2287
      %v2289 = vrot.slane %v2287, 4
      %v2290 = vrot.slane %v2174, 5
      %v2291 = vsel %vm2263, %v2289, %v2290
      %v2292 = vrot.slane %v2175, 5
      %v2293 = vrot.slane %v2292, 4
      %v2294 = vrot.slane %v2176, 5
      %v2295 = vsel %vm2263, %v2293, %v2294
      %v2296 = vrot.slane %v2294, 4
      %v2297 = vrot.slane %v2177, 5
      %v2298 = vsel %vm2263, %v2296, %v2297
      %v2299 = vrot.slane %v2178, 5
      %v2300 = vrot.slane %v2299, 4
      %v2301 = vrot.slane %v2179, 5
      %v2302 = vsel %vm2263, %v2300, %v2301
      %v2303 = vrot.slane %v2301, 4
      %v2304 = vrot.slane %v2180, 5
      %v2305 = vsel %vm2263, %v2303, %v2304
      %v2306 = vrot.slane %v2181, 5
      %v2307 = vrot.slane %v2306, 4
      %v2308 = vrot.slane %v2182, 5
      %v2309 = vsel %vm2263, %v2307, %v2308
      %v2310 = vrot.slane %v2308, 4
      %v2311 = vrot.slane %v2183, 5
      %v2312 = vsel %vm2263, %v2310, %v2311
      %v2313 = vrot.slane %v2184, 5
      %v2314 = vrot.slane %v2313, 4
      %v2315 = vrot.slane %v2185, 5
      %v2316 = vsel %vm2263, %v2314, %v2315
      %v2317 = vrot.slane %v2315, 4
      %v2318 = vrot.slane %v2186, 5
      %v2319 = vsel %vm2263, %v2317, %v2318
      %v2320 = vrot.slane %v2187, 5
      %v2321 = vrot.slane %v2320, 4
      %v2322 = vrot.slane %v2188, 5
      %v2323 = vsel %vm2263, %v2321, %v2322
      %v2324 = vrot.slane %v2322, 4
      %v2325 = vrot.slane %v2189, 5
      %v2326 = vsel %vm2263, %v2324, %v2325
      %v2327 = vrot.slane %v2190, 5
      %v2328 = vrot.slane %v2327, 4
      %v2329 = vrot.slane %v2191, 5
      %v2330 = vsel %vm2263, %v2328, %v2329
      %v2331 = vrot.slane %v2329, 4
      %v2332 = vrot.slane %v2192, 5
      %v2333 = vsel %vm2263, %v2331, %v2332
      %v2334 = vrot.slane %v2193, 5
      %v2335 = vrot.slane %v2334, 4
      %v2336 = vrot.slane %v2194, 5
      %v2337 = vsel %vm2263, %v2335, %v2336
      %v2338 = vrot.slane %v2336, 4
      %v2339 = vrot.slane %v2195, 5
      %v2340 = vsel %vm2263, %v2338, %v2339
      %v2341 = vrot.slane %v2196, 5
      %v2342 = vrot.slane %v2341, 4
      %v2343 = vrot.slane %v2197, 5
      %v2344 = vsel %vm2263, %v2342, %v2343
      %v2345 = vrot.slane %v2343, 4
      %v2346 = vrot.slane %v2198, 5
      %v2347 = vsel %vm2263, %v2345, %v2346
      %v2348 = vrot.slane %v2199, 5
      %v2349 = vrot.slane %v2348, 4
      %v2350 = vrot.slane %v2200, 5
      %v2351 = vsel %vm2263, %v2349, %v2350
      %v2352 = vrot.slane %v2350, 4
      %v2353 = vrot.slane %v2201, 5
      %v2354 = vsel %vm2263, %v2352, %v2353
      %v2355 = vrot.slane %v2202, 5
      %v2356 = vrot.slane %v2355, 4
      %v2357 = vrot.slane %v2203, 5
      %v2358 = vsel %vm2263, %v2356, %v2357
      %v2359 = vrot.slane %v2357, 4
      %v2360 = vrot.slane %v2204, 5
      %v2361 = vsel %vm2263, %v2359, %v2360
      %v2362 = vrot.slane %v2205, 5
      %v2363 = vrot.slane %v2362, 4
      %v2364 = vrot.slane %v2206, 5
      %v2365 = vsel %vm2263, %v2363, %v2364
      %v2366 = vrot.slane %v2364, 4
      %v2367 = vrot.slane %v2207, 5
      %v2368 = vsel %vm2263, %v2366, %v2367
      %v2369 = vrot.slane %v2208, 5
      %v2370 = vrot.slane %v2369, 4
      %v2371 = vrot.slane %v2209, 5
      %v2372 = vsel %vm2263, %v2370, %v2371
      %v2373 = vrot.slane %v2371, 4
      %v2374 = vrot.slane %v2210, 5
      %v2375 = vsel %vm2263, %v2373, %v2374
      %v2376 = vunpack.c.l.b16 %v2267
      %v2377 = vunpack.c.l.b16 %v2270
      %v2378 = vunpack.c.l.b16 %v2274
      %v2379 = vunpack.c.l.b16 %v2277
      %v2380 = vunpack.c.l.b16 %v2281
      %v2381 = vunpack.c.l.b16 %v2284
      %v2382 = vunpack.c.l.b16 %v2288
      %v2383 = vunpack.c.l.b16 %v2291
      %v2384 = vunpack.c.l.b16 %v2295
      %v2385 = vunpack.c.l.b16 %v2298
      %v2386 = vunpack.c.l.b16 %v2302
      %v2387 = vunpack.c.l.b16 %v2305
      %v2388 = vunpack.c.l.b16 %v2309
      %v2389 = vunpack.c.l.b16 %v2312
      %v2390 = vunpack.c.l.b16 %v2316
      %v2391 = vunpack.c.l.b16 %v2319
      %v2392 = vunpack.c.l.b16 %v2323
      %v2393 = vunpack.c.l.b16 %v2326
      %v2394 = vunpack.c.l.b16 %v2330
      %v2395 = vunpack.c.l.b16 %v2333
      %v2396 = vunpack.c.l.b16 %v2337
      %v2397 = vunpack.c.l.b16 %v2340
      %v2398 = vunpack.c.l.b16 %v2344
      %v2399 = vunpack.c.l.b16 %v2347
      %v2400 = vunpack.c.l.b16 %v2351
      %v2401 = vunpack.c.l.b16 %v2354
      %v2402 = vunpack.c.l.b16 %v2358
      %v2403 = vunpack.c.l.b16 %v2361
      %v2404 = vunpack.c.l.b16 %v2365
      %v2405 = vunpack.c.l.b16 %v2368
      %v2406 = vunpack.c.l.b16 %v2372
      %v2407 = vunpack.c.l.b16 %v2375
      %v2408 = vpack.c.b16 %v2377, %v2376
      %v2409 = vpack.c.b16 %v2379, %v2378
      %v2410 = vpack.c.b16 %v2381, %v2380
      %v2411 = vpack.c.b16 %v2383, %v2382
      %v2412 = vpack.c.b16 %v2385, %v2384
      %v2413 = vpack.c.b16 %v2387, %v2386
      %v2414 = vpack.c.b16 %v2389, %v2388
      %v2415 = vpack.c.b16 %v2391, %v2390
      %v2416 = vpack.c.b16 %v2393, %v2392
      %v2417 = vpack.c.b16 %v2395, %v2394
      %v2418 = vpack.c.b16 %v2397, %v2396
      %v2419 = vpack.c.b16 %v2399, %v2398
      %v2420 = vpack.c.b16 %v2401, %v2400
      %v2421 = vpack.c.b16 %v2403, %v2402
      %v2422 = vpack.c.b16 %v2405, %v2404
      %v2423 = vpack.c.b16 %v2407, %v2406
      %v2425 = vsel %vm1657, %v2408, 0
      %v2428 = vsel %vm1657, %v2409, 0
      %v2431 = vsel %vm1657, %v2410, 0
      %v2434 = vsel %vm1657, %v2411, 0
      %v2437 = vsel %vm1657, %v2412, 0
      %v2440 = vsel %vm1657, %v2413, 0
      %v2443 = vsel %vm1657, %v2414, 0
      %v2446 = vsel %vm1657, %v2415, 0
      %v2449 = vsel %vm1657, %v2416, 0
      %v2452 = vsel %vm1657, %v2417, 0
      %v2455 = vsel %vm1657, %v2418, 0
      %v2458 = vsel %vm1657, %v2419, 0
      %v2461 = vsel %vm1657, %v2420, 0
      %v2464 = vsel %vm1657, %v2421, 0
      %v2467 = vsel %vm1657, %v2422, 0
      %v2470 = vsel %vm1657, %v2423, 0
      %v2473 = vsel %vm1706, %v2212, 0
      %2475 = vmatprep.subr.bf16.mxu0 0
      %2476 = vmatpush1.bf16.msra.mxu0 0
      %2477 = vmatprep.subr.bf16.mxu0 0
      %2478 = vmatpush1.bf16.msra.mxu0 0
      %2479 = vmatprep.subr.bf16.mxu0 0
      %2480 = vmatpush1.bf16.msra.mxu0 0
      %2481 = vmatprep.subr.bf16.mxu0 0
      %2482 = vmatpush1.bf16.msra.mxu0 0
      %2483 = vmatprep.subr.bf16.mxu0 0
      %2484 = vmatpush1.bf16.msra.mxu0 0
      %2485 = vmatprep.subr.bf16.mxu0 0
      %2486 = vmatpush1.bf16.msra.mxu0 0
      %2487 = vmatprep.subr.bf16.mxu0 0
      %2488 = vmatpush1.bf16.msra.mxu0 0
      %2489 = vmatprep.subr.bf16.mxu0 0
      %2490 = vmatpush1.bf16.msra.mxu0 %v2473
      %2491 = vmatprep.subr.bf16.mxu0 0
      %2492 = vmatpush2.bf16.msra.mxu0 0
      %2493 = vmatprep.subr.bf16.mxu0 0
      %2494 = vmatpush2.bf16.msra.mxu0 0
      %2495 = vmatprep.subr.bf16.mxu0 0
      %2496 = vmatpush2.bf16.msra.mxu0 0
      %2497 = vmatprep.subr.bf16.mxu0 0
      %2498 = vmatpush2.bf16.msra.mxu0 0
      %2499 = vmatprep.subr.bf16.mxu0 0
      %2500 = vmatpush2.bf16.msra.mxu0 0
      %2501 = vmatprep.subr.bf16.mxu0 0
      %2502 = vmatpush2.bf16.msra.mxu0 0
      %2503 = vmatprep.subr.bf16.mxu0 0
      %2504 = vmatpush2.bf16.msra.mxu0 0
      %2505 = vmatprep.subr.bf16.mxu0 0
      %2506 = vmatpush2.bf16.msra.mxu0 0
      %2507 = vmatprep.mubr.bf16.mxu0 0
      %2508 = vmatmul.mubr.bf16.gmra.mxu0 %v2425
      %v2509 = vpop.f32.mrf.mxu0
      %v2510 = vadd.f32 0.0, %v2509
      %v2511 = vpop.f32.mrf.mxu0
      %v2512 = vpop.f32.mrf.mxu0
      %v2513 = vadd.f32 0.0, %v2512
      %v2514 = vpop.f32.mrf.mxu0
      %2515 = vmatprep.mubr.bf16.mxu0 0
      %2516 = vmatmul.mubr.bf16.gmra.mxu0 %v2428
      %v2517 = vpop.f32.mrf.mxu0
      %v2518 = vadd.f32 0.0, %v2517
      %v2519 = vpop.f32.mrf.mxu0
      %v2520 = vpop.f32.mrf.mxu0
      %v2521 = vadd.f32 0.0, %v2520
      %v2522 = vpop.f32.mrf.mxu0
      %2523 = vmatprep.mubr.bf16.mxu0 0
      %2524 = vmatmul.mubr.bf16.gmra.mxu0 %v2431
      %v2525 = vpop.f32.mrf.mxu0
      %v2526 = vadd.f32 0.0, %v2525
      %v2527 = vpop.f32.mrf.mxu0
      %v2528 = vpop.f32.mrf.mxu0
      %v2529 = vadd.f32 0.0, %v2528
      %v2530 = vpop.f32.mrf.mxu0
      %2531 = vmatprep.mubr.bf16.mxu0 0
      %2532 = vmatmul.mubr.bf16.gmra.mxu0 %v2434
      %v2533 = vpop.f32.mrf.mxu0
      %v2534 = vadd.f32 0.0, %v2533
      %v2535 = vpop.f32.mrf.mxu0
      %v2536 = vpop.f32.mrf.mxu0
      %v2537 = vadd.f32 0.0, %v2536
      %v2538 = vpop.f32.mrf.mxu0
      %2539 = vmatprep.mubr.bf16.mxu0 0
      %2540 = vmatmul.mubr.bf16.gmra.mxu0 %v2437
      %v2541 = vpop.f32.mrf.mxu0
      %v2542 = vadd.f32 0.0, %v2541
      %v2543 = vpop.f32.mrf.mxu0
      %v2544 = vpop.f32.mrf.mxu0
      %v2545 = vadd.f32 0.0, %v2544
      %v2546 = vpop.f32.mrf.mxu0
      %2547 = vmatprep.mubr.bf16.mxu0 0
      %2548 = vmatmul.mubr.bf16.gmra.mxu0 %v2440
      %v2549 = vpop.f32.mrf.mxu0
      %v2550 = vadd.f32 0.0, %v2549
      %v2551 = vpop.f32.mrf.mxu0
      %v2552 = vpop.f32.mrf.mxu0
      %v2553 = vadd.f32 0.0, %v2552
      %v2554 = vpop.f32.mrf.mxu0
      %2555 = vmatprep.mubr.bf16.mxu0 0
      %2556 = vmatmul.mubr.bf16.gmra.mxu0 %v2443
      %v2557 = vpop.f32.mrf.mxu0
      %v2558 = vadd.f32 0.0, %v2557
      %v2559 = vpop.f32.mrf.mxu0
      %v2560 = vpop.f32.mrf.mxu0
      %v2561 = vadd.f32 0.0, %v2560
      %v2562 = vpop.f32.mrf.mxu0
      %2563 = vmatprep.mubr.bf16.mxu0 0
      %2564 = vmatmul.mubr.bf16.gmra.mxu0 %v2446
      %v2565 = vpop.f32.mrf.mxu0
      %v2566 = vadd.f32 0.0, %v2565
      %v2567 = vpop.f32.mrf.mxu0
      %v2568 = vpop.f32.mrf.mxu0
      %v2569 = vadd.f32 0.0, %v2568
      %v2570 = vpop.f32.mrf.mxu0
      %2571 = vmatprep.mubr.bf16.mxu0 0
      %2572 = vmatmul.mubr.bf16.gmra.mxu0 %v2449
      %v2573 = vpop.f32.mrf.mxu0
      %v2574 = vadd.f32 0.0, %v2573
      %v2575 = vpop.f32.mrf.mxu0
      %v2576 = vpop.f32.mrf.mxu0
      %v2577 = vadd.f32 0.0, %v2576
      %v2578 = vpop.f32.mrf.mxu0
      %2579 = vmatprep.mubr.bf16.mxu0 0
      %2580 = vmatmul.mubr.bf16.gmra.mxu0 %v2452
      %v2581 = vpop.f32.mrf.mxu0
      %v2582 = vadd.f32 0.0, %v2581
      %v2583 = vpop.f32.mrf.mxu0
      %v2584 = vpop.f32.mrf.mxu0
      %v2585 = vadd.f32 0.0, %v2584
      %v2586 = vpop.f32.mrf.mxu0
      %2587 = vmatprep.mubr.bf16.mxu0 0
      %2588 = vmatmul.mubr.bf16.gmra.mxu0 %v2455
      %v2589 = vpop.f32.mrf.mxu0
      %v2590 = vadd.f32 0.0, %v2589
      %v2591 = vpop.f32.mrf.mxu0
      %v2592 = vpop.f32.mrf.mxu0
      %v2593 = vadd.f32 0.0, %v2592
      %v2594 = vpop.f32.mrf.mxu0
      %2595 = vmatprep.mubr.bf16.mxu0 0
      %2596 = vmatmul.mubr.bf16.gmra.mxu0 %v2458
      %v2597 = vpop.f32.mrf.mxu0
      %v2598 = vadd.f32 0.0, %v2597
      %v2599 = vpop.f32.mrf.mxu0
      %v2600 = vpop.f32.mrf.mxu0
      %v2601 = vadd.f32 0.0, %v2600
      %v2602 = vpop.f32.mrf.mxu0
      %2603 = vmatprep.mubr.bf16.mxu0 0
      %2604 = vmatmul.mubr.bf16.gmra.mxu0 %v2461
      %v2605 = vpop.f32.mrf.mxu0
      %v2606 = vadd.f32 0.0, %v2605
      %v2607 = vpop.f32.mrf.mxu0
      %v2608 = vpop.f32.mrf.mxu0
      %v2609 = vadd.f32 0.0, %v2608
      %v2610 = vpop.f32.mrf.mxu0
      %2611 = vmatprep.mubr.bf16.mxu0 0
      %2612 = vmatmul.mubr.bf16.gmra.mxu0 %v2464
      %v2613 = vpop.f32.mrf.mxu0
      %v2614 = vadd.f32 0.0, %v2613
      %v2615 = vpop.f32.mrf.mxu0
      %v2616 = vpop.f32.mrf.mxu0
      %v2617 = vadd.f32 0.0, %v2616
      %v2618 = vpop.f32.mrf.mxu0
      %2619 = vmatprep.mubr.bf16.mxu0 0
      %2620 = vmatmul.mubr.bf16.gmra.mxu0 %v2467
      %v2621 = vpop.f32.mrf.mxu0
      %v2622 = vadd.f32 0.0, %v2621
      %v2623 = vpop.f32.mrf.mxu0
      %v2624 = vpop.f32.mrf.mxu0
      %v2625 = vadd.f32 0.0, %v2624
      %v2626 = vpop.f32.mrf.mxu0
      %2627 = vmatprep.mubr.bf16.mxu0 0
      %2628 = vmatmul.mubr.bf16.gmra.mxu0 %v2470
      %v2629 = vpop.f32.mrf.mxu0
      %v2630 = vadd.f32 0.0, %v2629
      %v2631 = vpop.f32.mrf.mxu0
      %v2632 = vpop.f32.mrf.mxu0
      %v2633 = vadd.f32 0.0, %v2632
      %v2634 = vpop.f32.mrf.mxu0
      %2635 = vdwg.mxu0
      %v2636 = vadd.f32 %v2037, %v2510
      %v2637 = vadd.f32 %v2040, %v2513
      %v2638 = vadd.f32 %v2045, %v2518
      %v2639 = vadd.f32 %v2048, %v2521
      %v2640 = vadd.f32 %v2053, %v2526
      %v2641 = vadd.f32 %v2056, %v2529
      %v2642 = vadd.f32 %v2061, %v2534
      %v2643 = vadd.f32 %v2064, %v2537
      %v2644 = vadd.f32 %v2069, %v2542
      %v2645 = vadd.f32 %v2072, %v2545
      %v2646 = vadd.f32 %v2077, %v2550
      %v2647 = vadd.f32 %v2080, %v2553
      %v2648 = vadd.f32 %v2085, %v2558
      %v2649 = vadd.f32 %v2088, %v2561
      %v2650 = vadd.f32 %v2093, %v2566
      %v2651 = vadd.f32 %v2096, %v2569
      %v2652 = vadd.f32 %v2101, %v2574
      %v2653 = vadd.f32 %v2104, %v2577
      %v2654 = vadd.f32 %v2109, %v2582
      %v2655 = vadd.f32 %v2112, %v2585
      %v2656 = vadd.f32 %v2117, %v2590
      %v2657 = vadd.f32 %v2120, %v2593
      %v2658 = vadd.f32 %v2125, %v2598
      %v2659 = vadd.f32 %v2128, %v2601
      %v2660 = vadd.f32 %v2133, %v2606
      %v2661 = vadd.f32 %v2136, %v2609
      %v2662 = vadd.f32 %v2141, %v2614
      %v2663 = vadd.f32 %v2144, %v2617
      %v2664 = vadd.f32 %v2149, %v2622
      %v2665 = vadd.f32 %v2152, %v2625
      %v2666 = vadd.f32 %v2157, %v2630
      %v2667 = vadd.f32 %v2160, %v2633
      %v2668 = vld [vmem:[%s945] sm:$0xf]
      %v2669 = vld [vmem:[%s945 + $0x4] sm:$0xf]
      %v2670 = vld [vmem:[%s945 + $0xc] sm:$0xf]
      %v2671 = vld [vmem:[%s945 + $0x10] sm:$0xf]
      %v2672 = vld [vmem:[%s945 + $0x18] sm:$0xf]
      %v2673 = vld [vmem:[%s945 + $0x1c] sm:$0xf]
      %v2674 = vld [vmem:[%s945 + $0x24] sm:$0xf]
      %v2675 = vld [vmem:[%s945 + $0x28] sm:$0xf]
      %v2676 = vld [vmem:[%s945 + $0x30] sm:$0xf]
      %v2677 = vld [vmem:[%s945 + $0x34] sm:$0xf]
      %v2678 = vld [vmem:[%s945 + $0x3c] sm:$0xf]
      %v2679 = vld [vmem:[%s945 + $0x40] sm:$0xf]
      %v2680 = vld [vmem:[%s945 + $0x48] sm:$0xf]
      %v2681 = vld [vmem:[%s945 + $0x4c] sm:$0xf]
      %v2682 = vld [vmem:[%s945 + $0x54] sm:$0xf]
      %v2683 = vld [vmem:[%s945 + $0x58] sm:$0xf]
      %v2684 = vld [vmem:[%s945 + $0x60] sm:$0xf]
      %v2685 = vld [vmem:[%s945 + $0x64] sm:$0xf]
      %v2686 = vld [vmem:[%s945 + $0x6c] sm:$0xf]
      %v2687 = vld [vmem:[%s945 + $0x70] sm:$0xf]
      %v2688 = vld [vmem:[%s945 + $0x78] sm:$0xf]
      %v2689 = vld [vmem:[%s945 + $0x7c] sm:$0xf]
      %v2690 = vld [vmem:[%s945 + $0x84] sm:$0xf]
      %v2691 = vld [vmem:[%s945 + $0x88] sm:$0xf]
      %v2692 = vld [vmem:[%s945 + $0x90] sm:$0xf]
      %v2693 = vld [vmem:[%s945 + $0x94] sm:$0xf]
      %v2694 = vld [vmem:[%s945 + $0x9c] sm:$0xf]
      %v2695 = vld [vmem:[%s945 + $0xa0] sm:$0xf]
      %v2696 = vld [vmem:[%s945 + $0xa8] sm:$0xf]
      %v2697 = vld [vmem:[%s945 + $0xac] sm:$0xf]
      %v2698 = vld [vmem:[%s945 + $0xb4] sm:$0xf]
      %v2699 = vld [vmem:[%s945 + $0xb8] sm:$0xf]
      %s2700 = scalar_lea.vmem %s3, 6
      %v2701 = vld [vmem:[%s2700] sm:$0x3]
      %v2734 = vunpack.c.l.b16 %v2668
      %v2735 = vunpack.c.l.b16 %v2669
      %v2736 = vunpack.c.l.b16 %v2670
      %v2737 = vunpack.c.l.b16 %v2671
      %v2738 = vunpack.c.l.b16 %v2672
      %v2739 = vunpack.c.l.b16 %v2673
      %v2740 = vunpack.c.l.b16 %v2674
      %v2741 = vunpack.c.l.b16 %v2675
      %v2742 = vunpack.c.l.b16 %v2676
      %v2743 = vunpack.c.l.b16 %v2677
      %v2744 = vunpack.c.l.b16 %v2678
      %v2745 = vunpack.c.l.b16 %v2679
      %v2746 = vunpack.c.l.b16 %v2680
      %v2747 = vunpack.c.l.b16 %v2681
      %v2748 = vunpack.c.l.b16 %v2682
      %v2749 = vunpack.c.l.b16 %v2683
      %v2750 = vunpack.c.l.b16 %v2684
      %v2751 = vunpack.c.l.b16 %v2685
      %v2752 = vunpack.c.l.b16 %v2686
      %v2753 = vunpack.c.l.b16 %v2687
      %v2754 = vunpack.c.l.b16 %v2688
      %v2755 = vunpack.c.l.b16 %v2689
      %v2756 = vunpack.c.l.b16 %v2690
      %v2757 = vunpack.c.l.b16 %v2691
      %v2758 = vunpack.c.l.b16 %v2692
      %v2759 = vunpack.c.l.b16 %v2693
      %v2760 = vunpack.c.l.b16 %v2694
      %v2761 = vunpack.c.l.b16 %v2695
      %v2762 = vunpack.c.l.b16 %v2696
      %v2763 = vunpack.c.l.b16 %v2697
      %v2764 = vunpack.c.l.b16 %v2698
      %v2765 = vunpack.c.l.b16 %v2699
      %v2766 = vpack.c.b16 %v2735, %v2734
      %v2767 = vpack.c.b16 %v2737, %v2736
      %v2768 = vpack.c.b16 %v2739, %v2738
      %v2769 = vpack.c.b16 %v2741, %v2740
      %v2770 = vpack.c.b16 %v2743, %v2742
      %v2771 = vpack.c.b16 %v2745, %v2744
      %v2772 = vpack.c.b16 %v2747, %v2746
      %v2773 = vpack.c.b16 %v2749, %v2748
      %v2774 = vpack.c.b16 %v2751, %v2750
      %v2775 = vpack.c.b16 %v2753, %v2752
      %v2776 = vpack.c.b16 %v2755, %v2754
      %v2777 = vpack.c.b16 %v2757, %v2756
      %v2778 = vpack.c.b16 %v2759, %v2758
      %v2779 = vpack.c.b16 %v2761, %v2760
      %v2780 = vpack.c.b16 %v2763, %v2762
      %v2781 = vpack.c.b16 %v2765, %v2764
      %v2783 = vsel %vm1657, %v2766, 0
      %v2786 = vsel %vm1657, %v2767, 0
      %v2789 = vsel %vm1657, %v2768, 0
      %v2792 = vsel %vm1657, %v2769, 0
      %v2795 = vsel %vm1657, %v2770, 0
      %v2798 = vsel %vm1657, %v2771, 0
      %v2801 = vsel %vm1657, %v2772, 0
      %v2804 = vsel %vm1657, %v2773, 0
      %v2807 = vsel %vm1657, %v2774, 0
      %v2810 = vsel %vm1657, %v2775, 0
      %v2813 = vsel %vm1657, %v2776, 0
      %v2816 = vsel %vm1657, %v2777, 0
      %v2819 = vsel %vm1657, %v2778, 0
      %v2822 = vsel %vm1657, %v2779, 0
      %v2825 = vsel %vm1657, %v2780, 0
      %v2828 = vsel %vm1657, %v2781, 0
      %v2831 = vsel %vm1706, %v2701, 0
      %2833 = vmatprep.subr.bf16.mxu0 0
      %2834 = vmatpush1.bf16.msra.mxu0 0
      %2835 = vmatprep.subr.bf16.mxu0 0
      %2836 = vmatpush1.bf16.msra.mxu0 0
      %2837 = vmatprep.subr.bf16.mxu0 0
      %2838 = vmatpush1.bf16.msra.mxu0 0
      %2839 = vmatprep.subr.bf16.mxu0 0
      %2840 = vmatpush1.bf16.msra.mxu0 0
      %2841 = vmatprep.subr.bf16.mxu0 0
      %2842 = vmatpush1.bf16.msra.mxu0 0
      %2843 = vmatprep.subr.bf16.mxu0 0
      %2844 = vmatpush1.bf16.msra.mxu0 0
      %2845 = vmatprep.subr.bf16.mxu0 0
      %2846 = vmatpush1.bf16.msra.mxu0 0
      %2847 = vmatprep.subr.bf16.mxu0 0
      %2848 = vmatpush1.bf16.msra.mxu0 %v2831
      %2849 = vmatprep.subr.bf16.mxu0 0
      %2850 = vmatpush2.bf16.msra.mxu0 0
      %2851 = vmatprep.subr.bf16.mxu0 0
      %2852 = vmatpush2.bf16.msra.mxu0 0
      %2853 = vmatprep.subr.bf16.mxu0 0
      %2854 = vmatpush2.bf16.msra.mxu0 0
      %2855 = vmatprep.subr.bf16.mxu0 0
      %2856 = vmatpush2.bf16.msra.mxu0 0
      %2857 = vmatprep.subr.bf16.mxu0 0
      %2858 = vmatpush2.bf16.msra.mxu0 0
      %2859 = vmatprep.subr.bf16.mxu0 0
      %2860 = vmatpush2.bf16.msra.mxu0 0
      %2861 = vmatprep.subr.bf16.mxu0 0
      %2862 = vmatpush2.bf16.msra.mxu0 0
      %2863 = vmatprep.subr.bf16.mxu0 0
      %2864 = vmatpush2.bf16.msra.mxu0 0
      %2865 = vmatprep.mubr.bf16.mxu0 0
      %2866 = vmatmul.mubr.bf16.gmra.mxu0 %v2783
      %v2867 = vpop.f32.mrf.mxu0
      %v2868 = vadd.f32 0.0, %v2867
      %v2869 = vpop.f32.mrf.mxu0
      %v2870 = vpop.f32.mrf.mxu0
      %v2871 = vadd.f32 0.0, %v2870
      %v2872 = vpop.f32.mrf.mxu0
      %2873 = vmatprep.mubr.bf16.mxu0 0
      %2874 = vmatmul.mubr.bf16.gmra.mxu0 %v2786
      %v2875 = vpop.f32.mrf.mxu0
      %v2876 = vadd.f32 0.0, %v2875
      %v2877 = vpop.f32.mrf.mxu0
      %v2878 = vpop.f32.mrf.mxu0
      %v2879 = vadd.f32 0.0, %v2878
      %v2880 = vpop.f32.mrf.mxu0
      %2881 = vmatprep.mubr.bf16.mxu0 0
      %2882 = vmatmul.mubr.bf16.gmra.mxu0 %v2789
      %v2883 = vpop.f32.mrf.mxu0
      %v2884 = vadd.f32 0.0, %v2883
      %v2885 = vpop.f32.mrf.mxu0
      %v2886 = vpop.f32.mrf.mxu0
      %v2887 = vadd.f32 0.0, %v2886
      %v2888 = vpop.f32.mrf.mxu0
      %2889 = vmatprep.mubr.bf16.mxu0 0
      %2890 = vmatmul.mubr.bf16.gmra.mxu0 %v2792
      %v2891 = vpop.f32.mrf.mxu0
      %v2892 = vadd.f32 0.0, %v2891
      %v2893 = vpop.f32.mrf.mxu0
      %v2894 = vpop.f32.mrf.mxu0
      %v2895 = vadd.f32 0.0, %v2894
      %v2896 = vpop.f32.mrf.mxu0
      %2897 = vmatprep.mubr.bf16.mxu0 0
      %2898 = vmatmul.mubr.bf16.gmra.mxu0 %v2795
      %v2899 = vpop.f32.mrf.mxu0
      %v2900 = vadd.f32 0.0, %v2899
      %v2901 = vpop.f32.mrf.mxu0
      %v2902 = vpop.f32.mrf.mxu0
      %v2903 = vadd.f32 0.0, %v2902
      %v2904 = vpop.f32.mrf.mxu0
      %2905 = vmatprep.mubr.bf16.mxu0 0
      %2906 = vmatmul.mubr.bf16.gmra.mxu0 %v2798
      %v2907 = vpop.f32.mrf.mxu0
      %v2908 = vadd.f32 0.0, %v2907
      %v2909 = vpop.f32.mrf.mxu0
      %v2910 = vpop.f32.mrf.mxu0
      %v2911 = vadd.f32 0.0, %v2910
      %v2912 = vpop.f32.mrf.mxu0
      %2913 = vmatprep.mubr.bf16.mxu0 0
      %2914 = vmatmul.mubr.bf16.gmra.mxu0 %v2801
      %v2915 = vpop.f32.mrf.mxu0
      %v2916 = vadd.f32 0.0, %v2915
      %v2917 = vpop.f32.mrf.mxu0
      %v2918 = vpop.f32.mrf.mxu0
      %v2919 = vadd.f32 0.0, %v2918
      %v2920 = vpop.f32.mrf.mxu0
      %2921 = vmatprep.mubr.bf16.mxu0 0
      %2922 = vmatmul.mubr.bf16.gmra.mxu0 %v2804
      %v2923 = vpop.f32.mrf.mxu0
      %v2924 = vadd.f32 0.0, %v2923
      %v2925 = vpop.f32.mrf.mxu0
      %v2926 = vpop.f32.mrf.mxu0
      %v2927 = vadd.f32 0.0, %v2926
      %v2928 = vpop.f32.mrf.mxu0
      %2929 = vmatprep.mubr.bf16.mxu0 0
      %2930 = vmatmul.mubr.bf16.gmra.mxu0 %v2807
      %v2931 = vpop.f32.mrf.mxu0
      %v2932 = vadd.f32 0.0, %v2931
      %v2933 = vpop.f32.mrf.mxu0
      %v2934 = vpop.f32.mrf.mxu0
      %v2935 = vadd.f32 0.0, %v2934
      %v2936 = vpop.f32.mrf.mxu0
      %2937 = vmatprep.mubr.bf16.mxu0 0
      %2938 = vmatmul.mubr.bf16.gmra.mxu0 %v2810
      %v2939 = vpop.f32.mrf.mxu0
      %v2940 = vadd.f32 0.0, %v2939
      %v2941 = vpop.f32.mrf.mxu0
      %v2942 = vpop.f32.mrf.mxu0
      %v2943 = vadd.f32 0.0, %v2942
      %v2944 = vpop.f32.mrf.mxu0
      %2945 = vmatprep.mubr.bf16.mxu0 0
      %2946 = vmatmul.mubr.bf16.gmra.mxu0 %v2813
      %v2947 = vpop.f32.mrf.mxu0
      %v2948 = vadd.f32 0.0, %v2947
      %v2949 = vpop.f32.mrf.mxu0
      %v2950 = vpop.f32.mrf.mxu0
      %v2951 = vadd.f32 0.0, %v2950
      %v2952 = vpop.f32.mrf.mxu0
      %2953 = vmatprep.mubr.bf16.mxu0 0
      %2954 = vmatmul.mubr.bf16.gmra.mxu0 %v2816
      %v2955 = vpop.f32.mrf.mxu0
      %v2956 = vadd.f32 0.0, %v2955
      %v2957 = vpop.f32.mrf.mxu0
      %v2958 = vpop.f32.mrf.mxu0
      %v2959 = vadd.f32 0.0, %v2958
      %v2960 = vpop.f32.mrf.mxu0
      %2961 = vmatprep.mubr.bf16.mxu0 0
      %2962 = vmatmul.mubr.bf16.gmra.mxu0 %v2819
      %v2963 = vpop.f32.mrf.mxu0
      %v2964 = vadd.f32 0.0, %v2963
      %v2965 = vpop.f32.mrf.mxu0
      %v2966 = vpop.f32.mrf.mxu0
      %v2967 = vadd.f32 0.0, %v2966
      %v2968 = vpop.f32.mrf.mxu0
      %2969 = vmatprep.mubr.bf16.mxu0 0
      %2970 = vmatmul.mubr.bf16.gmra.mxu0 %v2822
      %v2971 = vpop.f32.mrf.mxu0
      %v2972 = vadd.f32 0.0, %v2971
      %v2973 = vpop.f32.mrf.mxu0
      %v2974 = vpop.f32.mrf.mxu0
      %v2975 = vadd.f32 0.0, %v2974
      %v2976 = vpop.f32.mrf.mxu0
      %2977 = vmatprep.mubr.bf16.mxu0 0
      %2978 = vmatmul.mubr.bf16.gmra.mxu0 %v2825
      %v2979 = vpop.f32.mrf.mxu0
      %v2980 = vadd.f32 0.0, %v2979
      %v2981 = vpop.f32.mrf.mxu0
      %v2982 = vpop.f32.mrf.mxu0
      %v2983 = vadd.f32 0.0, %v2982
      %v2984 = vpop.f32.mrf.mxu0
      %2985 = vmatprep.mubr.bf16.mxu0 0
      %2986 = vmatmul.mubr.bf16.gmra.mxu0 %v2828
      %v2987 = vpop.f32.mrf.mxu0
      %v2988 = vadd.f32 0.0, %v2987
      %v2989 = vpop.f32.mrf.mxu0
      %v2990 = vpop.f32.mrf.mxu0
      %v2991 = vadd.f32 0.0, %v2990
      %v2992 = vpop.f32.mrf.mxu0
      %2993 = vdwg.mxu0
      %v2994 = vadd.f32 %v2636, %v2868
      %v2995 = vadd.f32 %v2637, %v2871
      %v2996 = vadd.f32 %v2638, %v2876
      %v2997 = vadd.f32 %v2639, %v2879
      %v2998 = vadd.f32 %v2640, %v2884
      %v2999 = vadd.f32 %v2641, %v2887
      %v3000 = vadd.f32 %v2642, %v2892
      %v3001 = vadd.f32 %v2643, %v2895
      %v3002 = vadd.f32 %v2644, %v2900
      %v3003 = vadd.f32 %v2645, %v2903
      %v3004 = vadd.f32 %v2646, %v2908
      %v3005 = vadd.f32 %v2647, %v2911
      %v3006 = vadd.f32 %v2648, %v2916
      %v3007 = vadd.f32 %v2649, %v2919
      %v3008 = vadd.f32 %v2650, %v2924
      %v3009 = vadd.f32 %v2651, %v2927
      %v3010 = vadd.f32 %v2652, %v2932
      %v3011 = vadd.f32 %v2653, %v2935
      %v3012 = vadd.f32 %v2654, %v2940
      %v3013 = vadd.f32 %v2655, %v2943
      %v3014 = vadd.f32 %v2656, %v2948
      %v3015 = vadd.f32 %v2657, %v2951
      %v3016 = vadd.f32 %v2658, %v2956
      %v3017 = vadd.f32 %v2659, %v2959
      %v3018 = vadd.f32 %v2660, %v2964
      %v3019 = vadd.f32 %v2661, %v2967
      %v3020 = vadd.f32 %v2662, %v2972
      %v3021 = vadd.f32 %v2663, %v2975
      %v3022 = vadd.f32 %v2664, %v2980
      %v3023 = vadd.f32 %v2665, %v2983
      %v3024 = vadd.f32 %v2666, %v2988
      %v3025 = vadd.f32 %v2667, %v2991
      %v3026 = vld [vmem:[%s945] sm:$0xf]
      %v3027 = vld [vmem:[%s945 + $0x4] sm:$0xf]
      %v3028 = vld [vmem:[%s945 + $0x8] sm:$0x1]
      %v3029 = vld [vmem:[%s945 + $0xc] sm:$0xf]
      %v3030 = vld [vmem:[%s945 + $0x10] sm:$0xf]
      %v3031 = vld [vmem:[%s945 + $0x14] sm:$0x1]
      %v3032 = vld [vmem:[%s945 + $0x18] sm:$0xf]
      %v3033 = vld [vmem:[%s945 + $0x1c] sm:$0xf]
      %v3034 = vld [vmem:[%s945 + $0x20] sm:$0x1]
      %v3035 = vld [vmem:[%s945 + $0x24] sm:$0xf]
      %v3036 = vld [vmem:[%s945 + $0x28] sm:$0xf]
      %v3037 = vld [vmem:[%s945 + $0x2c] sm:$0x1]
      %v3038 = vld [vmem:[%s945 + $0x30] sm:$0xf]
      %v3039 = vld [vmem:[%s945 + $0x34] sm:$0xf]
      %v3040 = vld [vmem:[%s945 + $0x38] sm:$0x1]
      %v3041 = vld [vmem:[%s945 + $0x3c] sm:$0xf]
      %v3042 = vld [vmem:[%s945 + $0x40] sm:$0xf]
      %v3043 = vld [vmem:[%s945 + $0x44] sm:$0x1]
      %v3044 = vld [vmem:[%s945 + $0x48] sm:$0xf]
      %v3045 = vld [vmem:[%s945 + $0x4c] sm:$0xf]
      %v3046 = vld [vmem:[%s945 + $0x50] sm:$0x1]
      %v3047 = vld [vmem:[%s945 + $0x54] sm:$0xf]
      %v3048 = vld [vmem:[%s945 + $0x58] sm:$0xf]
      %v3049 = vld [vmem:[%s945 + $0x5c] sm:$0x1]
      %v3050 = vld [vmem:[%s945 + $0x60] sm:$0xf]
      %v3051 = vld [vmem:[%s945 + $0x64] sm:$0xf]
      %v3052 = vld [vmem:[%s945 + $0x68] sm:$0x1]
      %v3053 = vld [vmem:[%s945 + $0x6c] sm:$0xf]
      %v3054 = vld [vmem:[%s945 + $0x70] sm:$0xf]
      %v3055 = vld [vmem:[%s945 + $0x74] sm:$0x1]
      %v3056 = vld [vmem:[%s945 + $0x78] sm:$0xf]
      %v3057 = vld [vmem:[%s945 + $0x7c] sm:$0xf]
      %v3058 = vld [vmem:[%s945 + $0x80] sm:$0x1]
      %v3059 = vld [vmem:[%s945 + $0x84] sm:$0xf]
      %v3060 = vld [vmem:[%s945 + $0x88] sm:$0xf]
      %v3061 = vld [vmem:[%s945 + $0x8c] sm:$0x1]
      %v3062 = vld [vmem:[%s945 + $0x90] sm:$0xf]
      %v3063 = vld [vmem:[%s945 + $0x94] sm:$0xf]
      %v3064 = vld [vmem:[%s945 + $0x98] sm:$0x1]
      %v3065 = vld [vmem:[%s945 + $0x9c] sm:$0xf]
      %v3066 = vld [vmem:[%s945 + $0xa0] sm:$0xf]
      %v3067 = vld [vmem:[%s945 + $0xa4] sm:$0x1]
      %v3068 = vld [vmem:[%s945 + $0xa8] sm:$0xf]
      %v3069 = vld [vmem:[%s945 + $0xac] sm:$0xf]
      %v3070 = vld [vmem:[%s945 + $0xb0] sm:$0x1]
      %v3071 = vld [vmem:[%s945 + $0xb4] sm:$0xf]
      %v3072 = vld [vmem:[%s945 + $0xb8] sm:$0xf]
      %v3073 = vld [vmem:[%s945 + $0xbc] sm:$0x1]
      %s3074 = scalar_lea.vmem %s3, 8
      %v3075 = vld [vmem:[%s3074] sm:$0x3]
      %v3077 = vshrl.u32 %v3026, 16
      %v3079 = vrot.slane %v3077, 4
      %v3080 = vshll.u32 %v3026, 16
      %v3082 = vrot.slane %v3080, 5
      %v3083 = vor.u32 %v3079, %v3082
      %v3084 = vrot.slane %v3083, 4
      %v3086 = vshll.u32 %v3027, 16
      %v3088 = vrot.slane %v3086, 5
      %v3089 = vsel %vm1224, %v3084, %v3088
      %v3090 = vshrl.u32 %v3027, 16
      %v3092 = vrot.slane %v3090, 4
      %v3093 = vor.u32 %v3092, %v3088
      %v3094 = vrot.slane %v3093, 4
      %v3096 = vshll.u32 %v3028, 16
      %v3098 = vrot.slane %v3096, 5
      %v3099 = vsel %vm1224, %v3094, %v3098
      %v3101 = vshrl.u32 %v3029, 16
      %v3103 = vrot.slane %v3101, 4
      %v3104 = vshll.u32 %v3029, 16
      %v3106 = vrot.slane %v3104, 5
      %v3107 = vor.u32 %v3103, %v3106
      %v3108 = vrot.slane %v3107, 4
      %v3110 = vshll.u32 %v3030, 16
      %v3112 = vrot.slane %v3110, 5
      %v3113 = vsel %vm1224, %v3108, %v3112
      %v3114 = vshrl.u32 %v3030, 16
      %v3116 = vrot.slane %v3114, 4
      %v3117 = vor.u32 %v3116, %v3112
      %v3118 = vrot.slane %v3117, 4
      %v3120 = vshll.u32 %v3031, 16
      %v3122 = vrot.slane %v3120, 5
      %v3123 = vsel %vm1224, %v3118, %v3122
      %v3125 = vshrl.u32 %v3032, 16
      %v3127 = vrot.slane %v3125, 4
      %v3128 = vshll.u32 %v3032, 16
      %v3130 = vrot.slane %v3128, 5
      %v3131 = vor.u32 %v3127, %v3130
      %v3132 = vrot.slane %v3131, 4
      %v3134 = vshll.u32 %v3033, 16
      %v3136 = vrot.slane %v3134, 5
      %v3137 = vsel %vm1224, %v3132, %v3136
      %v3138 = vshrl.u32 %v3033, 16
      %v3140 = vrot.slane %v3138, 4
      %v3141 = vor.u32 %v3140, %v3136
      %v3142 = vrot.slane %v3141, 4
      %v3144 = vshll.u32 %v3034, 16
      %v3146 = vrot.slane %v3144, 5
      %v3147 = vsel %vm1224, %v3142, %v3146
      %v3149 = vshrl.u32 %v3035, 16
      %v3151 = vrot.slane %v3149, 4
      %v3152 = vshll.u32 %v3035, 16
      %v3154 = vrot.slane %v3152, 5
      %v3155 = vor.u32 %v3151, %v3154
      %v3156 = vrot.slane %v3155, 4
      %v3158 = vshll.u32 %v3036, 16
      %v3160 = vrot.slane %v3158, 5
      %v3161 = vsel %vm1224, %v3156, %v3160
      %v3162 = vshrl.u32 %v3036, 16
      %v3164 = vrot.slane %v3162, 4
      %v3165 = vor.u32 %v3164, %v3160
      %v3166 = vrot.slane %v3165, 4
      %v3168 = vshll.u32 %v3037, 16
      %v3170 = vrot.slane %v3168, 5
      %v3171 = vsel %vm1224, %v3166, %v3170
      %v3173 = vshrl.u32 %v3038, 16
      %v3175 = vrot.slane %v3173, 4
      %v3176 = vshll.u32 %v3038, 16
      %v3178 = vrot.slane %v3176, 5
      %v3179 = vor.u32 %v3175, %v3178
      %v3180 = vrot.slane %v3179, 4
      %v3182 = vshll.u32 %v3039, 16
      %v3184 = vrot.slane %v3182, 5
      %v3185 = vsel %vm1224, %v3180, %v3184
      %v3186 = vshrl.u32 %v3039, 16
      %v3188 = vrot.slane %v3186, 4
      %v3189 = vor.u32 %v3188, %v3184
      %v3190 = vrot.slane %v3189, 4
      %v3192 = vshll.u32 %v3040, 16
      %v3194 = vrot.slane %v3192, 5
      %v3195 = vsel %vm1224, %v3190, %v3194
      %v3197 = vshrl.u32 %v3041, 16
      %v3199 = vrot.slane %v3197, 4
      %v3200 = vshll.u32 %v3041, 16
      %v3202 = vrot.slane %v3200, 5
      %v3203 = vor.u32 %v3199, %v3202
      %v3204 = vrot.slane %v3203, 4
      %v3206 = vshll.u32 %v3042, 16
      %v3208 = vrot.slane %v3206, 5
      %v3209 = vsel %vm1224, %v3204, %v3208
      %v3210 = vshrl.u32 %v3042, 16
      %v3212 = vrot.slane %v3210, 4
      %v3213 = vor.u32 %v3212, %v3208
      %v3214 = vrot.slane %v3213, 4
      %v3216 = vshll.u32 %v3043, 16
      %v3218 = vrot.slane %v3216, 5
      %v3219 = vsel %vm1224, %v3214, %v3218
      %v3221 = vshrl.u32 %v3044, 16
      %v3223 = vrot.slane %v3221, 4
      %v3224 = vshll.u32 %v3044, 16
      %v3226 = vrot.slane %v3224, 5
      %v3227 = vor.u32 %v3223, %v3226
      %v3228 = vrot.slane %v3227, 4
      %v3230 = vshll.u32 %v3045, 16
      %v3232 = vrot.slane %v3230, 5
      %v3233 = vsel %vm1224, %v3228, %v3232
      %v3234 = vshrl.u32 %v3045, 16
      %v3236 = vrot.slane %v3234, 4
      %v3237 = vor.u32 %v3236, %v3232
      %v3238 = vrot.slane %v3237, 4
      %v3240 = vshll.u32 %v3046, 16
      %v3242 = vrot.slane %v3240, 5
      %v3243 = vsel %vm1224, %v3238, %v3242
      %v3245 = vshrl.u32 %v3047, 16
      %v3247 = vrot.slane %v3245, 4
      %v3248 = vshll.u32 %v3047, 16
      %v3250 = vrot.slane %v3248, 5
      %v3251 = vor.u32 %v3247, %v3250
      %v3252 = vrot.slane %v3251, 4
      %v3254 = vshll.u32 %v3048, 16
      %v3256 = vrot.slane %v3254, 5
      %v3257 = vsel %vm1224, %v3252, %v3256
      %v3258 = vshrl.u32 %v3048, 16
      %v3260 = vrot.slane %v3258, 4
      %v3261 = vor.u32 %v3260, %v3256
      %v3262 = vrot.slane %v3261, 4
      %v3264 = vshll.u32 %v3049, 16
      %v3266 = vrot.slane %v3264, 5
      %v3267 = vsel %vm1224, %v3262, %v3266
      %v3269 = vshrl.u32 %v3050, 16
      %v3271 = vrot.slane %v3269, 4
      %v3272 = vshll.u32 %v3050, 16
      %v3274 = vrot.slane %v3272, 5
      %v3275 = vor.u32 %v3271, %v3274
      %v3276 = vrot.slane %v3275, 4
      %v3278 = vshll.u32 %v3051, 16
      %v3280 = vrot.slane %v3278, 5
      %v3281 = vsel %vm1224, %v3276, %v3280
      %v3282 = vshrl.u32 %v3051, 16
      %v3284 = vrot.slane %v3282, 4
      %v3285 = vor.u32 %v3284, %v3280
      %v3286 = vrot.slane %v3285, 4
      %v3288 = vshll.u32 %v3052, 16
      %v3290 = vrot.slane %v3288, 5
      %v3291 = vsel %vm1224, %v3286, %v3290
      %v3293 = vshrl.u32 %v3053, 16
      %v3295 = vrot.slane %v3293, 4
      %v3296 = vshll.u32 %v3053, 16
      %v3298 = vrot.slane %v3296, 5
      %v3299 = vor.u32 %v3295, %v3298
      %v3300 = vrot.slane %v3299, 4
      %v3302 = vshll.u32 %v3054, 16
      %v3304 = vrot.slane %v3302, 5
      %v3305 = vsel %vm1224, %v3300, %v3304
      %v3306 = vshrl.u32 %v3054, 16
      %v3308 = vrot.slane %v3306, 4
      %v3309 = vor.u32 %v3308, %v3304
      %v3310 = vrot.slane %v3309, 4
      %v3312 = vshll.u32 %v3055, 16
      %v3314 = vrot.slane %v3312, 5
      %v3315 = vsel %vm1224, %v3310, %v3314
      %v3317 = vshrl.u32 %v3056, 16
      %v3319 = vrot.slane %v3317, 4
      %v3320 = vshll.u32 %v3056, 16
      %v3322 = vrot.slane %v3320, 5
      %v3323 = vor.u32 %v3319, %v3322
      %v3324 = vrot.slane %v3323, 4
      %v3326 = vshll.u32 %v3057, 16
      %v3328 = vrot.slane %v3326, 5
      %v3329 = vsel %vm1224, %v3324, %v3328
      %v3330 = vshrl.u32 %v3057, 16
      %v3332 = vrot.slane %v3330, 4
      %v3333 = vor.u32 %v3332, %v3328
      %v3334 = vrot.slane %v3333, 4
      %v3336 = vshll.u32 %v3058, 16
      %v3338 = vrot.slane %v3336, 5
      %v3339 = vsel %vm1224, %v3334, %v3338
      %v3341 = vshrl.u32 %v3059, 16
      %v3343 = vrot.slane %v3341, 4
      %v3344 = vshll.u32 %v3059, 16
      %v3346 = vrot.slane %v3344, 5
      %v3347 = vor.u32 %v3343, %v3346
      %v3348 = vrot.slane %v3347, 4
      %v3350 = vshll.u32 %v3060, 16
      %v3352 = vrot.slane %v3350, 5
      %v3353 = vsel %vm1224, %v3348, %v3352
      %v3354 = vshrl.u32 %v3060, 16
      %v3356 = vrot.slane %v3354, 4
      %v3357 = vor.u32 %v3356, %v3352
      %v3358 = vrot.slane %v3357, 4
      %v3360 = vshll.u32 %v3061, 16
      %v3362 = vrot.slane %v3360, 5
      %v3363 = vsel %vm1224, %v3358, %v3362
      %v3365 = vshrl.u32 %v3062, 16
      %v3367 = vrot.slane %v3365, 4
      %v3368 = vshll.u32 %v3062, 16
      %v3370 = vrot.slane %v3368, 5
      %v3371 = vor.u32 %v3367, %v3370
      %v3372 = vrot.slane %v3371, 4
      %v3374 = vshll.u32 %v3063, 16
      %v3376 = vrot.slane %v3374, 5
      %v3377 = vsel %vm1224, %v3372, %v3376
      %v3378 = vshrl.u32 %v3063, 16
      %v3380 = vrot.slane %v3378, 4
      %v3381 = vor.u32 %v3380, %v3376
      %v3382 = vrot.slane %v3381, 4
      %v3384 = vshll.u32 %v3064, 16
      %v3386 = vrot.slane %v3384, 5
      %v3387 = vsel %vm1224, %v3382, %v3386
      %v3389 = vshrl.u32 %v3065, 16
      %v3391 = vrot.slane %v3389, 4
      %v3392 = vshll.u32 %v3065, 16
      %v3394 = vrot.slane %v3392, 5
      %v3395 = vor.u32 %v3391, %v3394
      %v3396 = vrot.slane %v3395, 4
      %v3398 = vshll.u32 %v3066, 16
      %v3400 = vrot.slane %v3398, 5
      %v3401 = vsel %vm1224, %v3396, %v3400
      %v3402 = vshrl.u32 %v3066, 16
      %v3404 = vrot.slane %v3402, 4
      %v3405 = vor.u32 %v3404, %v3400
      %v3406 = vrot.slane %v3405, 4
      %v3408 = vshll.u32 %v3067, 16
      %v3410 = vrot.slane %v3408, 5
      %v3411 = vsel %vm1224, %v3406, %v3410
      %v3413 = vshrl.u32 %v3068, 16
      %v3415 = vrot.slane %v3413, 4
      %v3416 = vshll.u32 %v3068, 16
      %v3418 = vrot.slane %v3416, 5
      %v3419 = vor.u32 %v3415, %v3418
      %v3420 = vrot.slane %v3419, 4
      %v3422 = vshll.u32 %v3069, 16
      %v3424 = vrot.slane %v3422, 5
      %v3425 = vsel %vm1224, %v3420, %v3424
      %v3426 = vshrl.u32 %v3069, 16
      %v3428 = vrot.slane %v3426, 4
      %v3429 = vor.u32 %v3428, %v3424
      %v3430 = vrot.slane %v3429, 4
      %v3432 = vshll.u32 %v3070, 16
      %v3434 = vrot.slane %v3432, 5
      %v3435 = vsel %vm1224, %v3430, %v3434
      %v3437 = vshrl.u32 %v3071, 16
      %v3439 = vrot.slane %v3437, 4
      %v3440 = vshll.u32 %v3071, 16
      %v3442 = vrot.slane %v3440, 5
      %v3443 = vor.u32 %v3439, %v3442
      %v3444 = vrot.slane %v3443, 4
      %v3446 = vshll.u32 %v3072, 16
      %v3448 = vrot.slane %v3446, 5
      %v3449 = vsel %vm1224, %v3444, %v3448
      %v3450 = vshrl.u32 %v3072, 16
      %v3452 = vrot.slane %v3450, 4
      %v3453 = vor.u32 %v3452, %v3448
      %v3454 = vrot.slane %v3453, 4
      %v3456 = vshll.u32 %v3073, 16
      %v3458 = vrot.slane %v3456, 5
      %v3459 = vsel %vm1224, %v3454, %v3458
      %v3460 = vunpack.c.l.b16 %v3089
      %v3461 = vunpack.c.l.b16 %v3099
      %v3462 = vunpack.c.l.b16 %v3113
      %v3463 = vunpack.c.l.b16 %v3123
      %v3464 = vunpack.c.l.b16 %v3137
      %v3465 = vunpack.c.l.b16 %v3147
      %v3466 = vunpack.c.l.b16 %v3161
      %v3467 = vunpack.c.l.b16 %v3171
      %v3468 = vunpack.c.l.b16 %v3185
      %v3469 = vunpack.c.l.b16 %v3195
      %v3470 = vunpack.c.l.b16 %v3209
      %v3471 = vunpack.c.l.b16 %v3219
      %v3472 = vunpack.c.l.b16 %v3233
      %v3473 = vunpack.c.l.b16 %v3243
      %v3474 = vunpack.c.l.b16 %v3257
      %v3475 = vunpack.c.l.b16 %v3267
      %v3476 = vunpack.c.l.b16 %v3281
      %v3477 = vunpack.c.l.b16 %v3291
      %v3478 = vunpack.c.l.b16 %v3305
      %v3479 = vunpack.c.l.b16 %v3315
      %v3480 = vunpack.c.l.b16 %v3329
      %v3481 = vunpack.c.l.b16 %v3339
      %v3482 = vunpack.c.l.b16 %v3353
      %v3483 = vunpack.c.l.b16 %v3363
      %v3484 = vunpack.c.l.b16 %v3377
      %v3485 = vunpack.c.l.b16 %v3387
      %v3486 = vunpack.c.l.b16 %v3401
      %v3487 = vunpack.c.l.b16 %v3411
      %v3488 = vunpack.c.l.b16 %v3425
      %v3489 = vunpack.c.l.b16 %v3435
      %v3490 = vunpack.c.l.b16 %v3449
      %v3491 = vunpack.c.l.b16 %v3459
      %v3492 = vpack.c.b16 %v3461, %v3460
      %v3493 = vpack.c.b16 %v3463, %v3462
      %v3494 = vpack.c.b16 %v3465, %v3464
      %v3495 = vpack.c.b16 %v3467, %v3466
      %v3496 = vpack.c.b16 %v3469, %v3468
      %v3497 = vpack.c.b16 %v3471, %v3470
      %v3498 = vpack.c.b16 %v3473, %v3472
      %v3499 = vpack.c.b16 %v3475, %v3474
      %v3500 = vpack.c.b16 %v3477, %v3476
      %v3501 = vpack.c.b16 %v3479, %v3478
      %v3502 = vpack.c.b16 %v3481, %v3480
      %v3503 = vpack.c.b16 %v3483, %v3482
      %v3504 = vpack.c.b16 %v3485, %v3484
      %v3505 = vpack.c.b16 %v3487, %v3486
      %v3506 = vpack.c.b16 %v3489, %v3488
      %v3507 = vpack.c.b16 %v3491, %v3490
      %v3509 = vsel %vm1657, %v3492, 0
      %v3512 = vsel %vm1657, %v3493, 0
      %v3515 = vsel %vm1657, %v3494, 0
      %v3518 = vsel %vm1657, %v3495, 0
      %v3521 = vsel %vm1657, %v3496, 0
      %v3524 = vsel %vm1657, %v3497, 0
      %v3527 = vsel %vm1657, %v3498, 0
      %v3530 = vsel %vm1657, %v3499, 0
      %v3533 = vsel %vm1657, %v3500, 0
      %v3536 = vsel %vm1657, %v3501, 0
      %v3539 = vsel %vm1657, %v3502, 0
      %v3542 = vsel %vm1657, %v3503, 0
      %v3545 = vsel %vm1657, %v3504, 0
      %v3548 = vsel %vm1657, %v3505, 0
      %v3551 = vsel %vm1657, %v3506, 0
      %v3554 = vsel %vm1657, %v3507, 0
      %v3557 = vsel %vm1706, %v3075, 0
      %3559 = vmatprep.subr.bf16.mxu0 0
      %3560 = vmatpush1.bf16.msra.mxu0 0
      %3561 = vmatprep.subr.bf16.mxu0 0
      %3562 = vmatpush1.bf16.msra.mxu0 0
      %3563 = vmatprep.subr.bf16.mxu0 0
      %3564 = vmatpush1.bf16.msra.mxu0 0
      %3565 = vmatprep.subr.bf16.mxu0 0
      %3566 = vmatpush1.bf16.msra.mxu0 0
      %3567 = vmatprep.subr.bf16.mxu0 0
      %3568 = vmatpush1.bf16.msra.mxu0 0
      %3569 = vmatprep.subr.bf16.mxu0 0
      %3570 = vmatpush1.bf16.msra.mxu0 0
      %3571 = vmatprep.subr.bf16.mxu0 0
      %3572 = vmatpush1.bf16.msra.mxu0 0
      %3573 = vmatprep.subr.bf16.mxu0 0
      %3574 = vmatpush1.bf16.msra.mxu0 %v3557
      %3575 = vmatprep.subr.bf16.mxu0 0
      %3576 = vmatpush2.bf16.msra.mxu0 0
      %3577 = vmatprep.subr.bf16.mxu0 0
      %3578 = vmatpush2.bf16.msra.mxu0 0
      %3579 = vmatprep.subr.bf16.mxu0 0
      %3580 = vmatpush2.bf16.msra.mxu0 0
      %3581 = vmatprep.subr.bf16.mxu0 0
      %3582 = vmatpush2.bf16.msra.mxu0 0
      %3583 = vmatprep.subr.bf16.mxu0 0
      %3584 = vmatpush2.bf16.msra.mxu0 0
      %3585 = vmatprep.subr.bf16.mxu0 0
      %3586 = vmatpush2.bf16.msra.mxu0 0
      %3587 = vmatprep.subr.bf16.mxu0 0
      %3588 = vmatpush2.bf16.msra.mxu0 0
      %3589 = vmatprep.subr.bf16.mxu0 0
      %3590 = vmatpush2.bf16.msra.mxu0 0
      %3591 = vmatprep.mubr.bf16.mxu0 0
      %3592 = vmatmul.mubr.bf16.gmra.mxu0 %v3509
      %v3593 = vpop.f32.mrf.mxu0
      %v3594 = vadd.f32 0.0, %v3593
      %v3595 = vpop.f32.mrf.mxu0
      %v3596 = vpop.f32.mrf.mxu0
      %v3597 = vadd.f32 0.0, %v3596
      %v3598 = vpop.f32.mrf.mxu0
      %3599 = vmatprep.mubr.bf16.mxu0 0
      %3600 = vmatmul.mubr.bf16.gmra.mxu0 %v3512
      %v3601 = vpop.f32.mrf.mxu0
      %v3602 = vadd.f32 0.0, %v3601
      %v3603 = vpop.f32.mrf.mxu0
      %v3604 = vpop.f32.mrf.mxu0
      %v3605 = vadd.f32 0.0, %v3604
      %v3606 = vpop.f32.mrf.mxu0
      %3607 = vmatprep.mubr.bf16.mxu0 0
      %3608 = vmatmul.mubr.bf16.gmra.mxu0 %v3515
      %v3609 = vpop.f32.mrf.mxu0
      %v3610 = vadd.f32 0.0, %v3609
      %v3611 = vpop.f32.mrf.mxu0
      %v3612 = vpop.f32.mrf.mxu0
      %v3613 = vadd.f32 0.0, %v3612
      %v3614 = vpop.f32.mrf.mxu0
      %3615 = vmatprep.mubr.bf16.mxu0 0
      %3616 = vmatmul.mubr.bf16.gmra.mxu0 %v3518
      %v3617 = vpop.f32.mrf.mxu0
      %v3618 = vadd.f32 0.0, %v3617
      %v3619 = vpop.f32.mrf.mxu0
      %v3620 = vpop.f32.mrf.mxu0
      %v3621 = vadd.f32 0.0, %v3620
      %v3622 = vpop.f32.mrf.mxu0
      %3623 = vmatprep.mubr.bf16.mxu0 0
      %3624 = vmatmul.mubr.bf16.gmra.mxu0 %v3521
      %v3625 = vpop.f32.mrf.mxu0
      %v3626 = vadd.f32 0.0, %v3625
      %v3627 = vpop.f32.mrf.mxu0
      %v3628 = vpop.f32.mrf.mxu0
      %v3629 = vadd.f32 0.0, %v3628
      %v3630 = vpop.f32.mrf.mxu0
      %3631 = vmatprep.mubr.bf16.mxu0 0
      %3632 = vmatmul.mubr.bf16.gmra.mxu0 %v3524
      %v3633 = vpop.f32.mrf.mxu0
      %v3634 = vadd.f32 0.0, %v3633
      %v3635 = vpop.f32.mrf.mxu0
      %v3636 = vpop.f32.mrf.mxu0
      %v3637 = vadd.f32 0.0, %v3636
      %v3638 = vpop.f32.mrf.mxu0
      %3639 = vmatprep.mubr.bf16.mxu0 0
      %3640 = vmatmul.mubr.bf16.gmra.mxu0 %v3527
      %v3641 = vpop.f32.mrf.mxu0
      %v3642 = vadd.f32 0.0, %v3641
      %v3643 = vpop.f32.mrf.mxu0
      %v3644 = vpop.f32.mrf.mxu0
      %v3645 = vadd.f32 0.0, %v3644
      %v3646 = vpop.f32.mrf.mxu0
      %3647 = vmatprep.mubr.bf16.mxu0 0
      %3648 = vmatmul.mubr.bf16.gmra.mxu0 %v3530
      %v3649 = vpop.f32.mrf.mxu0
      %v3650 = vadd.f32 0.0, %v3649
      %v3651 = vpop.f32.mrf.mxu0
      %v3652 = vpop.f32.mrf.mxu0
      %v3653 = vadd.f32 0.0, %v3652
      %v3654 = vpop.f32.mrf.mxu0
      %3655 = vmatprep.mubr.bf16.mxu0 0
      %3656 = vmatmul.mubr.bf16.gmra.mxu0 %v3533
      %v3657 = vpop.f32.mrf.mxu0
      %v3658 = vadd.f32 0.0, %v3657
      %v3659 = vpop.f32.mrf.mxu0
      %v3660 = vpop.f32.mrf.mxu0
      %v3661 = vadd.f32 0.0, %v3660
      %v3662 = vpop.f32.mrf.mxu0
      %3663 = vmatprep.mubr.bf16.mxu0 0
      %3664 = vmatmul.mubr.bf16.gmra.mxu0 %v3536
      %v3665 = vpop.f32.mrf.mxu0
      %v3666 = vadd.f32 0.0, %v3665
      %v3667 = vpop.f32.mrf.mxu0
      %v3668 = vpop.f32.mrf.mxu0
      %v3669 = vadd.f32 0.0, %v3668
      %v3670 = vpop.f32.mrf.mxu0
      %3671 = vmatprep.mubr.bf16.mxu0 0
      %3672 = vmatmul.mubr.bf16.gmra.mxu0 %v3539
      %v3673 = vpop.f32.mrf.mxu0
      %v3674 = vadd.f32 0.0, %v3673
      %v3675 = vpop.f32.mrf.mxu0
      %v3676 = vpop.f32.mrf.mxu0
      %v3677 = vadd.f32 0.0, %v3676
      %v3678 = vpop.f32.mrf.mxu0
      %3679 = vmatprep.mubr.bf16.mxu0 0
      %3680 = vmatmul.mubr.bf16.gmra.mxu0 %v3542
      %v3681 = vpop.f32.mrf.mxu0
      %v3682 = vadd.f32 0.0, %v3681
      %v3683 = vpop.f32.mrf.mxu0
      %v3684 = vpop.f32.mrf.mxu0
      %v3685 = vadd.f32 0.0, %v3684
      %v3686 = vpop.f32.mrf.mxu0
      %3687 = vmatprep.mubr.bf16.mxu0 0
      %3688 = vmatmul.mubr.bf16.gmra.mxu0 %v3545
      %v3689 = vpop.f32.mrf.mxu0
      %v3690 = vadd.f32 0.0, %v3689
      %v3691 = vpop.f32.mrf.mxu0
      %v3692 = vpop.f32.mrf.mxu0
      %v3693 = vadd.f32 0.0, %v3692
      %v3694 = vpop.f32.mrf.mxu0
      %3695 = vmatprep.mubr.bf16.mxu0 0
      %3696 = vmatmul.mubr.bf16.gmra.mxu0 %v3548
      %v3697 = vpop.f32.mrf.mxu0
      %v3698 = vadd.f32 0.0, %v3697
      %v3699 = vpop.f32.mrf.mxu0
      %v3700 = vpop.f32.mrf.mxu0
      %v3701 = vadd.f32 0.0, %v3700
      %v3702 = vpop.f32.mrf.mxu0
      %3703 = vmatprep.mubr.bf16.mxu0 0
      %3704 = vmatmul.mubr.bf16.gmra.mxu0 %v3551
      %v3705 = vpop.f32.mrf.mxu0
      %v3706 = vadd.f32 0.0, %v3705
      %v3707 = vpop.f32.mrf.mxu0
      %v3708 = vpop.f32.mrf.mxu0
      %v3709 = vadd.f32 0.0, %v3708
      %v3710 = vpop.f32.mrf.mxu0
      %3711 = vmatprep.mubr.bf16.mxu0 0
      %3712 = vmatmul.mubr.bf16.gmra.mxu0 %v3554
      %v3713 = vpop.f32.mrf.mxu0
      %v3714 = vadd.f32 0.0, %v3713
      %v3715 = vpop.f32.mrf.mxu0
      %v3716 = vpop.f32.mrf.mxu0
      %v3717 = vadd.f32 0.0, %v3716
      %v3718 = vpop.f32.mrf.mxu0
      %3719 = vdwg.mxu0
      %v3720 = vadd.f32 %v2994, %v3594
      %v3721 = vadd.f32 %v2995, %v3597
      %v3722 = vadd.f32 %v2996, %v3602
      %v3723 = vadd.f32 %v2997, %v3605
      %v3724 = vadd.f32 %v2998, %v3610
      %v3725 = vadd.f32 %v2999, %v3613
      %v3726 = vadd.f32 %v3000, %v3618
      %v3727 = vadd.f32 %v3001, %v3621
      %v3728 = vadd.f32 %v3002, %v3626
      %v3729 = vadd.f32 %v3003, %v3629
      %v3730 = vadd.f32 %v3004, %v3634
      %v3731 = vadd.f32 %v3005, %v3637
      %v3732 = vadd.f32 %v3006, %v3642
      %v3733 = vadd.f32 %v3007, %v3645
      %v3734 = vadd.f32 %v3008, %v3650
      %v3735 = vadd.f32 %v3009, %v3653
      %v3736 = vadd.f32 %v3010, %v3658
      %v3737 = vadd.f32 %v3011, %v3661
      %v3738 = vadd.f32 %v3012, %v3666
      %v3739 = vadd.f32 %v3013, %v3669
      %v3740 = vadd.f32 %v3014, %v3674
      %v3741 = vadd.f32 %v3015, %v3677
      %v3742 = vadd.f32 %v3016, %v3682
      %v3743 = vadd.f32 %v3017, %v3685
      %v3744 = vadd.f32 %v3018, %v3690
      %v3745 = vadd.f32 %v3019, %v3693
      %v3746 = vadd.f32 %v3020, %v3698
      %v3747 = vadd.f32 %v3021, %v3701
      %v3748 = vadd.f32 %v3022, %v3706
      %v3749 = vadd.f32 %v3023, %v3709
      %v3750 = vadd.f32 %v3024, %v3714
      %v3751 = vadd.f32 %v3025, %v3717
      %v3752 = vld [vmem:[%s945] sm:$0xe]
      %v3753 = vld [vmem:[%s945 + $0x4] sm:$0xf]
      %v3754 = vld [vmem:[%s945 + $0x8] sm:$0x1]
      %v3755 = vld [vmem:[%s945 + $0xc] sm:$0xe]
      %v3756 = vld [vmem:[%s945 + $0x10] sm:$0xf]
      %v3757 = vld [vmem:[%s945 + $0x14] sm:$0x1]
      %v3758 = vld [vmem:[%s945 + $0x18] sm:$0xe]
      %v3759 = vld [vmem:[%s945 + $0x1c] sm:$0xf]
      %v3760 = vld [vmem:[%s945 + $0x20] sm:$0x1]
      %v3761 = vld [vmem:[%s945 + $0x24] sm:$0xe]
      %v3762 = vld [vmem:[%s945 + $0x28] sm:$0xf]
      %v3763 = vld [vmem:[%s945 + $0x2c] sm:$0x1]
      %v3764 = vld [vmem:[%s945 + $0x30] sm:$0xe]
      %v3765 = vld [vmem:[%s945 + $0x34] sm:$0xf]
      %v3766 = vld [vmem:[%s945 + $0x38] sm:$0x1]
      %v3767 = vld [vmem:[%s945 + $0x3c] sm:$0xe]
      %v3768 = vld [vmem:[%s945 + $0x40] sm:$0xf]
      %v3769 = vld [vmem:[%s945 + $0x44] sm:$0x1]
      %v3770 = vld [vmem:[%s945 + $0x48] sm:$0xe]
      %v3771 = vld [vmem:[%s945 + $0x4c] sm:$0xf]
      %v3772 = vld [vmem:[%s945 + $0x50] sm:$0x1]
      %v3773 = vld [vmem:[%s945 + $0x54] sm:$0xe]
      %v3774 = vld [vmem:[%s945 + $0x58] sm:$0xf]
      %v3775 = vld [vmem:[%s945 + $0x5c] sm:$0x1]
      %v3776 = vld [vmem:[%s945 + $0x60] sm:$0xe]
      %v3777 = vld [vmem:[%s945 + $0x64] sm:$0xf]
      %v3778 = vld [vmem:[%s945 + $0x68] sm:$0x1]
      %v3779 = vld [vmem:[%s945 + $0x6c] sm:$0xe]
      %v3780 = vld [vmem:[%s945 + $0x70] sm:$0xf]
      %v3781 = vld [vmem:[%s945 + $0x74] sm:$0x1]
      %v3782 = vld [vmem:[%s945 + $0x78] sm:$0xe]
      %v3783 = vld [vmem:[%s945 + $0x7c] sm:$0xf]
      %v3784 = vld [vmem:[%s945 + $0x80] sm:$0x1]
      %v3785 = vld [vmem:[%s945 + $0x84] sm:$0xe]
      %v3786 = vld [vmem:[%s945 + $0x88] sm:$0xf]
      %v3787 = vld [vmem:[%s945 + $0x8c] sm:$0x1]
      %v3788 = vld [vmem:[%s945 + $0x90] sm:$0xe]
      %v3789 = vld [vmem:[%s945 + $0x94] sm:$0xf]
      %v3790 = vld [vmem:[%s945 + $0x98] sm:$0x1]
      %v3791 = vld [vmem:[%s945 + $0x9c] sm:$0xe]
      %v3792 = vld [vmem:[%s945 + $0xa0] sm:$0xf]
      %v3793 = vld [vmem:[%s945 + $0xa4] sm:$0x1]
      %v3794 = vld [vmem:[%s945 + $0xa8] sm:$0xe]
      %v3795 = vld [vmem:[%s945 + $0xac] sm:$0xf]
      %v3796 = vld [vmem:[%s945 + $0xb0] sm:$0x1]
      %v3797 = vld [vmem:[%s945 + $0xb4] sm:$0xe]
      %v3798 = vld [vmem:[%s945 + $0xb8] sm:$0xf]
      %v3799 = vld [vmem:[%s945 + $0xbc] sm:$0x1]
      %s3800 = scalar_lea.vmem %s3, 10
      %v3801 = vld [vmem:[%s3800] sm:$0x3]
      %v3850 = vrot.slane %v3752, 5
      %v3851 = vrot.slane %v3850, 4
      %v3852 = vrot.slane %v3753, 5
      %v3853 = vsel %vm2263, %v3851, %v3852
      %v3854 = vrot.slane %v3852, 4
      %v3855 = vrot.slane %v3754, 5
      %v3856 = vsel %vm2263, %v3854, %v3855
      %v3857 = vrot.slane %v3755, 5
      %v3858 = vrot.slane %v3857, 4
      %v3859 = vrot.slane %v3756, 5
      %v3860 = vsel %vm2263, %v3858, %v3859
      %v3861 = vrot.slane %v3859, 4
      %v3862 = vrot.slane %v3757, 5
      %v3863 = vsel %vm2263, %v3861, %v3862
      %v3864 = vrot.slane %v3758, 5
      %v3865 = vrot.slane %v3864, 4
      %v3866 = vrot.slane %v3759, 5
      %v3867 = vsel %vm2263, %v3865, %v3866
      %v3868 = vrot.slane %v3866, 4
      %v3869 = vrot.slane %v3760, 5
      %v3870 = vsel %vm2263, %v3868, %v3869
      %v3871 = vrot.slane %v3761, 5
      %v3872 = vrot.slane %v3871, 4
      %v3873 = vrot.slane %v3762, 5
      %v3874 = vsel %vm2263, %v3872, %v3873
      %v3875 = vrot.slane %v3873, 4
      %v3876 = vrot.slane %v3763, 5
      %v3877 = vsel %vm2263, %v3875, %v3876
      %v3878 = vrot.slane %v3764, 5
      %v3879 = vrot.slane %v3878, 4
      %v3880 = vrot.slane %v3765, 5
      %v3881 = vsel %vm2263, %v3879, %v3880
      %v3882 = vrot.slane %v3880, 4
      %v3883 = vrot.slane %v3766, 5
      %v3884 = vsel %vm2263, %v3882, %v3883
      %v3885 = vrot.slane %v3767, 5
      %v3886 = vrot.slane %v3885, 4
      %v3887 = vrot.slane %v3768, 5
      %v3888 = vsel %vm2263, %v3886, %v3887
      %v3889 = vrot.slane %v3887, 4
      %v3890 = vrot.slane %v3769, 5
      %v3891 = vsel %vm2263, %v3889, %v3890
      %v3892 = vrot.slane %v3770, 5
      %v3893 = vrot.slane %v3892, 4
      %v3894 = vrot.slane %v3771, 5
      %v3895 = vsel %vm2263, %v3893, %v3894
      %v3896 = vrot.slane %v3894, 4
      %v3897 = vrot.slane %v3772, 5
      %v3898 = vsel %vm2263, %v3896, %v3897
      %v3899 = vrot.slane %v3773, 5
      %v3900 = vrot.slane %v3899, 4
      %v3901 = vrot.slane %v3774, 5
      %v3902 = vsel %vm2263, %v3900, %v3901
      %v3903 = vrot.slane %v3901, 4
      %v3904 = vrot.slane %v3775, 5
      %v3905 = vsel %vm2263, %v3903, %v3904
      %v3906 = vrot.slane %v3776, 5
      %v3907 = vrot.slane %v3906, 4
      %v3908 = vrot.slane %v3777, 5
      %v3909 = vsel %vm2263, %v3907, %v3908
      %v3910 = vrot.slane %v3908, 4
      %v3911 = vrot.slane %v3778, 5
      %v3912 = vsel %vm2263, %v3910, %v3911
      %v3913 = vrot.slane %v3779, 5
      %v3914 = vrot.slane %v3913, 4
      %v3915 = vrot.slane %v3780, 5
      %v3916 = vsel %vm2263, %v3914, %v3915
      %v3917 = vrot.slane %v3915, 4
      %v3918 = vrot.slane %v3781, 5
      %v3919 = vsel %vm2263, %v3917, %v3918
      %v3920 = vrot.slane %v3782, 5
      %v3921 = vrot.slane %v3920, 4
      %v3922 = vrot.slane %v3783, 5
      %v3923 = vsel %vm2263, %v3921, %v3922
      %v3924 = vrot.slane %v3922, 4
      %v3925 = vrot.slane %v3784, 5
      %v3926 = vsel %vm2263, %v3924, %v3925
      %v3927 = vrot.slane %v3785, 5
      %v3928 = vrot.slane %v3927, 4
      %v3929 = vrot.slane %v3786, 5
      %v3930 = vsel %vm2263, %v3928, %v3929
      %v3931 = vrot.slane %v3929, 4
      %v3932 = vrot.slane %v3787, 5
      %v3933 = vsel %vm2263, %v3931, %v3932
      %v3934 = vrot.slane %v3788, 5
      %v3935 = vrot.slane %v3934, 4
      %v3936 = vrot.slane %v3789, 5
      %v3937 = vsel %vm2263, %v3935, %v3936
      %v3938 = vrot.slane %v3936, 4
      %v3939 = vrot.slane %v3790, 5
      %v3940 = vsel %vm2263, %v3938, %v3939
      %v3941 = vrot.slane %v3791, 5
      %v3942 = vrot.slane %v3941, 4
      %v3943 = vrot.slane %v3792, 5
      %v3944 = vsel %vm2263, %v3942, %v3943
      %v3945 = vrot.slane %v3943, 4
      %v3946 = vrot.slane %v3793, 5
      %v3947 = vsel %vm2263, %v3945, %v3946
      %v3948 = vrot.slane %v3794, 5
      %v3949 = vrot.slane %v3948, 4
      %v3950 = vrot.slane %v3795, 5
      %v3951 = vsel %vm2263, %v3949, %v3950
      %v3952 = vrot.slane %v3950, 4
      %v3953 = vrot.slane %v3796, 5
      %v3954 = vsel %vm2263, %v3952, %v3953
      %v3955 = vrot.slane %v3797, 5
      %v3956 = vrot.slane %v3955, 4
      %v3957 = vrot.slane %v3798, 5
      %v3958 = vsel %vm2263, %v3956, %v3957
      %v3959 = vrot.slane %v3957, 4
      %v3960 = vrot.slane %v3799, 5
      %v3961 = vsel %vm2263, %v3959, %v3960
      %v3962 = vunpack.c.l.b16 %v3853
      %v3963 = vunpack.c.l.b16 %v3856
      %v3964 = vunpack.c.l.b16 %v3860
      %v3965 = vunpack.c.l.b16 %v3863
      %v3966 = vunpack.c.l.b16 %v3867
      %v3967 = vunpack.c.l.b16 %v3870
      %v3968 = vunpack.c.l.b16 %v3874
      %v3969 = vunpack.c.l.b16 %v3877
      %v3970 = vunpack.c.l.b16 %v3881
      %v3971 = vunpack.c.l.b16 %v3884
      %v3972 = vunpack.c.l.b16 %v3888
      %v3973 = vunpack.c.l.b16 %v3891
      %v3974 = vunpack.c.l.b16 %v3895
      %v3975 = vunpack.c.l.b16 %v3898
      %v3976 = vunpack.c.l.b16 %v3902
      %v3977 = vunpack.c.l.b16 %v3905
      %v3978 = vunpack.c.l.b16 %v3909
      %v3979 = vunpack.c.l.b16 %v3912
      %v3980 = vunpack.c.l.b16 %v3916
      %v3981 = vunpack.c.l.b16 %v3919
      %v3982 = vunpack.c.l.b16 %v3923
      %v3983 = vunpack.c.l.b16 %v3926
      %v3984 = vunpack.c.l.b16 %v3930
      %v3985 = vunpack.c.l.b16 %v3933
      %v3986 = vunpack.c.l.b16 %v3937
      %v3987 = vunpack.c.l.b16 %v3940
      %v3988 = vunpack.c.l.b16 %v3944
      %v3989 = vunpack.c.l.b16 %v3947
      %v3990 = vunpack.c.l.b16 %v3951
      %v3991 = vunpack.c.l.b16 %v3954
      %v3992 = vunpack.c.l.b16 %v3958
      %v3993 = vunpack.c.l.b16 %v3961
      %v3994 = vpack.c.b16 %v3963, %v3962
      %v3995 = vpack.c.b16 %v3965, %v3964
      %v3996 = vpack.c.b16 %v3967, %v3966
      %v3997 = vpack.c.b16 %v3969, %v3968
      %v3998 = vpack.c.b16 %v3971, %v3970
      %v3999 = vpack.c.b16 %v3973, %v3972
      %v4000 = vpack.c.b16 %v3975, %v3974
      %v4001 = vpack.c.b16 %v3977, %v3976
      %v4002 = vpack.c.b16 %v3979, %v3978
      %v4003 = vpack.c.b16 %v3981, %v3980
      %v4004 = vpack.c.b16 %v3983, %v3982
      %v4005 = vpack.c.b16 %v3985, %v3984
      %v4006 = vpack.c.b16 %v3987, %v3986
      %v4007 = vpack.c.b16 %v3989, %v3988
      %v4008 = vpack.c.b16 %v3991, %v3990
      %v4009 = vpack.c.b16 %v3993, %v3992
      %v4011 = vsel %vm1657, %v3994, 0
      %v4014 = vsel %vm1657, %v3995, 0
      %v4017 = vsel %vm1657, %v3996, 0
      %v4020 = vsel %vm1657, %v3997, 0
      %v4023 = vsel %vm1657, %v3998, 0
      %v4026 = vsel %vm1657, %v3999, 0
      %v4029 = vsel %vm1657, %v4000, 0
      %v4032 = vsel %vm1657, %v4001, 0
      %v4035 = vsel %vm1657, %v4002, 0
      %v4038 = vsel %vm1657, %v4003, 0
      %v4041 = vsel %vm1657, %v4004, 0
      %v4044 = vsel %vm1657, %v4005, 0
      %v4047 = vsel %vm1657, %v4006, 0
      %v4050 = vsel %vm1657, %v4007, 0
      %v4053 = vsel %vm1657, %v4008, 0
      %v4056 = vsel %vm1657, %v4009, 0
      %v4059 = vsel %vm1706, %v3801, 0
      %4061 = vmatprep.subr.bf16.mxu0 0
      %4062 = vmatpush1.bf16.msra.mxu0 0
      %4063 = vmatprep.subr.bf16.mxu0 0
      %4064 = vmatpush1.bf16.msra.mxu0 0
      %4065 = vmatprep.subr.bf16.mxu0 0
      %4066 = vmatpush1.bf16.msra.mxu0 0
      %4067 = vmatprep.subr.bf16.mxu0 0
      %4068 = vmatpush1.bf16.msra.mxu0 0
      %4069 = vmatprep.subr.bf16.mxu0 0
      %4070 = vmatpush1.bf16.msra.mxu0 0
      %4071 = vmatprep.subr.bf16.mxu0 0
      %4072 = vmatpush1.bf16.msra.mxu0 0
      %4073 = vmatprep.subr.bf16.mxu0 0
      %4074 = vmatpush1.bf16.msra.mxu0 0
      %4075 = vmatprep.subr.bf16.mxu0 0
      %4076 = vmatpush1.bf16.msra.mxu0 %v4059
      %4077 = vmatprep.subr.bf16.mxu0 0
      %4078 = vmatpush2.bf16.msra.mxu0 0
      %4079 = vmatprep.subr.bf16.mxu0 0
      %4080 = vmatpush2.bf16.msra.mxu0 0
      %4081 = vmatprep.subr.bf16.mxu0 0
      %4082 = vmatpush2.bf16.msra.mxu0 0
      %4083 = vmatprep.subr.bf16.mxu0 0
      %4084 = vmatpush2.bf16.msra.mxu0 0
      %4085 = vmatprep.subr.bf16.mxu0 0
      %4086 = vmatpush2.bf16.msra.mxu0 0
      %4087 = vmatprep.subr.bf16.mxu0 0
      %4088 = vmatpush2.bf16.msra.mxu0 0
      %4089 = vmatprep.subr.bf16.mxu0 0
      %4090 = vmatpush2.bf16.msra.mxu0 0
      %4091 = vmatprep.subr.bf16.mxu0 0
      %4092 = vmatpush2.bf16.msra.mxu0 0
      %4093 = vmatprep.mubr.bf16.mxu0 0
      %4094 = vmatmul.mubr.bf16.gmra.mxu0 %v4011
      %v4095 = vpop.f32.mrf.mxu0
      %v4096 = vadd.f32 0.0, %v4095
      %v4097 = vpop.f32.mrf.mxu0
      %v4098 = vpop.f32.mrf.mxu0
      %v4099 = vadd.f32 0.0, %v4098
      %v4100 = vpop.f32.mrf.mxu0
      %4101 = vmatprep.mubr.bf16.mxu0 0
      %4102 = vmatmul.mubr.bf16.gmra.mxu0 %v4014
      %v4103 = vpop.f32.mrf.mxu0
      %v4104 = vadd.f32 0.0, %v4103
      %v4105 = vpop.f32.mrf.mxu0
      %v4106 = vpop.f32.mrf.mxu0
      %v4107 = vadd.f32 0.0, %v4106
      %v4108 = vpop.f32.mrf.mxu0
      %4109 = vmatprep.mubr.bf16.mxu0 0
      %4110 = vmatmul.mubr.bf16.gmra.mxu0 %v4017
      %v4111 = vpop.f32.mrf.mxu0
      %v4112 = vadd.f32 0.0, %v4111
      %v4113 = vpop.f32.mrf.mxu0
      %v4114 = vpop.f32.mrf.mxu0
      %v4115 = vadd.f32 0.0, %v4114
      %v4116 = vpop.f32.mrf.mxu0
      %4117 = vmatprep.mubr.bf16.mxu0 0
      %4118 = vmatmul.mubr.bf16.gmra.mxu0 %v4020
      %v4119 = vpop.f32.mrf.mxu0
      %v4120 = vadd.f32 0.0, %v4119
      %v4121 = vpop.f32.mrf.mxu0
      %v4122 = vpop.f32.mrf.mxu0
      %v4123 = vadd.f32 0.0, %v4122
      %v4124 = vpop.f32.mrf.mxu0
      %4125 = vmatprep.mubr.bf16.mxu0 0
      %4126 = vmatmul.mubr.bf16.gmra.mxu0 %v4023
      %v4127 = vpop.f32.mrf.mxu0
      %v4128 = vadd.f32 0.0, %v4127
      %v4129 = vpop.f32.mrf.mxu0
      %v4130 = vpop.f32.mrf.mxu0
      %v4131 = vadd.f32 0.0, %v4130
      %v4132 = vpop.f32.mrf.mxu0
      %4133 = vmatprep.mubr.bf16.mxu0 0
      %4134 = vmatmul.mubr.bf16.gmra.mxu0 %v4026
      %v4135 = vpop.f32.mrf.mxu0
      %v4136 = vadd.f32 0.0, %v4135
      %v4137 = vpop.f32.mrf.mxu0
      %v4138 = vpop.f32.mrf.mxu0
      %v4139 = vadd.f32 0.0, %v4138
      %v4140 = vpop.f32.mrf.mxu0
      %4141 = vmatprep.mubr.bf16.mxu0 0
      %4142 = vmatmul.mubr.bf16.gmra.mxu0 %v4029
      %v4143 = vpop.f32.mrf.mxu0
      %v4144 = vadd.f32 0.0, %v4143
      %v4145 = vpop.f32.mrf.mxu0
      %v4146 = vpop.f32.mrf.mxu0
      %v4147 = vadd.f32 0.0, %v4146
      %v4148 = vpop.f32.mrf.mxu0
      %4149 = vmatprep.mubr.bf16.mxu0 0
      %4150 = vmatmul.mubr.bf16.gmra.mxu0 %v4032
      %v4151 = vpop.f32.mrf.mxu0
      %v4152 = vadd.f32 0.0, %v4151
      %v4153 = vpop.f32.mrf.mxu0
      %v4154 = vpop.f32.mrf.mxu0
      %v4155 = vadd.f32 0.0, %v4154
      %v4156 = vpop.f32.mrf.mxu0
      %4157 = vmatprep.mubr.bf16.mxu0 0
      %4158 = vmatmul.mubr.bf16.gmra.mxu0 %v4035
      %v4159 = vpop.f32.mrf.mxu0
      %v4160 = vadd.f32 0.0, %v4159
      %v4161 = vpop.f32.mrf.mxu0
      %v4162 = vpop.f32.mrf.mxu0
      %v4163 = vadd.f32 0.0, %v4162
      %v4164 = vpop.f32.mrf.mxu0
      %4165 = vmatprep.mubr.bf16.mxu0 0
      %4166 = vmatmul.mubr.bf16.gmra.mxu0 %v4038
      %v4167 = vpop.f32.mrf.mxu0
      %v4168 = vadd.f32 0.0, %v4167
      %v4169 = vpop.f32.mrf.mxu0
      %v4170 = vpop.f32.mrf.mxu0
      %v4171 = vadd.f32 0.0, %v4170
      %v4172 = vpop.f32.mrf.mxu0
      %4173 = vmatprep.mubr.bf16.mxu0 0
      %4174 = vmatmul.mubr.bf16.gmra.mxu0 %v4041
      %v4175 = vpop.f32.mrf.mxu0
      %v4176 = vadd.f32 0.0, %v4175
      %v4177 = vpop.f32.mrf.mxu0
      %v4178 = vpop.f32.mrf.mxu0
      %v4179 = vadd.f32 0.0, %v4178
      %v4180 = vpop.f32.mrf.mxu0
      %4181 = vmatprep.mubr.bf16.mxu0 0
      %4182 = vmatmul.mubr.bf16.gmra.mxu0 %v4044
      %v4183 = vpop.f32.mrf.mxu0
      %v4184 = vadd.f32 0.0, %v4183
      %v4185 = vpop.f32.mrf.mxu0
      %v4186 = vpop.f32.mrf.mxu0
      %v4187 = vadd.f32 0.0, %v4186
      %v4188 = vpop.f32.mrf.mxu0
      %4189 = vmatprep.mubr.bf16.mxu0 0
      %4190 = vmatmul.mubr.bf16.gmra.mxu0 %v4047
      %v4191 = vpop.f32.mrf.mxu0
      %v4192 = vadd.f32 0.0, %v4191
      %v4193 = vpop.f32.mrf.mxu0
      %v4194 = vpop.f32.mrf.mxu0
      %v4195 = vadd.f32 0.0, %v4194
      %v4196 = vpop.f32.mrf.mxu0
      %4197 = vmatprep.mubr.bf16.mxu0 0
      %4198 = vmatmul.mubr.bf16.gmra.mxu0 %v4050
      %v4199 = vpop.f32.mrf.mxu0
      %v4200 = vadd.f32 0.0, %v4199
      %v4201 = vpop.f32.mrf.mxu0
      %v4202 = vpop.f32.mrf.mxu0
      %v4203 = vadd.f32 0.0, %v4202
      %v4204 = vpop.f32.mrf.mxu0
      %4205 = vmatprep.mubr.bf16.mxu0 0
      %4206 = vmatmul.mubr.bf16.gmra.mxu0 %v4053
      %v4207 = vpop.f32.mrf.mxu0
      %v4208 = vadd.f32 0.0, %v4207
      %v4209 = vpop.f32.mrf.mxu0
      %v4210 = vpop.f32.mrf.mxu0
      %v4211 = vadd.f32 0.0, %v4210
      %v4212 = vpop.f32.mrf.mxu0
      %4213 = vmatprep.mubr.bf16.mxu0 0
      %4214 = vmatmul.mubr.bf16.gmra.mxu0 %v4056
      %v4215 = vpop.f32.mrf.mxu0
      %v4216 = vadd.f32 0.0, %v4215
      %v4217 = vpop.f32.mrf.mxu0
      %v4218 = vpop.f32.mrf.mxu0
      %v4219 = vadd.f32 0.0, %v4218
      %v4220 = vpop.f32.mrf.mxu0
      %4221 = vdwg.mxu0
      %v4222 = vadd.f32 %v3720, %v4096
      %v4223 = vadd.f32 %v3721, %v4099
      %v4224 = vadd.f32 %v3722, %v4104
      %v4225 = vadd.f32 %v3723, %v4107
      %v4226 = vadd.f32 %v3724, %v4112
      %v4227 = vadd.f32 %v3725, %v4115
      %v4228 = vadd.f32 %v3726, %v4120
      %v4229 = vadd.f32 %v3727, %v4123
      %v4230 = vadd.f32 %v3728, %v4128
      %v4231 = vadd.f32 %v3729, %v4131
      %v4232 = vadd.f32 %v3730, %v4136
      %v4233 = vadd.f32 %v3731, %v4139
      %v4234 = vadd.f32 %v3732, %v4144
      %v4235 = vadd.f32 %v3733, %v4147
      %v4236 = vadd.f32 %v3734, %v4152
      %v4237 = vadd.f32 %v3735, %v4155
      %v4238 = vadd.f32 %v3736, %v4160
      %v4239 = vadd.f32 %v3737, %v4163
      %v4240 = vadd.f32 %v3738, %v4168
      %v4241 = vadd.f32 %v3739, %v4171
      %v4242 = vadd.f32 %v3740, %v4176
      %v4243 = vadd.f32 %v3741, %v4179
      %v4244 = vadd.f32 %v3742, %v4184
      %v4245 = vadd.f32 %v3743, %v4187
      %v4246 = vadd.f32 %v3744, %v4192
      %v4247 = vadd.f32 %v3745, %v4195
      %v4248 = vadd.f32 %v3746, %v4200
      %v4249 = vadd.f32 %v3747, %v4203
      %v4250 = vadd.f32 %v3748, %v4208
      %v4251 = vadd.f32 %v3749, %v4211
      %v4252 = vadd.f32 %v3750, %v4216
      %v4253 = vadd.f32 %v3751, %v4219
      %v4255 = vlaneseq
      %v4256 = vshrl.u32 %v4255, 7
      %v4257 = vsub.s32 0, %v4256
      %v4258 = vrot.slane %v1138, %v4257
      %v4260 = vadd.f32 %v4222, %v4258
      %v4261 = vadd.f32 %v4223, %v4258
      %v4262 = vadd.f32 %v4224, %v4258
      %v4263 = vadd.f32 %v4225, %v4258
      %v4264 = vadd.f32 %v4226, %v4258
      %v4265 = vadd.f32 %v4227, %v4258
      %v4266 = vadd.f32 %v4228, %v4258
      %v4267 = vadd.f32 %v4229, %v4258
      %v4268 = vadd.f32 %v4230, %v4258
      %v4269 = vadd.f32 %v4231, %v4258
      %v4270 = vadd.f32 %v4232, %v4258
      %v4271 = vadd.f32 %v4233, %v4258
      %v4272 = vadd.f32 %v4234, %v4258
      %v4273 = vadd.f32 %v4235, %v4258
      %v4274 = vadd.f32 %v4236, %v4258
      %v4275 = vadd.f32 %v4237, %v4258
      %v4276 = vadd.f32 %v4238, %v4258
      %v4277 = vadd.f32 %v4239, %v4258
      %v4278 = vadd.f32 %v4240, %v4258
      %v4279 = vadd.f32 %v4241, %v4258
      %v4280 = vadd.f32 %v4242, %v4258
      %v4281 = vadd.f32 %v4243, %v4258
      %v4282 = vadd.f32 %v4244, %v4258
      %v4283 = vadd.f32 %v4245, %v4258
      %v4284 = vadd.f32 %v4246, %v4258
      %v4285 = vadd.f32 %v4247, %v4258
      %v4286 = vadd.f32 %v4248, %v4258
      %v4287 = vadd.f32 %v4249, %v4258
      %v4288 = vadd.f32 %v4250, %v4258
      %v4289 = vadd.f32 %v4251, %v4258
      %v4290 = vadd.f32 %v4252, %v4258
      %v4291 = vadd.f32 %v4253, %v4258
      %vm4292 = vcmask 64512
      %4293 = vst.msk [vmem:[%s378] sm:$0xff] %vm4292, %v4260
      %4294 = vst.msk [vmem:[%s378 + $0x8] sm:$0xff] %vm4292, %v4261
      %4295 = vst.msk [vmem:[%s378 + $0x20] sm:$0xff] %vm4292, %v4262
      %4296 = vst.msk [vmem:[%s378 + $0x28] sm:$0xff] %vm4292, %v4263
      %4297 = vst.msk [vmem:[%s378 + $0x40] sm:$0xff] %vm4292, %v4264
      %4298 = vst.msk [vmem:[%s378 + $0x48] sm:$0xff] %vm4292, %v4265
      %4299 = vst.msk [vmem:[%s378 + $0x60] sm:$0xff] %vm4292, %v4266
      %4300 = vst.msk [vmem:[%s378 + $0x68] sm:$0xff] %vm4292, %v4267
      %4301 = vst.msk [vmem:[%s378 + $0x80] sm:$0xff] %vm4292, %v4268
      %4302 = vst.msk [vmem:[%s378 + $0x88] sm:$0xff] %vm4292, %v4269
      %4303 = vst.msk [vmem:[%s378 + $0xa0] sm:$0xff] %vm4292, %v4270
      %4304 = vst.msk [vmem:[%s378 + $0xa8] sm:$0xff] %vm4292, %v4271
      %4305 = vst.msk [vmem:[%s378 + $0xc0] sm:$0xff] %vm4292, %v4272
      %4306 = vst.msk [vmem:[%s378 + $0xc8] sm:$0xff] %vm4292, %v4273
      %4307 = vst.msk [vmem:[%s378 + $0xe0] sm:$0xff] %vm4292, %v4274
      %4308 = vst.msk [vmem:[%s378 + $0xe8] sm:$0xff] %vm4292, %v4275
      %4309 = vst.msk [vmem:[%s378 + $0x100] sm:$0xff] %vm4292, %v4276
      %4310 = vst.msk [vmem:[%s378 + $0x108] sm:$0xff] %vm4292, %v4277
      %4311 = vst.msk [vmem:[%s378 + $0x120] sm:$0xff] %vm4292, %v4278
      %4312 = vst.msk [vmem:[%s378 + $0x128] sm:$0xff] %vm4292, %v4279
      %4313 = vst.msk [vmem:[%s378 + $0x140] sm:$0xff] %vm4292, %v4280
      %4314 = vst.msk [vmem:[%s378 + $0x148] sm:$0xff] %vm4292, %v4281
      %4315 = vst.msk [vmem:[%s378 + $0x160] sm:$0xff] %vm4292, %v4282
      %4316 = vst.msk [vmem:[%s378 + $0x168] sm:$0xff] %vm4292, %v4283
      %4317 = vst.msk [vmem:[%s378 + $0x180] sm:$0xff] %vm4292, %v4284
      %4318 = vst.msk [vmem:[%s378 + $0x188] sm:$0xff] %vm4292, %v4285
      %4319 = vst.msk [vmem:[%s378 + $0x1a0] sm:$0xff] %vm4292, %v4286
      %4320 = vst.msk [vmem:[%s378 + $0x1a8] sm:$0xff] %vm4292, %v4287
      %4321 = vst.msk [vmem:[%s378 + $0x1c0] sm:$0xff] %vm4292, %v4288
      %4322 = vst.msk [vmem:[%s378 + $0x1c8] sm:$0xff] %vm4292, %v4289
      %4323 = vst.msk [vmem:[%s378 + $0x1e0] sm:$0xff] %vm4292, %v4290
      %4324 = vst.msk [vmem:[%s378 + $0x1e8] sm:$0xff] %vm4292, %v4291
      %v4325 = vld [vmem:[%s945] sm:$0xf]
      %v4326 = vld [vmem:[%s945 + $0x4] sm:$0xf]
      %v4327 = vld [vmem:[%s945 + $0xc] sm:$0xf]
      %v4328 = vld [vmem:[%s945 + $0x10] sm:$0xf]
      %v4329 = vld [vmem:[%s945 + $0x18] sm:$0xf]
      %v4330 = vld [vmem:[%s945 + $0x1c] sm:$0xf]
      %v4331 = vld [vmem:[%s945 + $0x24] sm:$0xf]
      %v4332 = vld [vmem:[%s945 + $0x28] sm:$0xf]
      %v4333 = vld [vmem:[%s945 + $0x30] sm:$0xf]
      %v4334 = vld [vmem:[%s945 + $0x34] sm:$0xf]
      %v4335 = vld [vmem:[%s945 + $0x3c] sm:$0xf]
      %v4336 = vld [vmem:[%s945 + $0x40] sm:$0xf]
      %v4337 = vld [vmem:[%s945 + $0x48] sm:$0xf]
      %v4338 = vld [vmem:[%s945 + $0x4c] sm:$0xf]
      %v4339 = vld [vmem:[%s945 + $0x54] sm:$0xf]
      %v4340 = vld [vmem:[%s945 + $0x58] sm:$0xf]
      %v4341 = vld [vmem:[%s945 + $0x60] sm:$0xf]
      %v4342 = vld [vmem:[%s945 + $0x64] sm:$0xf]
      %v4343 = vld [vmem:[%s945 + $0x6c] sm:$0xf]
      %v4344 = vld [vmem:[%s945 + $0x70] sm:$0xf]
      %v4345 = vld [vmem:[%s945 + $0x78] sm:$0xf]
      %v4346 = vld [vmem:[%s945 + $0x7c] sm:$0xf]
      %v4347 = vld [vmem:[%s945 + $0x84] sm:$0xf]
      %v4348 = vld [vmem:[%s945 + $0x88] sm:$0xf]
      %v4349 = vld [vmem:[%s945 + $0x90] sm:$0xf]
      %v4350 = vld [vmem:[%s945 + $0x94] sm:$0xf]
      %v4351 = vld [vmem:[%s945 + $0x9c] sm:$0xf]
      %v4352 = vld [vmem:[%s945 + $0xa0] sm:$0xf]
      %v4353 = vld [vmem:[%s945 + $0xa8] sm:$0xf]
      %v4354 = vld [vmem:[%s945 + $0xac] sm:$0xf]
      %v4355 = vld [vmem:[%s945 + $0xb4] sm:$0xf]
      %v4356 = vld [vmem:[%s945 + $0xb8] sm:$0xf]
      %s4357 = scalar_lea.vmem %s3, 12
      %v4358 = vld [vmem:[%s4357] sm:$0x3]
      %v4359 = vld [vmem:[%s945] sm:$0xf]
      %v4360 = vld [vmem:[%s945 + $0x4] sm:$0xf]
      %v4361 = vld [vmem:[%s945 + $0x8] sm:$0x1]
      %v4362 = vld [vmem:[%s945 + $0xc] sm:$0xf]
      %v4363 = vld [vmem:[%s945 + $0x10] sm:$0xf]
      %v4364 = vld [vmem:[%s945 + $0x14] sm:$0x1]
      %v4365 = vld [vmem:[%s945 + $0x18] sm:$0xf]
      %v4366 = vld [vmem:[%s945 + $0x1c] sm:$0xf]
      %v4367 = vld [vmem:[%s945 + $0x20] sm:$0x1]
      %v4368 = vld [vmem:[%s945 + $0x24] sm:$0xf]
      %v4369 = vld [vmem:[%s945 + $0x28] sm:$0xf]
      %v4370 = vld [vmem:[%s945 + $0x2c] sm:$0x1]
      %v4371 = vld [vmem:[%s945 + $0x30] sm:$0xf]
      %v4372 = vld [vmem:[%s945 + $0x34] sm:$0xf]
      %v4373 = vld [vmem:[%s945 + $0x38] sm:$0x1]
      %v4374 = vld [vmem:[%s945 + $0x3c] sm:$0xf]
      %v4375 = vld [vmem:[%s945 + $0x40] sm:$0xf]
      %v4376 = vld [vmem:[%s945 + $0x44] sm:$0x1]
      %v4377 = vld [vmem:[%s945 + $0x48] sm:$0xf]
      %v4378 = vld [vmem:[%s945 + $0x4c] sm:$0xf]
      %v4379 = vld [vmem:[%s945 + $0x50] sm:$0x1]
      %v4380 = vld [vmem:[%s945 + $0x54] sm:$0xf]
      %v4381 = vld [vmem:[%s945 + $0x58] sm:$0xf]
      %v4382 = vld [vmem:[%s945 + $0x5c] sm:$0x1]
      %v4383 = vld [vmem:[%s945 + $0x60] sm:$0xf]
      %v4384 = vld [vmem:[%s945 + $0x64] sm:$0xf]
      %v4385 = vld [vmem:[%s945 + $0x68] sm:$0x1]
      %v4386 = vld [vmem:[%s945 + $0x6c] sm:$0xf]
      %v4387 = vld [vmem:[%s945 + $0x70] sm:$0xf]
      %v4388 = vld [vmem:[%s945 + $0x74] sm:$0x1]
      %v4389 = vld [vmem:[%s945 + $0x78] sm:$0xf]
      %v4390 = vld [vmem:[%s945 + $0x7c] sm:$0xf]
      %v4391 = vld [vmem:[%s945 + $0x80] sm:$0x1]
      %v4392 = vld [vmem:[%s945 + $0x84] sm:$0xf]
      %v4393 = vld [vmem:[%s945 + $0x88] sm:$0xf]
      %v4394 = vld [vmem:[%s945 + $0x8c] sm:$0x1]
      %v4395 = vld [vmem:[%s945 + $0x90] sm:$0xf]
      %v4396 = vld [vmem:[%s945 + $0x94] sm:$0xf]
      %v4397 = vld [vmem:[%s945 + $0x98] sm:$0x1]
      %v4398 = vld [vmem:[%s945 + $0x9c] sm:$0xf]
      %v4399 = vld [vmem:[%s945 + $0xa0] sm:$0xf]
      %v4400 = vld [vmem:[%s945 + $0xa4] sm:$0x1]
      %v4401 = vld [vmem:[%s945 + $0xa8] sm:$0xf]
      %v4402 = vld [vmem:[%s945 + $0xac] sm:$0xf]
      %v4403 = vld [vmem:[%s945 + $0xb0] sm:$0x1]
      %v4404 = vld [vmem:[%s945 + $0xb4] sm:$0xf]
      %v4405 = vld [vmem:[%s945 + $0xb8] sm:$0xf]
      %v4406 = vld [vmem:[%s945 + $0xbc] sm:$0x1]
      %s4407 = scalar_lea.vmem %s3, 14
      %v4408 = vld [vmem:[%s4407] sm:$0x3]
      %v4410 = vshrl.u32 %v4359, 16
      %v4412 = vrot.slane %v4410, 4
      %v4413 = vshll.u32 %v4359, 16
      %v4415 = vrot.slane %v4413, 5
      %v4416 = vor.u32 %v4412, %v4415
      %v4417 = vrot.slane %v4416, 4
      %v4419 = vshll.u32 %v4360, 16
      %v4421 = vrot.slane %v4419, 5
      %v4422 = vsel %vm1224, %v4417, %v4421
      %v4423 = vshrl.u32 %v4360, 16
      %v4425 = vrot.slane %v4423, 4
      %v4426 = vor.u32 %v4425, %v4421
      %v4427 = vrot.slane %v4426, 4
      %v4429 = vshll.u32 %v4361, 16
      %v4431 = vrot.slane %v4429, 5
      %v4432 = vsel %vm1224, %v4427, %v4431
      %v4434 = vshrl.u32 %v4362, 16
      %v4436 = vrot.slane %v4434, 4
      %v4437 = vshll.u32 %v4362, 16
      %v4439 = vrot.slane %v4437, 5
      %v4440 = vor.u32 %v4436, %v4439
      %v4441 = vrot.slane %v4440, 4
      %v4443 = vshll.u32 %v4363, 16
      %v4445 = vrot.slane %v4443, 5
      %v4446 = vsel %vm1224, %v4441, %v4445
      %v4447 = vshrl.u32 %v4363, 16
      %v4449 = vrot.slane %v4447, 4
      %v4450 = vor.u32 %v4449, %v4445
      %v4451 = vrot.slane %v4450, 4
      %v4453 = vshll.u32 %v4364, 16
      %v4455 = vrot.slane %v4453, 5
      %v4456 = vsel %vm1224, %v4451, %v4455
      %v4458 = vshrl.u32 %v4365, 16
      %v4460 = vrot.slane %v4458, 4
      %v4461 = vshll.u32 %v4365, 16
      %v4463 = vrot.slane %v4461, 5
      %v4464 = vor.u32 %v4460, %v4463
      %v4465 = vrot.slane %v4464, 4
      %v4467 = vshll.u32 %v4366, 16
      %v4469 = vrot.slane %v4467, 5
      %v4470 = vsel %vm1224, %v4465, %v4469
      %v4471 = vshrl.u32 %v4366, 16
      %v4473 = vrot.slane %v4471, 4
      %v4474 = vor.u32 %v4473, %v4469
      %v4475 = vrot.slane %v4474, 4
      %v4477 = vshll.u32 %v4367, 16
      %v4479 = vrot.slane %v4477, 5
      %v4480 = vsel %vm1224, %v4475, %v4479
      %v4482 = vshrl.u32 %v4368, 16
      %v4484 = vrot.slane %v4482, 4
      %v4485 = vshll.u32 %v4368, 16
      %v4487 = vrot.slane %v4485, 5
      %v4488 = vor.u32 %v4484, %v4487
      %v4489 = vrot.slane %v4488, 4
      %v4491 = vshll.u32 %v4369, 16
      %v4493 = vrot.slane %v4491, 5
      %v4494 = vsel %vm1224, %v4489, %v4493
      %v4495 = vshrl.u32 %v4369, 16
      %v4497 = vrot.slane %v4495, 4
      %v4498 = vor.u32 %v4497, %v4493
      %v4499 = vrot.slane %v4498, 4
      %v4501 = vshll.u32 %v4370, 16
      %v4503 = vrot.slane %v4501, 5
      %v4504 = vsel %vm1224, %v4499, %v4503
      %v4506 = vshrl.u32 %v4371, 16
      %v4508 = vrot.slane %v4506, 4
      %v4509 = vshll.u32 %v4371, 16
      %v4511 = vrot.slane %v4509, 5
      %v4512 = vor.u32 %v4508, %v4511
      %v4513 = vrot.slane %v4512, 4
      %v4515 = vshll.u32 %v4372, 16
      %v4517 = vrot.slane %v4515, 5
      %v4518 = vsel %vm1224, %v4513, %v4517
      %v4519 = vshrl.u32 %v4372, 16
      %v4521 = vrot.slane %v4519, 4
      %v4522 = vor.u32 %v4521, %v4517
      %v4523 = vrot.slane %v4522, 4
      %v4525 = vshll.u32 %v4373, 16
      %v4527 = vrot.slane %v4525, 5
      %v4528 = vsel %vm1224, %v4523, %v4527
      %v4530 = vshrl.u32 %v4374, 16
      %v4532 = vrot.slane %v4530, 4
      %v4533 = vshll.u32 %v4374, 16
      %v4535 = vrot.slane %v4533, 5
      %v4536 = vor.u32 %v4532, %v4535
      %v4537 = vrot.slane %v4536, 4
      %v4539 = vshll.u32 %v4375, 16
      %v4541 = vrot.slane %v4539, 5
      %v4542 = vsel %vm1224, %v4537, %v4541
      %v4543 = vshrl.u32 %v4375, 16
      %v4545 = vrot.slane %v4543, 4
      %v4546 = vor.u32 %v4545, %v4541
      %v4547 = vrot.slane %v4546, 4
      %v4549 = vshll.u32 %v4376, 16
      %v4551 = vrot.slane %v4549, 5
      %v4552 = vsel %vm1224, %v4547, %v4551
      %v4554 = vshrl.u32 %v4377, 16
      %v4556 = vrot.slane %v4554, 4
      %v4557 = vshll.u32 %v4377, 16
      %v4559 = vrot.slane %v4557, 5
      %v4560 = vor.u32 %v4556, %v4559
      %v4561 = vrot.slane %v4560, 4
      %v4563 = vshll.u32 %v4378, 16
      %v4565 = vrot.slane %v4563, 5
      %v4566 = vsel %vm1224, %v4561, %v4565
      %v4567 = vshrl.u32 %v4378, 16
      %v4569 = vrot.slane %v4567, 4
      %v4570 = vor.u32 %v4569, %v4565
      %v4571 = vrot.slane %v4570, 4
      %v4573 = vshll.u32 %v4379, 16
      %v4575 = vrot.slane %v4573, 5
      %v4576 = vsel %vm1224, %v4571, %v4575
      %v4578 = vshrl.u32 %v4380, 16
      %v4580 = vrot.slane %v4578, 4
      %v4581 = vshll.u32 %v4380, 16
      %v4583 = vrot.slane %v4581, 5
      %v4584 = vor.u32 %v4580, %v4583
      %v4585 = vrot.slane %v4584, 4
      %v4587 = vshll.u32 %v4381, 16
      %v4589 = vrot.slane %v4587, 5
      %v4590 = vsel %vm1224, %v4585, %v4589
      %v4591 = vshrl.u32 %v4381, 16
      %v4593 = vrot.slane %v4591, 4
      %v4594 = vor.u32 %v4593, %v4589
      %v4595 = vrot.slane %v4594, 4
      %v4597 = vshll.u32 %v4382, 16
      %v4599 = vrot.slane %v4597, 5
      %v4600 = vsel %vm1224, %v4595, %v4599
      %v4602 = vshrl.u32 %v4383, 16
      %v4604 = vrot.slane %v4602, 4
      %v4605 = vshll.u32 %v4383, 16
      %v4607 = vrot.slane %v4605, 5
      %v4608 = vor.u32 %v4604, %v4607
      %v4609 = vrot.slane %v4608, 4
      %v4611 = vshll.u32 %v4384, 16
      %v4613 = vrot.slane %v4611, 5
      %v4614 = vsel %vm1224, %v4609, %v4613
      %v4615 = vshrl.u32 %v4384, 16
      %v4617 = vrot.slane %v4615, 4
      %v4618 = vor.u32 %v4617, %v4613
      %v4619 = vrot.slane %v4618, 4
      %v4621 = vshll.u32 %v4385, 16
      %v4623 = vrot.slane %v4621, 5
      %v4624 = vsel %vm1224, %v4619, %v4623
      %v4626 = vshrl.u32 %v4386, 16
      %v4628 = vrot.slane %v4626, 4
      %v4629 = vshll.u32 %v4386, 16
      %v4631 = vrot.slane %v4629, 5
      %v4632 = vor.u32 %v4628, %v4631
      %v4633 = vrot.slane %v4632, 4
      %v4635 = vshll.u32 %v4387, 16
      %v4637 = vrot.slane %v4635, 5
      %v4638 = vsel %vm1224, %v4633, %v4637
      %v4639 = vshrl.u32 %v4387, 16
      %v4641 = vrot.slane %v4639, 4
      %v4642 = vor.u32 %v4641, %v4637
      %v4643 = vrot.slane %v4642, 4
      %v4645 = vshll.u32 %v4388, 16
      %v4647 = vrot.slane %v4645, 5
      %v4648 = vsel %vm1224, %v4643, %v4647
      %v4650 = vshrl.u32 %v4389, 16
      %v4652 = vrot.slane %v4650, 4
      %v4653 = vshll.u32 %v4389, 16
      %v4655 = vrot.slane %v4653, 5
      %v4656 = vor.u32 %v4652, %v4655
      %v4657 = vrot.slane %v4656, 4
      %v4659 = vshll.u32 %v4390, 16
      %v4661 = vrot.slane %v4659, 5
      %v4662 = vsel %vm1224, %v4657, %v4661
      %v4663 = vshrl.u32 %v4390, 16
      %v4665 = vrot.slane %v4663, 4
      %v4666 = vor.u32 %v4665, %v4661
      %v4667 = vrot.slane %v4666, 4
      %v4669 = vshll.u32 %v4391, 16
      %v4671 = vrot.slane %v4669, 5
      %v4672 = vsel %vm1224, %v4667, %v4671
      %v4674 = vshrl.u32 %v4392, 16
      %v4676 = vrot.slane %v4674, 4
      %v4677 = vshll.u32 %v4392, 16
      %v4679 = vrot.slane %v4677, 5
      %v4680 = vor.u32 %v4676, %v4679
      %v4681 = vrot.slane %v4680, 4
      %v4683 = vshll.u32 %v4393, 16
      %v4685 = vrot.slane %v4683, 5
      %v4686 = vsel %vm1224, %v4681, %v4685
      %v4687 = vshrl.u32 %v4393, 16
      %v4689 = vrot.slane %v4687, 4
      %v4690 = vor.u32 %v4689, %v4685
      %v4691 = vrot.slane %v4690, 4
      %v4693 = vshll.u32 %v4394, 16
      %v4695 = vrot.slane %v4693, 5
      %v4696 = vsel %vm1224, %v4691, %v4695
      %v4698 = vshrl.u32 %v4395, 16
      %v4700 = vrot.slane %v4698, 4
      %v4701 = vshll.u32 %v4395, 16
      %v4703 = vrot.slane %v4701, 5
      %v4704 = vor.u32 %v4700, %v4703
      %v4705 = vrot.slane %v4704, 4
      %v4707 = vshll.u32 %v4396, 16
      %v4709 = vrot.slane %v4707, 5
      %v4710 = vsel %vm1224, %v4705, %v4709
      %v4711 = vshrl.u32 %v4396, 16
      %v4713 = vrot.slane %v4711, 4
      %v4714 = vor.u32 %v4713, %v4709
      %v4715 = vrot.slane %v4714, 4
      %v4717 = vshll.u32 %v4397, 16
      %v4719 = vrot.slane %v4717, 5
      %v4720 = vsel %vm1224, %v4715, %v4719
      %v4722 = vshrl.u32 %v4398, 16
      %v4724 = vrot.slane %v4722, 4
      %v4725 = vshll.u32 %v4398, 16
      %v4727 = vrot.slane %v4725, 5
      %v4728 = vor.u32 %v4724, %v4727
      %v4729 = vrot.slane %v4728, 4
      %v4731 = vshll.u32 %v4399, 16
      %v4733 = vrot.slane %v4731, 5
      %v4734 = vsel %vm1224, %v4729, %v4733
      %v4735 = vshrl.u32 %v4399, 16
      %v4737 = vrot.slane %v4735, 4
      %v4738 = vor.u32 %v4737, %v4733
      %v4739 = vrot.slane %v4738, 4
      %v4741 = vshll.u32 %v4400, 16
      %v4743 = vrot.slane %v4741, 5
      %v4744 = vsel %vm1224, %v4739, %v4743
      %v4746 = vshrl.u32 %v4401, 16
      %v4748 = vrot.slane %v4746, 4
      %v4749 = vshll.u32 %v4401, 16
      %v4751 = vrot.slane %v4749, 5
      %v4752 = vor.u32 %v4748, %v4751
      %v4753 = vrot.slane %v4752, 4
      %v4755 = vshll.u32 %v4402, 16
      %v4757 = vrot.slane %v4755, 5
      %v4758 = vsel %vm1224, %v4753, %v4757
      %v4759 = vshrl.u32 %v4402, 16
      %v4761 = vrot.slane %v4759, 4
      %v4762 = vor.u32 %v4761, %v4757
      %v4763 = vrot.slane %v4762, 4
      %v4765 = vshll.u32 %v4403, 16
      %v4767 = vrot.slane %v4765, 5
      %v4768 = vsel %vm1224, %v4763, %v4767
      %v4770 = vshrl.u32 %v4404, 16
      %v4772 = vrot.slane %v4770, 4
      %v4773 = vshll.u32 %v4404, 16
      %v4775 = vrot.slane %v4773, 5
      %v4776 = vor.u32 %v4772, %v4775
      %v4777 = vrot.slane %v4776, 4
      %v4779 = vshll.u32 %v4405, 16
      %v4781 = vrot.slane %v4779, 5
      %v4782 = vsel %vm1224, %v4777, %v4781
      %v4783 = vshrl.u32 %v4405, 16
      %v4785 = vrot.slane %v4783, 4
      %v4786 = vor.u32 %v4785, %v4781
      %v4787 = vrot.slane %v4786, 4
      %v4789 = vshll.u32 %v4406, 16
      %v4791 = vrot.slane %v4789, 5
      %v4792 = vsel %vm1224, %v4787, %v4791
      %v4793 = vunpack.c.l.b16 %v4422
      %v4794 = vunpack.c.l.b16 %v4432
      %v4795 = vunpack.c.l.b16 %v4446
      %v4796 = vunpack.c.l.b16 %v4456
      %v4797 = vunpack.c.l.b16 %v4470
      %v4798 = vunpack.c.l.b16 %v4480
      %v4799 = vunpack.c.l.b16 %v4494
      %v4800 = vunpack.c.l.b16 %v4504
      %v4801 = vunpack.c.l.b16 %v4518
      %v4802 = vunpack.c.l.b16 %v4528
      %v4803 = vunpack.c.l.b16 %v4542
      %v4804 = vunpack.c.l.b16 %v4552
      %v4805 = vunpack.c.l.b16 %v4566
      %v4806 = vunpack.c.l.b16 %v4576
      %v4807 = vunpack.c.l.b16 %v4590
      %v4808 = vunpack.c.l.b16 %v4600
      %v4809 = vunpack.c.l.b16 %v4614
      %v4810 = vunpack.c.l.b16 %v4624
      %v4811 = vunpack.c.l.b16 %v4638
      %v4812 = vunpack.c.l.b16 %v4648
      %v4813 = vunpack.c.l.b16 %v4662
      %v4814 = vunpack.c.l.b16 %v4672
      %v4815 = vunpack.c.l.b16 %v4686
      %v4816 = vunpack.c.l.b16 %v4696
      %v4817 = vunpack.c.l.b16 %v4710
      %v4818 = vunpack.c.l.b16 %v4720
      %v4819 = vunpack.c.l.b16 %v4734
      %v4820 = vunpack.c.l.b16 %v4744
      %v4821 = vunpack.c.l.b16 %v4758
      %v4822 = vunpack.c.l.b16 %v4768
      %v4823 = vunpack.c.l.b16 %v4782
      %v4824 = vunpack.c.l.b16 %v4792
      %v4825 = vpack.c.b16 %v4794, %v4793
      %v4826 = vpack.c.b16 %v4796, %v4795
      %v4827 = vpack.c.b16 %v4798, %v4797
      %v4828 = vpack.c.b16 %v4800, %v4799
      %v4829 = vpack.c.b16 %v4802, %v4801
      %v4830 = vpack.c.b16 %v4804, %v4803
      %v4831 = vpack.c.b16 %v4806, %v4805
      %v4832 = vpack.c.b16 %v4808, %v4807
      %v4833 = vpack.c.b16 %v4810, %v4809
      %v4834 = vpack.c.b16 %v4812, %v4811
      %v4835 = vpack.c.b16 %v4814, %v4813
      %v4836 = vpack.c.b16 %v4816, %v4815
      %v4837 = vpack.c.b16 %v4818, %v4817
      %v4838 = vpack.c.b16 %v4820, %v4819
      %v4839 = vpack.c.b16 %v4822, %v4821
      %v4840 = vpack.c.b16 %v4824, %v4823
      %v4842 = vsel %vm1657, %v4825, 0
      %v4845 = vsel %vm1657, %v4826, 0
      %v4848 = vsel %vm1657, %v4827, 0
      %v4851 = vsel %vm1657, %v4828, 0
      %v4854 = vsel %vm1657, %v4829, 0
      %v4857 = vsel %vm1657, %v4830, 0
      %v4860 = vsel %vm1657, %v4831, 0
      %v4863 = vsel %vm1657, %v4832, 0
      %v4866 = vsel %vm1657, %v4833, 0
      %v4869 = vsel %vm1657, %v4834, 0
      %v4872 = vsel %vm1657, %v4835, 0
      %v4875 = vsel %vm1657, %v4836, 0
      %v4878 = vsel %vm1657, %v4837, 0
      %v4881 = vsel %vm1657, %v4838, 0
      %v4884 = vsel %vm1657, %v4839, 0
      %v4887 = vsel %vm1657, %v4840, 0
      %v4890 = vsel %vm1706, %v4408, 0
      %4892 = vmatprep.subr.bf16.mxu0 0
      %4893 = vmatpush1.bf16.msra.mxu0 0
      %4894 = vmatprep.subr.bf16.mxu0 0
      %4895 = vmatpush1.bf16.msra.mxu0 0
      %4896 = vmatprep.subr.bf16.mxu0 0
      %4897 = vmatpush1.bf16.msra.mxu0 0
      %4898 = vmatprep.subr.bf16.mxu0 0
      %4899 = vmatpush1.bf16.msra.mxu0 0
      %4900 = vmatprep.subr.bf16.mxu0 0
      %4901 = vmatpush1.bf16.msra.mxu0 0
      %4902 = vmatprep.subr.bf16.mxu0 0
      %4903 = vmatpush1.bf16.msra.mxu0 0
      %4904 = vmatprep.subr.bf16.mxu0 0
      %4905 = vmatpush1.bf16.msra.mxu0 0
      %4906 = vmatprep.subr.bf16.mxu0 0
      %4907 = vmatpush1.bf16.msra.mxu0 %v4890
      %4908 = vmatprep.subr.bf16.mxu0 0
      %4909 = vmatpush2.bf16.msra.mxu0 0
      %4910 = vmatprep.subr.bf16.mxu0 0
      %4911 = vmatpush2.bf16.msra.mxu0 0
      %4912 = vmatprep.subr.bf16.mxu0 0
      %4913 = vmatpush2.bf16.msra.mxu0 0
      %4914 = vmatprep.subr.bf16.mxu0 0
      %4915 = vmatpush2.bf16.msra.mxu0 0
      %4916 = vmatprep.subr.bf16.mxu0 0
      %4917 = vmatpush2.bf16.msra.mxu0 0
      %4918 = vmatprep.subr.bf16.mxu0 0
      %4919 = vmatpush2.bf16.msra.mxu0 0
      %4920 = vmatprep.subr.bf16.mxu0 0
      %4921 = vmatpush2.bf16.msra.mxu0 0
      %4922 = vmatprep.subr.bf16.mxu0 0
      %4923 = vmatpush2.bf16.msra.mxu0 0
      %4924 = vmatprep.mubr.bf16.mxu0 0
      %4925 = vmatmul.mubr.bf16.gmra.mxu0 %v4842
      %v4926 = vpop.f32.mrf.mxu0
      %v4927 = vadd.f32 0.0, %v4926
      %v4928 = vpop.f32.mrf.mxu0
      %v4929 = vpop.f32.mrf.mxu0
      %v4930 = vadd.f32 0.0, %v4929
      %v4931 = vpop.f32.mrf.mxu0
      %4932 = vmatprep.mubr.bf16.mxu0 0
      %4933 = vmatmul.mubr.bf16.gmra.mxu0 %v4845
      %v4934 = vpop.f32.mrf.mxu0
      %v4935 = vadd.f32 0.0, %v4934
      %v4936 = vpop.f32.mrf.mxu0
      %v4937 = vpop.f32.mrf.mxu0
      %v4938 = vadd.f32 0.0, %v4937
      %v4939 = vpop.f32.mrf.mxu0
      %4940 = vmatprep.mubr.bf16.mxu0 0
      %4941 = vmatmul.mubr.bf16.gmra.mxu0 %v4848
      %v4942 = vpop.f32.mrf.mxu0
      %v4943 = vadd.f32 0.0, %v4942
      %v4944 = vpop.f32.mrf.mxu0
      %v4945 = vpop.f32.mrf.mxu0
      %v4946 = vadd.f32 0.0, %v4945
      %v4947 = vpop.f32.mrf.mxu0
      %4948 = vmatprep.mubr.bf16.mxu0 0
      %4949 = vmatmul.mubr.bf16.gmra.mxu0 %v4851
      %v4950 = vpop.f32.mrf.mxu0
      %v4951 = vadd.f32 0.0, %v4950
      %v4952 = vpop.f32.mrf.mxu0
      %v4953 = vpop.f32.mrf.mxu0
      %v4954 = vadd.f32 0.0, %v4953
      %v4955 = vpop.f32.mrf.mxu0
      %4956 = vmatprep.mubr.bf16.mxu0 0
      %4957 = vmatmul.mubr.bf16.gmra.mxu0 %v4854
      %v4958 = vpop.f32.mrf.mxu0
      %v4959 = vadd.f32 0.0, %v4958
      %v4960 = vpop.f32.mrf.mxu0
      %v4961 = vpop.f32.mrf.mxu0
      %v4962 = vadd.f32 0.0, %v4961
      %v4963 = vpop.f32.mrf.mxu0
      %4964 = vmatprep.mubr.bf16.mxu0 0
      %4965 = vmatmul.mubr.bf16.gmra.mxu0 %v4857
      %v4966 = vpop.f32.mrf.mxu0
      %v4967 = vadd.f32 0.0, %v4966
      %v4968 = vpop.f32.mrf.mxu0
      %v4969 = vpop.f32.mrf.mxu0
      %v4970 = vadd.f32 0.0, %v4969
      %v4971 = vpop.f32.mrf.mxu0
      %4972 = vmatprep.mubr.bf16.mxu0 0
      %4973 = vmatmul.mubr.bf16.gmra.mxu0 %v4860
      %v4974 = vpop.f32.mrf.mxu0
      %v4975 = vadd.f32 0.0, %v4974
      %v4976 = vpop.f32.mrf.mxu0
      %v4977 = vpop.f32.mrf.mxu0
      %v4978 = vadd.f32 0.0, %v4977
      %v4979 = vpop.f32.mrf.mxu0
      %4980 = vmatprep.mubr.bf16.mxu0 0
      %4981 = vmatmul.mubr.bf16.gmra.mxu0 %v4863
      %v4982 = vpop.f32.mrf.mxu0
      %v4983 = vadd.f32 0.0, %v4982
      %v4984 = vpop.f32.mrf.mxu0
      %v4985 = vpop.f32.mrf.mxu0
      %v4986 = vadd.f32 0.0, %v4985
      %v4987 = vpop.f32.mrf.mxu0
      %4988 = vmatprep.mubr.bf16.mxu0 0
      %4989 = vmatmul.mubr.bf16.gmra.mxu0 %v4866
      %v4990 = vpop.f32.mrf.mxu0
      %v4991 = vadd.f32 0.0, %v4990
      %v4992 = vpop.f32.mrf.mxu0
      %v4993 = vpop.f32.mrf.mxu0
      %v4994 = vadd.f32 0.0, %v4993
      %v4995 = vpop.f32.mrf.mxu0
      %4996 = vmatprep.mubr.bf16.mxu0 0
      %4997 = vmatmul.mubr.bf16.gmra.mxu0 %v4869
      %v4998 = vpop.f32.mrf.mxu0
      %v4999 = vadd.f32 0.0, %v4998
      %v5000 = vpop.f32.mrf.mxu0
      %v5001 = vpop.f32.mrf.mxu0
      %v5002 = vadd.f32 0.0, %v5001
      %v5003 = vpop.f32.mrf.mxu0
      %5004 = vmatprep.mubr.bf16.mxu0 0
      %5005 = vmatmul.mubr.bf16.gmra.mxu0 %v4872
      %v5006 = vpop.f32.mrf.mxu0
      %v5007 = vadd.f32 0.0, %v5006
      %v5008 = vpop.f32.mrf.mxu0
      %v5009 = vpop.f32.mrf.mxu0
      %v5010 = vadd.f32 0.0, %v5009
      %v5011 = vpop.f32.mrf.mxu0
      %5012 = vmatprep.mubr.bf16.mxu0 0
      %5013 = vmatmul.mubr.bf16.gmra.mxu0 %v4875
      %v5014 = vpop.f32.mrf.mxu0
      %v5015 = vadd.f32 0.0, %v5014
      %v5016 = vpop.f32.mrf.mxu0
      %v5017 = vpop.f32.mrf.mxu0
      %v5018 = vadd.f32 0.0, %v5017
      %v5019 = vpop.f32.mrf.mxu0
      %5020 = vmatprep.mubr.bf16.mxu0 0
      %5021 = vmatmul.mubr.bf16.gmra.mxu0 %v4878
      %v5022 = vpop.f32.mrf.mxu0
      %v5023 = vadd.f32 0.0, %v5022
      %v5024 = vpop.f32.mrf.mxu0
      %v5025 = vpop.f32.mrf.mxu0
      %v5026 = vadd.f32 0.0, %v5025
      %v5027 = vpop.f32.mrf.mxu0
      %5028 = vmatprep.mubr.bf16.mxu0 0
      %5029 = vmatmul.mubr.bf16.gmra.mxu0 %v4881
      %v5030 = vpop.f32.mrf.mxu0
      %v5031 = vadd.f32 0.0, %v5030
      %v5032 = vpop.f32.mrf.mxu0
      %v5033 = vpop.f32.mrf.mxu0
      %v5034 = vadd.f32 0.0, %v5033
      %v5035 = vpop.f32.mrf.mxu0
      %5036 = vmatprep.mubr.bf16.mxu0 0
      %5037 = vmatmul.mubr.bf16.gmra.mxu0 %v4884
      %v5038 = vpop.f32.mrf.mxu0
      %v5039 = vadd.f32 0.0, %v5038
      %v5040 = vpop.f32.mrf.mxu0
      %v5041 = vpop.f32.mrf.mxu0
      %v5042 = vadd.f32 0.0, %v5041
      %v5043 = vpop.f32.mrf.mxu0
      %5044 = vmatprep.mubr.bf16.mxu0 0
      %5045 = vmatmul.mubr.bf16.gmra.mxu0 %v4887
      %v5046 = vpop.f32.mrf.mxu0
      %v5047 = vadd.f32 0.0, %v5046
      %v5048 = vpop.f32.mrf.mxu0
      %v5049 = vpop.f32.mrf.mxu0
      %v5050 = vadd.f32 0.0, %v5049
      %v5051 = vpop.f32.mrf.mxu0
      %5052 = vdwg.mxu0
      %v5085 = vunpack.c.l.b16 %v4325
      %v5086 = vunpack.c.l.b16 %v4326
      %v5087 = vunpack.c.l.b16 %v4327
      %v5088 = vunpack.c.l.b16 %v4328
      %v5089 = vunpack.c.l.b16 %v4329
      %v5090 = vunpack.c.l.b16 %v4330
      %v5091 = vunpack.c.l.b16 %v4331
      %v5092 = vunpack.c.l.b16 %v4332
      %v5093 = vunpack.c.l.b16 %v4333
      %v5094 = vunpack.c.l.b16 %v4334
      %v5095 = vunpack.c.l.b16 %v4335
      %v5096 = vunpack.c.l.b16 %v4336
      %v5097 = vunpack.c.l.b16 %v4337
      %v5098 = vunpack.c.l.b16 %v4338
      %v5099 = vunpack.c.l.b16 %v4339
      %v5100 = vunpack.c.l.b16 %v4340
      %v5101 = vunpack.c.l.b16 %v4341
      %v5102 = vunpack.c.l.b16 %v4342
      %v5103 = vunpack.c.l.b16 %v4343
      %v5104 = vunpack.c.l.b16 %v4344
      %v5105 = vunpack.c.l.b16 %v4345
      %v5106 = vunpack.c.l.b16 %v4346
      %v5107 = vunpack.c.l.b16 %v4347
      %v5108 = vunpack.c.l.b16 %v4348
      %v5109 = vunpack.c.l.b16 %v4349
      %v5110 = vunpack.c.l.b16 %v4350
      %v5111 = vunpack.c.l.b16 %v4351
      %v5112 = vunpack.c.l.b16 %v4352
      %v5113 = vunpack.c.l.b16 %v4353
      %v5114 = vunpack.c.l.b16 %v4354
      %v5115 = vunpack.c.l.b16 %v4355
      %v5116 = vunpack.c.l.b16 %v4356
      %v5117 = vpack.c.b16 %v5086, %v5085
      %v5118 = vpack.c.b16 %v5088, %v5087
      %v5119 = vpack.c.b16 %v5090, %v5089
      %v5120 = vpack.c.b16 %v5092, %v5091
      %v5121 = vpack.c.b16 %v5094, %v5093
      %v5122 = vpack.c.b16 %v5096, %v5095
      %v5123 = vpack.c.b16 %v5098, %v5097
      %v5124 = vpack.c.b16 %v5100, %v5099
      %v5125 = vpack.c.b16 %v5102, %v5101
      %v5126 = vpack.c.b16 %v5104, %v5103
      %v5127 = vpack.c.b16 %v5106, %v5105
      %v5128 = vpack.c.b16 %v5108, %v5107
      %v5129 = vpack.c.b16 %v5110, %v5109
      %v5130 = vpack.c.b16 %v5112, %v5111
      %v5131 = vpack.c.b16 %v5114, %v5113
      %v5132 = vpack.c.b16 %v5116, %v5115
      %v5134 = vsel %vm1657, %v5117, 0
      %v5137 = vsel %vm1657, %v5118, 0
      %v5140 = vsel %vm1657, %v5119, 0
      %v5143 = vsel %vm1657, %v5120, 0
      %v5146 = vsel %vm1657, %v5121, 0
      %v5149 = vsel %vm1657, %v5122, 0
      %v5152 = vsel %vm1657, %v5123, 0
      %v5155 = vsel %vm1657, %v5124, 0
      %v5158 = vsel %vm1657, %v5125, 0
      %v5161 = vsel %vm1657, %v5126, 0
      %v5164 = vsel %vm1657, %v5127, 0
      %v5167 = vsel %vm1657, %v5128, 0
      %v5170 = vsel %vm1657, %v5129, 0
      %v5173 = vsel %vm1657, %v5130, 0
      %v5176 = vsel %vm1657, %v5131, 0
      %v5179 = vsel %vm1657, %v5132, 0
      %v5182 = vsel %vm1706, %v4358, 0
      %5184 = vmatprep.subr.bf16.mxu0 0
      %5185 = vmatpush1.bf16.msra.mxu0 0
      %5186 = vmatprep.subr.bf16.mxu0 0
      %5187 = vmatpush1.bf16.msra.mxu0 0
      %5188 = vmatprep.subr.bf16.mxu0 0
      %5189 = vmatpush1.bf16.msra.mxu0 0
      %5190 = vmatprep.subr.bf16.mxu0 0
      %5191 = vmatpush1.bf16.msra.mxu0 0
      %5192 = vmatprep.subr.bf16.mxu0 0
      %5193 = vmatpush1.bf16.msra.mxu0 0
      %5194 = vmatprep.subr.bf16.mxu0 0
      %5195 = vmatpush1.bf16.msra.mxu0 0
      %5196 = vmatprep.subr.bf16.mxu0 0
      %5197 = vmatpush1.bf16.msra.mxu0 0
      %5198 = vmatprep.subr.bf16.mxu0 0
      %5199 = vmatpush1.bf16.msra.mxu0 %v5182
      %5200 = vmatprep.subr.bf16.mxu0 0
      %5201 = vmatpush2.bf16.msra.mxu0 0
      %5202 = vmatprep.subr.bf16.mxu0 0
      %5203 = vmatpush2.bf16.msra.mxu0 0
      %5204 = vmatprep.subr.bf16.mxu0 0
      %5205 = vmatpush2.bf16.msra.mxu0 0
      %5206 = vmatprep.subr.bf16.mxu0 0
      %5207 = vmatpush2.bf16.msra.mxu0 0
      %5208 = vmatprep.subr.bf16.mxu0 0
      %5209 = vmatpush2.bf16.msra.mxu0 0
      %5210 = vmatprep.subr.bf16.mxu0 0
      %5211 = vmatpush2.bf16.msra.mxu0 0
      %5212 = vmatprep.subr.bf16.mxu0 0
      %5213 = vmatpush2.bf16.msra.mxu0 0
      %5214 = vmatprep.subr.bf16.mxu0 0
      %5215 = vmatpush2.bf16.msra.mxu0 0
      %5216 = vmatprep.mubr.bf16.mxu0 0
      %5217 = vmatmul.mubr.bf16.gmra.mxu0 %v5134
      %v5218 = vpop.f32.mrf.mxu0
      %v5219 = vadd.f32 %v4927, %v5218
      %v5220 = vpop.f32.mrf.mxu0
      %v5221 = vpop.f32.mrf.mxu0
      %v5222 = vadd.f32 %v4930, %v5221
      %v5223 = vpop.f32.mrf.mxu0
      %5224 = vmatprep.mubr.bf16.mxu0 0
      %5225 = vmatmul.mubr.bf16.gmra.mxu0 %v5137
      %v5226 = vpop.f32.mrf.mxu0
      %v5227 = vadd.f32 %v4935, %v5226
      %v5228 = vpop.f32.mrf.mxu0
      %v5229 = vpop.f32.mrf.mxu0
      %v5230 = vadd.f32 %v4938, %v5229
      %v5231 = vpop.f32.mrf.mxu0
      %5232 = vmatprep.mubr.bf16.mxu0 0
      %5233 = vmatmul.mubr.bf16.gmra.mxu0 %v5140
      %v5234 = vpop.f32.mrf.mxu0
      %v5235 = vadd.f32 %v4943, %v5234
      %v5236 = vpop.f32.mrf.mxu0
      %v5237 = vpop.f32.mrf.mxu0
      %v5238 = vadd.f32 %v4946, %v5237
      %v5239 = vpop.f32.mrf.mxu0
      %5240 = vmatprep.mubr.bf16.mxu0 0
      %5241 = vmatmul.mubr.bf16.gmra.mxu0 %v5143
      %v5242 = vpop.f32.mrf.mxu0
      %v5243 = vadd.f32 %v4951, %v5242
      %v5244 = vpop.f32.mrf.mxu0
      %v5245 = vpop.f32.mrf.mxu0
      %v5246 = vadd.f32 %v4954, %v5245
      %v5247 = vpop.f32.mrf.mxu0
      %5248 = vmatprep.mubr.bf16.mxu0 0
      %5249 = vmatmul.mubr.bf16.gmra.mxu0 %v5146
      %v5250 = vpop.f32.mrf.mxu0
      %v5251 = vadd.f32 %v4959, %v5250
      %v5252 = vpop.f32.mrf.mxu0
      %v5253 = vpop.f32.mrf.mxu0
      %v5254 = vadd.f32 %v4962, %v5253
      %v5255 = vpop.f32.mrf.mxu0
      %5256 = vmatprep.mubr.bf16.mxu0 0
      %5257 = vmatmul.mubr.bf16.gmra.mxu0 %v5149
      %v5258 = vpop.f32.mrf.mxu0
      %v5259 = vadd.f32 %v4967, %v5258
      %v5260 = vpop.f32.mrf.mxu0
      %v5261 = vpop.f32.mrf.mxu0
      %v5262 = vadd.f32 %v4970, %v5261
      %v5263 = vpop.f32.mrf.mxu0
      %5264 = vmatprep.mubr.bf16.mxu0 0
      %5265 = vmatmul.mubr.bf16.gmra.mxu0 %v5152
      %v5266 = vpop.f32.mrf.mxu0
      %v5267 = vadd.f32 %v4975, %v5266
      %v5268 = vpop.f32.mrf.mxu0
      %v5269 = vpop.f32.mrf.mxu0
      %v5270 = vadd.f32 %v4978, %v5269
      %v5271 = vpop.f32.mrf.mxu0
      %5272 = vmatprep.mubr.bf16.mxu0 0
      %5273 = vmatmul.mubr.bf16.gmra.mxu0 %v5155
      %v5274 = vpop.f32.mrf.mxu0
      %v5275 = vadd.f32 %v4983, %v5274
      %v5276 = vpop.f32.mrf.mxu0
      %v5277 = vpop.f32.mrf.mxu0
      %v5278 = vadd.f32 %v4986, %v5277
      %v5279 = vpop.f32.mrf.mxu0
      %5280 = vmatprep.mubr.bf16.mxu0 0
      %5281 = vmatmul.mubr.bf16.gmra.mxu0 %v5158
      %v5282 = vpop.f32.mrf.mxu0
      %v5283 = vadd.f32 %v4991, %v5282
      %v5284 = vpop.f32.mrf.mxu0
      %v5285 = vpop.f32.mrf.mxu0
      %v5286 = vadd.f32 %v4994, %v5285
      %v5287 = vpop.f32.mrf.mxu0
      %5288 = vmatprep.mubr.bf16.mxu0 0
      %5289 = vmatmul.mubr.bf16.gmra.mxu0 %v5161
      %v5290 = vpop.f32.mrf.mxu0
      %v5291 = vadd.f32 %v4999, %v5290
      %v5292 = vpop.f32.mrf.mxu0
      %v5293 = vpop.f32.mrf.mxu0
      %v5294 = vadd.f32 %v5002, %v5293
      %v5295 = vpop.f32.mrf.mxu0
      %5296 = vmatprep.mubr.bf16.mxu0 0
      %5297 = vmatmul.mubr.bf16.gmra.mxu0 %v5164
      %v5298 = vpop.f32.mrf.mxu0
      %v5299 = vadd.f32 %v5007, %v5298
      %v5300 = vpop.f32.mrf.mxu0
      %v5301 = vpop.f32.mrf.mxu0
      %v5302 = vadd.f32 %v5010, %v5301
      %v5303 = vpop.f32.mrf.mxu0
      %5304 = vmatprep.mubr.bf16.mxu0 0
      %5305 = vmatmul.mubr.bf16.gmra.mxu0 %v5167
      %v5306 = vpop.f32.mrf.mxu0
      %v5307 = vadd.f32 %v5015, %v5306
      %v5308 = vpop.f32.mrf.mxu0
      %v5309 = vpop.f32.mrf.mxu0
      %v5310 = vadd.f32 %v5018, %v5309
      %v5311 = vpop.f32.mrf.mxu0
      %5312 = vmatprep.mubr.bf16.mxu0 0
      %5313 = vmatmul.mubr.bf16.gmra.mxu0 %v5170
      %v5314 = vpop.f32.mrf.mxu0
      %v5315 = vadd.f32 %v5023, %v5314
      %v5316 = vpop.f32.mrf.mxu0
      %v5317 = vpop.f32.mrf.mxu0
      %v5318 = vadd.f32 %v5026, %v5317
      %v5319 = vpop.f32.mrf.mxu0
      %5320 = vmatprep.mubr.bf16.mxu0 0
      %5321 = vmatmul.mubr.bf16.gmra.mxu0 %v5173
      %v5322 = vpop.f32.mrf.mxu0
      %v5323 = vadd.f32 %v5031, %v5322
      %v5324 = vpop.f32.mrf.mxu0
      %v5325 = vpop.f32.mrf.mxu0
      %v5326 = vadd.f32 %v5034, %v5325
      %v5327 = vpop.f32.mrf.mxu0
      %5328 = vmatprep.mubr.bf16.mxu0 0
      %5329 = vmatmul.mubr.bf16.gmra.mxu0 %v5176
      %v5330 = vpop.f32.mrf.mxu0
      %v5331 = vadd.f32 %v5039, %v5330
      %v5332 = vpop.f32.mrf.mxu0
      %v5333 = vpop.f32.mrf.mxu0
      %v5334 = vadd.f32 %v5042, %v5333
      %v5335 = vpop.f32.mrf.mxu0
      %5336 = vmatprep.mubr.bf16.mxu0 0
      %5337 = vmatmul.mubr.bf16.gmra.mxu0 %v5179
      %v5338 = vpop.f32.mrf.mxu0
      %v5339 = vadd.f32 %v5047, %v5338
      %v5340 = vpop.f32.mrf.mxu0
      %v5341 = vpop.f32.mrf.mxu0
      %v5342 = vadd.f32 %v5050, %v5341
      %v5343 = vpop.f32.mrf.mxu0
      %5344 = vdwg.mxu0
      %v5345 = vld [vmem:[%s945] sm:$0xe]
      %v5346 = vld [vmem:[%s945 + $0x4] sm:$0xf]
      %v5347 = vld [vmem:[%s945 + $0x8] sm:$0x1]
      %v5348 = vld [vmem:[%s945 + $0xc] sm:$0xe]
      %v5349 = vld [vmem:[%s945 + $0x10] sm:$0xf]
      %v5350 = vld [vmem:[%s945 + $0x14] sm:$0x1]
      %v5351 = vld [vmem:[%s945 + $0x18] sm:$0xe]
      %v5352 = vld [vmem:[%s945 + $0x1c] sm:$0xf]
      %v5353 = vld [vmem:[%s945 + $0x20] sm:$0x1]
      %v5354 = vld [vmem:[%s945 + $0x24] sm:$0xe]
      %v5355 = vld [vmem:[%s945 + $0x28] sm:$0xf]
      %v5356 = vld [vmem:[%s945 + $0x2c] sm:$0x1]
      %v5357 = vld [vmem:[%s945 + $0x30] sm:$0xe]
      %v5358 = vld [vmem:[%s945 + $0x34] sm:$0xf]
      %v5359 = vld [vmem:[%s945 + $0x38] sm:$0x1]
      %v5360 = vld [vmem:[%s945 + $0x3c] sm:$0xe]
      %v5361 = vld [vmem:[%s945 + $0x40] sm:$0xf]
      %v5362 = vld [vmem:[%s945 + $0x44] sm:$0x1]
      %v5363 = vld [vmem:[%s945 + $0x48] sm:$0xe]
      %v5364 = vld [vmem:[%s945 + $0x4c] sm:$0xf]
      %v5365 = vld [vmem:[%s945 + $0x50] sm:$0x1]
      %v5366 = vld [vmem:[%s945 + $0x54] sm:$0xe]
      %v5367 = vld [vmem:[%s945 + $0x58] sm:$0xf]
      %v5368 = vld [vmem:[%s945 + $0x5c] sm:$0x1]
      %v5369 = vld [vmem:[%s945 + $0x60] sm:$0xe]
      %v5370 = vld [vmem:[%s945 + $0x64] sm:$0xf]
      %v5371 = vld [vmem:[%s945 + $0x68] sm:$0x1]
      %v5372 = vld [vmem:[%s945 + $0x6c] sm:$0xe]
      %v5373 = vld [vmem:[%s945 + $0x70] sm:$0xf]
      %v5374 = vld [vmem:[%s945 + $0x74] sm:$0x1]
      %v5375 = vld [vmem:[%s945 + $0x78] sm:$0xe]
      %v5376 = vld [vmem:[%s945 + $0x7c] sm:$0xf]
      %v5377 = vld [vmem:[%s945 + $0x80] sm:$0x1]
      %v5378 = vld [vmem:[%s945 + $0x84] sm:$0xe]
      %v5379 = vld [vmem:[%s945 + $0x88] sm:$0xf]
      %v5380 = vld [vmem:[%s945 + $0x8c] sm:$0x1]
      %v5381 = vld [vmem:[%s945 + $0x90] sm:$0xe]
      %v5382 = vld [vmem:[%s945 + $0x94] sm:$0xf]
      %v5383 = vld [vmem:[%s945 + $0x98] sm:$0x1]
      %v5384 = vld [vmem:[%s945 + $0x9c] sm:$0xe]
      %v5385 = vld [vmem:[%s945 + $0xa0] sm:$0xf]
      %v5386 = vld [vmem:[%s945 + $0xa4] sm:$0x1]
      %v5387 = vld [vmem:[%s945 + $0xa8] sm:$0xe]
      %v5388 = vld [vmem:[%s945 + $0xac] sm:$0xf]
      %v5389 = vld [vmem:[%s945 + $0xb0] sm:$0x1]
      %v5390 = vld [vmem:[%s945 + $0xb4] sm:$0xe]
      %v5391 = vld [vmem:[%s945 + $0xb8] sm:$0xf]
      %v5392 = vld [vmem:[%s945 + $0xbc] sm:$0x1]
      %s5393 = scalar_lea.vmem %s3, 16
      %v5394 = vld [vmem:[%s5393] sm:$0x3]
      %v5443 = vrot.slane %v5345, 5
      %v5444 = vrot.slane %v5443, 4
      %v5445 = vrot.slane %v5346, 5
      %v5446 = vsel %vm2263, %v5444, %v5445
      %v5447 = vrot.slane %v5445, 4
      %v5448 = vrot.slane %v5347, 5
      %v5449 = vsel %vm2263, %v5447, %v5448
      %v5450 = vrot.slane %v5348, 5
      %v5451 = vrot.slane %v5450, 4
      %v5452 = vrot.slane %v5349, 5
      %v5453 = vsel %vm2263, %v5451, %v5452
      %v5454 = vrot.slane %v5452, 4
      %v5455 = vrot.slane %v5350, 5
      %v5456 = vsel %vm2263, %v5454, %v5455
      %v5457 = vrot.slane %v5351, 5
      %v5458 = vrot.slane %v5457, 4
      %v5459 = vrot.slane %v5352, 5
      %v5460 = vsel %vm2263, %v5458, %v5459
      %v5461 = vrot.slane %v5459, 4
      %v5462 = vrot.slane %v5353, 5
      %v5463 = vsel %vm2263, %v5461, %v5462
      %v5464 = vrot.slane %v5354, 5
      %v5465 = vrot.slane %v5464, 4
      %v5466 = vrot.slane %v5355, 5
      %v5467 = vsel %vm2263, %v5465, %v5466
      %v5468 = vrot.slane %v5466, 4
      %v5469 = vrot.slane %v5356, 5
      %v5470 = vsel %vm2263, %v5468, %v5469
      %v5471 = vrot.slane %v5357, 5
      %v5472 = vrot.slane %v5471, 4
      %v5473 = vrot.slane %v5358, 5
      %v5474 = vsel %vm2263, %v5472, %v5473
      %v5475 = vrot.slane %v5473, 4
      %v5476 = vrot.slane %v5359, 5
      %v5477 = vsel %vm2263, %v5475, %v5476
      %v5478 = vrot.slane %v5360, 5
      %v5479 = vrot.slane %v5478, 4
      %v5480 = vrot.slane %v5361, 5
      %v5481 = vsel %vm2263, %v5479, %v5480
      %v5482 = vrot.slane %v5480, 4
      %v5483 = vrot.slane %v5362, 5
      %v5484 = vsel %vm2263, %v5482, %v5483
      %v5485 = vrot.slane %v5363, 5
      %v5486 = vrot.slane %v5485, 4
      %v5487 = vrot.slane %v5364, 5
      %v5488 = vsel %vm2263, %v5486, %v5487
      %v5489 = vrot.slane %v5487, 4
      %v5490 = vrot.slane %v5365, 5
      %v5491 = vsel %vm2263, %v5489, %v5490
      %v5492 = vrot.slane %v5366, 5
      %v5493 = vrot.slane %v5492, 4
      %v5494 = vrot.slane %v5367, 5
      %v5495 = vsel %vm2263, %v5493, %v5494
      %v5496 = vrot.slane %v5494, 4
      %v5497 = vrot.slane %v5368, 5
      %v5498 = vsel %vm2263, %v5496, %v5497
      %v5499 = vrot.slane %v5369, 5
      %v5500 = vrot.slane %v5499, 4
      %v5501 = vrot.slane %v5370, 5
      %v5502 = vsel %vm2263, %v5500, %v5501
      %v5503 = vrot.slane %v5501, 4
      %v5504 = vrot.slane %v5371, 5
      %v5505 = vsel %vm2263, %v5503, %v5504
      %v5506 = vrot.slane %v5372, 5
      %v5507 = vrot.slane %v5506, 4
      %v5508 = vrot.slane %v5373, 5
      %v5509 = vsel %vm2263, %v5507, %v5508
      %v5510 = vrot.slane %v5508, 4
      %v5511 = vrot.slane %v5374, 5
      %v5512 = vsel %vm2263, %v5510, %v5511
      %v5513 = vrot.slane %v5375, 5
      %v5514 = vrot.slane %v5513, 4
      %v5515 = vrot.slane %v5376, 5
      %v5516 = vsel %vm2263, %v5514, %v5515
      %v5517 = vrot.slane %v5515, 4
      %v5518 = vrot.slane %v5377, 5
      %v5519 = vsel %vm2263, %v5517, %v5518
      %v5520 = vrot.slane %v5378, 5
      %v5521 = vrot.slane %v5520, 4
      %v5522 = vrot.slane %v5379, 5
      %v5523 = vsel %vm2263, %v5521, %v5522
      %v5524 = vrot.slane %v5522, 4
      %v5525 = vrot.slane %v5380, 5
      %v5526 = vsel %vm2263, %v5524, %v5525
      %v5527 = vrot.slane %v5381, 5
      %v5528 = vrot.slane %v5527, 4
      %v5529 = vrot.slane %v5382, 5
      %v5530 = vsel %vm2263, %v5528, %v5529
      %v5531 = vrot.slane %v5529, 4
      %v5532 = vrot.slane %v5383, 5
      %v5533 = vsel %vm2263, %v5531, %v5532
      %v5534 = vrot.slane %v5384, 5
      %v5535 = vrot.slane %v5534, 4
      %v5536 = vrot.slane %v5385, 5
      %v5537 = vsel %vm2263, %v5535, %v5536
      %v5538 = vrot.slane %v5536, 4
      %v5539 = vrot.slane %v5386, 5
      %v5540 = vsel %vm2263, %v5538, %v5539
      %v5541 = vrot.slane %v5387, 5
      %v5542 = vrot.slane %v5541, 4
      %v5543 = vrot.slane %v5388, 5
      %v5544 = vsel %vm2263, %v5542, %v5543
      %v5545 = vrot.slane %v5543, 4
      %v5546 = vrot.slane %v5389, 5
      %v5547 = vsel %vm2263, %v5545, %v5546
      %v5548 = vrot.slane %v5390, 5
      %v5549 = vrot.slane %v5548, 4
      %v5550 = vrot.slane %v5391, 5
      %v5551 = vsel %vm2263, %v5549, %v5550
      %v5552 = vrot.slane %v5550, 4
      %v5553 = vrot.slane %v5392, 5
      %v5554 = vsel %vm2263, %v5552, %v5553
      %v5555 = vunpack.c.l.b16 %v5446
      %v5556 = vunpack.c.l.b16 %v5449
      %v5557 = vunpack.c.l.b16 %v5453
      %v5558 = vunpack.c.l.b16 %v5456
      %v5559 = vunpack.c.l.b16 %v5460
      %v5560 = vunpack.c.l.b16 %v5463
      %v5561 = vunpack.c.l.b16 %v5467
      %v5562 = vunpack.c.l.b16 %v5470
      %v5563 = vunpack.c.l.b16 %v5474
      %v5564 = vunpack.c.l.b16 %v5477
      %v5565 = vunpack.c.l.b16 %v5481
      %v5566 = vunpack.c.l.b16 %v5484
      %v5567 = vunpack.c.l.b16 %v5488
      %v5568 = vunpack.c.l.b16 %v5491
      %v5569 = vunpack.c.l.b16 %v5495
      %v5570 = vunpack.c.l.b16 %v5498
      %v5571 = vunpack.c.l.b16 %v5502
      %v5572 = vunpack.c.l.b16 %v5505
      %v5573 = vunpack.c.l.b16 %v5509
      %v5574 = vunpack.c.l.b16 %v5512
      %v5575 = vunpack.c.l.b16 %v5516
      %v5576 = vunpack.c.l.b16 %v5519
      %v5577 = vunpack.c.l.b16 %v5523
      %v5578 = vunpack.c.l.b16 %v5526
      %v5579 = vunpack.c.l.b16 %v5530
      %v5580 = vunpack.c.l.b16 %v5533
      %v5581 = vunpack.c.l.b16 %v5537
      %v5582 = vunpack.c.l.b16 %v5540
      %v5583 = vunpack.c.l.b16 %v5544
      %v5584 = vunpack.c.l.b16 %v5547
      %v5585 = vunpack.c.l.b16 %v5551
      %v5586 = vunpack.c.l.b16 %v5554
      %v5587 = vpack.c.b16 %v5556, %v5555
      %v5588 = vpack.c.b16 %v5558, %v5557
      %v5589 = vpack.c.b16 %v5560, %v5559
      %v5590 = vpack.c.b16 %v5562, %v5561
      %v5591 = vpack.c.b16 %v5564, %v5563
      %v5592 = vpack.c.b16 %v5566, %v5565
      %v5593 = vpack.c.b16 %v5568, %v5567
      %v5594 = vpack.c.b16 %v5570, %v5569
      %v5595 = vpack.c.b16 %v5572, %v5571
      %v5596 = vpack.c.b16 %v5574, %v5573
      %v5597 = vpack.c.b16 %v5576, %v5575
      %v5598 = vpack.c.b16 %v5578, %v5577
      %v5599 = vpack.c.b16 %v5580, %v5579
      %v5600 = vpack.c.b16 %v5582, %v5581
      %v5601 = vpack.c.b16 %v5584, %v5583
      %v5602 = vpack.c.b16 %v5586, %v5585
      %v5604 = vsel %vm1657, %v5587, 0
      %v5607 = vsel %vm1657, %v5588, 0
      %v5610 = vsel %vm1657, %v5589, 0
      %v5613 = vsel %vm1657, %v5590, 0
      %v5616 = vsel %vm1657, %v5591, 0
      %v5619 = vsel %vm1657, %v5592, 0
      %v5622 = vsel %vm1657, %v5593, 0
      %v5625 = vsel %vm1657, %v5594, 0
      %v5628 = vsel %vm1657, %v5595, 0
      %v5631 = vsel %vm1657, %v5596, 0
      %v5634 = vsel %vm1657, %v5597, 0
      %v5637 = vsel %vm1657, %v5598, 0
      %v5640 = vsel %vm1657, %v5599, 0
      %v5643 = vsel %vm1657, %v5600, 0
      %v5646 = vsel %vm1657, %v5601, 0
      %v5649 = vsel %vm1657, %v5602, 0
      %v5652 = vsel %vm1706, %v5394, 0
      %5654 = vmatprep.subr.bf16.mxu0 0
      %5655 = vmatpush1.bf16.msra.mxu0 0
      %5656 = vmatprep.subr.bf16.mxu0 0
      %5657 = vmatpush1.bf16.msra.mxu0 0
      %5658 = vmatprep.subr.bf16.mxu0 0
      %5659 = vmatpush1.bf16.msra.mxu0 0
      %5660 = vmatprep.subr.bf16.mxu0 0
      %5661 = vmatpush1.bf16.msra.mxu0 0
      %5662 = vmatprep.subr.bf16.mxu0 0
      %5663 = vmatpush1.bf16.msra.mxu0 0
      %5664 = vmatprep.subr.bf16.mxu0 0
      %5665 = vmatpush1.bf16.msra.mxu0 0
      %5666 = vmatprep.subr.bf16.mxu0 0
      %5667 = vmatpush1.bf16.msra.mxu0 0
      %5668 = vmatprep.subr.bf16.mxu0 0
      %5669 = vmatpush1.bf16.msra.mxu0 %v5652
      %5670 = vmatprep.subr.bf16.mxu0 0
      %5671 = vmatpush2.bf16.msra.mxu0 0
      %5672 = vmatprep.subr.bf16.mxu0 0
      %5673 = vmatpush2.bf16.msra.mxu0 0
      %5674 = vmatprep.subr.bf16.mxu0 0
      %5675 = vmatpush2.bf16.msra.mxu0 0
      %5676 = vmatprep.subr.bf16.mxu0 0
      %5677 = vmatpush2.bf16.msra.mxu0 0
      %5678 = vmatprep.subr.bf16.mxu0 0
      %5679 = vmatpush2.bf16.msra.mxu0 0
      %5680 = vmatprep.subr.bf16.mxu0 0
      %5681 = vmatpush2.bf16.msra.mxu0 0
      %5682 = vmatprep.subr.bf16.mxu0 0
      %5683 = vmatpush2.bf16.msra.mxu0 0
      %5684 = vmatprep.subr.bf16.mxu0 0
      %5685 = vmatpush2.bf16.msra.mxu0 0
      %5686 = vmatprep.mubr.bf16.mxu0 0
      %5687 = vmatmul.mubr.bf16.gmra.mxu0 %v5604
      %v5688 = vpop.f32.mrf.mxu0
      %v5689 = vadd.f32 0.0, %v5688
      %v5690 = vpop.f32.mrf.mxu0
      %v5691 = vpop.f32.mrf.mxu0
      %v5692 = vadd.f32 0.0, %v5691
      %v5693 = vpop.f32.mrf.mxu0
      %5694 = vmatprep.mubr.bf16.mxu0 0
      %5695 = vmatmul.mubr.bf16.gmra.mxu0 %v5607
      %v5696 = vpop.f32.mrf.mxu0
      %v5697 = vadd.f32 0.0, %v5696
      %v5698 = vpop.f32.mrf.mxu0
      %v5699 = vpop.f32.mrf.mxu0
      %v5700 = vadd.f32 0.0, %v5699
      %v5701 = vpop.f32.mrf.mxu0
      %5702 = vmatprep.mubr.bf16.mxu0 0
      %5703 = vmatmul.mubr.bf16.gmra.mxu0 %v5610
      %v5704 = vpop.f32.mrf.mxu0
      %v5705 = vadd.f32 0.0, %v5704
      %v5706 = vpop.f32.mrf.mxu0
      %v5707 = vpop.f32.mrf.mxu0
      %v5708 = vadd.f32 0.0, %v5707
      %v5709 = vpop.f32.mrf.mxu0
      %5710 = vmatprep.mubr.bf16.mxu0 0
      %5711 = vmatmul.mubr.bf16.gmra.mxu0 %v5613
      %v5712 = vpop.f32.mrf.mxu0
      %v5713 = vadd.f32 0.0, %v5712
      %v5714 = vpop.f32.mrf.mxu0
      %v5715 = vpop.f32.mrf.mxu0
      %v5716 = vadd.f32 0.0, %v5715
      %v5717 = vpop.f32.mrf.mxu0
      %5718 = vmatprep.mubr.bf16.mxu0 0
      %5719 = vmatmul.mubr.bf16.gmra.mxu0 %v5616
      %v5720 = vpop.f32.mrf.mxu0
      %v5721 = vadd.f32 0.0, %v5720
      %v5722 = vpop.f32.mrf.mxu0
      %v5723 = vpop.f32.mrf.mxu0
      %v5724 = vadd.f32 0.0, %v5723
      %v5725 = vpop.f32.mrf.mxu0
      %5726 = vmatprep.mubr.bf16.mxu0 0
      %5727 = vmatmul.mubr.bf16.gmra.mxu0 %v5619
      %v5728 = vpop.f32.mrf.mxu0
      %v5729 = vadd.f32 0.0, %v5728
      %v5730 = vpop.f32.mrf.mxu0
      %v5731 = vpop.f32.mrf.mxu0
      %v5732 = vadd.f32 0.0, %v5731
      %v5733 = vpop.f32.mrf.mxu0
      %5734 = vmatprep.mubr.bf16.mxu0 0
      %5735 = vmatmul.mubr.bf16.gmra.mxu0 %v5622
      %v5736 = vpop.f32.mrf.mxu0
      %v5737 = vadd.f32 0.0, %v5736
      %v5738 = vpop.f32.mrf.mxu0
      %v5739 = vpop.f32.mrf.mxu0
      %v5740 = vadd.f32 0.0, %v5739
      %v5741 = vpop.f32.mrf.mxu0
      %5742 = vmatprep.mubr.bf16.mxu0 0
      %5743 = vmatmul.mubr.bf16.gmra.mxu0 %v5625
      %v5744 = vpop.f32.mrf.mxu0
      %v5745 = vadd.f32 0.0, %v5744
      %v5746 = vpop.f32.mrf.mxu0
      %v5747 = vpop.f32.mrf.mxu0
      %v5748 = vadd.f32 0.0, %v5747
      %v5749 = vpop.f32.mrf.mxu0
      %5750 = vmatprep.mubr.bf16.mxu0 0
      %5751 = vmatmul.mubr.bf16.gmra.mxu0 %v5628
      %v5752 = vpop.f32.mrf.mxu0
      %v5753 = vadd.f32 0.0, %v5752
      %v5754 = vpop.f32.mrf.mxu0
      %v5755 = vpop.f32.mrf.mxu0
      %v5756 = vadd.f32 0.0, %v5755
      %v5757 = vpop.f32.mrf.mxu0
      %5758 = vmatprep.mubr.bf16.mxu0 0
      %5759 = vmatmul.mubr.bf16.gmra.mxu0 %v5631
      %v5760 = vpop.f32.mrf.mxu0
      %v5761 = vadd.f32 0.0, %v5760
      %v5762 = vpop.f32.mrf.mxu0
      %v5763 = vpop.f32.mrf.mxu0
      %v5764 = vadd.f32 0.0, %v5763
      %v5765 = vpop.f32.mrf.mxu0
      %5766 = vmatprep.mubr.bf16.mxu0 0
      %5767 = vmatmul.mubr.bf16.gmra.mxu0 %v5634
      %v5768 = vpop.f32.mrf.mxu0
      %v5769 = vadd.f32 0.0, %v5768
      %v5770 = vpop.f32.mrf.mxu0
      %v5771 = vpop.f32.mrf.mxu0
      %v5772 = vadd.f32 0.0, %v5771
      %v5773 = vpop.f32.mrf.mxu0
      %5774 = vmatprep.mubr.bf16.mxu0 0
      %5775 = vmatmul.mubr.bf16.gmra.mxu0 %v5637
      %v5776 = vpop.f32.mrf.mxu0
      %v5777 = vadd.f32 0.0, %v5776
      %v5778 = vpop.f32.mrf.mxu0
      %v5779 = vpop.f32.mrf.mxu0
      %v5780 = vadd.f32 0.0, %v5779
      %v5781 = vpop.f32.mrf.mxu0
      %5782 = vmatprep.mubr.bf16.mxu0 0
      %5783 = vmatmul.mubr.bf16.gmra.mxu0 %v5640
      %v5784 = vpop.f32.mrf.mxu0
      %v5785 = vadd.f32 0.0, %v5784
      %v5786 = vpop.f32.mrf.mxu0
      %v5787 = vpop.f32.mrf.mxu0
      %v5788 = vadd.f32 0.0, %v5787
      %v5789 = vpop.f32.mrf.mxu0
      %5790 = vmatprep.mubr.bf16.mxu0 0
      %5791 = vmatmul.mubr.bf16.gmra.mxu0 %v5643
      %v5792 = vpop.f32.mrf.mxu0
      %v5793 = vadd.f32 0.0, %v5792
      %v5794 = vpop.f32.mrf.mxu0
      %v5795 = vpop.f32.mrf.mxu0
      %v5796 = vadd.f32 0.0, %v5795
      %v5797 = vpop.f32.mrf.mxu0
      %5798 = vmatprep.mubr.bf16.mxu0 0
      %5799 = vmatmul.mubr.bf16.gmra.mxu0 %v5646
      %v5800 = vpop.f32.mrf.mxu0
      %v5801 = vadd.f32 0.0, %v5800
      %v5802 = vpop.f32.mrf.mxu0
      %v5803 = vpop.f32.mrf.mxu0
      %v5804 = vadd.f32 0.0, %v5803
      %v5805 = vpop.f32.mrf.mxu0
      %5806 = vmatprep.mubr.bf16.mxu0 0
      %5807 = vmatmul.mubr.bf16.gmra.mxu0 %v5649
      %v5808 = vpop.f32.mrf.mxu0
      %v5809 = vadd.f32 0.0, %v5808
      %v5810 = vpop.f32.mrf.mxu0
      %v5811 = vpop.f32.mrf.mxu0
      %v5812 = vadd.f32 0.0, %v5811
      %v5813 = vpop.f32.mrf.mxu0
      %5814 = vdwg.mxu0
      %v5815 = vadd.f32 %v5219, %v5689
      %v5816 = vadd.f32 %v5222, %v5692
      %v5817 = vadd.f32 %v5227, %v5697
      %v5818 = vadd.f32 %v5230, %v5700
      %v5819 = vadd.f32 %v5235, %v5705
      %v5820 = vadd.f32 %v5238, %v5708
      %v5821 = vadd.f32 %v5243, %v5713
      %v5822 = vadd.f32 %v5246, %v5716
      %v5823 = vadd.f32 %v5251, %v5721
      %v5824 = vadd.f32 %v5254, %v5724
      %v5825 = vadd.f32 %v5259, %v5729
      %v5826 = vadd.f32 %v5262, %v5732
      %v5827 = vadd.f32 %v5267, %v5737
      %v5828 = vadd.f32 %v5270, %v5740
      %v5829 = vadd.f32 %v5275, %v5745
      %v5830 = vadd.f32 %v5278, %v5748
      %v5831 = vadd.f32 %v5283, %v5753
      %v5832 = vadd.f32 %v5286, %v5756
      %v5833 = vadd.f32 %v5291, %v5761
      %v5834 = vadd.f32 %v5294, %v5764
      %v5835 = vadd.f32 %v5299, %v5769
      %v5836 = vadd.f32 %v5302, %v5772
      %v5837 = vadd.f32 %v5307, %v5777
      %v5838 = vadd.f32 %v5310, %v5780
      %v5839 = vadd.f32 %v5315, %v5785
      %v5840 = vadd.f32 %v5318, %v5788
      %v5841 = vadd.f32 %v5323, %v5793
      %v5842 = vadd.f32 %v5326, %v5796
      %v5843 = vadd.f32 %v5331, %v5801
      %v5844 = vadd.f32 %v5334, %v5804
      %v5845 = vadd.f32 %v5339, %v5809
      %v5846 = vadd.f32 %v5342, %v5812
      %s5847 = scalar_lea.vmem [#allocation2], 24
      %v5848 = vld [vmem:[%s5847] sm:$0xf]
      %v5849 = vld [vmem:[%s5847 + $0x4] sm:$0xf]
      %v5850 = vld [vmem:[%s5847 + $0xc] sm:$0xf]
      %v5851 = vld [vmem:[%s5847 + $0x10] sm:$0xf]
      %v5852 = vld [vmem:[%s5847 + $0x18] sm:$0xf]
      %v5853 = vld [vmem:[%s5847 + $0x1c] sm:$0xf]
      %v5854 = vld [vmem:[%s5847 + $0x24] sm:$0xf]
      %v5855 = vld [vmem:[%s5847 + $0x28] sm:$0xf]
      %v5856 = vld [vmem:[%s5847 + $0x30] sm:$0xf]
      %v5857 = vld [vmem:[%s5847 + $0x34] sm:$0xf]
      %v5858 = vld [vmem:[%s5847 + $0x3c] sm:$0xf]
      %v5859 = vld [vmem:[%s5847 + $0x40] sm:$0xf]
      %v5860 = vld [vmem:[%s5847 + $0x48] sm:$0xf]
      %v5861 = vld [vmem:[%s5847 + $0x4c] sm:$0xf]
      %v5862 = vld [vmem:[%s5847 + $0x54] sm:$0xf]
      %v5863 = vld [vmem:[%s5847 + $0x58] sm:$0xf]
      %v5864 = vld [vmem:[%s5847 + $0x60] sm:$0xf]
      %v5865 = vld [vmem:[%s5847 + $0x64] sm:$0xf]
      %v5866 = vld [vmem:[%s5847 + $0x6c] sm:$0xf]
      %v5867 = vld [vmem:[%s5847 + $0x70] sm:$0xf]
      %v5868 = vld [vmem:[%s5847 + $0x78] sm:$0xf]
      %v5869 = vld [vmem:[%s5847 + $0x7c] sm:$0xf]
      %v5870 = vld [vmem:[%s5847 + $0x84] sm:$0xf]
      %v5871 = vld [vmem:[%s5847 + $0x88] sm:$0xf]
      %v5872 = vld [vmem:[%s5847 + $0x90] sm:$0xf]
      %v5873 = vld [vmem:[%s5847 + $0x94] sm:$0xf]
      %v5874 = vld [vmem:[%s5847 + $0x9c] sm:$0xf]
      %v5875 = vld [vmem:[%s5847 + $0xa0] sm:$0xf]
      %v5876 = vld [vmem:[%s5847 + $0xa8] sm:$0xf]
      %v5877 = vld [vmem:[%s5847 + $0xac] sm:$0xf]
      %v5878 = vld [vmem:[%s5847 + $0xb4] sm:$0xf]
      %v5879 = vld [vmem:[%s5847 + $0xb8] sm:$0xf]
      %s5880 = scalar_lea.vmem %s3, 18
      %v5881 = vld [vmem:[%s5880] sm:$0x3]
      %v5914 = vunpack.c.l.b16 %v5848
      %v5915 = vunpack.c.l.b16 %v5849
      %v5916 = vunpack.c.l.b16 %v5850
      %v5917 = vunpack.c.l.b16 %v5851
      %v5918 = vunpack.c.l.b16 %v5852
      %v5919 = vunpack.c.l.b16 %v5853
      %v5920 = vunpack.c.l.b16 %v5854
      %v5921 = vunpack.c.l.b16 %v5855
      %v5922 = vunpack.c.l.b16 %v5856
      %v5923 = vunpack.c.l.b16 %v5857
      %v5924 = vunpack.c.l.b16 %v5858
      %v5925 = vunpack.c.l.b16 %v5859
      %v5926 = vunpack.c.l.b16 %v5860
      %v5927 = vunpack.c.l.b16 %v5861
      %v5928 = vunpack.c.l.b16 %v5862
      %v5929 = vunpack.c.l.b16 %v5863
      %v5930 = vunpack.c.l.b16 %v5864
      %v5931 = vunpack.c.l.b16 %v5865
      %v5932 = vunpack.c.l.b16 %v5866
      %v5933 = vunpack.c.l.b16 %v5867
      %v5934 = vunpack.c.l.b16 %v5868
      %v5935 = vunpack.c.l.b16 %v5869
      %v5936 = vunpack.c.l.b16 %v5870
      %v5937 = vunpack.c.l.b16 %v5871
      %v5938 = vunpack.c.l.b16 %v5872
      %v5939 = vunpack.c.l.b16 %v5873
      %v5940 = vunpack.c.l.b16 %v5874
      %v5941 = vunpack.c.l.b16 %v5875
      %v5942 = vunpack.c.l.b16 %v5876
      %v5943 = vunpack.c.l.b16 %v5877
      %v5944 = vunpack.c.l.b16 %v5878
      %v5945 = vunpack.c.l.b16 %v5879
      %v5946 = vpack.c.b16 %v5915, %v5914
      %v5947 = vpack.c.b16 %v5917, %v5916
      %v5948 = vpack.c.b16 %v5919, %v5918
      %v5949 = vpack.c.b16 %v5921, %v5920
      %v5950 = vpack.c.b16 %v5923, %v5922
      %v5951 = vpack.c.b16 %v5925, %v5924
      %v5952 = vpack.c.b16 %v5927, %v5926
      %v5953 = vpack.c.b16 %v5929, %v5928
      %v5954 = vpack.c.b16 %v5931, %v5930
      %v5955 = vpack.c.b16 %v5933, %v5932
      %v5956 = vpack.c.b16 %v5935, %v5934
      %v5957 = vpack.c.b16 %v5937, %v5936
      %v5958 = vpack.c.b16 %v5939, %v5938
      %v5959 = vpack.c.b16 %v5941, %v5940
      %v5960 = vpack.c.b16 %v5943, %v5942
      %v5961 = vpack.c.b16 %v5945, %v5944
      %v5963 = vsel %vm1657, %v5946, 0
      %v5966 = vsel %vm1657, %v5947, 0
      %v5969 = vsel %vm1657, %v5948, 0
      %v5972 = vsel %vm1657, %v5949, 0
      %v5975 = vsel %vm1657, %v5950, 0
      %v5978 = vsel %vm1657, %v5951, 0
      %v5981 = vsel %vm1657, %v5952, 0
      %v5984 = vsel %vm1657, %v5953, 0
      %v5987 = vsel %vm1657, %v5954, 0
      %v5990 = vsel %vm1657, %v5955, 0
      %v5993 = vsel %vm1657, %v5956, 0
      %v5996 = vsel %vm1657, %v5957, 0
      %v5999 = vsel %vm1657, %v5958, 0
      %v6002 = vsel %vm1657, %v5959, 0
      %v6005 = vsel %vm1657, %v5960, 0
      %v6008 = vsel %vm1657, %v5961, 0
      %v6011 = vsel %vm1706, %v5881, 0
      %6013 = vmatprep.subr.bf16.mxu0 0
      %6014 = vmatpush1.bf16.msra.mxu0 0
      %6015 = vmatprep.subr.bf16.mxu0 0
      %6016 = vmatpush1.bf16.msra.mxu0 0
      %6017 = vmatprep.subr.bf16.mxu0 0
      %6018 = vmatpush1.bf16.msra.mxu0 0
      %6019 = vmatprep.subr.bf16.mxu0 0
      %6020 = vmatpush1.bf16.msra.mxu0 0
      %6021 = vmatprep.subr.bf16.mxu0 0
      %6022 = vmatpush1.bf16.msra.mxu0 0
      %6023 = vmatprep.subr.bf16.mxu0 0
      %6024 = vmatpush1.bf16.msra.mxu0 0
      %6025 = vmatprep.subr.bf16.mxu0 0
      %6026 = vmatpush1.bf16.msra.mxu0 0
      %6027 = vmatprep.subr.bf16.mxu0 0
      %6028 = vmatpush1.bf16.msra.mxu0 %v6011
      %6029 = vmatprep.subr.bf16.mxu0 0
      %6030 = vmatpush2.bf16.msra.mxu0 0
      %6031 = vmatprep.subr.bf16.mxu0 0
      %6032 = vmatpush2.bf16.msra.mxu0 0
      %6033 = vmatprep.subr.bf16.mxu0 0
      %6034 = vmatpush2.bf16.msra.mxu0 0
      %6035 = vmatprep.subr.bf16.mxu0 0
      %6036 = vmatpush2.bf16.msra.mxu0 0
      %6037 = vmatprep.subr.bf16.mxu0 0
      %6038 = vmatpush2.bf16.msra.mxu0 0
      %6039 = vmatprep.subr.bf16.mxu0 0
      %6040 = vmatpush2.bf16.msra.mxu0 0
      %6041 = vmatprep.subr.bf16.mxu0 0
      %6042 = vmatpush2.bf16.msra.mxu0 0
      %6043 = vmatprep.subr.bf16.mxu0 0
      %6044 = vmatpush2.bf16.msra.mxu0 0
      %6045 = vmatprep.mubr.bf16.mxu0 0
      %6046 = vmatmul.mubr.bf16.gmra.mxu0 %v5963
      %v6047 = vpop.f32.mrf.mxu0
      %v6048 = vadd.f32 0.0, %v6047
      %v6049 = vpop.f32.mrf.mxu0
      %v6050 = vpop.f32.mrf.mxu0
      %v6051 = vadd.f32 0.0, %v6050
      %v6052 = vpop.f32.mrf.mxu0
      %6053 = vmatprep.mubr.bf16.mxu0 0
      %6054 = vmatmul.mubr.bf16.gmra.mxu0 %v5966
      %v6055 = vpop.f32.mrf.mxu0
      %v6056 = vadd.f32 0.0, %v6055
      %v6057 = vpop.f32.mrf.mxu0
      %v6058 = vpop.f32.mrf.mxu0
      %v6059 = vadd.f32 0.0, %v6058
      %v6060 = vpop.f32.mrf.mxu0
      %6061 = vmatprep.mubr.bf16.mxu0 0
      %6062 = vmatmul.mubr.bf16.gmra.mxu0 %v5969
      %v6063 = vpop.f32.mrf.mxu0
      %v6064 = vadd.f32 0.0, %v6063
      %v6065 = vpop.f32.mrf.mxu0
      %v6066 = vpop.f32.mrf.mxu0
      %v6067 = vadd.f32 0.0, %v6066
      %v6068 = vpop.f32.mrf.mxu0
      %6069 = vmatprep.mubr.bf16.mxu0 0
      %6070 = vmatmul.mubr.bf16.gmra.mxu0 %v5972
      %v6071 = vpop.f32.mrf.mxu0
      %v6072 = vadd.f32 0.0, %v6071
      %v6073 = vpop.f32.mrf.mxu0
      %v6074 = vpop.f32.mrf.mxu0
      %v6075 = vadd.f32 0.0, %v6074
      %v6076 = vpop.f32.mrf.mxu0
      %6077 = vmatprep.mubr.bf16.mxu0 0
      %6078 = vmatmul.mubr.bf16.gmra.mxu0 %v5975
      %v6079 = vpop.f32.mrf.mxu0
      %v6080 = vadd.f32 0.0, %v6079
      %v6081 = vpop.f32.mrf.mxu0
      %v6082 = vpop.f32.mrf.mxu0
      %v6083 = vadd.f32 0.0, %v6082
      %v6084 = vpop.f32.mrf.mxu0
      %6085 = vmatprep.mubr.bf16.mxu0 0
      %6086 = vmatmul.mubr.bf16.gmra.mxu0 %v5978
      %v6087 = vpop.f32.mrf.mxu0
      %v6088 = vadd.f32 0.0, %v6087
      %v6089 = vpop.f32.mrf.mxu0
      %v6090 = vpop.f32.mrf.mxu0
      %v6091 = vadd.f32 0.0, %v6090
      %v6092 = vpop.f32.mrf.mxu0
      %6093 = vmatprep.mubr.bf16.mxu0 0
      %6094 = vmatmul.mubr.bf16.gmra.mxu0 %v5981
      %v6095 = vpop.f32.mrf.mxu0
      %v6096 = vadd.f32 0.0, %v6095
      %v6097 = vpop.f32.mrf.mxu0
      %v6098 = vpop.f32.mrf.mxu0
      %v6099 = vadd.f32 0.0, %v6098
      %v6100 = vpop.f32.mrf.mxu0
      %6101 = vmatprep.mubr.bf16.mxu0 0
      %6102 = vmatmul.mubr.bf16.gmra.mxu0 %v5984
      %v6103 = vpop.f32.mrf.mxu0
      %v6104 = vadd.f32 0.0, %v6103
      %v6105 = vpop.f32.mrf.mxu0
      %v6106 = vpop.f32.mrf.mxu0
      %v6107 = vadd.f32 0.0, %v6106
      %v6108 = vpop.f32.mrf.mxu0
      %6109 = vmatprep.mubr.bf16.mxu0 0
      %6110 = vmatmul.mubr.bf16.gmra.mxu0 %v5987
      %v6111 = vpop.f32.mrf.mxu0
      %v6112 = vadd.f32 0.0, %v6111
      %v6113 = vpop.f32.mrf.mxu0
      %v6114 = vpop.f32.mrf.mxu0
      %v6115 = vadd.f32 0.0, %v6114
      %v6116 = vpop.f32.mrf.mxu0
      %6117 = vmatprep.mubr.bf16.mxu0 0
      %6118 = vmatmul.mubr.bf16.gmra.mxu0 %v5990
      %v6119 = vpop.f32.mrf.mxu0
      %v6120 = vadd.f32 0.0, %v6119
      %v6121 = vpop.f32.mrf.mxu0
      %v6122 = vpop.f32.mrf.mxu0
      %v6123 = vadd.f32 0.0, %v6122
      %v6124 = vpop.f32.mrf.mxu0
      %6125 = vmatprep.mubr.bf16.mxu0 0
      %6126 = vmatmul.mubr.bf16.gmra.mxu0 %v5993
      %v6127 = vpop.f32.mrf.mxu0
      %v6128 = vadd.f32 0.0, %v6127
      %v6129 = vpop.f32.mrf.mxu0
      %v6130 = vpop.f32.mrf.mxu0
      %v6131 = vadd.f32 0.0, %v6130
      %v6132 = vpop.f32.mrf.mxu0
      %6133 = vmatprep.mubr.bf16.mxu0 0
      %6134 = vmatmul.mubr.bf16.gmra.mxu0 %v5996
      %v6135 = vpop.f32.mrf.mxu0
      %v6136 = vadd.f32 0.0, %v6135
      %v6137 = vpop.f32.mrf.mxu0
      %v6138 = vpop.f32.mrf.mxu0
      %v6139 = vadd.f32 0.0, %v6138
      %v6140 = vpop.f32.mrf.mxu0
      %6141 = vmatprep.mubr.bf16.mxu0 0
      %6142 = vmatmul.mubr.bf16.gmra.mxu0 %v5999
      %v6143 = vpop.f32.mrf.mxu0
      %v6144 = vadd.f32 0.0, %v6143
      %v6145 = vpop.f32.mrf.mxu0
      %v6146 = vpop.f32.mrf.mxu0
      %v6147 = vadd.f32 0.0, %v6146
      %v6148 = vpop.f32.mrf.mxu0
      %6149 = vmatprep.mubr.bf16.mxu0 0
      %6150 = vmatmul.mubr.bf16.gmra.mxu0 %v6002
      %v6151 = vpop.f32.mrf.mxu0
      %v6152 = vadd.f32 0.0, %v6151
      %v6153 = vpop.f32.mrf.mxu0
      %v6154 = vpop.f32.mrf.mxu0
      %v6155 = vadd.f32 0.0, %v6154
      %v6156 = vpop.f32.mrf.mxu0
      %6157 = vmatprep.mubr.bf16.mxu0 0
      %6158 = vmatmul.mubr.bf16.gmra.mxu0 %v6005
      %v6159 = vpop.f32.mrf.mxu0
      %v6160 = vadd.f32 0.0, %v6159
      %v6161 = vpop.f32.mrf.mxu0
      %v6162 = vpop.f32.mrf.mxu0
      %v6163 = vadd.f32 0.0, %v6162
      %v6164 = vpop.f32.mrf.mxu0
      %6165 = vmatprep.mubr.bf16.mxu0 0
      %6166 = vmatmul.mubr.bf16.gmra.mxu0 %v6008
      %v6167 = vpop.f32.mrf.mxu0
      %v6168 = vadd.f32 0.0, %v6167
      %v6169 = vpop.f32.mrf.mxu0
      %v6170 = vpop.f32.mrf.mxu0
      %v6171 = vadd.f32 0.0, %v6170
      %v6172 = vpop.f32.mrf.mxu0
      %6173 = vdwg.mxu0
      %v6174 = vadd.f32 %v5815, %v6048
      %v6175 = vadd.f32 %v5816, %v6051
      %v6176 = vadd.f32 %v5817, %v6056
      %v6177 = vadd.f32 %v5818, %v6059
      %v6178 = vadd.f32 %v5819, %v6064
      %v6179 = vadd.f32 %v5820, %v6067
      %v6180 = vadd.f32 %v5821, %v6072
      %v6181 = vadd.f32 %v5822, %v6075
      %v6182 = vadd.f32 %v5823, %v6080
      %v6183 = vadd.f32 %v5824, %v6083
      %v6184 = vadd.f32 %v5825, %v6088
      %v6185 = vadd.f32 %v5826, %v6091
      %v6186 = vadd.f32 %v5827, %v6096
      %v6187 = vadd.f32 %v5828, %v6099
      %v6188 = vadd.f32 %v5829, %v6104
      %v6189 = vadd.f32 %v5830, %v6107
      %v6190 = vadd.f32 %v5831, %v6112
      %v6191 = vadd.f32 %v5832, %v6115
      %v6192 = vadd.f32 %v5833, %v6120
      %v6193 = vadd.f32 %v5834, %v6123
      %v6194 = vadd.f32 %v5835, %v6128
      %v6195 = vadd.f32 %v5836, %v6131
      %v6196 = vadd.f32 %v5837, %v6136
      %v6197 = vadd.f32 %v5838, %v6139
      %v6198 = vadd.f32 %v5839, %v6144
      %v6199 = vadd.f32 %v5840, %v6147
      %v6200 = vadd.f32 %v5841, %v6152
      %v6201 = vadd.f32 %v5842, %v6155
      %v6202 = vadd.f32 %v5843, %v6160
      %v6203 = vadd.f32 %v5844, %v6163
      %v6204 = vadd.f32 %v5845, %v6168
      %v6205 = vadd.f32 %v5846, %v6171
      %v6206 = vld [vmem:[%s5847] sm:$0xf]
      %v6207 = vld [vmem:[%s5847 + $0x4] sm:$0xf]
      %v6208 = vld [vmem:[%s5847 + $0x8] sm:$0x1]
      %v6209 = vld [vmem:[%s5847 + $0xc] sm:$0xf]
      %v6210 = vld [vmem:[%s5847 + $0x10] sm:$0xf]
      %v6211 = vld [vmem:[%s5847 + $0x14] sm:$0x1]
      %v6212 = vld [vmem:[%s5847 + $0x18] sm:$0xf]
      %v6213 = vld [vmem:[%s5847 + $0x1c] sm:$0xf]
      %v6214 = vld [vmem:[%s5847 + $0x20] sm:$0x1]
      %v6215 = vld [vmem:[%s5847 + $0x24] sm:$0xf]
      %v6216 = vld [vmem:[%s5847 + $0x28] sm:$0xf]
      %v6217 = vld [vmem:[%s5847 + $0x2c] sm:$0x1]
      %v6218 = vld [vmem:[%s5847 + $0x30] sm:$0xf]
      %v6219 = vld [vmem:[%s5847 + $0x34] sm:$0xf]
      %v6220 = vld [vmem:[%s5847 + $0x38] sm:$0x1]
      %v6221 = vld [vmem:[%s5847 + $0x3c] sm:$0xf]
      %v6222 = vld [vmem:[%s5847 + $0x40] sm:$0xf]
      %v6223 = vld [vmem:[%s5847 + $0x44] sm:$0x1]
      %v6224 = vld [vmem:[%s5847 + $0x48] sm:$0xf]
      %v6225 = vld [vmem:[%s5847 + $0x4c] sm:$0xf]
      %v6226 = vld [vmem:[%s5847 + $0x50] sm:$0x1]
      %v6227 = vld [vmem:[%s5847 + $0x54] sm:$0xf]
      %v6228 = vld [vmem:[%s5847 + $0x58] sm:$0xf]
      %v6229 = vld [vmem:[%s5847 + $0x5c] sm:$0x1]
      %v6230 = vld [vmem:[%s5847 + $0x60] sm:$0xf]
      %v6231 = vld [vmem:[%s5847 + $0x64] sm:$0xf]
      %v6232 = vld [vmem:[%s5847 + $0x68] sm:$0x1]
      %v6233 = vld [vmem:[%s5847 + $0x6c] sm:$0xf]
      %v6234 = vld [vmem:[%s5847 + $0x70] sm:$0xf]
      %v6235 = vld [vmem:[%s5847 + $0x74] sm:$0x1]
      %v6236 = vld [vmem:[%s5847 + $0x78] sm:$0xf]
      %v6237 = vld [vmem:[%s5847 + $0x7c] sm:$0xf]
      %v6238 = vld [vmem:[%s5847 + $0x80] sm:$0x1]
      %v6239 = vld [vmem:[%s5847 + $0x84] sm:$0xf]
      %v6240 = vld [vmem:[%s5847 + $0x88] sm:$0xf]
      %v6241 = vld [vmem:[%s5847 + $0x8c] sm:$0x1]
      %v6242 = vld [vmem:[%s5847 + $0x90] sm:$0xf]
      %v6243 = vld [vmem:[%s5847 + $0x94] sm:$0xf]
      %v6244 = vld [vmem:[%s5847 + $0x98] sm:$0x1]
      %v6245 = vld [vmem:[%s5847 + $0x9c] sm:$0xf]
      %v6246 = vld [vmem:[%s5847 + $0xa0] sm:$0xf]
      %v6247 = vld [vmem:[%s5847 + $0xa4] sm:$0x1]
      %v6248 = vld [vmem:[%s5847 + $0xa8] sm:$0xf]
      %v6249 = vld [vmem:[%s5847 + $0xac] sm:$0xf]
      %v6250 = vld [vmem:[%s5847 + $0xb0] sm:$0x1]
      %v6251 = vld [vmem:[%s5847 + $0xb4] sm:$0xf]
      %v6252 = vld [vmem:[%s5847 + $0xb8] sm:$0xf]
      %v6253 = vld [vmem:[%s5847 + $0xbc] sm:$0x1]
      %s6254 = scalar_lea.vmem %s3, 20
      %v6255 = vld [vmem:[%s6254] sm:$0x3]
      %v6257 = vshrl.u32 %v6206, 16
      %v6259 = vrot.slane %v6257, 4
      %v6260 = vshll.u32 %v6206, 16
      %v6262 = vrot.slane %v6260, 5
      %v6263 = vor.u32 %v6259, %v6262
      %v6264 = vrot.slane %v6263, 4
      %v6266 = vshll.u32 %v6207, 16
      %v6268 = vrot.slane %v6266, 5
      %v6269 = vsel %vm1224, %v6264, %v6268
      %v6270 = vshrl.u32 %v6207, 16
      %v6272 = vrot.slane %v6270, 4
      %v6273 = vor.u32 %v6272, %v6268
      %v6274 = vrot.slane %v6273, 4
      %v6276 = vshll.u32 %v6208, 16
      %v6278 = vrot.slane %v6276, 5
      %v6279 = vsel %vm1224, %v6274, %v6278
      %v6281 = vshrl.u32 %v6209, 16
      %v6283 = vrot.slane %v6281, 4
      %v6284 = vshll.u32 %v6209, 16
      %v6286 = vrot.slane %v6284, 5
      %v6287 = vor.u32 %v6283, %v6286
      %v6288 = vrot.slane %v6287, 4
      %v6290 = vshll.u32 %v6210, 16
      %v6292 = vrot.slane %v6290, 5
      %v6293 = vsel %vm1224, %v6288, %v6292
      %v6294 = vshrl.u32 %v6210, 16
      %v6296 = vrot.slane %v6294, 4
      %v6297 = vor.u32 %v6296, %v6292
      %v6298 = vrot.slane %v6297, 4
      %v6300 = vshll.u32 %v6211, 16
      %v6302 = vrot.slane %v6300, 5
      %v6303 = vsel %vm1224, %v6298, %v6302
      %v6305 = vshrl.u32 %v6212, 16
      %v6307 = vrot.slane %v6305, 4
      %v6308 = vshll.u32 %v6212, 16
      %v6310 = vrot.slane %v6308, 5
      %v6311 = vor.u32 %v6307, %v6310
      %v6312 = vrot.slane %v6311, 4
      %v6314 = vshll.u32 %v6213, 16
      %v6316 = vrot.slane %v6314, 5
      %v6317 = vsel %vm1224, %v6312, %v6316
      %v6318 = vshrl.u32 %v6213, 16
      %v6320 = vrot.slane %v6318, 4
      %v6321 = vor.u32 %v6320, %v6316
      %v6322 = vrot.slane %v6321, 4
      %v6324 = vshll.u32 %v6214, 16
      %v6326 = vrot.slane %v6324, 5
      %v6327 = vsel %vm1224, %v6322, %v6326
      %v6329 = vshrl.u32 %v6215, 16
      %v6331 = vrot.slane %v6329, 4
      %v6332 = vshll.u32 %v6215, 16
      %v6334 = vrot.slane %v6332, 5
      %v6335 = vor.u32 %v6331, %v6334
      %v6336 = vrot.slane %v6335, 4
      %v6338 = vshll.u32 %v6216, 16
      %v6340 = vrot.slane %v6338, 5
      %v6341 = vsel %vm1224, %v6336, %v6340
      %v6342 = vshrl.u32 %v6216, 16
      %v6344 = vrot.slane %v6342, 4
      %v6345 = vor.u32 %v6344, %v6340
      %v6346 = vrot.slane %v6345, 4
      %v6348 = vshll.u32 %v6217, 16
      %v6350 = vrot.slane %v6348, 5
      %v6351 = vsel %vm1224, %v6346, %v6350
      %v6353 = vshrl.u32 %v6218, 16
      %v6355 = vrot.slane %v6353, 4
      %v6356 = vshll.u32 %v6218, 16
      %v6358 = vrot.slane %v6356, 5
      %v6359 = vor.u32 %v6355, %v6358
      %v6360 = vrot.slane %v6359, 4
      %v6362 = vshll.u32 %v6219, 16
      %v6364 = vrot.slane %v6362, 5
      %v6365 = vsel %vm1224, %v6360, %v6364
      %v6366 = vshrl.u32 %v6219, 16
      %v6368 = vrot.slane %v6366, 4
      %v6369 = vor.u32 %v6368, %v6364
      %v6370 = vrot.slane %v6369, 4
      %v6372 = vshll.u32 %v6220, 16
      %v6374 = vrot.slane %v6372, 5
      %v6375 = vsel %vm1224, %v6370, %v6374
      %v6377 = vshrl.u32 %v6221, 16
      %v6379 = vrot.slane %v6377, 4
      %v6380 = vshll.u32 %v6221, 16
      %v6382 = vrot.slane %v6380, 5
      %v6383 = vor.u32 %v6379, %v6382
      %v6384 = vrot.slane %v6383, 4
      %v6386 = vshll.u32 %v6222, 16
      %v6388 = vrot.slane %v6386, 5
      %v6389 = vsel %vm1224, %v6384, %v6388
      %v6390 = vshrl.u32 %v6222, 16
      %v6392 = vrot.slane %v6390, 4
      %v6393 = vor.u32 %v6392, %v6388
      %v6394 = vrot.slane %v6393, 4
      %v6396 = vshll.u32 %v6223, 16
      %v6398 = vrot.slane %v6396, 5
      %v6399 = vsel %vm1224, %v6394, %v6398
      %v6401 = vshrl.u32 %v6224, 16
      %v6403 = vrot.slane %v6401, 4
      %v6404 = vshll.u32 %v6224, 16
      %v6406 = vrot.slane %v6404, 5
      %v6407 = vor.u32 %v6403, %v6406
      %v6408 = vrot.slane %v6407, 4
      %v6410 = vshll.u32 %v6225, 16
      %v6412 = vrot.slane %v6410, 5
      %v6413 = vsel %vm1224, %v6408, %v6412
      %v6414 = vshrl.u32 %v6225, 16
      %v6416 = vrot.slane %v6414, 4
      %v6417 = vor.u32 %v6416, %v6412
      %v6418 = vrot.slane %v6417, 4
      %v6420 = vshll.u32 %v6226, 16
      %v6422 = vrot.slane %v6420, 5
      %v6423 = vsel %vm1224, %v6418, %v6422
      %v6425 = vshrl.u32 %v6227, 16
      %v6427 = vrot.slane %v6425, 4
      %v6428 = vshll.u32 %v6227, 16
      %v6430 = vrot.slane %v6428, 5
      %v6431 = vor.u32 %v6427, %v6430
      %v6432 = vrot.slane %v6431, 4
      %v6434 = vshll.u32 %v6228, 16
      %v6436 = vrot.slane %v6434, 5
      %v6437 = vsel %vm1224, %v6432, %v6436
      %v6438 = vshrl.u32 %v6228, 16
      %v6440 = vrot.slane %v6438, 4
      %v6441 = vor.u32 %v6440, %v6436
      %v6442 = vrot.slane %v6441, 4
      %v6444 = vshll.u32 %v6229, 16
      %v6446 = vrot.slane %v6444, 5
      %v6447 = vsel %vm1224, %v6442, %v6446
      %v6449 = vshrl.u32 %v6230, 16
      %v6451 = vrot.slane %v6449, 4
      %v6452 = vshll.u32 %v6230, 16
      %v6454 = vrot.slane %v6452, 5
      %v6455 = vor.u32 %v6451, %v6454
      %v6456 = vrot.slane %v6455, 4
      %v6458 = vshll.u32 %v6231, 16
      %v6460 = vrot.slane %v6458, 5
      %v6461 = vsel %vm1224, %v6456, %v6460
      %v6462 = vshrl.u32 %v6231, 16
      %v6464 = vrot.slane %v6462, 4
      %v6465 = vor.u32 %v6464, %v6460
      %v6466 = vrot.slane %v6465, 4
      %v6468 = vshll.u32 %v6232, 16
      %v6470 = vrot.slane %v6468, 5
      %v6471 = vsel %vm1224, %v6466, %v6470
      %v6473 = vshrl.u32 %v6233, 16
      %v6475 = vrot.slane %v6473, 4
      %v6476 = vshll.u32 %v6233, 16
      %v6478 = vrot.slane %v6476, 5
      %v6479 = vor.u32 %v6475, %v6478
      %v6480 = vrot.slane %v6479, 4
      %v6482 = vshll.u32 %v6234, 16
      %v6484 = vrot.slane %v6482, 5
      %v6485 = vsel %vm1224, %v6480, %v6484
      %v6486 = vshrl.u32 %v6234, 16
      %v6488 = vrot.slane %v6486, 4
      %v6489 = vor.u32 %v6488, %v6484
      %v6490 = vrot.slane %v6489, 4
      %v6492 = vshll.u32 %v6235, 16
      %v6494 = vrot.slane %v6492, 5
      %v6495 = vsel %vm1224, %v6490, %v6494
      %v6497 = vshrl.u32 %v6236, 16
      %v6499 = vrot.slane %v6497, 4
      %v6500 = vshll.u32 %v6236, 16
      %v6502 = vrot.slane %v6500, 5
      %v6503 = vor.u32 %v6499, %v6502
      %v6504 = vrot.slane %v6503, 4
      %v6506 = vshll.u32 %v6237, 16
      %v6508 = vrot.slane %v6506, 5
      %v6509 = vsel %vm1224, %v6504, %v6508
      %v6510 = vshrl.u32 %v6237, 16
      %v6512 = vrot.slane %v6510, 4
      %v6513 = vor.u32 %v6512, %v6508
      %v6514 = vrot.slane %v6513, 4
      %v6516 = vshll.u32 %v6238, 16
      %v6518 = vrot.slane %v6516, 5
      %v6519 = vsel %vm1224, %v6514, %v6518
      %v6521 = vshrl.u32 %v6239, 16
      %v6523 = vrot.slane %v6521, 4
      %v6524 = vshll.u32 %v6239, 16
      %v6526 = vrot.slane %v6524, 5
      %v6527 = vor.u32 %v6523, %v6526
      %v6528 = vrot.slane %v6527, 4
      %v6530 = vshll.u32 %v6240, 16
      %v6532 = vrot.slane %v6530, 5
      %v6533 = vsel %vm1224, %v6528, %v6532
      %v6534 = vshrl.u32 %v6240, 16
      %v6536 = vrot.slane %v6534, 4
      %v6537 = vor.u32 %v6536, %v6532
      %v6538 = vrot.slane %v6537, 4
      %v6540 = vshll.u32 %v6241, 16
      %v6542 = vrot.slane %v6540, 5
      %v6543 = vsel %vm1224, %v6538, %v6542
      %v6545 = vshrl.u32 %v6242, 16
      %v6547 = vrot.slane %v6545, 4
      %v6548 = vshll.u32 %v6242, 16
      %v6550 = vrot.slane %v6548, 5
      %v6551 = vor.u32 %v6547, %v6550
      %v6552 = vrot.slane %v6551, 4
      %v6554 = vshll.u32 %v6243, 16
      %v6556 = vrot.slane %v6554, 5
      %v6557 = vsel %vm1224, %v6552, %v6556
      %v6558 = vshrl.u32 %v6243, 16
      %v6560 = vrot.slane %v6558, 4
      %v6561 = vor.u32 %v6560, %v6556
      %v6562 = vrot.slane %v6561, 4
      %v6564 = vshll.u32 %v6244, 16
      %v6566 = vrot.slane %v6564, 5
      %v6567 = vsel %vm1224, %v6562, %v6566
      %v6569 = vshrl.u32 %v6245, 16
      %v6571 = vrot.slane %v6569, 4
      %v6572 = vshll.u32 %v6245, 16
      %v6574 = vrot.slane %v6572, 5
      %v6575 = vor.u32 %v6571, %v6574
      %v6576 = vrot.slane %v6575, 4
      %v6578 = vshll.u32 %v6246, 16
      %v6580 = vrot.slane %v6578, 5
      %v6581 = vsel %vm1224, %v6576, %v6580
      %v6582 = vshrl.u32 %v6246, 16
      %v6584 = vrot.slane %v6582, 4
      %v6585 = vor.u32 %v6584, %v6580
      %v6586 = vrot.slane %v6585, 4
      %v6588 = vshll.u32 %v6247, 16
      %v6590 = vrot.slane %v6588, 5
      %v6591 = vsel %vm1224, %v6586, %v6590
      %v6593 = vshrl.u32 %v6248, 16
      %v6595 = vrot.slane %v6593, 4
      %v6596 = vshll.u32 %v6248, 16
      %v6598 = vrot.slane %v6596, 5
      %v6599 = vor.u32 %v6595, %v6598
      %v6600 = vrot.slane %v6599, 4
      %v6602 = vshll.u32 %v6249, 16
      %v6604 = vrot.slane %v6602, 5
      %v6605 = vsel %vm1224, %v6600, %v6604
      %v6606 = vshrl.u32 %v6249, 16
      %v6608 = vrot.slane %v6606, 4
      %v6609 = vor.u32 %v6608, %v6604
      %v6610 = vrot.slane %v6609, 4
      %v6612 = vshll.u32 %v6250, 16
      %v6614 = vrot.slane %v6612, 5
      %v6615 = vsel %vm1224, %v6610, %v6614
      %v6617 = vshrl.u32 %v6251, 16
      %v6619 = vrot.slane %v6617, 4
      %v6620 = vshll.u32 %v6251, 16
      %v6622 = vrot.slane %v6620, 5
      %v6623 = vor.u32 %v6619, %v6622
      %v6624 = vrot.slane %v6623, 4
      %v6626 = vshll.u32 %v6252, 16
      %v6628 = vrot.slane %v6626, 5
      %v6629 = vsel %vm1224, %v6624, %v6628
      %v6630 = vshrl.u32 %v6252, 16
      %v6632 = vrot.slane %v6630, 4
      %v6633 = vor.u32 %v6632, %v6628
      %v6634 = vrot.slane %v6633, 4
      %v6636 = vshll.u32 %v6253, 16
      %v6638 = vrot.slane %v6636, 5
      %v6639 = vsel %vm1224, %v6634, %v6638
      %v6640 = vunpack.c.l.b16 %v6269
      %v6641 = vunpack.c.l.b16 %v6279
      %v6642 = vunpack.c.l.b16 %v6293
      %v6643 = vunpack.c.l.b16 %v6303
      %v6644 = vunpack.c.l.b16 %v6317
      %v6645 = vunpack.c.l.b16 %v6327
      %v6646 = vunpack.c.l.b16 %v6341
      %v6647 = vunpack.c.l.b16 %v6351
      %v6648 = vunpack.c.l.b16 %v6365
      %v6649 = vunpack.c.l.b16 %v6375
      %v6650 = vunpack.c.l.b16 %v6389
      %v6651 = vunpack.c.l.b16 %v6399
      %v6652 = vunpack.c.l.b16 %v6413
      %v6653 = vunpack.c.l.b16 %v6423
      %v6654 = vunpack.c.l.b16 %v6437
      %v6655 = vunpack.c.l.b16 %v6447
      %v6656 = vunpack.c.l.b16 %v6461
      %v6657 = vunpack.c.l.b16 %v6471
      %v6658 = vunpack.c.l.b16 %v6485
      %v6659 = vunpack.c.l.b16 %v6495
      %v6660 = vunpack.c.l.b16 %v6509
      %v6661 = vunpack.c.l.b16 %v6519
      %v6662 = vunpack.c.l.b16 %v6533
      %v6663 = vunpack.c.l.b16 %v6543
      %v6664 = vunpack.c.l.b16 %v6557
      %v6665 = vunpack.c.l.b16 %v6567
      %v6666 = vunpack.c.l.b16 %v6581
      %v6667 = vunpack.c.l.b16 %v6591
      %v6668 = vunpack.c.l.b16 %v6605
      %v6669 = vunpack.c.l.b16 %v6615
      %v6670 = vunpack.c.l.b16 %v6629
      %v6671 = vunpack.c.l.b16 %v6639
      %v6672 = vpack.c.b16 %v6641, %v6640
      %v6673 = vpack.c.b16 %v6643, %v6642
      %v6674 = vpack.c.b16 %v6645, %v6644
      %v6675 = vpack.c.b16 %v6647, %v6646
      %v6676 = vpack.c.b16 %v6649, %v6648
      %v6677 = vpack.c.b16 %v6651, %v6650
      %v6678 = vpack.c.b16 %v6653, %v6652
      %v6679 = vpack.c.b16 %v6655, %v6654
      %v6680 = vpack.c.b16 %v6657, %v6656
      %v6681 = vpack.c.b16 %v6659, %v6658
      %v6682 = vpack.c.b16 %v6661, %v6660
      %v6683 = vpack.c.b16 %v6663, %v6662
      %v6684 = vpack.c.b16 %v6665, %v6664
      %v6685 = vpack.c.b16 %v6667, %v6666
      %v6686 = vpack.c.b16 %v6669, %v6668
      %v6687 = vpack.c.b16 %v6671, %v6670
      %v6689 = vsel %vm1657, %v6672, 0
      %v6692 = vsel %vm1657, %v6673, 0
      %v6695 = vsel %vm1657, %v6674, 0
      %v6698 = vsel %vm1657, %v6675, 0
      %v6701 = vsel %vm1657, %v6676, 0
      %v6704 = vsel %vm1657, %v6677, 0
      %v6707 = vsel %vm1657, %v6678, 0
      %v6710 = vsel %vm1657, %v6679, 0
      %v6713 = vsel %vm1657, %v6680, 0
      %v6716 = vsel %vm1657, %v6681, 0
      %v6719 = vsel %vm1657, %v6682, 0
      %v6722 = vsel %vm1657, %v6683, 0
      %v6725 = vsel %vm1657, %v6684, 0
      %v6728 = vsel %vm1657, %v6685, 0
      %v6731 = vsel %vm1657, %v6686, 0
      %v6734 = vsel %vm1657, %v6687, 0
      %v6737 = vsel %vm1706, %v6255, 0
      %6739 = vmatprep.subr.bf16.mxu0 0
      %6740 = vmatpush1.bf16.msra.mxu0 0
      %6741 = vmatprep.subr.bf16.mxu0 0
      %6742 = vmatpush1.bf16.msra.mxu0 0
      %6743 = vmatprep.subr.bf16.mxu0 0
      %6744 = vmatpush1.bf16.msra.mxu0 0
      %6745 = vmatprep.subr.bf16.mxu0 0
      %6746 = vmatpush1.bf16.msra.mxu0 0
      %6747 = vmatprep.subr.bf16.mxu0 0
      %6748 = vmatpush1.bf16.msra.mxu0 0
      %6749 = vmatprep.subr.bf16.mxu0 0
      %6750 = vmatpush1.bf16.msra.mxu0 0
      %6751 = vmatprep.subr.bf16.mxu0 0
      %6752 = vmatpush1.bf16.msra.mxu0 0
      %6753 = vmatprep.subr.bf16.mxu0 0
      %6754 = vmatpush1.bf16.msra.mxu0 %v6737
      %6755 = vmatprep.subr.bf16.mxu0 0
      %6756 = vmatpush2.bf16.msra.mxu0 0
      %6757 = vmatprep.subr.bf16.mxu0 0
      %6758 = vmatpush2.bf16.msra.mxu0 0
      %6759 = vmatprep.subr.bf16.mxu0 0
      %6760 = vmatpush2.bf16.msra.mxu0 0
      %6761 = vmatprep.subr.bf16.mxu0 0
      %6762 = vmatpush2.bf16.msra.mxu0 0
      %6763 = vmatprep.subr.bf16.mxu0 0
      %6764 = vmatpush2.bf16.msra.mxu0 0
      %6765 = vmatprep.subr.bf16.mxu0 0
      %6766 = vmatpush2.bf16.msra.mxu0 0
      %6767 = vmatprep.subr.bf16.mxu0 0
      %6768 = vmatpush2.bf16.msra.mxu0 0
      %6769 = vmatprep.subr.bf16.mxu0 0
      %6770 = vmatpush2.bf16.msra.mxu0 0
      %6771 = vmatprep.mubr.bf16.mxu0 0
      %6772 = vmatmul.mubr.bf16.gmra.mxu0 %v6689
      %v6773 = vpop.f32.mrf.mxu0
      %v6774 = vadd.f32 0.0, %v6773
      %v6775 = vpop.f32.mrf.mxu0
      %v6776 = vpop.f32.mrf.mxu0
      %v6777 = vadd.f32 0.0, %v6776
      %v6778 = vpop.f32.mrf.mxu0
      %6779 = vmatprep.mubr.bf16.mxu0 0
      %6780 = vmatmul.mubr.bf16.gmra.mxu0 %v6692
      %v6781 = vpop.f32.mrf.mxu0
      %v6782 = vadd.f32 0.0, %v6781
      %v6783 = vpop.f32.mrf.mxu0
      %v6784 = vpop.f32.mrf.mxu0
      %v6785 = vadd.f32 0.0, %v6784
      %v6786 = vpop.f32.mrf.mxu0
      %6787 = vmatprep.mubr.bf16.mxu0 0
      %6788 = vmatmul.mubr.bf16.gmra.mxu0 %v6695
      %v6789 = vpop.f32.mrf.mxu0
      %v6790 = vadd.f32 0.0, %v6789
      %v6791 = vpop.f32.mrf.mxu0
      %v6792 = vpop.f32.mrf.mxu0
      %v6793 = vadd.f32 0.0, %v6792
      %v6794 = vpop.f32.mrf.mxu0
      %6795 = vmatprep.mubr.bf16.mxu0 0
      %6796 = vmatmul.mubr.bf16.gmra.mxu0 %v6698
      %v6797 = vpop.f32.mrf.mxu0
      %v6798 = vadd.f32 0.0, %v6797
      %v6799 = vpop.f32.mrf.mxu0
      %v6800 = vpop.f32.mrf.mxu0
      %v6801 = vadd.f32 0.0, %v6800
      %v6802 = vpop.f32.mrf.mxu0
      %6803 = vmatprep.mubr.bf16.mxu0 0
      %6804 = vmatmul.mubr.bf16.gmra.mxu0 %v6701
      %v6805 = vpop.f32.mrf.mxu0
      %v6806 = vadd.f32 0.0, %v6805
      %v6807 = vpop.f32.mrf.mxu0
      %v6808 = vpop.f32.mrf.mxu0
      %v6809 = vadd.f32 0.0, %v6808
      %v6810 = vpop.f32.mrf.mxu0
      %6811 = vmatprep.mubr.bf16.mxu0 0
      %6812 = vmatmul.mubr.bf16.gmra.mxu0 %v6704
      %v6813 = vpop.f32.mrf.mxu0
      %v6814 = vadd.f32 0.0, %v6813
      %v6815 = vpop.f32.mrf.mxu0
      %v6816 = vpop.f32.mrf.mxu0
      %v6817 = vadd.f32 0.0, %v6816
      %v6818 = vpop.f32.mrf.mxu0
      %6819 = vmatprep.mubr.bf16.mxu0 0
      %6820 = vmatmul.mubr.bf16.gmra.mxu0 %v6707
      %v6821 = vpop.f32.mrf.mxu0
      %v6822 = vadd.f32 0.0, %v6821
      %v6823 = vpop.f32.mrf.mxu0
      %v6824 = vpop.f32.mrf.mxu0
      %v6825 = vadd.f32 0.0, %v6824
      %v6826 = vpop.f32.mrf.mxu0
      %6827 = vmatprep.mubr.bf16.mxu0 0
      %6828 = vmatmul.mubr.bf16.gmra.mxu0 %v6710
      %v6829 = vpop.f32.mrf.mxu0
      %v6830 = vadd.f32 0.0, %v6829
      %v6831 = vpop.f32.mrf.mxu0
      %v6832 = vpop.f32.mrf.mxu0
      %v6833 = vadd.f32 0.0, %v6832
      %v6834 = vpop.f32.mrf.mxu0
      %6835 = vmatprep.mubr.bf16.mxu0 0
      %6836 = vmatmul.mubr.bf16.gmra.mxu0 %v6713
      %v6837 = vpop.f32.mrf.mxu0
      %v6838 = vadd.f32 0.0, %v6837
      %v6839 = vpop.f32.mrf.mxu0
      %v6840 = vpop.f32.mrf.mxu0
      %v6841 = vadd.f32 0.0, %v6840
      %v6842 = vpop.f32.mrf.mxu0
      %6843 = vmatprep.mubr.bf16.mxu0 0
      %6844 = vmatmul.mubr.bf16.gmra.mxu0 %v6716
      %v6845 = vpop.f32.mrf.mxu0
      %v6846 = vadd.f32 0.0, %v6845
      %v6847 = vpop.f32.mrf.mxu0
      %v6848 = vpop.f32.mrf.mxu0
      %v6849 = vadd.f32 0.0, %v6848
      %v6850 = vpop.f32.mrf.mxu0
      %6851 = vmatprep.mubr.bf16.mxu0 0
      %6852 = vmatmul.mubr.bf16.gmra.mxu0 %v6719
      %v6853 = vpop.f32.mrf.mxu0
      %v6854 = vadd.f32 0.0, %v6853
      %v6855 = vpop.f32.mrf.mxu0
      %v6856 = vpop.f32.mrf.mxu0
      %v6857 = vadd.f32 0.0, %v6856
      %v6858 = vpop.f32.mrf.mxu0
      %6859 = vmatprep.mubr.bf16.mxu0 0
      %6860 = vmatmul.mubr.bf16.gmra.mxu0 %v6722
      %v6861 = vpop.f32.mrf.mxu0
      %v6862 = vadd.f32 0.0, %v6861
      %v6863 = vpop.f32.mrf.mxu0
      %v6864 = vpop.f32.mrf.mxu0
      %v6865 = vadd.f32 0.0, %v6864
      %v6866 = vpop.f32.mrf.mxu0
      %6867 = vmatprep.mubr.bf16.mxu0 0
      %6868 = vmatmul.mubr.bf16.gmra.mxu0 %v6725
      %v6869 = vpop.f32.mrf.mxu0
      %v6870 = vadd.f32 0.0, %v6869
      %v6871 = vpop.f32.mrf.mxu0
      %v6872 = vpop.f32.mrf.mxu0
      %v6873 = vadd.f32 0.0, %v6872
      %v6874 = vpop.f32.mrf.mxu0
      %6875 = vmatprep.mubr.bf16.mxu0 0
      %6876 = vmatmul.mubr.bf16.gmra.mxu0 %v6728
      %v6877 = vpop.f32.mrf.mxu0
      %v6878 = vadd.f32 0.0, %v6877
      %v6879 = vpop.f32.mrf.mxu0
      %v6880 = vpop.f32.mrf.mxu0
      %v6881 = vadd.f32 0.0, %v6880
      %v6882 = vpop.f32.mrf.mxu0
      %6883 = vmatprep.mubr.bf16.mxu0 0
      %6884 = vmatmul.mubr.bf16.gmra.mxu0 %v6731
      %v6885 = vpop.f32.mrf.mxu0
      %v6886 = vadd.f32 0.0, %v6885
      %v6887 = vpop.f32.mrf.mxu0
      %v6888 = vpop.f32.mrf.mxu0
      %v6889 = vadd.f32 0.0, %v6888
      %v6890 = vpop.f32.mrf.mxu0
      %6891 = vmatprep.mubr.bf16.mxu0 0
      %6892 = vmatmul.mubr.bf16.gmra.mxu0 %v6734
      %v6893 = vpop.f32.mrf.mxu0
      %v6894 = vadd.f32 0.0, %v6893
      %v6895 = vpop.f32.mrf.mxu0
      %v6896 = vpop.f32.mrf.mxu0
      %v6897 = vadd.f32 0.0, %v6896
      %v6898 = vpop.f32.mrf.mxu0
      %6899 = vdwg.mxu0
      %v6900 = vadd.f32 %v6174, %v6774
      %v6901 = vadd.f32 %v6175, %v6777
      %v6902 = vadd.f32 %v6176, %v6782
      %v6903 = vadd.f32 %v6177, %v6785
      %v6904 = vadd.f32 %v6178, %v6790
      %v6905 = vadd.f32 %v6179, %v6793
      %v6906 = vadd.f32 %v6180, %v6798
      %v6907 = vadd.f32 %v6181, %v6801
      %v6908 = vadd.f32 %v6182, %v6806
      %v6909 = vadd.f32 %v6183, %v6809
      %v6910 = vadd.f32 %v6184, %v6814
      %v6911 = vadd.f32 %v6185, %v6817
      %v6912 = vadd.f32 %v6186, %v6822
      %v6913 = vadd.f32 %v6187, %v6825
      %v6914 = vadd.f32 %v6188, %v6830
      %v6915 = vadd.f32 %v6189, %v6833
      %v6916 = vadd.f32 %v6190, %v6838
      %v6917 = vadd.f32 %v6191, %v6841
      %v6918 = vadd.f32 %v6192, %v6846
      %v6919 = vadd.f32 %v6193, %v6849
      %v6920 = vadd.f32 %v6194, %v6854
      %v6921 = vadd.f32 %v6195, %v6857
      %v6922 = vadd.f32 %v6196, %v6862
      %v6923 = vadd.f32 %v6197, %v6865
      %v6924 = vadd.f32 %v6198, %v6870
      %v6925 = vadd.f32 %v6199, %v6873
      %v6926 = vadd.f32 %v6200, %v6878
      %v6927 = vadd.f32 %v6201, %v6881
      %v6928 = vadd.f32 %v6202, %v6886
      %v6929 = vadd.f32 %v6203, %v6889
      %v6930 = vadd.f32 %v6204, %v6894
      %v6931 = vadd.f32 %v6205, %v6897
      %v6932 = vld [vmem:[%s5847] sm:$0xe]
      %v6933 = vld [vmem:[%s5847 + $0x4] sm:$0xf]
      %v6934 = vld [vmem:[%s5847 + $0x8] sm:$0x1]
      %v6935 = vld [vmem:[%s5847 + $0xc] sm:$0xe]
      %v6936 = vld [vmem:[%s5847 + $0x10] sm:$0xf]
      %v6937 = vld [vmem:[%s5847 + $0x14] sm:$0x1]
      %v6938 = vld [vmem:[%s5847 + $0x18] sm:$0xe]
      %v6939 = vld [vmem:[%s5847 + $0x1c] sm:$0xf]
      %v6940 = vld [vmem:[%s5847 + $0x20] sm:$0x1]
      %v6941 = vld [vmem:[%s5847 + $0x24] sm:$0xe]
      %v6942 = vld [vmem:[%s5847 + $0x28] sm:$0xf]
      %v6943 = vld [vmem:[%s5847 + $0x2c] sm:$0x1]
      %v6944 = vld [vmem:[%s5847 + $0x30] sm:$0xe]
      %v6945 = vld [vmem:[%s5847 + $0x34] sm:$0xf]
      %v6946 = vld [vmem:[%s5847 + $0x38] sm:$0x1]
      %v6947 = vld [vmem:[%s5847 + $0x3c] sm:$0xe]
      %v6948 = vld [vmem:[%s5847 + $0x40] sm:$0xf]
      %v6949 = vld [vmem:[%s5847 + $0x44] sm:$0x1]
      %v6950 = vld [vmem:[%s5847 + $0x48] sm:$0xe]
      %v6951 = vld [vmem:[%s5847 + $0x4c] sm:$0xf]
      %v6952 = vld [vmem:[%s5847 + $0x50] sm:$0x1]
      %v6953 = vld [vmem:[%s5847 + $0x54] sm:$0xe]
      %v6954 = vld [vmem:[%s5847 + $0x58] sm:$0xf]
      %v6955 = vld [vmem:[%s5847 + $0x5c] sm:$0x1]
      %v6956 = vld [vmem:[%s5847 + $0x60] sm:$0xe]
      %v6957 = vld [vmem:[%s5847 + $0x64] sm:$0xf]
      %v6958 = vld [vmem:[%s5847 + $0x68] sm:$0x1]
      %v6959 = vld [vmem:[%s5847 + $0x6c] sm:$0xe]
      %v6960 = vld [vmem:[%s5847 + $0x70] sm:$0xf]
      %v6961 = vld [vmem:[%s5847 + $0x74] sm:$0x1]
      %v6962 = vld [vmem:[%s5847 + $0x78] sm:$0xe]
      %v6963 = vld [vmem:[%s5847 + $0x7c] sm:$0xf]
      %v6964 = vld [vmem:[%s5847 + $0x80] sm:$0x1]
      %v6965 = vld [vmem:[%s5847 + $0x84] sm:$0xe]
      %v6966 = vld [vmem:[%s5847 + $0x88] sm:$0xf]
      %v6967 = vld [vmem:[%s5847 + $0x8c] sm:$0x1]
      %v6968 = vld [vmem:[%s5847 + $0x90] sm:$0xe]
      %v6969 = vld [vmem:[%s5847 + $0x94] sm:$0xf]
      %v6970 = vld [vmem:[%s5847 + $0x98] sm:$0x1]
      %v6971 = vld [vmem:[%s5847 + $0x9c] sm:$0xe]
      %v6972 = vld [vmem:[%s5847 + $0xa0] sm:$0xf]
      %v6973 = vld [vmem:[%s5847 + $0xa4] sm:$0x1]
      %v6974 = vld [vmem:[%s5847 + $0xa8] sm:$0xe]
      %v6975 = vld [vmem:[%s5847 + $0xac] sm:$0xf]
      %v6976 = vld [vmem:[%s5847 + $0xb0] sm:$0x1]
      %v6977 = vld [vmem:[%s5847 + $0xb4] sm:$0xe]
      %v6978 = vld [vmem:[%s5847 + $0xb8] sm:$0xf]
      %v6979 = vld [vmem:[%s5847 + $0xbc] sm:$0x1]
      %s6980 = scalar_lea.vmem %s3, 22
      %v6981 = vld [vmem:[%s6980] sm:$0x3]
      %v7030 = vrot.slane %v6932, 5
      %v7031 = vrot.slane %v7030, 4
      %v7032 = vrot.slane %v6933, 5
      %v7033 = vsel %vm2263, %v7031, %v7032
      %v7034 = vrot.slane %v7032, 4
      %v7035 = vrot.slane %v6934, 5
      %v7036 = vsel %vm2263, %v7034, %v7035
      %v7037 = vrot.slane %v6935, 5
      %v7038 = vrot.slane %v7037, 4
      %v7039 = vrot.slane %v6936, 5
      %v7040 = vsel %vm2263, %v7038, %v7039
      %v7041 = vrot.slane %v7039, 4
      %v7042 = vrot.slane %v6937, 5
      %v7043 = vsel %vm2263, %v7041, %v7042
      %v7044 = vrot.slane %v6938, 5
      %v7045 = vrot.slane %v7044, 4
      %v7046 = vrot.slane %v6939, 5
      %v7047 = vsel %vm2263, %v7045, %v7046
      %v7048 = vrot.slane %v7046, 4
      %v7049 = vrot.slane %v6940, 5
      %v7050 = vsel %vm2263, %v7048, %v7049
      %v7051 = vrot.slane %v6941, 5
      %v7052 = vrot.slane %v7051, 4
      %v7053 = vrot.slane %v6942, 5
      %v7054 = vsel %vm2263, %v7052, %v7053
      %v7055 = vrot.slane %v7053, 4
      %v7056 = vrot.slane %v6943, 5
      %v7057 = vsel %vm2263, %v7055, %v7056
      %v7058 = vrot.slane %v6944, 5
      %v7059 = vrot.slane %v7058, 4
      %v7060 = vrot.slane %v6945, 5
      %v7061 = vsel %vm2263, %v7059, %v7060
      %v7062 = vrot.slane %v7060, 4
      %v7063 = vrot.slane %v6946, 5
      %v7064 = vsel %vm2263, %v7062, %v7063
      %v7065 = vrot.slane %v6947, 5
      %v7066 = vrot.slane %v7065, 4
      %v7067 = vrot.slane %v6948, 5
      %v7068 = vsel %vm2263, %v7066, %v7067
      %v7069 = vrot.slane %v7067, 4
      %v7070 = vrot.slane %v6949, 5
      %v7071 = vsel %vm2263, %v7069, %v7070
      %v7072 = vrot.slane %v6950, 5
      %v7073 = vrot.slane %v7072, 4
      %v7074 = vrot.slane %v6951, 5
      %v7075 = vsel %vm2263, %v7073, %v7074
      %v7076 = vrot.slane %v7074, 4
      %v7077 = vrot.slane %v6952, 5
      %v7078 = vsel %vm2263, %v7076, %v7077
      %v7079 = vrot.slane %v6953, 5
      %v7080 = vrot.slane %v7079, 4
      %v7081 = vrot.slane %v6954, 5
      %v7082 = vsel %vm2263, %v7080, %v7081
      %v7083 = vrot.slane %v7081, 4
      %v7084 = vrot.slane %v6955, 5
      %v7085 = vsel %vm2263, %v7083, %v7084
      %v7086 = vrot.slane %v6956, 5
      %v7087 = vrot.slane %v7086, 4
      %v7088 = vrot.slane %v6957, 5
      %v7089 = vsel %vm2263, %v7087, %v7088
      %v7090 = vrot.slane %v7088, 4
      %v7091 = vrot.slane %v6958, 5
      %v7092 = vsel %vm2263, %v7090, %v7091
      %v7093 = vrot.slane %v6959, 5
      %v7094 = vrot.slane %v7093, 4
      %v7095 = vrot.slane %v6960, 5
      %v7096 = vsel %vm2263, %v7094, %v7095
      %v7097 = vrot.slane %v7095, 4
      %v7098 = vrot.slane %v6961, 5
      %v7099 = vsel %vm2263, %v7097, %v7098
      %v7100 = vrot.slane %v6962, 5
      %v7101 = vrot.slane %v7100, 4
      %v7102 = vrot.slane %v6963, 5
      %v7103 = vsel %vm2263, %v7101, %v7102
      %v7104 = vrot.slane %v7102, 4
      %v7105 = vrot.slane %v6964, 5
      %v7106 = vsel %vm2263, %v7104, %v7105
      %v7107 = vrot.slane %v6965, 5
      %v7108 = vrot.slane %v7107, 4
      %v7109 = vrot.slane %v6966, 5
      %v7110 = vsel %vm2263, %v7108, %v7109
      %v7111 = vrot.slane %v7109, 4
      %v7112 = vrot.slane %v6967, 5
      %v7113 = vsel %vm2263, %v7111, %v7112
      %v7114 = vrot.slane %v6968, 5
      %v7115 = vrot.slane %v7114, 4
      %v7116 = vrot.slane %v6969, 5
      %v7117 = vsel %vm2263, %v7115, %v7116
      %v7118 = vrot.slane %v7116, 4
      %v7119 = vrot.slane %v6970, 5
      %v7120 = vsel %vm2263, %v7118, %v7119
      %v7121 = vrot.slane %v6971, 5
      %v7122 = vrot.slane %v7121, 4
      %v7123 = vrot.slane %v6972, 5
      %v7124 = vsel %vm2263, %v7122, %v7123
      %v7125 = vrot.slane %v7123, 4
      %v7126 = vrot.slane %v6973, 5
      %v7127 = vsel %vm2263, %v7125, %v7126
      %v7128 = vrot.slane %v6974, 5
      %v7129 = vrot.slane %v7128, 4
      %v7130 = vrot.slane %v6975, 5
      %v7131 = vsel %vm2263, %v7129, %v7130
      %v7132 = vrot.slane %v7130, 4
      %v7133 = vrot.slane %v6976, 5
      %v7134 = vsel %vm2263, %v7132, %v7133
      %v7135 = vrot.slane %v6977, 5
      %v7136 = vrot.slane %v7135, 4
      %v7137 = vrot.slane %v6978, 5
      %v7138 = vsel %vm2263, %v7136, %v7137
      %v7139 = vrot.slane %v7137, 4
      %v7140 = vrot.slane %v6979, 5
      %v7141 = vsel %vm2263, %v7139, %v7140
      %v7142 = vunpack.c.l.b16 %v7033
      %v7143 = vunpack.c.l.b16 %v7036
      %v7144 = vunpack.c.l.b16 %v7040
      %v7145 = vunpack.c.l.b16 %v7043
      %v7146 = vunpack.c.l.b16 %v7047
      %v7147 = vunpack.c.l.b16 %v7050
      %v7148 = vunpack.c.l.b16 %v7054
      %v7149 = vunpack.c.l.b16 %v7057
      %v7150 = vunpack.c.l.b16 %v7061
      %v7151 = vunpack.c.l.b16 %v7064
      %v7152 = vunpack.c.l.b16 %v7068
      %v7153 = vunpack.c.l.b16 %v7071
      %v7154 = vunpack.c.l.b16 %v7075
      %v7155 = vunpack.c.l.b16 %v7078
      %v7156 = vunpack.c.l.b16 %v7082
      %v7157 = vunpack.c.l.b16 %v7085
      %v7158 = vunpack.c.l.b16 %v7089
      %v7159 = vunpack.c.l.b16 %v7092
      %v7160 = vunpack.c.l.b16 %v7096
      %v7161 = vunpack.c.l.b16 %v7099
      %v7162 = vunpack.c.l.b16 %v7103
      %v7163 = vunpack.c.l.b16 %v7106
      %v7164 = vunpack.c.l.b16 %v7110
      %v7165 = vunpack.c.l.b16 %v7113
      %v7166 = vunpack.c.l.b16 %v7117
      %v7167 = vunpack.c.l.b16 %v7120
      %v7168 = vunpack.c.l.b16 %v7124
      %v7169 = vunpack.c.l.b16 %v7127
      %v7170 = vunpack.c.l.b16 %v7131
      %v7171 = vunpack.c.l.b16 %v7134
      %v7172 = vunpack.c.l.b16 %v7138
      %v7173 = vunpack.c.l.b16 %v7141
      %v7174 = vpack.c.b16 %v7143, %v7142
      %v7175 = vpack.c.b16 %v7145, %v7144
      %v7176 = vpack.c.b16 %v7147, %v7146
      %v7177 = vpack.c.b16 %v7149, %v7148
      %v7178 = vpack.c.b16 %v7151, %v7150
      %v7179 = vpack.c.b16 %v7153, %v7152
      %v7180 = vpack.c.b16 %v7155, %v7154
      %v7181 = vpack.c.b16 %v7157, %v7156
      %v7182 = vpack.c.b16 %v7159, %v7158
      %v7183 = vpack.c.b16 %v7161, %v7160
      %v7184 = vpack.c.b16 %v7163, %v7162
      %v7185 = vpack.c.b16 %v7165, %v7164
      %v7186 = vpack.c.b16 %v7167, %v7166
      %v7187 = vpack.c.b16 %v7169, %v7168
      %v7188 = vpack.c.b16 %v7171, %v7170
      %v7189 = vpack.c.b16 %v7173, %v7172
      %v7191 = vsel %vm1657, %v7174, 0
      %v7194 = vsel %vm1657, %v7175, 0
      %v7197 = vsel %vm1657, %v7176, 0
      %v7200 = vsel %vm1657, %v7177, 0
      %v7203 = vsel %vm1657, %v7178, 0
      %v7206 = vsel %vm1657, %v7179, 0
      %v7209 = vsel %vm1657, %v7180, 0
      %v7212 = vsel %vm1657, %v7181, 0
      %v7215 = vsel %vm1657, %v7182, 0
      %v7218 = vsel %vm1657, %v7183, 0
      %v7221 = vsel %vm1657, %v7184, 0
      %v7224 = vsel %vm1657, %v7185, 0
      %v7227 = vsel %vm1657, %v7186, 0
      %v7230 = vsel %vm1657, %v7187, 0
      %v7233 = vsel %vm1657, %v7188, 0
      %v7236 = vsel %vm1657, %v7189, 0
      %v7239 = vsel %vm1706, %v6981, 0
      %7241 = vmatprep.subr.bf16.mxu0 0
      %7242 = vmatpush1.bf16.msra.mxu0 0
      %7243 = vmatprep.subr.bf16.mxu0 0
      %7244 = vmatpush1.bf16.msra.mxu0 0
      %7245 = vmatprep.subr.bf16.mxu0 0
      %7246 = vmatpush1.bf16.msra.mxu0 0
      %7247 = vmatprep.subr.bf16.mxu0 0
      %7248 = vmatpush1.bf16.msra.mxu0 0
      %7249 = vmatprep.subr.bf16.mxu0 0
      %7250 = vmatpush1.bf16.msra.mxu0 0
      %7251 = vmatprep.subr.bf16.mxu0 0
      %7252 = vmatpush1.bf16.msra.mxu0 0
      %7253 = vmatprep.subr.bf16.mxu0 0
      %7254 = vmatpush1.bf16.msra.mxu0 0
      %7255 = vmatprep.subr.bf16.mxu0 0
      %7256 = vmatpush1.bf16.msra.mxu0 %v7239
      %7257 = vmatprep.subr.bf16.mxu0 0
      %7258 = vmatpush2.bf16.msra.mxu0 0
      %7259 = vmatprep.subr.bf16.mxu0 0
      %7260 = vmatpush2.bf16.msra.mxu0 0
      %7261 = vmatprep.subr.bf16.mxu0 0
      %7262 = vmatpush2.bf16.msra.mxu0 0
      %7263 = vmatprep.subr.bf16.mxu0 0
      %7264 = vmatpush2.bf16.msra.mxu0 0
      %7265 = vmatprep.subr.bf16.mxu0 0
      %7266 = vmatpush2.bf16.msra.mxu0 0
      %7267 = vmatprep.subr.bf16.mxu0 0
      %7268 = vmatpush2.bf16.msra.mxu0 0
      %7269 = vmatprep.subr.bf16.mxu0 0
      %7270 = vmatpush2.bf16.msra.mxu0 0
      %7271 = vmatprep.subr.bf16.mxu0 0
      %7272 = vmatpush2.bf16.msra.mxu0 0
      %7273 = vmatprep.mubr.bf16.mxu0 0
      %7274 = vmatmul.mubr.bf16.gmra.mxu0 %v7191
      %v7275 = vpop.f32.mrf.mxu0
      %v7276 = vadd.f32 0.0, %v7275
      %v7277 = vpop.f32.mrf.mxu0
      %v7278 = vpop.f32.mrf.mxu0
      %v7279 = vadd.f32 0.0, %v7278
      %v7280 = vpop.f32.mrf.mxu0
      %7281 = vmatprep.mubr.bf16.mxu0 0
      %7282 = vmatmul.mubr.bf16.gmra.mxu0 %v7194
      %v7283 = vpop.f32.mrf.mxu0
      %v7284 = vadd.f32 0.0, %v7283
      %v7285 = vpop.f32.mrf.mxu0
      %v7286 = vpop.f32.mrf.mxu0
      %v7287 = vadd.f32 0.0, %v7286
      %v7288 = vpop.f32.mrf.mxu0
      %7289 = vmatprep.mubr.bf16.mxu0 0
      %7290 = vmatmul.mubr.bf16.gmra.mxu0 %v7197
      %v7291 = vpop.f32.mrf.mxu0
      %v7292 = vadd.f32 0.0, %v7291
      %v7293 = vpop.f32.mrf.mxu0
      %v7294 = vpop.f32.mrf.mxu0
      %v7295 = vadd.f32 0.0, %v7294
      %v7296 = vpop.f32.mrf.mxu0
      %7297 = vmatprep.mubr.bf16.mxu0 0
      %7298 = vmatmul.mubr.bf16.gmra.mxu0 %v7200
      %v7299 = vpop.f32.mrf.mxu0
      %v7300 = vadd.f32 0.0, %v7299
      %v7301 = vpop.f32.mrf.mxu0
      %v7302 = vpop.f32.mrf.mxu0
      %v7303 = vadd.f32 0.0, %v7302
      %v7304 = vpop.f32.mrf.mxu0
      %7305 = vmatprep.mubr.bf16.mxu0 0
      %7306 = vmatmul.mubr.bf16.gmra.mxu0 %v7203
      %v7307 = vpop.f32.mrf.mxu0
      %v7308 = vadd.f32 0.0, %v7307
      %v7309 = vpop.f32.mrf.mxu0
      %v7310 = vpop.f32.mrf.mxu0
      %v7311 = vadd.f32 0.0, %v7310
      %v7312 = vpop.f32.mrf.mxu0
      %7313 = vmatprep.mubr.bf16.mxu0 0
      %7314 = vmatmul.mubr.bf16.gmra.mxu0 %v7206
      %v7315 = vpop.f32.mrf.mxu0
      %v7316 = vadd.f32 0.0, %v7315
      %v7317 = vpop.f32.mrf.mxu0
      %v7318 = vpop.f32.mrf.mxu0
      %v7319 = vadd.f32 0.0, %v7318
      %v7320 = vpop.f32.mrf.mxu0
      %7321 = vmatprep.mubr.bf16.mxu0 0
      %7322 = vmatmul.mubr.bf16.gmra.mxu0 %v7209
      %v7323 = vpop.f32.mrf.mxu0
      %v7324 = vadd.f32 0.0, %v7323
      %v7325 = vpop.f32.mrf.mxu0
      %v7326 = vpop.f32.mrf.mxu0
      %v7327 = vadd.f32 0.0, %v7326
      %v7328 = vpop.f32.mrf.mxu0
      %7329 = vmatprep.mubr.bf16.mxu0 0
      %7330 = vmatmul.mubr.bf16.gmra.mxu0 %v7212
      %v7331 = vpop.f32.mrf.mxu0
      %v7332 = vadd.f32 0.0, %v7331
      %v7333 = vpop.f32.mrf.mxu0
      %v7334 = vpop.f32.mrf.mxu0
      %v7335 = vadd.f32 0.0, %v7334
      %v7336 = vpop.f32.mrf.mxu0
      %7337 = vmatprep.mubr.bf16.mxu0 0
      %7338 = vmatmul.mubr.bf16.gmra.mxu0 %v7215
      %v7339 = vpop.f32.mrf.mxu0
      %v7340 = vadd.f32 0.0, %v7339
      %v7341 = vpop.f32.mrf.mxu0
      %v7342 = vpop.f32.mrf.mxu0
      %v7343 = vadd.f32 0.0, %v7342
      %v7344 = vpop.f32.mrf.mxu0
      %7345 = vmatprep.mubr.bf16.mxu0 0
      %7346 = vmatmul.mubr.bf16.gmra.mxu0 %v7218
      %v7347 = vpop.f32.mrf.mxu0
      %v7348 = vadd.f32 0.0, %v7347
      %v7349 = vpop.f32.mrf.mxu0
      %v7350 = vpop.f32.mrf.mxu0
      %v7351 = vadd.f32 0.0, %v7350
      %v7352 = vpop.f32.mrf.mxu0
      %7353 = vmatprep.mubr.bf16.mxu0 0
      %7354 = vmatmul.mubr.bf16.gmra.mxu0 %v7221
      %v7355 = vpop.f32.mrf.mxu0
      %v7356 = vadd.f32 0.0, %v7355
      %v7357 = vpop.f32.mrf.mxu0
      %v7358 = vpop.f32.mrf.mxu0
      %v7359 = vadd.f32 0.0, %v7358
      %v7360 = vpop.f32.mrf.mxu0
      %7361 = vmatprep.mubr.bf16.mxu0 0
      %7362 = vmatmul.mubr.bf16.gmra.mxu0 %v7224
      %v7363 = vpop.f32.mrf.mxu0
      %v7364 = vadd.f32 0.0, %v7363
      %v7365 = vpop.f32.mrf.mxu0
      %v7366 = vpop.f32.mrf.mxu0
      %v7367 = vadd.f32 0.0, %v7366
      %v7368 = vpop.f32.mrf.mxu0
      %7369 = vmatprep.mubr.bf16.mxu0 0
      %7370 = vmatmul.mubr.bf16.gmra.mxu0 %v7227
      %v7371 = vpop.f32.mrf.mxu0
      %v7372 = vadd.f32 0.0, %v7371
      %v7373 = vpop.f32.mrf.mxu0
      %v7374 = vpop.f32.mrf.mxu0
      %v7375 = vadd.f32 0.0, %v7374
      %v7376 = vpop.f32.mrf.mxu0
      %7377 = vmatprep.mubr.bf16.mxu0 0
      %7378 = vmatmul.mubr.bf16.gmra.mxu0 %v7230
      %v7379 = vpop.f32.mrf.mxu0
      %v7380 = vadd.f32 0.0, %v7379
      %v7381 = vpop.f32.mrf.mxu0
      %v7382 = vpop.f32.mrf.mxu0
      %v7383 = vadd.f32 0.0, %v7382
      %v7384 = vpop.f32.mrf.mxu0
      %7385 = vmatprep.mubr.bf16.mxu0 0
      %7386 = vmatmul.mubr.bf16.gmra.mxu0 %v7233
      %v7387 = vpop.f32.mrf.mxu0
      %v7388 = vadd.f32 0.0, %v7387
      %v7389 = vpop.f32.mrf.mxu0
      %v7390 = vpop.f32.mrf.mxu0
      %v7391 = vadd.f32 0.0, %v7390
      %v7392 = vpop.f32.mrf.mxu0
      %7393 = vmatprep.mubr.bf16.mxu0 0
      %7394 = vmatmul.mubr.bf16.gmra.mxu0 %v7236
      %v7395 = vpop.f32.mrf.mxu0
      %v7396 = vadd.f32 0.0, %v7395
      %v7397 = vpop.f32.mrf.mxu0
      %v7398 = vpop.f32.mrf.mxu0
      %v7399 = vadd.f32 0.0, %v7398
      %v7400 = vpop.f32.mrf.mxu0
      %7401 = vdwg.mxu0
      %v7402 = vadd.f32 %v6900, %v7276
      %v7403 = vadd.f32 %v6901, %v7279
      %v7404 = vadd.f32 %v6902, %v7284
      %v7405 = vadd.f32 %v6903, %v7287
      %v7406 = vadd.f32 %v6904, %v7292
      %v7407 = vadd.f32 %v6905, %v7295
      %v7408 = vadd.f32 %v6906, %v7300
      %v7409 = vadd.f32 %v6907, %v7303
      %v7410 = vadd.f32 %v6908, %v7308
      %v7411 = vadd.f32 %v6909, %v7311
      %v7412 = vadd.f32 %v6910, %v7316
      %v7413 = vadd.f32 %v6911, %v7319
      %v7414 = vadd.f32 %v6912, %v7324
      %v7415 = vadd.f32 %v6913, %v7327
      %v7416 = vadd.f32 %v6914, %v7332
      %v7417 = vadd.f32 %v6915, %v7335
      %v7418 = vadd.f32 %v6916, %v7340
      %v7419 = vadd.f32 %v6917, %v7343
      %v7420 = vadd.f32 %v6918, %v7348
      %v7421 = vadd.f32 %v6919, %v7351
      %v7422 = vadd.f32 %v6920, %v7356
      %v7423 = vadd.f32 %v6921, %v7359
      %v7424 = vadd.f32 %v6922, %v7364
      %v7425 = vadd.f32 %v6923, %v7367
      %v7426 = vadd.f32 %v6924, %v7372
      %v7427 = vadd.f32 %v6925, %v7375
      %v7428 = vadd.f32 %v6926, %v7380
      %v7429 = vadd.f32 %v6927, %v7383
      %v7430 = vadd.f32 %v6928, %v7388
      %v7431 = vadd.f32 %v6929, %v7391
      %v7432 = vadd.f32 %v6930, %v7396
      %v7433 = vadd.f32 %v6931, %v7399
      %v7434 = vadd.f32 %v7402, %v4258
      %v7435 = vadd.f32 %v7403, %v4258
      %v7436 = vadd.f32 %v7404, %v4258
      %v7437 = vadd.f32 %v7405, %v4258
      %v7438 = vadd.f32 %v7406, %v4258
      %v7439 = vadd.f32 %v7407, %v4258
      %v7440 = vadd.f32 %v7408, %v4258
      %v7441 = vadd.f32 %v7409, %v4258
      %v7442 = vadd.f32 %v7410, %v4258
      %v7443 = vadd.f32 %v7411, %v4258
      %v7444 = vadd.f32 %v7412, %v4258
      %v7445 = vadd.f32 %v7413, %v4258
      %v7446 = vadd.f32 %v7414, %v4258
      %v7447 = vadd.f32 %v7415, %v4258
      %v7448 = vadd.f32 %v7416, %v4258
      %v7449 = vadd.f32 %v7417, %v4258
      %v7450 = vadd.f32 %v7418, %v4258
      %v7451 = vadd.f32 %v7419, %v4258
      %v7452 = vadd.f32 %v7420, %v4258
      %v7453 = vadd.f32 %v7421, %v4258
      %v7454 = vadd.f32 %v7422, %v4258
      %v7455 = vadd.f32 %v7423, %v4258
      %v7456 = vadd.f32 %v7424, %v4258
      %v7457 = vadd.f32 %v7425, %v4258
      %v7458 = vadd.f32 %v7426, %v4258
      %v7459 = vadd.f32 %v7427, %v4258
      %v7460 = vadd.f32 %v7428, %v4258
      %v7461 = vadd.f32 %v7429, %v4258
      %v7462 = vadd.f32 %v7430, %v4258
      %v7463 = vadd.f32 %v7431, %v4258
      %v7464 = vadd.f32 %v7432, %v4258
      %v7465 = vadd.f32 %v7433, %v4258
      %s7466 = scalar_lea.vmem %s378, 16
      %7467 = vst.msk [vmem:[%s7466] sm:$0xff] %vm4292, %v7434
      %7468 = vst.msk [vmem:[%s7466 + $0x8] sm:$0xff] %vm4292, %v7435
      %7469 = vst.msk [vmem:[%s7466 + $0x20] sm:$0xff] %vm4292, %v7436
      %7470 = vst.msk [vmem:[%s7466 + $0x28] sm:$0xff] %vm4292, %v7437
      %7471 = vst.msk [vmem:[%s7466 + $0x40] sm:$0xff] %vm4292, %v7438
      %7472 = vst.msk [vmem:[%s7466 + $0x48] sm:$0xff] %vm4292, %v7439
      %7473 = vst.msk [vmem:[%s7466 + $0x60] sm:$0xff] %vm4292, %v7440
      %7474 = vst.msk [vmem:[%s7466 + $0x68] sm:$0xff] %vm4292, %v7441
      %7475 = vst.msk [vmem:[%s7466 + $0x80] sm:$0xff] %vm4292, %v7442
      %7476 = vst.msk [vmem:[%s7466 + $0x88] sm:$0xff] %vm4292, %v7443
      %7477 = vst.msk [vmem:[%s7466 + $0xa0] sm:$0xff] %vm4292, %v7444
      %7478 = vst.msk [vmem:[%s7466 + $0xa8] sm:$0xff] %vm4292, %v7445
      %7479 = vst.msk [vmem:[%s7466 + $0xc0] sm:$0xff] %vm4292, %v7446
      %7480 = vst.msk [vmem:[%s7466 + $0xc8] sm:$0xff] %vm4292, %v7447
      %7481 = vst.msk [vmem:[%s7466 + $0xe0] sm:$0xff] %vm4292, %v7448
      %7482 = vst.msk [vmem:[%s7466 + $0xe8] sm:$0xff] %vm4292, %v7449
      %7483 = vst.msk [vmem:[%s7466 + $0x100] sm:$0xff] %vm4292, %v7450
      %7484 = vst.msk [vmem:[%s7466 + $0x108] sm:$0xff] %vm4292, %v7451
      %7485 = vst.msk [vmem:[%s7466 + $0x120] sm:$0xff] %vm4292, %v7452
      %7486 = vst.msk [vmem:[%s7466 + $0x128] sm:$0xff] %vm4292, %v7453
      %7487 = vst.msk [vmem:[%s7466 + $0x140] sm:$0xff] %vm4292, %v7454
      %7488 = vst.msk [vmem:[%s7466 + $0x148] sm:$0xff] %vm4292, %v7455
      %7489 = vst.msk [vmem:[%s7466 + $0x160] sm:$0xff] %vm4292, %v7456
      %7490 = vst.msk [vmem:[%s7466 + $0x168] sm:$0xff] %vm4292, %v7457
      %7491 = vst.msk [vmem:[%s7466 + $0x180] sm:$0xff] %vm4292, %v7458
      %7492 = vst.msk [vmem:[%s7466 + $0x188] sm:$0xff] %vm4292, %v7459
      %7493 = vst.msk [vmem:[%s7466 + $0x1a0] sm:$0xff] %vm4292, %v7460
      %7494 = vst.msk [vmem:[%s7466 + $0x1a8] sm:$0xff] %vm4292, %v7461
      %7495 = vst.msk [vmem:[%s7466 + $0x1c0] sm:$0xff] %vm4292, %v7462
      %7496 = vst.msk [vmem:[%s7466 + $0x1c8] sm:$0xff] %vm4292, %v7463
      %7497 = vst.msk [vmem:[%s7466 + $0x1e0] sm:$0xff] %vm4292, %v7464
      %7498 = vst.msk [vmem:[%s7466 + $0x1e8] sm:$0xff] %vm4292, %v7465
      %s7499 = sadd.s32 %s20, %s21
      %s7500 = smul.u32 16, %s7499
      %p7501 = scmp.lt.s32.totalorder %s7500, 31
      %s7502 = scalar_select %p7501, %s7500, 31
      %s7503 = smul.addr %s7502, 4
      %s7504 = smul.addr %s7503, 8
      %s7505 = scalar_lea.vmem %s5, %s7504
      // Predicated region
      $region41: #{tpu_custom_call.1} parent=39 // pred_check
        %p7506 = pneg %p194
      $region42: #{tpu_custom_call.1} parent=39 // pred_check_branch
        %7508 = sbr.rel (%p7506) target = $region44
      $region43: #{tpu_custom_call.1} parent=39 // pred_region
        %s7509 = sadd.s32 %s20, %s21
        %s7510 = smul.u32 16, %s7509
      $region44: #{tpu_custom_call.1} parent=39 // pred_fallthru
        _
    $region40: #{tpu_custom_call.1} parent=5 // pred_fallthru
      _
    %p7511 = scmp.le.s32.totalorder 2, %s11
    // Predicated region
    $region45: #{tpu_custom_call.1} parent=5 // pred_check
      %p7512 = pneg %p7511
    $region46: #{tpu_custom_call.1} parent=5 // pred_check_branch
      %7514 = sbr.rel (%p7512) target = $region48
    $region47: #{tpu_custom_call.1} parent=5 // pred_region
      %s7515 = ssub.s32 %s11, 2
      // Predicated region
      $region49: #{tpu_custom_call.1} parent=47 // pred_check
        %p7516 = pneg %p200
      $region50: #{tpu_custom_call.1} parent=47 // pred_check_branch
        %7518 = sbr.rel (%p7516) target = $region52
      $region51: #{tpu_custom_call.1} parent=47 // pred_region
        %s7519 = sadd.s32 %s22, %s23
        %s7520 = smul.u32 16, %s7519
        %p7521 = scmp.lt.s32.totalorder %s7520, 31
        %s7522 = scalar_select %p7521, %s7520, 31
        %s7523 = smul.addr %s7522, 4
        %s7524 = smul.addr %s7523, 8
        %s7525 = scalar_lea.vmem %s5, %s7524
      $region52: #{tpu_custom_call.1} parent=47 // pred_fallthru
        _
    $region48: #{tpu_custom_call.1} parent=5 // pred_fallthru
      _
  $region6: #{tpu_custom_call.1} parent=0 // loop_footer
    %s15 = sadd.s32 1, %s11
  $region7: #{tpu_custom_call.1} parent=0 // loop_footer_branch
    %10 = sbr.rel target = $region3
  $region8: #{tpu_custom_call.1} parent=0 // loop_exit
    _

</llo_original>
